<compile_context>
chip_gen: v7x
topology: tpu7x:2x2x1
jax: 0.10.0
libtpu: 0.0.40
codegen_flags: <defaults>
</compile_context>

<pallas_src>
import functools
import math

import jax
import jax.numpy as jnp
from jax import lax
from jax.experimental import pallas as pl
from jax.experimental.pallas import tpu as pltpu

_VMEM_LIMIT = 64 * 1024 * 1024  # safe on v5e/v6e/v7x (physical 128/128/64 MiB)


# ----------------------------------------------------------------------------
# helpers
# ----------------------------------------------------------------------------

def _seq_tile(n, target=256):
    """Largest sequence tile <= target that divides n (multiple of 16 if tiled)."""
    if n <= target:
        return n
    for t in range(target, 15, -1):
        if n % t == 0 and t % 16 == 0:
            return t
    # TODO(synk): awkward N (no 16-multiple divisor) falls back to full-N
    # blocks; pad N in the caller for very long sequences.
    return n


def silu(x):
    return x * jax.nn.sigmoid(x)


def mish(x):
    return x * jnp.tanh(jax.nn.softplus(x))


def gelu_tanh(x):
    return 0.5 * x * (1.0 + jnp.tanh(0.7978845608028654 * (x + 0.044715 * x ** 3)))


def _ln_modulate(x, scale, shift, eps=1e-6):
    """LayerNorm (no affine) * (1 + scale) + shift, computed in f32."""
    mu = jnp.mean(x, axis=-1, keepdims=True)
    var = jnp.mean(jnp.square(x - mu), axis=-1, keepdims=True)
    xn = (x - mu) * lax.rsqrt(var + eps)
    return xn * (1.0 + scale) + shift


def _rotate_half_reg(x):
    """rotate_half on the last dim of an in-register value:
       (x0, x1, x2, x3, ...) -> (-x1, x0, -x3, x2, ...).
    Implemented with unambiguous static slices + concat (lane shifts)."""
    left = jnp.concatenate([x[..., 1:], x[..., :1]], axis=-1)    # x[j+1]
    right = jnp.concatenate([x[..., -1:], x[..., :-1]], axis=-1)  # x[j-1]
    lane = lax.broadcasted_iota(jnp.int32, x.shape, x.ndim - 1)
    return jnp.where(lane % 2 == 0, -left, right)


# ----------------------------------------------------------------------------
# Pallas kernels
# ----------------------------------------------------------------------------

def _mm_bias_kernel(x_ref, w_ref, b_ref, o_ref):
    acc = jnp.dot(x_ref[...], w_ref[...], preferred_element_type=jnp.float32)
    o_ref[...] = (acc + b_ref[...].astype(jnp.float32)).astype(o_ref.dtype)


def linear_pallas(x, w, b, *, tn=None):
    """y = x @ w + b over (B, N, Din) -> (B, N, Dout)."""
    B, N, Din = x.shape
    Dout = w.shape[1]
    tn = _seq_tile(N) if tn is None else tn
    return pl.pallas_call(
        _mm_bias_kernel,
        out_shape=jax.ShapeDtypeStruct((B, N, Dout), x.dtype),
        grid=(B, N // tn),
        in_specs=[
            pl.BlockSpec((None, tn, Din), lambda b, n: (b, n, 0)),
            pl.BlockSpec((Din, Dout), lambda b, n: (0, 0)),
            pl.BlockSpec((1, Dout), lambda b, n: (0, 0)),
        ],
        out_specs=pl.BlockSpec((None, tn, Dout), lambda b, n: (b, n, 0)),
        compiler_params=pltpu.CompilerParams(
            dimension_semantics=("parallel", "parallel"),
            vmem_limit_bytes=_VMEM_LIMIT),
    )(x, w, b.reshape(1, Dout))


def _adaln_qkv_rope_kernel(x_ref, sc_ref, sh_ref, wqkv_ref, bqkv_ref,
                           cos_ref, sin_ref, q_ref, k_ref, v_ref,
                           *, inner, dim_head):
    # LayerNorm + modulation in f32, matmul operands kept in the input dtype
    # (bf16 stays bf16 -> full MXU rate), f32 accumulate.
    xf = x_ref[...].astype(jnp.float32)
    h = _ln_modulate(xf, sc_ref[...].astype(jnp.float32),
                     sh_ref[...].astype(jnp.float32)).astype(x_ref.dtype)
    qkv = (jnp.dot(h, wqkv_ref[...], preferred_element_type=jnp.float32)
           + bqkv_ref[...].astype(jnp.float32))

    # RoPE on the first dim_head channels of q and k (nanospeech applies rotary
    # before the head split, so only the first head's channels are rotated).
    cos = cos_ref[...].astype(jnp.float32)            # (tn, dim_head)
    sin = sin_ref[...].astype(jnp.float32)
    tn = qkv.shape[0]
    if inner > dim_head:
        cos = jnp.concatenate(
            [cos, jnp.ones((tn, inner - dim_head), jnp.float32)], axis=-1)
        sin = jnp.concatenate(
            [sin, jnp.zeros((tn, inner - dim_head), jnp.float32)], axis=-1)

    qp = qkv[:, :inner]
    kp = qkv[:, inner:2 * inner]
    vp = qkv[:, 2 * inner:]
    q_ref[...] = (qp * cos + _rotate_half_reg(qp) * sin).astype(q_ref.dtype)
    k_ref[...] = (kp * cos + _rotate_half_reg(kp) * sin).astype(k_ref.dtype)
    v_ref[...] = vp.astype(v_ref.dtype)


def adaln_qkv_rope_pallas(x, scale, shift, wqkv, bqkv, cos_t, sin_t,
                          *, heads, dim_head, tn=None):
    """Fused: adaLN-Zero modulation -> single wide QKV matmul -> RoPE on q/k."""
    B, N, D = x.shape
    inner = heads * dim_head
    assert wqkv.shape == (D, 3 * inner)
    tn = _seq_tile(N) if tn is None else tn
    kern = functools.partial(_adaln_qkv_rope_kernel, inner=inner, dim_head=dim_head)
    x_spec = pl.BlockSpec((None, tn, D), lambda b, n: (b, n, 0))
    mod_spec = pl.BlockSpec((None, 1, D), lambda b, n: (b, 0, 0))
    rope_spec = pl.BlockSpec((tn, dim_head), lambda b, n: (n, 0))
    o_spec = pl.BlockSpec((None, tn, inner), lambda b, n: (b, n, 0))
    out_sd = jax.ShapeDtypeStruct((B, N, inner), x.dtype)
    return pl.pallas_call(
        kern,
        out_shape=(out_sd, out_sd, out_sd),
        grid=(B, N // tn),
        in_specs=[x_spec, mod_spec, mod_spec,
                  pl.BlockSpec((D, 3 * inner), lambda b, n: (0, 0)),
                  pl.BlockSpec((1, 3 * inner), lambda b, n: (0, 0)),
                  rope_spec, rope_spec],
        out_specs=(o_spec, o_spec, o_spec),
        compiler_params=pltpu.CompilerParams(
            dimension_semantics=("parallel", "parallel"),
            vmem_limit_bytes=_VMEM_LIMIT),
    )(x, scale.reshape(B, 1, D), shift.reshape(B, 1, D),
      wqkv, bqkv.reshape(1, 3 * inner), cos_t, sin_t)


def _attn_block_kernel(q_ref, k_ref, v_ref, wo_ref, g_ref, x_ref, o_ref,
                       *, heads, dim_head, sm_scale):
    # Heads are sliced in-register out of the (tq, heads*dim_head) layout, so
    # no 'b n (h d) -> b h n d' transpose ever touches HBM.  The attention
    # output is immediately projected by wo and added to the gated residual
    # while still in VMEM (no HBM round trip).
    # TODO(synk): flash-style KV tiling (online softmax over kv tiles) for very
    # long sequences; full-N K/V blocks are fine at demo / moderate N.
    q = q_ref[...]
    k = k_ref[...]
    v = v_ref[...]
    outs = []
    for hh in range(heads):
        lo = hh * dim_head
        qh = q[:, lo:lo + dim_head]
        kh = k[:, lo:lo + dim_head]
        vh = v[:, lo:lo + dim_head]
        # q @ k^T via dot_general dimension_numbers (no explicit transpose).
        s = lax.dot_general(qh, kh, (((1,), (1,)), ((), ())),
                            preferred_element_type=jnp.float32) * sm_scale
        m = jnp.max(s, axis=-1, keepdims=True)
        p = jnp.exp(s - m)
        l = jnp.sum(p, axis=-1, keepdims=True)
        o = jnp.dot(p.astype(v_ref.dtype), vh, preferred_element_type=jnp.float32)
        outs.append(o * pl.reciprocal(l, approx=True))
    attn = jnp.concatenate(outs, axis=-1).astype(x_ref.dtype)
    proj = jnp.dot(attn, wo_ref[...], preferred_element_type=jnp.float32)
    o_ref[...] = (x_ref[...].astype(jnp.float32)
                  + g_ref[...].astype(jnp.float32) * proj).astype(o_ref.dtype)


def mha_out_pallas(q, k, v, wo, gate, x, *, heads, tq=None):
    """Fused per-batch multi-head SDPA + out-projection + gated residual:
       out = x + gate * (softmax(q k^T / sqrt(d)) v) @ wo."""
    B, N, inner = q.shape
    D = wo.shape[1]
    dim_head = inner // heads
    tq = _seq_tile(N) if tq is None else tq
    kern = functools.partial(_attn_block_kernel, heads=heads, dim_head=dim_head,
                             sm_scale=1.0 / math.sqrt(dim_head))
    return pl.pallas_call(
        kern,
        out_shape=jax.ShapeDtypeStruct((B, N, D), x.dtype),
        grid=(B, N // tq),
        in_specs=[
            pl.BlockSpec((None, tq, inner), lambda b, n: (b, n, 0)),
            pl.BlockSpec((None, N, inner), lambda b, n: (b, 0, 0)),
            pl.BlockSpec((None, N, inner), lambda b, n: (b, 0, 0)),
            pl.BlockSpec((inner, D), lambda b, n: (0, 0)),
            pl.BlockSpec((None, 1, D), lambda b, n: (b, 0, 0)),
            pl.BlockSpec((None, tq, D), lambda b, n: (b, n, 0)),
        ],
        out_specs=pl.BlockSpec((None, tq, D), lambda b, n: (b, n, 0)),
        compiler_params=pltpu.CompilerParams(
            dimension_semantics=("parallel", "parallel"),
            vmem_limit_bytes=_VMEM_LIMIT),
    )(q, k, v, wo, gate.reshape(B, 1, D), x)


def _ff_block_kernel(x_ref, sc_ref, sh_ref, g_ref,
                     w1_ref, b1_ref, w2_ref, b2_ref, o_ref):
    xf = x_ref[...].astype(jnp.float32)
    h = _ln_modulate(xf, sc_ref[...].astype(jnp.float32),
                     sh_ref[...].astype(jnp.float32)).astype(x_ref.dtype)
    h = (jnp.dot(h, w1_ref[...], preferred_element_type=jnp.float32)
         + b1_ref[...].astype(jnp.float32))
    h = 0.5 * h * (1.0 + jnp.tanh(0.7978845608028654 * (h + 0.044715 * h * h * h)))
    y = (jnp.dot(h.astype(w2_ref.dtype), w2_ref[...],
                 preferred_element_type=jnp.float32)
         + b2_ref[...].astype(jnp.float32))
    o_ref[...] = (xf + g_ref[...].astype(jnp.float32) * y).astype(o_ref.dtype)


def ff_block_pallas(x, scale, shift, gate, w1, b1, w2, b2, *, tn=None):
    """Fused: x + gate * FFN(LN(x)*(1+scale)+shift), GELU-tanh activation."""
    # TODO(synk): on v7x at production dims, tile the F axis (or single-buffer
    # the constant weight blocks) to bound VMEM residency of w1/w2.
    B, N, D = x.shape
    F = w1.shape[1]
    tn = _seq_tile(N) if tn is None else tn
    return pl.pallas_call(
        _ff_block_kernel,
        out_shape=jax.ShapeDtypeStruct((B, N, D), x.dtype),
        grid=(B, N // tn),
        in_specs=[
            pl.BlockSpec((None, tn, D), lambda b, n: (b, n, 0)),
            pl.BlockSpec((None, 1, D), lambda b, n: (b, 0, 0)),
            pl.BlockSpec((None, 1, D), lambda b, n: (b, 0, 0)),
            pl.BlockSpec((None, 1, D), lambda b, n: (b, 0, 0)),
            pl.BlockSpec((D, F), lambda b, n: (0, 0)),
            pl.BlockSpec((1, F), lambda b, n: (0, 0)),
            pl.BlockSpec((F, D), lambda b, n: (0, 0)),
            pl.BlockSpec((1, D), lambda b, n: (0, 0)),
        ],
        out_specs=pl.BlockSpec((None, tn, D), lambda b, n: (b, n, 0)),
        compiler_params=pltpu.CompilerParams(
            dimension_semantics=("parallel", "parallel"),
            vmem_limit_bytes=_VMEM_LIMIT),
    )(x, scale.reshape(B, 1, D), shift.reshape(B, 1, D), gate.reshape(B, 1, D),
      w1, b1.reshape(1, F), w2, b2.reshape(1, D))


def _final_kernel(x_ref, sc_ref, sh_ref, w_ref, o_ref):
    xf = x_ref[...].astype(jnp.float32)
    h = _ln_modulate(xf, sc_ref[...].astype(jnp.float32),
                     sh_ref[...].astype(jnp.float32)).astype(x_ref.dtype)
    o_ref[...] = jnp.dot(h, w_ref[...],
                         preferred_element_type=jnp.float32).astype(o_ref.dtype)


def final_proj_pallas(x, scale, shift, w_out, *, tn=None):
    """AdaLayerNormZero_Final + proj_out (no bias) fused.
    Output channels padded to a multiple of 128 for lane-dense stores."""
    B, N, D = x.shape
    M = w_out.shape[1]
    Mp = ((M + 127) // 128) * 128
    if Mp != M:
        w_out = jnp.pad(w_out, ((0, 0), (0, Mp - M)))
    tn = _seq_tile(N) if tn is None else tn
    out = pl.pallas_call(
        _final_kernel,
        out_shape=jax.ShapeDtypeStruct((B, N, Mp), x.dtype),
        grid=(B, N // tn),
        in_specs=[
            pl.BlockSpec((None, tn, D), lambda b, n: (b, n, 0)),
            pl.BlockSpec((None, 1, D), lambda b, n: (b, 0, 0)),
            pl.BlockSpec((None, 1, D), lambda b, n: (b, 0, 0)),
            pl.BlockSpec((D, Mp), lambda b, n: (0, 0)),
        ],
        out_specs=pl.BlockSpec((None, tn, Mp), lambda b, n: (b, n, 0)),
        compiler_params=pltpu.CompilerParams(
            dimension_semantics=("parallel", "parallel"),
            vmem_limit_bytes=_VMEM_LIMIT),
    )(x, scale.reshape(B, 1, D), shift.reshape(B, 1, D), w_out)
    return out[:, :, :M] if Mp != M else out


# ----------------------------------------------------------------------------
# small XLA glue (tiny / elementwise pieces of the DiT forward)
# ----------------------------------------------------------------------------

def timestep_embed(time, tp, freq_embed_dim=256):
    half = freq_embed_dim // 2
    f = math.log(10000.0) / (half - 1)
    f = jnp.exp(jnp.arange(half, dtype=jnp.float32) * -f)
    ang = 1000.0 * time[:, None].astype(jnp.float32) * f[None, :]
    emb = jnp.concatenate([jnp.sin(ang), jnp.cos(ang)], axis=-1)
    h = silu(emb @ tp["w1"] + tp["b1"])
    return h @ tp["w2"] + tp["b2"]


def text_embed(text, seq_len, table, *, drop_text=False):
    # TODO(synk): conv_layers>0 (ConvNeXtV2 text blocks + freqs_cis pos-emb) not
    # implemented; the demo configuration uses conv_layers=0.
    text = text + 1
    text = text[:, :seq_len]
    pad = seq_len - text.shape[1]
    if pad > 0:
        text = jnp.pad(text, ((0, 0), (0, pad)))
    if drop_text:
        text = jnp.zeros_like(text)
    return jnp.take(table, text, axis=0)


def conv_pos_embed(x, ip):
    # Grouped Conv1d in NWC layout: the PyTorch 'b n d <-> b d n' permutes are
    # fused into the convolution -> no standalone transpose / HBM pass.
    # TODO(synk): grouped Conv1d kept in XLA (lax.conv_general_dilated), not Pallas.
    dn = ("NWC", "WIO", "NWC")
    k = ip["conv_w1"].shape[0]
    pad = [(k // 2, k // 2)]
    groups = ip["conv_w1"].shape[2] // ip["conv_w1"].shape[1]
    h = lax.conv_general_dilated(x, ip["conv_w1"], (1,), pad,
                                 dimension_numbers=dn,
                                 feature_group_count=groups) + ip["conv_b1"]
    h = mish(h)
    h = lax.conv_general_dilated(h, ip["conv_w2"], (1,), pad,
                                 dimension_numbers=dn,
                                 feature_group_count=groups) + ip["conv_b2"]
    return mish(h)


def rotary_freqs(seq_len, dim_head, theta=10000.0):
    inv_freq = 1.0 / (theta ** (jnp.arange(0, dim_head, 2, dtype=jnp.float32) / dim_head))
    t = jnp.arange(seq_len, dtype=jnp.float32)[None, :]
    freqs = t[..., None] * inv_freq                       # (1, N, dh/2)
    freqs = jnp.stack([freqs, freqs], axis=-1).reshape(1, seq_len, dim_head)
    return freqs


def rotate_half(x):
    shp = x.shape
    x = x.reshape(shp[:-1] + (shp[-1] // 2, 2))
    x1, x2 = x[..., 0], x[..., 1]
    return jnp.stack([-x2, x1], axis=-1).reshape(shp)


def apply_rotary(t, freqs, scale=1.0):
    # Matches nanospeech: rotary applied to the first rot_dim channels of the
    # concatenated-heads tensor (reference path only; kernels fuse this).
    rot_dim = freqs.shape[-1]
    seq_len = t.shape[-2]
    freqs = freqs[:, -seq_len:, :]
    t_rot, t_pass = t[..., :rot_dim], t[..., rot_dim:]
    t_rot = t_rot * jnp.cos(freqs) * scale + rotate_half(t_rot) * jnp.sin(freqs) * scale
    return jnp.concatenate([t_rot, t_pass], axis=-1).astype(t.dtype)


# ----------------------------------------------------------------------------
# DiT forward (Pallas-powered) and pure-JAX reference
# ----------------------------------------------------------------------------

def dit_forward(params, x, cond, text, time, *, heads, dim_head,
                drop_audio_cond=False, drop_text=False, mask=None):
    # TODO(synk): attention key-padding mask not wired into the Pallas kernels;
    # the demo / common inference path uses mask=None.
    assert mask is None
    B, N, _ = x.shape
    if time.ndim == 0:
        time = jnp.broadcast_to(time, (B,))
    t = timestep_embed(time, params["time"])
    te = text_embed(text, N, params["text_table"], drop_text=drop_text)
    if drop_audio_cond:
        cond = jnp.zeros_like(cond)

    ip = params["input"]
    h = linear_pallas(jnp.concatenate([x, cond, te], axis=-1),
                      ip["proj_w"], ip["proj_b"])
    h = conv_pos_embed(h, ip) + h

    freqs = rotary_freqs(N, dim_head)[0]            # (N, dim_head)
    cos_t = jnp.cos(freqs)
    sin_t = jnp.sin(freqs)

    for blk in params["blocks"]:
        mods = silu(t) @ blk["adaln_w"] + blk["adaln_b"]
        (shift_msa, scale_msa, gate_msa,
         shift_mlp, scale_mlp, gate_mlp) = jnp.split(mods, 6, axis=-1)
        q, k, v = adaln_qkv_rope_pallas(h, scale_msa, shift_msa,
                                        blk["wqkv"], blk["bqkv"], cos_t, sin_t,
                                        heads=heads, dim_head=dim_head)
        h = mha_out_pallas(q, k, v, blk["wo"], gate_msa, h, heads=heads)
        h = ff_block_pallas(h, scale_mlp, shift_mlp, gate_mlp,
                            blk["ff_w1"], blk["ff_b1"], blk["ff_w2"], blk["ff_b2"])

    sc, sh = jnp.split(silu(t) @ params["final_adaln_w"] + params["final_adaln_b"],
                       2, axis=-1)
    return final_proj_pallas(h, sc, sh, params["proj_out_w"])


def _layernorm(x, eps=1e-6):
    mu = jnp.mean(x, axis=-1, keepdims=True)
    var = jnp.mean(jnp.square(x - mu), axis=-1, keepdims=True)
    return (x - mu) * lax.rsqrt(var + eps)


def dit_forward_ref(params, x, cond, text, time, *, heads, dim_head,
                    drop_audio_cond=False, drop_text=False):
    B, N, _ = x.shape
    if time.ndim == 0:
        time = jnp.broadcast_to(time, (B,))
    t = timestep_embed(time, params["time"])
    te = text_embed(text, N, params["text_table"], drop_text=drop_text)
    if drop_audio_cond:
        cond = jnp.zeros_like(cond)
    ip = params["input"]
    h = jnp.concatenate([x, cond, te], axis=-1) @ ip["proj_w"] + ip["proj_b"]
    h = conv_pos_embed(h, ip) + h
    rope = rotary_freqs(N, dim_head)
    for blk in params["blocks"]:
        (shift_msa, scale_msa, gate_msa,
         shift_mlp, scale_mlp, gate_mlp) = jnp.split(
            silu(t) @ blk["adaln_w"] + blk["adaln_b"], 6, axis=-1)
        wq, wk, wv = jnp.split(blk["wqkv"], 3, axis=1)
        bq, bk, bv = jnp.split(blk["bqkv"], 3, axis=0)
        norm = _layernorm(h) * (1.0 + scale_msa[:, None]) + shift_msa[:, None]
        q = apply_rotary(norm @ wq + bq, rope)
        k = apply_rotary(norm @ wk + bk, rope)
        v = norm @ wv + bv
        qh = q.reshape(B, N, heads, dim_head).transpose(0, 2, 1, 3)
        kh = k.reshape(B, N, heads, dim_head).transpose(0, 2, 1, 3)
        vh = v.reshape(B, N, heads, dim_head).transpose(0, 2, 1, 3)
        s = jnp.einsum("bhnd,bhmd->bhnm", qh, kh) / math.sqrt(dim_head)
        p = jax.nn.softmax(s, axis=-1)
        o = jnp.einsum("bhnm,bhmd->bhnd", p, vh)
        o = o.transpose(0, 2, 1, 3).reshape(B, N, heads * dim_head)
        h = h + gate_msa[:, None] * (o @ blk["wo"])
        norm2 = _layernorm(h) * (1.0 + scale_mlp[:, None]) + shift_mlp[:, None]
        ff = gelu_tanh(norm2 @ blk["ff_w1"] + blk["ff_b1"]) @ blk["ff_w2"] + blk["ff_b2"]
        h = h + gate_mlp[:, None] * ff
    sc, sh = jnp.split(silu(t) @ params["final_adaln_w"] + params["final_adaln_b"],
                       2, axis=-1)
    h = _layernorm(h) * (1.0 + sc[:, None]) + sh[:, None]
    return h @ params["proj_out_w"]


# ----------------------------------------------------------------------------
# parameter init
# ----------------------------------------------------------------------------

def init_params(key, *, dim, depth, heads, dim_head, ff_mult, mel_dim, text_dim,
                text_num_embeds, freq_embed_dim=256, conv_kernel=31, conv_groups=16):
    keys = iter(jax.random.split(key, 256))

    def nrm(shape, s=0.05):
        return jax.random.normal(next(keys), shape, jnp.float32) * s

    inner = heads * dim_head
    ff_inner = dim * ff_mult
    params = {
        "time": {"w1": nrm((freq_embed_dim, dim)), "b1": nrm((dim,), 0.02),
                 "w2": nrm((dim, dim)), "b2": nrm((dim,), 0.02)},
        "text_table": nrm((text_num_embeds + 1, text_dim), 0.5),
        "input": {
            "proj_w": nrm((mel_dim * 2 + text_dim, dim)),
            "proj_b": nrm((dim,), 0.02),
            "conv_w1": nrm((conv_kernel, dim // conv_groups, dim)),
            "conv_b1": nrm((dim,), 0.02),
            "conv_w2": nrm((conv_kernel, dim // conv_groups, dim)),
            "conv_b2": nrm((dim,), 0.02),
        },
        "blocks": [],
        "final_adaln_w": nrm((dim, dim * 2)),
        "final_adaln_b": nrm((dim * 2,), 0.02),
        # NOTE: the PyTorch module zero-initializes proj_out; random weights are
        # used here so the final kernel is actually exercised (init-only diff).
        "proj_out_w": nrm((dim, mel_dim)),
    }
    for _ in range(depth):
        params["blocks"].append({
            "adaln_w": nrm((dim, dim * 6)), "adaln_b": nrm((dim * 6,), 0.02),
            # Q/K/V projection weights concatenated along the output dim.
            "wqkv": nrm((dim, 3 * inner)), "bqkv": nrm((3 * inner,), 0.02),
            "wo": nrm((inner, dim)),
            "ff_w1": nrm((dim, ff_inner)), "ff_b1": nrm((ff_inner,), 0.02),
            "ff_w2": nrm((ff_inner, dim)), "ff_b2": nrm((dim,), 0.02),
        })
    return params


# ----------------------------------------------------------------------------
# demo
# ----------------------------------------------------------------------------

if __name__ == "__main__":
    DIM, DEPTH, HEADS, DIM_HEAD = 64, 2, 4, 16
    FF_MULT, MEL, TEXT_DIM, VOCAB = 4, 16, 16, 8
    B, N, NT = 2, 16, 8

    key = jax.random.PRNGKey(0)
    kp, kx, kc, ktx, kt = jax.random.split(key, 5)
    params = init_params(kp, dim=DIM, depth=DEPTH, heads=HEADS, dim_head=DIM_HEAD,
                         ff_mult=FF_MULT, mel_dim=MEL, text_dim=TEXT_DIM,
                         text_num_embeds=VOCAB)

    x = jax.random.normal(kx, (B, N, MEL), jnp.float32)
    cond = jax.random.normal(kc, (B, N, MEL), jnp.float32)
    text = jax.random.randint(ktx, (B, NT), 0, VOCAB)
    time = jax.random.uniform(kt, (B,), jnp.float32)

    fwd = jax.jit(functools.partial(dit_forward, heads=HEADS, dim_head=DIM_HEAD))
    out = jax.block_until_ready(fwd(params, x, cond, text, time))

    ref = jax.block_until_ready(
        dit_forward_ref(params, x, cond, text, time, heads=HEADS, dim_head=DIM_HEAD))

    assert out.shape == (B, N, MEL), out.shape
    assert bool(jnp.all(jnp.isfinite(out)))
    max_err = float(jnp.max(jnp.abs(out - ref)))
    assert jnp.allclose(out, ref, atol=2e-2, rtol=2e-2), f"max abs err {max_err}"

    print("KERNEL_OK")
</pallas_src>

<mosaic_0001>
module attributes {stable_mosaic.version = 11 : i64} {
  func.func @_mm_bias_kernel(%arg0: i32, %arg1: i32, %arg2: memref<1x16x48xf32, #tpu.memory_space<vmem>>, %arg3: memref<48x64xf32, #tpu.memory_space<vmem>>, %arg4: memref<1x64xf32, #tpu.memory_space<vmem>>, %arg5: memref<1x16x64xf32, #tpu.memory_space<vmem>>) attributes {dimension_semantics = [#tpu.dimension_semantics<parallel>, #tpu.dimension_semantics<parallel>], iteration_bounds = array<i64: 2, 1>, scalar_prefetch = 0 : i64, scratch_operands = 0 : i64, tpu.core_type = #tpu.core_type<tc>, window_params = [{transform_indices = @transform_0, window_bounds = array<i64: 1, 16, 48>}, {pipeline_mode = #tpu.pipeline_mode<synchronous>, transform_indices = @transform_1, window_bounds = array<i64: 48, 64>}, {pipeline_mode = #tpu.pipeline_mode<synchronous>, transform_indices = @transform_2, window_bounds = array<i64: 1, 64>}, {transform_indices = @transform_3, window_bounds = array<i64: 1, 16, 64>}]} {
    %c0 = arith.constant 0 : index
    %c0_0 = arith.constant 0 : index
    %c0_1 = arith.constant 0 : index
    %0 = vector.load %arg2[%c0, %c0_0, %c0_1] : memref<1x16x48xf32, #tpu.memory_space<vmem>>, vector<1x16x48xf32>
    %1 = vector.shape_cast %0 : vector<1x16x48xf32> to vector<16x48xf32>
    %c0_2 = arith.constant 0 : index
    %c0_3 = arith.constant 0 : index
    %2 = vector.load %arg3[%c0_2, %c0_3] : memref<48x64xf32, #tpu.memory_space<vmem>>, vector<48x64xf32>
    %cst = arith.constant dense<0.000000e+00> : vector<16x64xf32>
    %3 = tpu.matmul %1, %2, %cst {dimension_numbers = #tpu.dot_dimension_numbers<[1], [0], [0], [1], [0, 0, 1, 1], [], []>} : vector<16x48xf32>, vector<48x64xf32>, vector<16x64xf32> -> vector<16x64xf32>
    %c0_4 = arith.constant 0 : index
    %c0_5 = arith.constant 0 : index
    %4 = vector.load %arg4[%c0_4, %c0_5] : memref<1x64xf32, #tpu.memory_space<vmem>>, vector<1x64xf32>
    %5 = vector.broadcast %4 : vector<1x64xf32> to vector<16x64xf32>
    %6 = arith.addf %3, %5 : vector<16x64xf32>
    %c0_6 = arith.constant 0 : index
    %c0_7 = arith.constant 0 : index
    %c0_8 = arith.constant 0 : index
    %7 = vector.load %arg5[%c0_6, %c0_7, %c0_8] : memref<1x16x64xf32, #tpu.memory_space<vmem>>, vector<1x16x64xf32>
    %8 = vector.shape_cast %7 : vector<1x16x64xf32> to vector<16x64xf32>
    %9 = vector.shape_cast %6 : vector<16x64xf32> to vector<1x16x64xf32>
    tpu.vector_store %arg5[%c0_6, %c0_7, %c0_8], %9 {strides = array<i32>} : memref<1x16x64xf32, #tpu.memory_space<vmem>>, vector<1x16x64xf32>,
    return
  }
  func.func @transform_0(%arg0: i32, %arg1: i32) -> (i32, i32, i32) {
    %c0_i32 = arith.constant 0 : i32
    %c0_i32_0 = arith.constant 0 : i32
    return %arg0, %arg1, %c0_i32 : i32, i32, i32
  }
  func.func @transform_1(%arg0: i32, %arg1: i32) -> (i32, i32) {
    %c0_i32 = arith.constant 0 : i32
    %c0_i32_0 = arith.constant 0 : i32
    %c0_i32_1 = arith.constant 0 : i32
    return %c0_i32, %c0_i32_0 : i32, i32
  }
  func.func @transform_2(%arg0: i32, %arg1: i32) -> (i32, i32) {
    %c0_i32 = arith.constant 0 : i32
    %c0_i32_0 = arith.constant 0 : i32
    %c0_i32_1 = arith.constant 0 : i32
    return %c0_i32, %c0_i32_0 : i32, i32
  }
  func.func @transform_3(%arg0: i32, %arg1: i32) -> (i32, i32, i32) {
    %c0_i32 = arith.constant 0 : i32
    %c0_i32_0 = arith.constant 0 : i32
    return %arg0, %arg1, %c0_i32 : i32, i32, i32
  }
}

module attributes {stable_mosaic.version = 11 : i64} {
  func.func @_adaln_qkv_rope_kernel(%arg0: i32, %arg1: i32, %arg2: memref<1x16x64xf32, #tpu.memory_space<vmem>>, %arg3: memref<1x1x64xf32, #tpu.memory_space<vmem>>, %arg4: memref<1x1x64xf32, #tpu.memory_space<vmem>>, %arg5: memref<64x192xf32, #tpu.memory_space<vmem>>, %arg6: memref<1x192xf32, #tpu.memory_space<vmem>>, %arg7: memref<16x16xf32, #tpu.memory_space<vmem>>, %arg8: memref<16x16xf32, #tpu.memory_space<vmem>>, %arg9: memref<1x16x64xf32, #tpu.memory_space<vmem>>, %arg10: memref<1x16x64xf32, #tpu.memory_space<vmem>>, %arg11: memref<1x16x64xf32, #tpu.memory_space<vmem>>) attributes {dimension_semantics = [#tpu.dimension_semantics<parallel>, #tpu.dimension_semantics<parallel>], iteration_bounds = array<i64: 2, 1>, scalar_prefetch = 0 : i64, scratch_operands = 0 : i64, tpu.core_type = #tpu.core_type<tc>, window_params = [{transform_indices = @transform_0, window_bounds = array<i64: 1, 16, 64>}, {transform_indices = @transform_1, window_bounds = array<i64: 1, 1, 64>}, {transform_indices = @transform_2, window_bounds = array<i64: 1, 1, 64>}, {pipeline_mode = #tpu.pipeline_mode<synchronous>, transform_indices = @transform_3, window_bounds = array<i64: 64, 192>}, {pipeline_mode = #tpu.pipeline_mode<synchronous>, transform_indices = @transform_4, window_bounds = array<i64: 1, 192>}, {transform_indices = @transform_5, window_bounds = array<i64: 16, 16>}, {transform_indices = @transform_6, window_bounds = array<i64: 16, 16>}, {transform_indices = @transform_7, window_bounds = array<i64: 1, 16, 64>}, {transform_indices = @transform_8, window_bounds = array<i64: 1, 16, 64>}, {transform_indices = @transform_9, window_bounds = array<i64: 1, 16, 64>}]} {
    %c0 = arith.constant 0 : index
    %c0_0 = arith.constant 0 : index
    %c0_1 = arith.constant 0 : index
    %0 = vector.load %arg2[%c0, %c0_0, %c0_1] : memref<1x16x64xf32, #tpu.memory_space<vmem>>, vector<1x16x64xf32>
    %1 = vector.shape_cast %0 : vector<1x16x64xf32> to vector<16x64xf32>
    %c0_2 = arith.constant 0 : index
    %c0_3 = arith.constant 0 : index
    %c0_4 = arith.constant 0 : index
    %2 = vector.load %arg3[%c0_2, %c0_3, %c0_4] : memref<1x1x64xf32, #tpu.memory_space<vmem>>, vector<1x1x64xf32>
    %3 = vector.shape_cast %2 : vector<1x1x64xf32> to vector<1x64xf32>
    %c0_5 = arith.constant 0 : index
    %c0_6 = arith.constant 0 : index
    %c0_7 = arith.constant 0 : index
    %4 = vector.load %arg4[%c0_5, %c0_6, %c0_7] : memref<1x1x64xf32, #tpu.memory_space<vmem>>, vector<1x1x64xf32>
    %5 = vector.shape_cast %4 : vector<1x1x64xf32> to vector<1x64xf32>
    %cst = arith.constant dense<0.000000e+00> : vector<16xf32>
    %6 = vector.multi_reduction <add>, %1, %cst [1] : vector<16x64xf32> to vector<16xf32>
    %7 = vector.shape_cast %6 : vector<16xf32> to vector<16x1xf32>
    %cst_8 = arith.constant 6.400000e+01 : f32
    %8 = vector.broadcast %cst_8 : f32 to vector<16x1xf32>
    %9 = arith.divf %7, %8 : vector<16x1xf32>
    %10 = vector.broadcast %9 : vector<16x1xf32> to vector<16x64xf32>
    %11 = arith.subf %1, %10 : vector<16x64xf32>
    %12 = arith.mulf %11, %11 : vector<16x64xf32>
    %cst_9 = arith.constant dense<0.000000e+00> : vector<16xf32>
    %13 = vector.multi_reduction <add>, %12, %cst_9 [1] : vector<16x64xf32> to vector<16xf32>
    %14 = vector.shape_cast %13 : vector<16xf32> to vector<16x1xf32>
    %cst_10 = arith.constant 6.400000e+01 : f32
    %15 = vector.broadcast %cst_10 : f32 to vector<16x1xf32>
    %16 = arith.divf %14, %15 : vector<16x1xf32>
    %17 = vector.broadcast %9 : vector<16x1xf32> to vector<16x64xf32>
    %18 = arith.subf %1, %17 : vector<16x64xf32>
    %cst_11 = arith.constant 9.99999997E-7 : f32
    %19 = vector.broadcast %cst_11 : f32 to vector<16x1xf32>
    %20 = arith.addf %16, %19 : vector<16x1xf32>
    %21 = math.rsqrt %20 : vector<16x1xf32>
    %22 = vector.broadcast %21 : vector<16x1xf32> to vector<16x64xf32>
    %23 = arith.mulf %18, %22 : vector<16x64xf32>
    %cst_12 = arith.constant 1.000000e+00 : f32
    %24 = vector.broadcast %cst_12 : f32 to vector<1x64xf32>
    %25 = arith.addf %24, %3 : vector<1x64xf32>
    %26 = vector.broadcast %25 : vector<1x64xf32> to vector<16x64xf32>
    %27 = arith.mulf %23, %26 : vector<16x64xf32>
    %28 = vector.broadcast %5 : vector<1x64xf32> to vector<16x64xf32>
    %29 = arith.addf %27, %28 : vector<16x64xf32>
    %c0_13 = arith.constant 0 : index
    %c0_14 = arith.constant 0 : index
    %30 = vector.load %arg5[%c0_13, %c0_14] : memref<64x192xf32, #tpu.memory_space<vmem>>, vector<64x192xf32>
    %cst_15 = arith.constant dense<0.000000e+00> : vector<16x192xf32>
    %31 = tpu.matmul %29, %30, %cst_15 {dimension_numbers = #tpu.dot_dimension_numbers<[1], [0], [0], [1], [0, 0, 1, 1], [], []>} : vector<16x64xf32>, vector<64x192xf32>, vector<16x192xf32> -> vector<16x192xf32>
    %c0_16 = arith.constant 0 : index
    %c0_17 = arith.constant 0 : index
    %32 = vector.load %arg6[%c0_16, %c0_17] : memref<1x192xf32, #tpu.memory_space<vmem>>, vector<1x192xf32>
    %33 = vector.broadcast %32 : vector<1x192xf32> to vector<16x192xf32>
    %34 = arith.addf %31, %33 : vector<16x192xf32>
    %c0_18 = arith.constant 0 : index
    %c0_19 = arith.constant 0 : index
    %35 = vector.load %arg7[%c0_18, %c0_19] : memref<16x16xf32, #tpu.memory_space<vmem>>, vector<16x16xf32>
    %c0_20 = arith.constant 0 : index
    %c0_21 = arith.constant 0 : index
    %36 = vector.load %arg8[%c0_20, %c0_21] : memref<16x16xf32, #tpu.memory_space<vmem>>, vector<16x16xf32>
    %cst_22 = arith.constant 1.000000e+00 : f32
    %37 = vector.broadcast %cst_22 : f32 to vector<16x48xf32>
    %38 = tpu.concatenate %35, %37 in 1 : vector<16x16xf32>, vector<16x48xf32> -> vector<16x64xf32>
    %cst_23 = arith.constant 0.000000e+00 : f32
    %39 = vector.broadcast %cst_23 : f32 to vector<16x48xf32>
    %40 = tpu.concatenate %36, %39 in 1 : vector<16x16xf32>, vector<16x48xf32> -> vector<16x64xf32>
    %41 = vector.extract_strided_slice %34 {offsets = [0, 0], sizes = [16, 64], strides = [1, 1]} : vector<16x192xf32> to vector<16x64xf32>
    %42 = vector.extract_strided_slice %34 {offsets = [0, 64], sizes = [16, 64], strides = [1, 1]} : vector<16x192xf32> to vector<16x64xf32>
    %43 = vector.extract_strided_slice %34 {offsets = [0, 128], sizes = [16, 64], strides = [1, 1]} : vector<16x192xf32> to vector<16x64xf32>
    %44 = arith.mulf %41, %38 : vector<16x64xf32>
    %45 = vector.extract_strided_slice %41 {offsets = [0, 1], sizes = [16, 63], strides = [1, 1]} : vector<16x64xf32> to vector<16x63xf32>
    %46 = vector.extract_strided_slice %41 {offsets = [0, 0], sizes = [16, 1], strides = [1, 1]} : vector<16x64xf32> to vector<16x1xf32>
    %47 = tpu.concatenate %45, %46 in 1 : vector<16x63xf32>, vector<16x1xf32> -> vector<16x64xf32>
    %48 = vector.extract_strided_slice %41 {offsets = [0, 63], sizes = [16, 1], strides = [1, 1]} : vector<16x64xf32> to vector<16x1xf32>
    %49 = vector.extract_strided_slice %41 {offsets = [0, 0], sizes = [16, 63], strides = [1, 1]} : vector<16x64xf32> to vector<16x63xf32>
    %50 = tpu.concatenate %48, %49 in 1 : vector<16x1xf32>, vector<16x63xf32> -> vector<16x64xf32>
    %51 = tpu.iota {dimensions = array<i32: 1>} : vector<16x64xi32>
    %c2_i32 = arith.constant 2 : i32
    %c0_i32 = arith.constant 0 : i32
    %52 = arith.cmpi eq, %c2_i32, %c0_i32 : i32
    %c1_i32 = arith.constant 1 : i32
    %53 = arith.select %52, %c1_i32, %c2_i32 : i32
    %54 = vector.broadcast %53 : i32 to vector<16x64xi32>
    %55 = arith.remsi %51, %54 : vector<16x64xi32>
    %c0_i32_24 = arith.constant 0 : i32
    %56 = vector.broadcast %c0_i32_24 : i32 to vector<16x64xi32>
    %57 = arith.cmpi ne, %55, %56 : vector<16x64xi32>
    %c0_i32_25 = arith.constant 0 : i32
    %58 = vector.broadcast %c0_i32_25 : i32 to vector<16x64xi32>
    %59 = arith.cmpi slt, %55, %58 : vector<16x64xi32>
    %c0_i32_26 = arith.constant 0 : i32
    %60 = arith.cmpi slt, %53, %c0_i32_26 : i32
    %61 = vector.broadcast %60 : i1 to vector<16x64xi1>
    %62 = vector.broadcast %61 : vector<16x64xi1> to vector<16x64xi1>
    %63 = arith.xori %59, %62 : vector<16x64xi1>
    %64 = arith.andi %63, %57 : vector<16x64xi1>
    %65 = vector.broadcast %53 : i32 to vector<16x64xi32>
    %66 = arith.addi %55, %65 : vector<16x64xi32>
    %67 = arith.select %64, %66, %55 : vector<16x64xi1>, vector<16x64xi32>
    %c0_i32_27 = arith.constant 0 : i32
    %68 = vector.broadcast %c0_i32_27 : i32 to vector<16x64xi32>
    %69 = arith.cmpi eq, %67, %68 : vector<16x64xi32>
    %cst_28 = arith.constant 0.000000e+00 : f32
    %70 = vector.broadcast %cst_28 : f32 to vector<16x64xf32>
    %71 = arith.subf %70, %47 : vector<16x64xf32>
    %72 = arith.select %69, %71, %50 : vector<16x64xi1>, vector<16x64xf32>
    %73 = arith.mulf %72, %40 : vector<16x64xf32>
    %74 = arith.addf %44, %73 : vector<16x64xf32>
    %c0_29 = arith.constant 0 : index
    %c0_30 = arith.constant 0 : index
    %c0_31 = arith.constant 0 : index
    %75 = vector.load %arg9[%c0_29, %c0_30, %c0_31] : memref<1x16x64xf32, #tpu.memory_space<vmem>>, vector<1x16x64xf32>
    %76 = vector.shape_cast %75 : vector<1x16x64xf32> to vector<16x64xf32>
    %77 = vector.shape_cast %74 : vector<16x64xf32> to vector<1x16x64xf32>
    tpu.vector_store %arg9[%c0_29, %c0_30, %c0_31], %77 {strides = array<i32>} : memref<1x16x64xf32, #tpu.memory_space<vmem>>, vector<1x16x64xf32>,
    %78 = arith.mulf %42, %38 : vector<16x64xf32>
    %79 = vector.extract_strided_slice %42 {offsets = [0, 1], sizes = [16, 63], strides = [1, 1]} : vector<16x64xf32> to vector<16x63xf32>
    %80 = vector.extract_strided_slice %42 {offsets = [0, 0], sizes = [16, 1], strides = [1, 1]} : vector<16x64xf32> to vector<16x1xf32>
    %81 = tpu.concatenate %79, %80 in 1 : vector<16x63xf32>, vector<16x1xf32> -> vector<16x64xf32>
    %82 = vector.extract_strided_slice %42 {offsets = [0, 63], sizes = [16, 1], strides = [1, 1]} : vector<16x64xf32> to vector<16x1xf32>
    %83 = vector.extract_strided_slice %42 {offsets = [0, 0], sizes = [16, 63], strides = [1, 1]} : vector<16x64xf32> to vector<16x63xf32>
    %84 = tpu.concatenate %82, %83 in 1 : vector<16x1xf32>, vector<16x63xf32> -> vector<16x64xf32>
    %85 = tpu.iota {dimensions = array<i32: 1>} : vector<16x64xi32>
    %c2_i32_32 = arith.constant 2 : i32
    %c0_i32_33 = arith.constant 0 : i32
    %86 = arith.cmpi eq, %c2_i32_32, %c0_i32_33 : i32
    %c1_i32_34 = arith.constant 1 : i32
    %87 = arith.select %86, %c1_i32_34, %c2_i32_32 : i32
    %88 = vector.broadcast %87 : i32 to vector<16x64xi32>
    %89 = arith.remsi %85, %88 : vector<16x64xi32>
    %c0_i32_35 = arith.constant 0 : i32
    %90 = vector.broadcast %c0_i32_35 : i32 to vector<16x64xi32>
    %91 = arith.cmpi ne, %89, %90 : vector<16x64xi32>
    %c0_i32_36 = arith.constant 0 : i32
    %92 = vector.broadcast %c0_i32_36 : i32 to vector<16x64xi32>
    %93 = arith.cmpi slt, %89, %92 : vector<16x64xi32>
    %c0_i32_37 = arith.constant 0 : i32
    %94 = arith.cmpi slt, %87, %c0_i32_37 : i32
    %95 = vector.broadcast %94 : i1 to vector<16x64xi1>
    %96 = vector.broadcast %95 : vector<16x64xi1> to vector<16x64xi1>
    %97 = arith.xori %93, %96 : vector<16x64xi1>
    %98 = arith.andi %97, %91 : vector<16x64xi1>
    %99 = vector.broadcast %87 : i32 to vector<16x64xi32>
    %100 = arith.addi %89, %99 : vector<16x64xi32>
    %101 = arith.select %98, %100, %89 : vector<16x64xi1>, vector<16x64xi32>
    %c0_i32_38 = arith.constant 0 : i32
    %102 = vector.broadcast %c0_i32_38 : i32 to vector<16x64xi32>
    %103 = arith.cmpi eq, %101, %102 : vector<16x64xi32>
    %cst_39 = arith.constant 0.000000e+00 : f32
    %104 = vector.broadcast %cst_39 : f32 to vector<16x64xf32>
    %105 = arith.subf %104, %81 : vector<16x64xf32>
    %106 = arith.select %103, %105, %84 : vector<16x64xi1>, vector<16x64xf32>
    %107 = arith.mulf %106, %40 : vector<16x64xf32>
    %108 = arith.addf %78, %107 : vector<16x64xf32>
    %c0_40 = arith.constant 0 : index
    %c0_41 = arith.constant 0 : index
    %c0_42 = arith.constant 0 : index
    %109 = vector.load %arg10[%c0_40, %c0_41, %c0_42] : memref<1x16x64xf32, #tpu.memory_space<vmem>>, vector<1x16x64xf32>
    %110 = vector.shape_cast %109 : vector<1x16x64xf32> to vector<16x64xf32>
    %111 = vector.shape_cast %108 : vector<16x64xf32> to vector<1x16x64xf32>
    tpu.vector_store %arg10[%c0_40, %c0_41, %c0_42], %111 {strides = array<i32>} : memref<1x16x64xf32, #tpu.memory_space<vmem>>, vector<1x16x64xf32>,
    %c0_43 = arith.constant 0 : index
    %c0_44 = arith.constant 0 : index
    %c0_45 = arith.constant 0 : index
    %112 = vector.load %arg11[%c0_43, %c0_44, %c0_45] : memref<1x16x64xf32, #tpu.memory_space<vmem>>, vector<1x16x64xf32>
    %113 = vector.shape_cast %112 : vector<1x16x64xf32> to vector<16x64xf32>
    %114 = vector.shape_cast %43 : vector<16x64xf32> to vector<1x16x64xf32>
    tpu.vector_store %arg11[%c0_43, %c0_44, %c0_45], %114 {strides = array<i32>} : memref<1x16x64xf32, #tpu.memory_space<vmem>>, vector<1x16x64xf32>,
    return
  }
  func.func @transform_0(%arg0: i32, %arg1: i32) -> (i32, i32, i32) {
    %c0_i32 = arith.constant 0 : i32
    %c0_i32_0 = arith.constant 0 : i32
    return %arg0, %arg1, %c0_i32 : i32, i32, i32
  }
  func.func @transform_1(%arg0: i32, %arg1: i32) -> (i32, i32, i32) {
    %c0_i32 = arith.constant 0 : i32
    %c0_i32_0 = arith.constant 0 : i32
    %c0_i32_1 = arith.constant 0 : i32
    return %arg0, %c0_i32, %c0_i32_0 : i32, i32, i32
  }
  func.func @transform_2(%arg0: i32, %arg1: i32) -> (i32, i32, i32) {
    %c0_i32 = arith.constant 0 : i32
    %c0_i32_0 = arith.constant 0 : i32
    %c0_i32_1 = arith.constant 0 : i32
    return %arg0, %c0_i32, %c0_i32_0 : i32, i32, i32
  }
  func.func @transform_3(%arg0: i32, %arg1: i32) -> (i32, i32) {
    %c0_i32 = arith.constant 0 : i32
    %c0_i32_0 = arith.constant 0 : i32
    %c0_i32_1 = arith.constant 0 : i32
    return %c0_i32, %c0_i32_0 : i32, i32
  }
  func.func @transform_4(%arg0: i32, %arg1: i32) -> (i32, i32) {
    %c0_i32 = arith.constant 0 : i32
    %c0_i32_0 = arith.constant 0 : i32
    %c0_i32_1 = arith.constant 0 : i32
    return %c0_i32, %c0_i32_0 : i32, i32
  }
  func.func @transform_5(%arg0: i32, %arg1: i32) -> (i32, i32) {
    %c0_i32 = arith.constant 0 : i32
    %c0_i32_0 = arith.constant 0 : i32
    return %arg1, %c0_i32 : i32, i32
  }
  func.func @transform_6(%arg0: i32, %arg1: i32) -> (i32, i32) {
    %c0_i32 = arith.constant 0 : i32
    %c0_i32_0 = arith.constant 0 : i32
    return %arg1, %c0_i32 : i32, i32
  }
  func.func @transform_7(%arg0: i32, %arg1: i32) -> (i32, i32, i32) {
    %c0_i32 = arith.constant 0 : i32
    %c0_i32_0 = arith.constant 0 : i32
    return %arg0, %arg1, %c0_i32 : i32, i32, i32
  }
  func.func @transform_8(%arg0: i32, %arg1: i32) -> (i32, i32, i32) {
    %c0_i32 = arith.constant 0 : i32
    %c0_i32_0 = arith.constant 0 : i32
    return %arg0, %arg1, %c0_i32 : i32, i32, i32
  }
  func.func @transform_9(%arg0: i32, %arg1: i32) -> (i32, i32, i32) {
    %c0_i32 = arith.constant 0 : i32
    %c0_i32_0 = arith.constant 0 : i32
    return %arg0, %arg1, %c0_i32 : i32, i32, i32
  }
}

module attributes {stable_mosaic.version = 11 : i64} {
  func.func @_attn_block_kernel(%arg0: i32, %arg1: i32, %arg2: memref<1x16x64xf32, #tpu.memory_space<vmem>>, %arg3: memref<1x16x64xf32, #tpu.memory_space<vmem>>, %arg4: memref<1x16x64xf32, #tpu.memory_space<vmem>>, %arg5: memref<64x64xf32, #tpu.memory_space<vmem>>, %arg6: memref<1x1x64xf32, #tpu.memory_space<vmem>>, %arg7: memref<1x16x64xf32, #tpu.memory_space<vmem>>, %arg8: memref<1x16x64xf32, #tpu.memory_space<vmem>>) attributes {dimension_semantics = [#tpu.dimension_semantics<parallel>, #tpu.dimension_semantics<parallel>], iteration_bounds = array<i64: 2, 1>, scalar_prefetch = 0 : i64, scratch_operands = 0 : i64, tpu.core_type = #tpu.core_type<tc>, window_params = [{transform_indices = @transform_0, window_bounds = array<i64: 1, 16, 64>}, {transform_indices = @transform_1, window_bounds = array<i64: 1, 16, 64>}, {transform_indices = @transform_2, window_bounds = array<i64: 1, 16, 64>}, {pipeline_mode = #tpu.pipeline_mode<synchronous>, transform_indices = @transform_3, window_bounds = array<i64: 64, 64>}, {transform_indices = @transform_4, window_bounds = array<i64: 1, 1, 64>}, {transform_indices = @transform_5, window_bounds = array<i64: 1, 16, 64>}, {transform_indices = @transform_6, window_bounds = array<i64: 1, 16, 64>}]} {
    %c0 = arith.constant 0 : index
    %c0_0 = arith.constant 0 : index
    %c0_1 = arith.constant 0 : index
    %0 = vector.load %arg2[%c0, %c0_0, %c0_1] : memref<1x16x64xf32, #tpu.memory_space<vmem>>, vector<1x16x64xf32>
    %1 = vector.shape_cast %0 : vector<1x16x64xf32> to vector<16x64xf32>
    %c0_2 = arith.constant 0 : index
    %c0_3 = arith.constant 0 : index
    %c0_4 = arith.constant 0 : index
    %2 = vector.load %arg3[%c0_2, %c0_3, %c0_4] : memref<1x16x64xf32, #tpu.memory_space<vmem>>, vector<1x16x64xf32>
    %3 = vector.shape_cast %2 : vector<1x16x64xf32> to vector<16x64xf32>
    %c0_5 = arith.constant 0 : index
    %c0_6 = arith.constant 0 : index
    %c0_7 = arith.constant 0 : index
    %4 = vector.load %arg4[%c0_5, %c0_6, %c0_7] : memref<1x16x64xf32, #tpu.memory_space<vmem>>, vector<1x16x64xf32>
    %5 = vector.shape_cast %4 : vector<1x16x64xf32> to vector<16x64xf32>
    %6 = vector.extract_strided_slice %1 {offsets = [0, 0], sizes = [16, 16], strides = [1, 1]} : vector<16x64xf32> to vector<16x16xf32>
    %7 = vector.extract_strided_slice %3 {offsets = [0, 0], sizes = [16, 16], strides = [1, 1]} : vector<16x64xf32> to vector<16x16xf32>
    %8 = vector.extract_strided_slice %5 {offsets = [0, 0], sizes = [16, 16], strides = [1, 1]} : vector<16x64xf32> to vector<16x16xf32>
    %cst = arith.constant dense<0.000000e+00> : vector<16x16xf32>
    %9 = tpu.matmul %6, %7, %cst {dimension_numbers = #tpu.dot_dimension_numbers<[1], [1], [0], [0], [0, 0, 1, 0], [], []>} : vector<16x16xf32>, vector<16x16xf32>, vector<16x16xf32> -> vector<16x16xf32>
    %cst_8 = arith.constant 2.500000e-01 : f32
    %10 = vector.broadcast %cst_8 : f32 to vector<16x16xf32>
    %11 = arith.mulf %9, %10 : vector<16x16xf32>
    %cst_9 = arith.constant dense<0xFF800000> : vector<16xf32>
    %12 = vector.multi_reduction <maximumf>, %11, %cst_9 [1] : vector<16x16xf32> to vector<16xf32>
    %13 = vector.shape_cast %12 : vector<16xf32> to vector<16x1xf32>
    %14 = vector.broadcast %13 : vector<16x1xf32> to vector<16x16xf32>
    %15 = arith.subf %11, %14 : vector<16x16xf32>
    %16 = math.exp %15 : vector<16x16xf32>
    %cst_10 = arith.constant dense<0.000000e+00> : vector<16xf32>
    %17 = vector.multi_reduction <add>, %16, %cst_10 [1] : vector<16x16xf32> to vector<16xf32>
    %18 = vector.shape_cast %17 : vector<16xf32> to vector<16x1xf32>
    %cst_11 = arith.constant dense<0.000000e+00> : vector<16x16xf32>
    %19 = tpu.matmul %16, %8, %cst_11 {dimension_numbers = #tpu.dot_dimension_numbers<[1], [0], [0], [1], [0, 0, 1, 1], [], []>} : vector<16x16xf32>, vector<16x16xf32>, vector<16x16xf32> -> vector<16x16xf32>
    %20 = tpu.reciprocal %18 {approx = true} : vector<16x1xf32> -> vector<16x1xf32>
    %21 = vector.broadcast %20 : vector<16x1xf32> to vector<16x16xf32>
    %22 = arith.mulf %19, %21 : vector<16x16xf32>
    %23 = vector.extract_strided_slice %1 {offsets = [0, 16], sizes = [16, 16], strides = [1, 1]} : vector<16x64xf32> to vector<16x16xf32>
    %24 = vector.extract_strided_slice %3 {offsets = [0, 16], sizes = [16, 16], strides = [1, 1]} : vector<16x64xf32> to vector<16x16xf32>
    %25 = vector.extract_strided_slice %5 {offsets = [0, 16], sizes = [16, 16], strides = [1, 1]} : vector<16x64xf32> to vector<16x16xf32>
    %cst_12 = arith.constant dense<0.000000e+00> : vector<16x16xf32>
    %26 = tpu.matmul %23, %24, %cst_12 {dimension_numbers = #tpu.dot_dimension_numbers<[1], [1], [0], [0], [0, 0, 1, 0], [], []>} : vector<16x16xf32>, vector<16x16xf32>, vector<16x16xf32> -> vector<16x16xf32>
    %cst_13 = arith.constant 2.500000e-01 : f32
    %27 = vector.broadcast %cst_13 : f32 to vector<16x16xf32>
    %28 = arith.mulf %26, %27 : vector<16x16xf32>
    %cst_14 = arith.constant dense<0xFF800000> : vector<16xf32>
    %29 = vector.multi_reduction <maximumf>, %28, %cst_14 [1] : vector<16x16xf32> to vector<16xf32>
    %30 = vector.shape_cast %29 : vector<16xf32> to vector<16x1xf32>
    %31 = vector.broadcast %30 : vector<16x1xf32> to vector<16x16xf32>
    %32 = arith.subf %28, %31 : vector<16x16xf32>
    %33 = math.exp %32 : vector<16x16xf32>
    %cst_15 = arith.constant dense<0.000000e+00> : vector<16xf32>
    %34 = vector.multi_reduction <add>, %33, %cst_15 [1] : vector<16x16xf32> to vector<16xf32>
    %35 = vector.shape_cast %34 : vector<16xf32> to vector<16x1xf32>
    %cst_16 = arith.constant dense<0.000000e+00> : vector<16x16xf32>
    %36 = tpu.matmul %33, %25, %cst_16 {dimension_numbers = #tpu.dot_dimension_numbers<[1], [0], [0], [1], [0, 0, 1, 1], [], []>} : vector<16x16xf32>, vector<16x16xf32>, vector<16x16xf32> -> vector<16x16xf32>
    %37 = tpu.reciprocal %35 {approx = true} : vector<16x1xf32> -> vector<16x1xf32>
    %38 = vector.broadcast %37 : vector<16x1xf32> to vector<16x16xf32>
    %39 = arith.mulf %36, %38 : vector<16x16xf32>
    %40 = vector.extract_strided_slice %1 {offsets = [0, 32], sizes = [16, 16], strides = [1, 1]} : vector<16x64xf32> to vector<16x16xf32>
    %41 = vector.extract_strided_slice %3 {offsets = [0, 32], sizes = [16, 16], strides = [1, 1]} : vector<16x64xf32> to vector<16x16xf32>
    %42 = vector.extract_strided_slice %5 {offsets = [0, 32], sizes = [16, 16], strides = [1, 1]} : vector<16x64xf32> to vector<16x16xf32>
    %cst_17 = arith.constant dense<0.000000e+00> : vector<16x16xf32>
    %43 = tpu.matmul %40, %41, %cst_17 {dimension_numbers = #tpu.dot_dimension_numbers<[1], [1], [0], [0], [0, 0, 1, 0], [], []>} : vector<16x16xf32>, vector<16x16xf32>, vector<16x16xf32> -> vector<16x16xf32>
    %cst_18 = arith.constant 2.500000e-01 : f32
    %44 = vector.broadcast %cst_18 : f32 to vector<16x16xf32>
    %45 = arith.mulf %43, %44 : vector<16x16xf32>
    %cst_19 = arith.constant dense<0xFF800000> : vector<16xf32>
    %46 = vector.multi_reduction <maximumf>, %45, %cst_19 [1] : vector<16x16xf32> to vector<16xf32>
    %47 = vector.shape_cast %46 : vector<16xf32> to vector<16x1xf32>
    %48 = vector.broadcast %47 : vector<16x1xf32> to vector<16x16xf32>
    %49 = arith.subf %45, %48 : vector<16x16xf32>
    %50 = math.exp %49 : vector<16x16xf32>
    %cst_20 = arith.constant dense<0.000000e+00> : vector<16xf32>
    %51 = vector.multi_reduction <add>, %50, %cst_20 [1] : vector<16x16xf32> to vector<16xf32>
    %52 = vector.shape_cast %51 : vector<16xf32> to vector<16x1xf32>
    %cst_21 = arith.constant dense<0.000000e+00> : vector<16x16xf32>
    %53 = tpu.matmul %50, %42, %cst_21 {dimension_numbers = #tpu.dot_dimension_numbers<[1], [0], [0], [1], [0, 0, 1, 1], [], []>} : vector<16x16xf32>, vector<16x16xf32>, vector<16x16xf32> -> vector<16x16xf32>
    %54 = tpu.reciprocal %52 {approx = true} : vector<16x1xf32> -> vector<16x1xf32>
    %55 = vector.broadcast %54 : vector<16x1xf32> to vector<16x16xf32>
    %56 = arith.mulf %53, %55 : vector<16x16xf32>
    %57 = vector.extract_strided_slice %1 {offsets = [0, 48], sizes = [16, 16], strides = [1, 1]} : vector<16x64xf32> to vector<16x16xf32>
    %58 = vector.extract_strided_slice %3 {offsets = [0, 48], sizes = [16, 16], strides = [1, 1]} : vector<16x64xf32> to vector<16x16xf32>
    %59 = vector.extract_strided_slice %5 {offsets = [0, 48], sizes = [16, 16], strides = [1, 1]} : vector<16x64xf32> to vector<16x16xf32>
    %cst_22 = arith.constant dense<0.000000e+00> : vector<16x16xf32>
    %60 = tpu.matmul %57, %58, %cst_22 {dimension_numbers = #tpu.dot_dimension_numbers<[1], [1], [0], [0], [0, 0, 1, 0], [], []>} : vector<16x16xf32>, vector<16x16xf32>, vector<16x16xf32> -> vector<16x16xf32>
    %cst_23 = arith.constant 2.500000e-01 : f32
    %61 = vector.broadcast %cst_23 : f32 to vector<16x16xf32>
    %62 = arith.mulf %60, %61 : vector<16x16xf32>
    %cst_24 = arith.constant dense<0xFF800000> : vector<16xf32>
    %63 = vector.multi_reduction <maximumf>, %62, %cst_24 [1] : vector<16x16xf32> to vector<16xf32>
    %64 = vector.shape_cast %63 : vector<16xf32> to vector<16x1xf32>
    %65 = vector.broadcast %64 : vector<16x1xf32> to vector<16x16xf32>
    %66 = arith.subf %62, %65 : vector<16x16xf32>
    %67 = math.exp %66 : vector<16x16xf32>
    %cst_25 = arith.constant dense<0.000000e+00> : vector<16xf32>
    %68 = vector.multi_reduction <add>, %67, %cst_25 [1] : vector<16x16xf32> to vector<16xf32>
    %69 = vector.shape_cast %68 : vector<16xf32> to vector<16x1xf32>
    %cst_26 = arith.constant dense<0.000000e+00> : vector<16x16xf32>
    %70 = tpu.matmul %67, %59, %cst_26 {dimension_numbers = #tpu.dot_dimension_numbers<[1], [0], [0], [1], [0, 0, 1, 1], [], []>} : vector<16x16xf32>, vector<16x16xf32>, vector<16x16xf32> -> vector<16x16xf32>
    %71 = tpu.reciprocal %69 {approx = true} : vector<16x1xf32> -> vector<16x1xf32>
    %72 = vector.broadcast %71 : vector<16x1xf32> to vector<16x16xf32>
    %73 = arith.mulf %70, %72 : vector<16x16xf32>
    %74 = tpu.concatenate %22, %39, %56, %73 in 1 : vector<16x16xf32>, vector<16x16xf32>, vector<16x16xf32>, vector<16x16xf32> -> vector<16x64xf32>
    %c0_27 = arith.constant 0 : index
    %c0_28 = arith.constant 0 : index
    %75 = vector.load %arg5[%c0_27, %c0_28] : memref<64x64xf32, #tpu.memory_space<vmem>>, vector<64x64xf32>
    %cst_29 = arith.constant dense<0.000000e+00> : vector<16x64xf32>
    %76 = tpu.matmul %74, %75, %cst_29 {dimension_numbers = #tpu.dot_dimension_numbers<[1], [0], [0], [1], [0, 0, 1, 1], [], []>} : vector<16x64xf32>, vector<64x64xf32>, vector<16x64xf32> -> vector<16x64xf32>
    %c0_30 = arith.constant 0 : index
    %c0_31 = arith.constant 0 : index
    %c0_32 = arith.constant 0 : index
    %77 = vector.load %arg7[%c0_30, %c0_31, %c0_32] : memref<1x16x64xf32, #tpu.memory_space<vmem>>, vector<1x16x64xf32>
    %78 = vector.shape_cast %77 : vector<1x16x64xf32> to vector<16x64xf32>
    %c0_33 = arith.constant 0 : index
    %c0_34 = arith.constant 0 : index
    %c0_35 = arith.constant 0 : index
    %79 = vector.load %arg6[%c0_33, %c0_34, %c0_35] : memref<1x1x64xf32, #tpu.memory_space<vmem>>, vector<1x1x64xf32>
    %80 = vector.shape_cast %79 : vector<1x1x64xf32> to vector<1x64xf32>
    %81 = vector.broadcast %80 : vector<1x64xf32> to vector<16x64xf32>
    %82 = arith.mulf %81, %76 : vector<16x64xf32>
    %83 = arith.addf %78, %82 : vector<16x64xf32>
    %c0_36 = arith.constant 0 : index
    %c0_37 = arith.constant 0 : index
    %c0_38 = arith.constant 0 : index
    %84 = vector.load %arg8[%c0_36, %c0_37, %c0_38] : memref<1x16x64xf32, #tpu.memory_space<vmem>>, vector<1x16x64xf32>
    %85 = vector.shape_cast %84 : vector<1x16x64xf32> to vector<16x64xf32>
    %86 = vector.shape_cast %83 : vector<16x64xf32> to vector<1x16x64xf32>
    tpu.vector_store %arg8[%c0_36, %c0_37, %c0_38], %86 {strides = array<i32>} : memref<1x16x64xf32, #tpu.memory_space<vmem>>, vector<1x16x64xf32>,
    return
  }
  func.func @transform_0(%arg0: i32, %arg1: i32) -> (i32, i32, i32) {
    %c0_i32 = arith.constant 0 : i32
    %c0_i32_0 = arith.constant 0 : i32
    return %arg0, %arg1, %c0_i32 : i32, i32, i32
  }
  func.func @transform_1(%arg0: i32, %arg1: i32) -> (i32, i32, i32) {
    %c0_i32 = arith.constant 0 : i32
    %c0_i32_0 = arith.constant 0 : i32
    %c0_i32_1 = arith.constant 0 : i32
    return %arg0, %c0_i32, %c0_i32_0 : i32, i32, i32
  }
  func.func @transform_2(%arg0: i32, %arg1: i32) -> (i32, i32, i32) {
    %c0_i32 = arith.constant 0 : i32
    %c0_i32_0 = arith.constant 0 : i32
    %c0_i32_1 = arith.constant 0 : i32
    return %arg0, %c0_i32, %c0_i32_0 : i32, i32, i32
  }
  func.func @transform_3(%arg0: i32, %arg1: i32) -> (i32, i32) {
    %c0_i32 = arith.constant 0 : i32
    %c0_i32_0 = arith.constant 0 : i32
    %c0_i32_1 = arith.constant 0 : i32
    return %c0_i32, %c0_i32_0 : i32, i32
  }
  func.func @transform_4(%arg0: i32, %arg1: i32) -> (i32, i32, i32) {
    %c0_i32 = arith.constant 0 : i32
    %c0_i32_0 = arith.constant 0 : i32
    %c0_i32_1 = arith.constant 0 : i32
    return %arg0, %c0_i32, %c0_i32_0 : i32, i32, i32
  }
  func.func @transform_5(%arg0: i32, %arg1: i32) -> (i32, i32, i32) {
    %c0_i32 = arith.constant 0 : i32
    %c0_i32_0 = arith.constant 0 : i32
    return %arg0, %arg1, %c0_i32 : i32, i32, i32
  }
  func.func @transform_6(%arg0: i32, %arg1: i32) -> (i32, i32, i32) {
    %c0_i32 = arith.constant 0 : i32
    %c0_i32_0 = arith.constant 0 : i32
    return %arg0, %arg1, %c0_i32 : i32, i32, i32
  }
}

module attributes {stable_mosaic.version = 11 : i64} {
  func.func @_ff_block_kernel(%arg0: i32, %arg1: i32, %arg2: memref<1x16x64xf32, #tpu.memory_space<vmem>>, %arg3: memref<1x1x64xf32, #tpu.memory_space<vmem>>, %arg4: memref<1x1x64xf32, #tpu.memory_space<vmem>>, %arg5: memref<1x1x64xf32, #tpu.memory_space<vmem>>, %arg6: memref<64x256xf32, #tpu.memory_space<vmem>>, %arg7: memref<1x256xf32, #tpu.memory_space<vmem>>, %arg8: memref<256x64xf32, #tpu.memory_space<vmem>>, %arg9: memref<1x64xf32, #tpu.memory_space<vmem>>, %arg10: memref<1x16x64xf32, #tpu.memory_space<vmem>>) attributes {dimension_semantics = [#tpu.dimension_semantics<parallel>, #tpu.dimension_semantics<parallel>], iteration_bounds = array<i64: 2, 1>, scalar_prefetch = 0 : i64, scratch_operands = 0 : i64, tpu.core_type = #tpu.core_type<tc>, window_params = [{transform_indices = @transform_0, window_bounds = array<i64: 1, 16, 64>}, {transform_indices = @transform_1, window_bounds = array<i64: 1, 1, 64>}, {transform_indices = @transform_2, window_bounds = array<i64: 1, 1, 64>}, {transform_indices = @transform_3, window_bounds = array<i64: 1, 1, 64>}, {pipeline_mode = #tpu.pipeline_mode<synchronous>, transform_indices = @transform_4, window_bounds = array<i64: 64, 256>}, {pipeline_mode = #tpu.pipeline_mode<synchronous>, transform_indices = @transform_5, window_bounds = array<i64: 1, 256>}, {pipeline_mode = #tpu.pipeline_mode<synchronous>, transform_indices = @transform_6, window_bounds = array<i64: 256, 64>}, {pipeline_mode = #tpu.pipeline_mode<synchronous>, transform_indices = @transform_7, window_bounds = array<i64: 1, 64>}, {transform_indices = @transform_8, window_bounds = array<i64: 1, 16, 64>}]} {
    %c0 = arith.constant 0 : index
    %c0_0 = arith.constant 0 : index
    %c0_1 = arith.constant 0 : index
    %0 = vector.load %arg2[%c0, %c0_0, %c0_1] : memref<1x16x64xf32, #tpu.memory_space<vmem>>, vector<1x16x64xf32>
    %1 = vector.shape_cast %0 : vector<1x16x64xf32> to vector<16x64xf32>
    %c0_2 = arith.constant 0 : index
    %c0_3 = arith.constant 0 : index
    %c0_4 = arith.constant 0 : index
    %2 = vector.load %arg3[%c0_2, %c0_3, %c0_4] : memref<1x1x64xf32, #tpu.memory_space<vmem>>, vector<1x1x64xf32>
    %3 = vector.shape_cast %2 : vector<1x1x64xf32> to vector<1x64xf32>
    %c0_5 = arith.constant 0 : index
    %c0_6 = arith.constant 0 : index
    %c0_7 = arith.constant 0 : index
    %4 = vector.load %arg4[%c0_5, %c0_6, %c0_7] : memref<1x1x64xf32, #tpu.memory_space<vmem>>, vector<1x1x64xf32>
    %5 = vector.shape_cast %4 : vector<1x1x64xf32> to vector<1x64xf32>
    %cst = arith.constant dense<0.000000e+00> : vector<16xf32>
    %6 = vector.multi_reduction <add>, %1, %cst [1] : vector<16x64xf32> to vector<16xf32>
    %7 = vector.shape_cast %6 : vector<16xf32> to vector<16x1xf32>
    %cst_8 = arith.constant 6.400000e+01 : f32
    %8 = vector.broadcast %cst_8 : f32 to vector<16x1xf32>
    %9 = arith.divf %7, %8 : vector<16x1xf32>
    %10 = vector.broadcast %9 : vector<16x1xf32> to vector<16x64xf32>
    %11 = arith.subf %1, %10 : vector<16x64xf32>
    %12 = arith.mulf %11, %11 : vector<16x64xf32>
    %cst_9 = arith.constant dense<0.000000e+00> : vector<16xf32>
    %13 = vector.multi_reduction <add>, %12, %cst_9 [1] : vector<16x64xf32> to vector<16xf32>
    %14 = vector.shape_cast %13 : vector<16xf32> to vector<16x1xf32>
    %cst_10 = arith.constant 6.400000e+01 : f32
    %15 = vector.broadcast %cst_10 : f32 to vector<16x1xf32>
    %16 = arith.divf %14, %15 : vector<16x1xf32>
    %17 = vector.broadcast %9 : vector<16x1xf32> to vector<16x64xf32>
    %18 = arith.subf %1, %17 : vector<16x64xf32>
    %cst_11 = arith.constant 9.99999997E-7 : f32
    %19 = vector.broadcast %cst_11 : f32 to vector<16x1xf32>
    %20 = arith.addf %16, %19 : vector<16x1xf32>
    %21 = math.rsqrt %20 : vector<16x1xf32>
    %22 = vector.broadcast %21 : vector<16x1xf32> to vector<16x64xf32>
    %23 = arith.mulf %18, %22 : vector<16x64xf32>
    %cst_12 = arith.constant 1.000000e+00 : f32
    %24 = vector.broadcast %cst_12 : f32 to vector<1x64xf32>
    %25 = arith.addf %24, %3 : vector<1x64xf32>
    %26 = vector.broadcast %25 : vector<1x64xf32> to vector<16x64xf32>
    %27 = arith.mulf %23, %26 : vector<16x64xf32>
    %28 = vector.broadcast %5 : vector<1x64xf32> to vector<16x64xf32>
    %29 = arith.addf %27, %28 : vector<16x64xf32>
    %c0_13 = arith.constant 0 : index
    %c0_14 = arith.constant 0 : index
    %30 = vector.load %arg6[%c0_13, %c0_14] : memref<64x256xf32, #tpu.memory_space<vmem>>, vector<64x256xf32>
    %cst_15 = arith.constant dense<0.000000e+00> : vector<16x256xf32>
    %31 = tpu.matmul %29, %30, %cst_15 {dimension_numbers = #tpu.dot_dimension_numbers<[1], [0], [0], [1], [0, 0, 1, 1], [], []>} : vector<16x64xf32>, vector<64x256xf32>, vector<16x256xf32> -> vector<16x256xf32>
    %c0_16 = arith.constant 0 : index
    %c0_17 = arith.constant 0 : index
    %32 = vector.load %arg7[%c0_16, %c0_17] : memref<1x256xf32, #tpu.memory_space<vmem>>, vector<1x256xf32>
    %33 = vector.broadcast %32 : vector<1x256xf32> to vector<16x256xf32>
    %34 = arith.addf %31, %33 : vector<16x256xf32>
    %cst_18 = arith.constant 5.000000e-01 : f32
    %35 = vector.broadcast %cst_18 : f32 to vector<16x256xf32>
    %36 = arith.mulf %35, %34 : vector<16x256xf32>
    %cst_19 = arith.constant 4.471500e-02 : f32
    %37 = vector.broadcast %cst_19 : f32 to vector<16x256xf32>
    %38 = arith.mulf %37, %34 : vector<16x256xf32>
    %39 = arith.mulf %38, %34 : vector<16x256xf32>
    %40 = arith.mulf %39, %34 : vector<16x256xf32>
    %41 = arith.addf %34, %40 : vector<16x256xf32>
    %cst_20 = arith.constant 0.797884583 : f32
    %42 = vector.broadcast %cst_20 : f32 to vector<16x256xf32>
    %43 = arith.mulf %42, %41 : vector<16x256xf32>
    %44 = math.tanh %43 : vector<16x256xf32>
    %cst_21 = arith.constant 1.000000e+00 : f32
    %45 = vector.broadcast %cst_21 : f32 to vector<16x256xf32>
    %46 = arith.addf %45, %44 : vector<16x256xf32>
    %47 = arith.mulf %36, %46 : vector<16x256xf32>
    %c0_22 = arith.constant 0 : index
    %c0_23 = arith.constant 0 : index
    %48 = vector.load %arg8[%c0_22, %c0_23] : memref<256x64xf32, #tpu.memory_space<vmem>>, vector<256x64xf32>
    %cst_24 = arith.constant dense<0.000000e+00> : vector<16x64xf32>
    %49 = tpu.matmul %47, %48, %cst_24 {dimension_numbers = #tpu.dot_dimension_numbers<[1], [0], [0], [1], [0, 0, 1, 1], [], []>} : vector<16x256xf32>, vector<256x64xf32>, vector<16x64xf32> -> vector<16x64xf32>
    %c0_25 = arith.constant 0 : index
    %c0_26 = arith.constant 0 : index
    %50 = vector.load %arg9[%c0_25, %c0_26] : memref<1x64xf32, #tpu.memory_space<vmem>>, vector<1x64xf32>
    %51 = vector.broadcast %50 : vector<1x64xf32> to vector<16x64xf32>
    %52 = arith.addf %49, %51 : vector<16x64xf32>
    %c0_27 = arith.constant 0 : index
    %c0_28 = arith.constant 0 : index
    %c0_29 = arith.constant 0 : index
    %53 = vector.load %arg5[%c0_27, %c0_28, %c0_29] : memref<1x1x64xf32, #tpu.memory_space<vmem>>, vector<1x1x64xf32>
    %54 = vector.shape_cast %53 : vector<1x1x64xf32> to vector<1x64xf32>
    %55 = vector.broadcast %54 : vector<1x64xf32> to vector<16x64xf32>
    %56 = arith.mulf %55, %52 : vector<16x64xf32>
    %57 = arith.addf %1, %56 : vector<16x64xf32>
    %c0_30 = arith.constant 0 : index
    %c0_31 = arith.constant 0 : index
    %c0_32 = arith.constant 0 : index
    %58 = vector.load %arg10[%c0_30, %c0_31, %c0_32] : memref<1x16x64xf32, #tpu.memory_space<vmem>>, vector<1x16x64xf32>
    %59 = vector.shape_cast %58 : vector<1x16x64xf32> to vector<16x64xf32>
    %60 = vector.shape_cast %57 : vector<16x64xf32> to vector<1x16x64xf32>
    tpu.vector_store %arg10[%c0_30, %c0_31, %c0_32], %60 {strides = array<i32>} : memref<1x16x64xf32, #tpu.memory_space<vmem>>, vector<1x16x64xf32>,
    return
  }
  func.func @transform_0(%arg0: i32, %arg1: i32) -> (i32, i32, i32) {
    %c0_i32 = arith.constant 0 : i32
    %c0_i32_0 = arith.constant 0 : i32
    return %arg0, %arg1, %c0_i32 : i32, i32, i32
  }
  func.func @transform_1(%arg0: i32, %arg1: i32) -> (i32, i32, i32) {
    %c0_i32 = arith.constant 0 : i32
    %c0_i32_0 = arith.constant 0 : i32
    %c0_i32_1 = arith.constant 0 : i32
    return %arg0, %c0_i32, %c0_i32_0 : i32, i32, i32
  }
  func.func @transform_2(%arg0: i32, %arg1: i32) -> (i32, i32, i32) {
    %c0_i32 = arith.constant 0 : i32
    %c0_i32_0 = arith.constant 0 : i32
    %c0_i32_1 = arith.constant 0 : i32
    return %arg0, %c0_i32, %c0_i32_0 : i32, i32, i32
  }
  func.func @transform_3(%arg0: i32, %arg1: i32) -> (i32, i32, i32) {
    %c0_i32 = arith.constant 0 : i32
    %c0_i32_0 = arith.constant 0 : i32
    %c0_i32_1 = arith.constant 0 : i32
    return %arg0, %c0_i32, %c0_i32_0 : i32, i32, i32
  }
  func.func @transform_4(%arg0: i32, %arg1: i32) -> (i32, i32) {
    %c0_i32 = arith.constant 0 : i32
    %c0_i32_0 = arith.constant 0 : i32
    %c0_i32_1 = arith.constant 0 : i32
    return %c0_i32, %c0_i32_0 : i32, i32
  }
  func.func @transform_5(%arg0: i32, %arg1: i32) -> (i32, i32) {
    %c0_i32 = arith.constant 0 : i32
    %c0_i32_0 = arith.constant 0 : i32
    %c0_i32_1 = arith.constant 0 : i32
    return %c0_i32, %c0_i32_0 : i32, i32
  }
  func.func @transform_6(%arg0: i32, %arg1: i32) -> (i32, i32) {
    %c0_i32 = arith.constant 0 : i32
    %c0_i32_0 = arith.constant 0 : i32
    %c0_i32_1 = arith.constant 0 : i32
    return %c0_i32, %c0_i32_0 : i32, i32
  }
  func.func @transform_7(%arg0: i32, %arg1: i32) -> (i32, i32) {
    %c0_i32 = arith.constant 0 : i32
    %c0_i32_0 = arith.constant 0 : i32
    %c0_i32_1 = arith.constant 0 : i32
    return %c0_i32, %c0_i32_0 : i32, i32
  }
  func.func @transform_8(%arg0: i32, %arg1: i32) -> (i32, i32, i32) {
    %c0_i32 = arith.constant 0 : i32
    %c0_i32_0 = arith.constant 0 : i32
    return %arg0, %arg1, %c0_i32 : i32, i32, i32
  }
}

module attributes {stable_mosaic.version = 11 : i64} {
  func.func @_final_kernel(%arg0: i32, %arg1: i32, %arg2: memref<1x16x64xf32, #tpu.memory_space<vmem>>, %arg3: memref<1x1x64xf32, #tpu.memory_space<vmem>>, %arg4: memref<1x1x64xf32, #tpu.memory_space<vmem>>, %arg5: memref<64x128xf32, #tpu.memory_space<vmem>>, %arg6: memref<1x16x128xf32, #tpu.memory_space<vmem>>) attributes {dimension_semantics = [#tpu.dimension_semantics<parallel>, #tpu.dimension_semantics<parallel>], iteration_bounds = array<i64: 2, 1>, scalar_prefetch = 0 : i64, scratch_operands = 0 : i64, tpu.core_type = #tpu.core_type<tc>, window_params = [{transform_indices = @transform_0, window_bounds = array<i64: 1, 16, 64>}, {transform_indices = @transform_1, window_bounds = array<i64: 1, 1, 64>}, {transform_indices = @transform_2, window_bounds = array<i64: 1, 1, 64>}, {pipeline_mode = #tpu.pipeline_mode<synchronous>, transform_indices = @transform_3, window_bounds = array<i64: 64, 128>}, {transform_indices = @transform_4, window_bounds = array<i64: 1, 16, 128>}]} {
    %c0 = arith.constant 0 : index
    %c0_0 = arith.constant 0 : index
    %c0_1 = arith.constant 0 : index
    %0 = vector.load %arg2[%c0, %c0_0, %c0_1] : memref<1x16x64xf32, #tpu.memory_space<vmem>>, vector<1x16x64xf32>
    %1 = vector.shape_cast %0 : vector<1x16x64xf32> to vector<16x64xf32>
    %c0_2 = arith.constant 0 : index
    %c0_3 = arith.constant 0 : index
    %c0_4 = arith.constant 0 : index
    %2 = vector.load %arg3[%c0_2, %c0_3, %c0_4] : memref<1x1x64xf32, #tpu.memory_space<vmem>>, vector<1x1x64xf32>
    %3 = vector.shape_cast %2 : vector<1x1x64xf32> to vector<1x64xf32>
    %c0_5 = arith.constant 0 : index
    %c0_6 = arith.constant 0 : index
    %c0_7 = arith.constant 0 : index
    %4 = vector.load %arg4[%c0_5, %c0_6, %c0_7] : memref<1x1x64xf32, #tpu.memory_space<vmem>>, vector<1x1x64xf32>
    %5 = vector.shape_cast %4 : vector<1x1x64xf32> to vector<1x64xf32>
    %cst = arith.constant dense<0.000000e+00> : vector<16xf32>
    %6 = vector.multi_reduction <add>, %1, %cst [1] : vector<16x64xf32> to vector<16xf32>
    %7 = vector.shape_cast %6 : vector<16xf32> to vector<16x1xf32>
    %cst_8 = arith.constant 6.400000e+01 : f32
    %8 = vector.broadcast %cst_8 : f32 to vector<16x1xf32>
    %9 = arith.divf %7, %8 : vector<16x1xf32>
    %10 = vector.broadcast %9 : vector<16x1xf32> to vector<16x64xf32>
    %11 = arith.subf %1, %10 : vector<16x64xf32>
    %12 = arith.mulf %11, %11 : vector<16x64xf32>
    %cst_9 = arith.constant dense<0.000000e+00> : vector<16xf32>
    %13 = vector.multi_reduction <add>, %12, %cst_9 [1] : vector<16x64xf32> to vector<16xf32>
    %14 = vector.shape_cast %13 : vector<16xf32> to vector<16x1xf32>
    %cst_10 = arith.constant 6.400000e+01 : f32
    %15 = vector.broadcast %cst_10 : f32 to vector<16x1xf32>
    %16 = arith.divf %14, %15 : vector<16x1xf32>
    %17 = vector.broadcast %9 : vector<16x1xf32> to vector<16x64xf32>
    %18 = arith.subf %1, %17 : vector<16x64xf32>
    %cst_11 = arith.constant 9.99999997E-7 : f32
    %19 = vector.broadcast %cst_11 : f32 to vector<16x1xf32>
    %20 = arith.addf %16, %19 : vector<16x1xf32>
    %21 = math.rsqrt %20 : vector<16x1xf32>
    %22 = vector.broadcast %21 : vector<16x1xf32> to vector<16x64xf32>
    %23 = arith.mulf %18, %22 : vector<16x64xf32>
    %cst_12 = arith.constant 1.000000e+00 : f32
    %24 = vector.broadcast %cst_12 : f32 to vector<1x64xf32>
    %25 = arith.addf %24, %3 : vector<1x64xf32>
    %26 = vector.broadcast %25 : vector<1x64xf32> to vector<16x64xf32>
    %27 = arith.mulf %23, %26 : vector<16x64xf32>
    %28 = vector.broadcast %5 : vector<1x64xf32> to vector<16x64xf32>
    %29 = arith.addf %27, %28 : vector<16x64xf32>
    %c0_13 = arith.constant 0 : index
    %c0_14 = arith.constant 0 : index
    %30 = vector.load %arg5[%c0_13, %c0_14] : memref<64x128xf32, #tpu.memory_space<vmem>>, vector<64x128xf32>
    %cst_15 = arith.constant dense<0.000000e+00> : vector<16x128xf32>
    %31 = tpu.matmul %29, %30, %cst_15 {dimension_numbers = #tpu.dot_dimension_numbers<[1], [0], [0], [1], [0, 0, 1, 1], [], []>} : vector<16x64xf32>, vector<64x128xf32>, vector<16x128xf32> -> vector<16x128xf32>
    %c0_16 = arith.constant 0 : index
    %c0_17 = arith.constant 0 : index
    %c0_18 = arith.constant 0 : index
    %32 = vector.load %arg6[%c0_16, %c0_17, %c0_18] : memref<1x16x128xf32, #tpu.memory_space<vmem>>, vector<1x16x128xf32>
    %33 = vector.shape_cast %32 : vector<1x16x128xf32> to vector<16x128xf32>
    %34 = vector.shape_cast %31 : vector<16x128xf32> to vector<1x16x128xf32>
    tpu.vector_store %arg6[%c0_16, %c0_17, %c0_18], %34 {strides = array<i32>} : memref<1x16x128xf32, #tpu.memory_space<vmem>>, vector<1x16x128xf32>,
    return
  }
  func.func @transform_0(%arg0: i32, %arg1: i32) -> (i32, i32, i32) {
    %c0_i32 = arith.constant 0 : i32
    %c0_i32_0 = arith.constant 0 : i32
    return %arg0, %arg1, %c0_i32 : i32, i32, i32
  }
  func.func @transform_1(%arg0: i32, %arg1: i32) -> (i32, i32, i32) {
    %c0_i32 = arith.constant 0 : i32
    %c0_i32_0 = arith.constant 0 : i32
    %c0_i32_1 = arith.constant 0 : i32
    return %arg0, %c0_i32, %c0_i32_0 : i32, i32, i32
  }
  func.func @transform_2(%arg0: i32, %arg1: i32) -> (i32, i32, i32) {
    %c0_i32 = arith.constant 0 : i32
    %c0_i32_0 = arith.constant 0 : i32
    %c0_i32_1 = arith.constant 0 : i32
    return %arg0, %c0_i32, %c0_i32_0 : i32, i32, i32
  }
  func.func @transform_3(%arg0: i32, %arg1: i32) -> (i32, i32) {
    %c0_i32 = arith.constant 0 : i32
    %c0_i32_0 = arith.constant 0 : i32
    %c0_i32_1 = arith.constant 0 : i32
    return %c0_i32, %c0_i32_0 : i32, i32
  }
  func.func @transform_4(%arg0: i32, %arg1: i32) -> (i32, i32, i32) {
    %c0_i32 = arith.constant 0 : i32
    %c0_i32_0 = arith.constant 0 : i32
    return %arg0, %arg1, %c0_i32 : i32, i32, i32
  }
}

</mosaic_0001>

<llo_original>
// kernel: reverse
$region0: #{reverse}
  %s0 = inlined_call_operand.vmem [shape: bf16[31,4,16,4], index: 0, kind: input, shape index: {}]
  %s1 = inlined_call_operand.vmem [shape: bf16[31,4,16,4], index: 1, kind: output, shape index: {}]
  %v2 = vlaneseq
  %v3 = vsub.s32 30, %v2
  %4 = vset.pattern.permute.xlu0 %v3
  $region1: #{reverse} parent=0
    #allocation0 [shape = 'u8[262144]{0}', space=vmem, size = 0x40000, scoped, tag = 'operand span for operand 0']
    #allocation1 [shape = 'u8[65536]{0}', space=vmem, size = 0x10000, scoped, tag = 'packed  for operand 0']
    #allocation2 [shape = 'u8[262144]{0}', space=vmem, size = 0x40000, scoped, tag = 'operand span for operand 1']
    #allocation3 [shape = 'u8[65536]{0}', space=vmem, size = 0x10000, scoped, tag = 'packed  for operand 1']
    // Predicated region
    $region2: #{reverse} parent=1 // pred_check
      _
    $region3: #{reverse} parent=1 // pred_check_branch
      %6 = sbr.rel (0) target = $region5
    $region4: #{reverse} parent=1 // pred_region
      // Predicated region
      $region6: #{reverse} parent=4 // pred_check
        _
      $region7: #{reverse} parent=4 // pred_check_branch
        %8 = sbr.rel target = $region9
      $region8: #{reverse} parent=4 // pred_region
        // Predicated region
        $region21: #{reverse} parent=8 // pred_check
          _
        $region22: #{reverse} parent=8 // pred_check_branch
          %149 = sbr.rel (0) target = $region24
        $region23: #{reverse} parent=8 // pred_region
          loop: start=0, step=1, limit=1
          $region25: #{reverse} parent=23 // loop_pre_header
            _
          $region26: #{reverse} parent=23 // loop_header
            %s151 = sphi 0, %s155
            %p152 = scmp.ge.s32.totalorder %s151, 1
            %s156 = sphi %s0, %s0
            %s157 = sphi [#allocation1], [#allocation1]
          $region27: #{reverse} parent=23 // loop_header_branch
            %154 = sbr.rel (%p152) target = $region31
          $region28: #{reverse} parent=23 // loop_body
            _
          $region29: #{reverse} parent=23 // loop_footer
            %s155 = sadd.s32 1, %s151
          $region30: #{reverse} parent=23 // loop_footer_branch
            %150 = sbr.rel target = $region26
          $region31: #{reverse} parent=23 // loop_exit
            _
          loop: start=0, step=1, limit=1
          $region32: #{reverse} parent=23 // loop_pre_header
            _
          $region33: #{reverse} parent=23 // loop_header
            %s160 = sphi 0, %s164
            %p161 = scmp.ge.s32.totalorder %s160, 1
            %s165 = sphi %s0, %s0
            %s166 = sphi [#allocation1], [#allocation1]
          $region34: #{reverse} parent=23 // loop_header_branch
            %163 = sbr.rel (%p161) target = $region38
          $region35: #{reverse} parent=23 // loop_body
            %v167 = vld [vmem:[%s165] sm:$0x3]
            %168 = vst [vmem:[%s166] sm:$0x3] %v167
            %v169 = vld [vmem:[%s165 + $0x2] sm:$0x3]
            %170 = vst [vmem:[%s166 + $0x2] sm:$0x3] %v169
            %v171 = vld [vmem:[%s165 + $0x4] sm:$0x3]
            %172 = vst [vmem:[%s166 + $0x4] sm:$0x3] %v171
            %v173 = vld [vmem:[%s165 + $0x6] sm:$0x3]
            %174 = vst [vmem:[%s166 + $0x6] sm:$0x3] %v173
            %v175 = vld [vmem:[%s165 + $0x8] sm:$0x3]
            %176 = vst [vmem:[%s166 + $0x8] sm:$0x3] %v175
            %v177 = vld [vmem:[%s165 + $0xa] sm:$0x3]
            %178 = vst [vmem:[%s166 + $0xa] sm:$0x3] %v177
            %v179 = vld [vmem:[%s165 + $0xc] sm:$0x3]
            %180 = vst [vmem:[%s166 + $0xc] sm:$0x3] %v179
            %v181 = vld [vmem:[%s165 + $0xe] sm:$0x3]
            %182 = vst [vmem:[%s166 + $0xe] sm:$0x3] %v181
            %v183 = vld [vmem:[%s165 + $0x10] sm:$0x3]
            %184 = vst [vmem:[%s166 + $0x10] sm:$0x3] %v183
            %v185 = vld [vmem:[%s165 + $0x12] sm:$0x3]
            %186 = vst [vmem:[%s166 + $0x12] sm:$0x3] %v185
            %v187 = vld [vmem:[%s165 + $0x14] sm:$0x3]
            %188 = vst [vmem:[%s166 + $0x14] sm:$0x3] %v187
            %v189 = vld [vmem:[%s165 + $0x16] sm:$0x3]
            %190 = vst [vmem:[%s166 + $0x16] sm:$0x3] %v189
            %v191 = vld [vmem:[%s165 + $0x18] sm:$0x3]
            %192 = vst [vmem:[%s166 + $0x18] sm:$0x3] %v191
            %v193 = vld [vmem:[%s165 + $0x1a] sm:$0x3]
            %194 = vst [vmem:[%s166 + $0x1a] sm:$0x3] %v193
            %v195 = vld [vmem:[%s165 + $0x1c] sm:$0x3]
            %196 = vst [vmem:[%s166 + $0x1c] sm:$0x3] %v195
            %v197 = vld [vmem:[%s165 + $0x1e] sm:$0x3]
            %198 = vst [vmem:[%s166 + $0x1e] sm:$0x3] %v197
            %v199 = vld [vmem:[%s165 + $0x20] sm:$0x3]
            %200 = vst [vmem:[%s166 + $0x20] sm:$0x3] %v199
            %v201 = vld [vmem:[%s165 + $0x22] sm:$0x3]
            %202 = vst [vmem:[%s166 + $0x22] sm:$0x3] %v201
            %v203 = vld [vmem:[%s165 + $0x24] sm:$0x3]
            %204 = vst [vmem:[%s166 + $0x24] sm:$0x3] %v203
            %v205 = vld [vmem:[%s165 + $0x26] sm:$0x3]
            %206 = vst [vmem:[%s166 + $0x26] sm:$0x3] %v205
            %v207 = vld [vmem:[%s165 + $0x28] sm:$0x3]
            %208 = vst [vmem:[%s166 + $0x28] sm:$0x3] %v207
            %v209 = vld [vmem:[%s165 + $0x2a] sm:$0x3]
            %210 = vst [vmem:[%s166 + $0x2a] sm:$0x3] %v209
            %v211 = vld [vmem:[%s165 + $0x2c] sm:$0x3]
            %212 = vst [vmem:[%s166 + $0x2c] sm:$0x3] %v211
            %v213 = vld [vmem:[%s165 + $0x2e] sm:$0x3]
            %214 = vst [vmem:[%s166 + $0x2e] sm:$0x3] %v213
            %v215 = vld [vmem:[%s165 + $0x30] sm:$0x3]
            %216 = vst [vmem:[%s166 + $0x30] sm:$0x3] %v215
            %v217 = vld [vmem:[%s165 + $0x32] sm:$0x3]
            %218 = vst [vmem:[%s166 + $0x32] sm:$0x3] %v217
            %v219 = vld [vmem:[%s165 + $0x34] sm:$0x3]
            %220 = vst [vmem:[%s166 + $0x34] sm:$0x3] %v219
            %v221 = vld [vmem:[%s165 + $0x36] sm:$0x3]
            %222 = vst [vmem:[%s166 + $0x36] sm:$0x3] %v221
            %v223 = vld [vmem:[%s165 + $0x38] sm:$0x3]
            %224 = vst [vmem:[%s166 + $0x38] sm:$0x3] %v223
            %v225 = vld [vmem:[%s165 + $0x3a] sm:$0x3]
            %226 = vst [vmem:[%s166 + $0x3a] sm:$0x3] %v225
            %v227 = vld [vmem:[%s165 + $0x3c] sm:$0x3]
            %228 = vst [vmem:[%s166 + $0x3c] sm:$0x3] %v227
            %v229 = vld [vmem:[%s165 + $0x3e] sm:$0x3]
            %230 = vst [vmem:[%s166 + $0x3e] sm:$0x3] %v229
            %v231 = vld [vmem:[%s165 + $0x40] sm:$0x3]
            %232 = vst [vmem:[%s166 + $0x40] sm:$0x3] %v231
            %v233 = vld [vmem:[%s165 + $0x42] sm:$0x3]
            %234 = vst [vmem:[%s166 + $0x42] sm:$0x3] %v233
            %v235 = vld [vmem:[%s165 + $0x44] sm:$0x3]
            %236 = vst [vmem:[%s166 + $0x44] sm:$0x3] %v235
            %v237 = vld [vmem:[%s165 + $0x46] sm:$0x3]
            %238 = vst [vmem:[%s166 + $0x46] sm:$0x3] %v237
            %v239 = vld [vmem:[%s165 + $0x48] sm:$0x3]
            %240 = vst [vmem:[%s166 + $0x48] sm:$0x3] %v239
            %v241 = vld [vmem:[%s165 + $0x4a] sm:$0x3]
            %242 = vst [vmem:[%s166 + $0x4a] sm:$0x3] %v241
            %v243 = vld [vmem:[%s165 + $0x4c] sm:$0x3]
            %244 = vst [vmem:[%s166 + $0x4c] sm:$0x3] %v243
            %v245 = vld [vmem:[%s165 + $0x4e] sm:$0x3]
            %246 = vst [vmem:[%s166 + $0x4e] sm:$0x3] %v245
            %v247 = vld [vmem:[%s165 + $0x50] sm:$0x3]
            %248 = vst [vmem:[%s166 + $0x50] sm:$0x3] %v247
            %v249 = vld [vmem:[%s165 + $0x52] sm:$0x3]
            %250 = vst [vmem:[%s166 + $0x52] sm:$0x3] %v249
            %v251 = vld [vmem:[%s165 + $0x54] sm:$0x3]
            %252 = vst [vmem:[%s166 + $0x54] sm:$0x3] %v251
            %v253 = vld [vmem:[%s165 + $0x56] sm:$0x3]
            %254 = vst [vmem:[%s166 + $0x56] sm:$0x3] %v253
            %v255 = vld [vmem:[%s165 + $0x58] sm:$0x3]
            %256 = vst [vmem:[%s166 + $0x58] sm:$0x3] %v255
            %v257 = vld [vmem:[%s165 + $0x5a] sm:$0x3]
            %258 = vst [vmem:[%s166 + $0x5a] sm:$0x3] %v257
            %v259 = vld [vmem:[%s165 + $0x5c] sm:$0x3]
            %260 = vst [vmem:[%s166 + $0x5c] sm:$0x3] %v259
            %v261 = vld [vmem:[%s165 + $0x5e] sm:$0x3]
            %262 = vst [vmem:[%s166 + $0x5e] sm:$0x3] %v261
            %v263 = vld [vmem:[%s165 + $0x60] sm:$0x3]
            %264 = vst [vmem:[%s166 + $0x60] sm:$0x3] %v263
            %v265 = vld [vmem:[%s165 + $0x62] sm:$0x3]
            %266 = vst [vmem:[%s166 + $0x62] sm:$0x3] %v265
            %v267 = vld [vmem:[%s165 + $0x64] sm:$0x3]
            %268 = vst [vmem:[%s166 + $0x64] sm:$0x3] %v267
            %v269 = vld [vmem:[%s165 + $0x66] sm:$0x3]
            %270 = vst [vmem:[%s166 + $0x66] sm:$0x3] %v269
            %v271 = vld [vmem:[%s165 + $0x68] sm:$0x3]
            %272 = vst [vmem:[%s166 + $0x68] sm:$0x3] %v271
            %v273 = vld [vmem:[%s165 + $0x6a] sm:$0x3]
            %274 = vst [vmem:[%s166 + $0x6a] sm:$0x3] %v273
            %v275 = vld [vmem:[%s165 + $0x6c] sm:$0x3]
            %276 = vst [vmem:[%s166 + $0x6c] sm:$0x3] %v275
            %v277 = vld [vmem:[%s165 + $0x6e] sm:$0x3]
            %278 = vst [vmem:[%s166 + $0x6e] sm:$0x3] %v277
            %v279 = vld [vmem:[%s165 + $0x70] sm:$0x3]
            %280 = vst [vmem:[%s166 + $0x70] sm:$0x3] %v279
            %v281 = vld [vmem:[%s165 + $0x72] sm:$0x3]
            %282 = vst [vmem:[%s166 + $0x72] sm:$0x3] %v281
            %v283 = vld [vmem:[%s165 + $0x74] sm:$0x3]
            %284 = vst [vmem:[%s166 + $0x74] sm:$0x3] %v283
            %v285 = vld [vmem:[%s165 + $0x76] sm:$0x3]
            %286 = vst [vmem:[%s166 + $0x76] sm:$0x3] %v285
            %v287 = vld [vmem:[%s165 + $0x78] sm:$0x3]
            %288 = vst [vmem:[%s166 + $0x78] sm:$0x3] %v287
            %v289 = vld [vmem:[%s165 + $0x7a] sm:$0x3]
            %290 = vst [vmem:[%s166 + $0x7a] sm:$0x3] %v289
            %v291 = vld [vmem:[%s165 + $0x7c] sm:$0x3]
            %292 = vst [vmem:[%s166 + $0x7c] sm:$0x3] %v291
            %v293 = vld [vmem:[%s165 + $0x7e] sm:$0x3]
            %294 = vst [vmem:[%s166 + $0x7e] sm:$0x3] %v293
          $region36: #{reverse} parent=23 // loop_footer
            %s164 = sadd.s32 1, %s160
          $region37: #{reverse} parent=23 // loop_footer_branch
            %159 = sbr.rel target = $region33
          $region38: #{reverse} parent=23 // loop_exit
            _
        $region24: #{reverse} parent=8 // pred_fallthru
          _
      $region9: #{reverse} parent=4 // pred_fallthru
        _
      // Predicated region
      $region10: #{reverse} parent=4 // pred_check
        _
      $region11: #{reverse} parent=4 // pred_check_branch
        %10 = sbr.rel (0) target = $region13
      $region12: #{reverse} parent=4 // pred_region
        loop: start=0, step=1, limit=1
        $region14: #{reverse} parent=12 // loop_pre_header
          _
        $region15: #{reverse} parent=12 // loop_header
          %s13 = sphi 0, %s17
          %p14 = scmp.ge.s32.totalorder %s13, 1
          %s18 = sphi %s0, %s0
          %s19 = sphi [#allocation1], [#allocation1]
        $region16: #{reverse} parent=12 // loop_header_branch
          %16 = sbr.rel (%p14) target = $region20
        $region17: #{reverse} parent=12 // loop_body
          %v20 = vld [vmem:[%s18] sm:$0x3]
          %21 = vst [vmem:[%s19] sm:$0x3] %v20
          %v22 = vld [vmem:[%s18 + $0x2] sm:$0x3]
          %23 = vst [vmem:[%s19 + $0x2] sm:$0x3] %v22
          %v24 = vld [vmem:[%s18 + $0x4] sm:$0x3]
          %25 = vst [vmem:[%s19 + $0x4] sm:$0x3] %v24
          %v26 = vld [vmem:[%s18 + $0x6] sm:$0x3]
          %27 = vst [vmem:[%s19 + $0x6] sm:$0x3] %v26
          %v28 = vld [vmem:[%s18 + $0x8] sm:$0x3]
          %29 = vst [vmem:[%s19 + $0x8] sm:$0x3] %v28
          %v30 = vld [vmem:[%s18 + $0xa] sm:$0x3]
          %31 = vst [vmem:[%s19 + $0xa] sm:$0x3] %v30
          %v32 = vld [vmem:[%s18 + $0xc] sm:$0x3]
          %33 = vst [vmem:[%s19 + $0xc] sm:$0x3] %v32
          %v34 = vld [vmem:[%s18 + $0xe] sm:$0x3]
          %35 = vst [vmem:[%s19 + $0xe] sm:$0x3] %v34
          %v36 = vld [vmem:[%s18 + $0x10] sm:$0x3]
          %37 = vst [vmem:[%s19 + $0x10] sm:$0x3] %v36
          %v38 = vld [vmem:[%s18 + $0x12] sm:$0x3]
          %39 = vst [vmem:[%s19 + $0x12] sm:$0x3] %v38
          %v40 = vld [vmem:[%s18 + $0x14] sm:$0x3]
          %41 = vst [vmem:[%s19 + $0x14] sm:$0x3] %v40
          %v42 = vld [vmem:[%s18 + $0x16] sm:$0x3]
          %43 = vst [vmem:[%s19 + $0x16] sm:$0x3] %v42
          %v44 = vld [vmem:[%s18 + $0x18] sm:$0x3]
          %45 = vst [vmem:[%s19 + $0x18] sm:$0x3] %v44
          %v46 = vld [vmem:[%s18 + $0x1a] sm:$0x3]
          %47 = vst [vmem:[%s19 + $0x1a] sm:$0x3] %v46
          %v48 = vld [vmem:[%s18 + $0x1c] sm:$0x3]
          %49 = vst [vmem:[%s19 + $0x1c] sm:$0x3] %v48
          %v50 = vld [vmem:[%s18 + $0x1e] sm:$0x3]
          %51 = vst [vmem:[%s19 + $0x1e] sm:$0x3] %v50
          %v52 = vld [vmem:[%s18 + $0x20] sm:$0x3]
          %53 = vst [vmem:[%s19 + $0x20] sm:$0x3] %v52
          %v54 = vld [vmem:[%s18 + $0x22] sm:$0x3]
          %55 = vst [vmem:[%s19 + $0x22] sm:$0x3] %v54
          %v56 = vld [vmem:[%s18 + $0x24] sm:$0x3]
          %57 = vst [vmem:[%s19 + $0x24] sm:$0x3] %v56
          %v58 = vld [vmem:[%s18 + $0x26] sm:$0x3]
          %59 = vst [vmem:[%s19 + $0x26] sm:$0x3] %v58
          %v60 = vld [vmem:[%s18 + $0x28] sm:$0x3]
          %61 = vst [vmem:[%s19 + $0x28] sm:$0x3] %v60
          %v62 = vld [vmem:[%s18 + $0x2a] sm:$0x3]
          %63 = vst [vmem:[%s19 + $0x2a] sm:$0x3] %v62
          %v64 = vld [vmem:[%s18 + $0x2c] sm:$0x3]
          %65 = vst [vmem:[%s19 + $0x2c] sm:$0x3] %v64
          %v66 = vld [vmem:[%s18 + $0x2e] sm:$0x3]
          %67 = vst [vmem:[%s19 + $0x2e] sm:$0x3] %v66
          %v68 = vld [vmem:[%s18 + $0x30] sm:$0x3]
          %69 = vst [vmem:[%s19 + $0x30] sm:$0x3] %v68
          %v70 = vld [vmem:[%s18 + $0x32] sm:$0x3]
          %71 = vst [vmem:[%s19 + $0x32] sm:$0x3] %v70
          %v72 = vld [vmem:[%s18 + $0x34] sm:$0x3]
          %73 = vst [vmem:[%s19 + $0x34] sm:$0x3] %v72
          %v74 = vld [vmem:[%s18 + $0x36] sm:$0x3]
          %75 = vst [vmem:[%s19 + $0x36] sm:$0x3] %v74
          %v76 = vld [vmem:[%s18 + $0x38] sm:$0x3]
          %77 = vst [vmem:[%s19 + $0x38] sm:$0x3] %v76
          %v78 = vld [vmem:[%s18 + $0x3a] sm:$0x3]
          %79 = vst [vmem:[%s19 + $0x3a] sm:$0x3] %v78
          %v80 = vld [vmem:[%s18 + $0x3c] sm:$0x3]
          %81 = vst [vmem:[%s19 + $0x3c] sm:$0x3] %v80
          %v82 = vld [vmem:[%s18 + $0x3e] sm:$0x3]
          %83 = vst [vmem:[%s19 + $0x3e] sm:$0x3] %v82
          %v84 = vld [vmem:[%s18 + $0x40] sm:$0x3]
          %85 = vst [vmem:[%s19 + $0x40] sm:$0x3] %v84
          %v86 = vld [vmem:[%s18 + $0x42] sm:$0x3]
          %87 = vst [vmem:[%s19 + $0x42] sm:$0x3] %v86
          %v88 = vld [vmem:[%s18 + $0x44] sm:$0x3]
          %89 = vst [vmem:[%s19 + $0x44] sm:$0x3] %v88
          %v90 = vld [vmem:[%s18 + $0x46] sm:$0x3]
          %91 = vst [vmem:[%s19 + $0x46] sm:$0x3] %v90
          %v92 = vld [vmem:[%s18 + $0x48] sm:$0x3]
          %93 = vst [vmem:[%s19 + $0x48] sm:$0x3] %v92
          %v94 = vld [vmem:[%s18 + $0x4a] sm:$0x3]
          %95 = vst [vmem:[%s19 + $0x4a] sm:$0x3] %v94
          %v96 = vld [vmem:[%s18 + $0x4c] sm:$0x3]
          %97 = vst [vmem:[%s19 + $0x4c] sm:$0x3] %v96
          %v98 = vld [vmem:[%s18 + $0x4e] sm:$0x3]
          %99 = vst [vmem:[%s19 + $0x4e] sm:$0x3] %v98
          %v100 = vld [vmem:[%s18 + $0x50] sm:$0x3]
          %101 = vst [vmem:[%s19 + $0x50] sm:$0x3] %v100
          %v102 = vld [vmem:[%s18 + $0x52] sm:$0x3]
          %103 = vst [vmem:[%s19 + $0x52] sm:$0x3] %v102
          %v104 = vld [vmem:[%s18 + $0x54] sm:$0x3]
          %105 = vst [vmem:[%s19 + $0x54] sm:$0x3] %v104
          %v106 = vld [vmem:[%s18 + $0x56] sm:$0x3]
          %107 = vst [vmem:[%s19 + $0x56] sm:$0x3] %v106
          %v108 = vld [vmem:[%s18 + $0x58] sm:$0x3]
          %109 = vst [vmem:[%s19 + $0x58] sm:$0x3] %v108
          %v110 = vld [vmem:[%s18 + $0x5a] sm:$0x3]
          %111 = vst [vmem:[%s19 + $0x5a] sm:$0x3] %v110
          %v112 = vld [vmem:[%s18 + $0x5c] sm:$0x3]
          %113 = vst [vmem:[%s19 + $0x5c] sm:$0x3] %v112
          %v114 = vld [vmem:[%s18 + $0x5e] sm:$0x3]
          %115 = vst [vmem:[%s19 + $0x5e] sm:$0x3] %v114
          %v116 = vld [vmem:[%s18 + $0x60] sm:$0x3]
          %117 = vst [vmem:[%s19 + $0x60] sm:$0x3] %v116
          %v118 = vld [vmem:[%s18 + $0x62] sm:$0x3]
          %119 = vst [vmem:[%s19 + $0x62] sm:$0x3] %v118
          %v120 = vld [vmem:[%s18 + $0x64] sm:$0x3]
          %121 = vst [vmem:[%s19 + $0x64] sm:$0x3] %v120
          %v122 = vld [vmem:[%s18 + $0x66] sm:$0x3]
          %123 = vst [vmem:[%s19 + $0x66] sm:$0x3] %v122
          %v124 = vld [vmem:[%s18 + $0x68] sm:$0x3]
          %125 = vst [vmem:[%s19 + $0x68] sm:$0x3] %v124
          %v126 = vld [vmem:[%s18 + $0x6a] sm:$0x3]
          %127 = vst [vmem:[%s19 + $0x6a] sm:$0x3] %v126
          %v128 = vld [vmem:[%s18 + $0x6c] sm:$0x3]
          %129 = vst [vmem:[%s19 + $0x6c] sm:$0x3] %v128
          %v130 = vld [vmem:[%s18 + $0x6e] sm:$0x3]
          %131 = vst [vmem:[%s19 + $0x6e] sm:$0x3] %v130
          %v132 = vld [vmem:[%s18 + $0x70] sm:$0x3]
          %133 = vst [vmem:[%s19 + $0x70] sm:$0x3] %v132
          %v134 = vld [vmem:[%s18 + $0x72] sm:$0x3]
          %135 = vst [vmem:[%s19 + $0x72] sm:$0x3] %v134
          %v136 = vld [vmem:[%s18 + $0x74] sm:$0x3]
          %137 = vst [vmem:[%s19 + $0x74] sm:$0x3] %v136
          %v138 = vld [vmem:[%s18 + $0x76] sm:$0x3]
          %139 = vst [vmem:[%s19 + $0x76] sm:$0x3] %v138
          %v140 = vld [vmem:[%s18 + $0x78] sm:$0x3]
          %141 = vst [vmem:[%s19 + $0x78] sm:$0x3] %v140
          %v142 = vld [vmem:[%s18 + $0x7a] sm:$0x3]
          %143 = vst [vmem:[%s19 + $0x7a] sm:$0x3] %v142
          %v144 = vld [vmem:[%s18 + $0x7c] sm:$0x3]
          %145 = vst [vmem:[%s19 + $0x7c] sm:$0x3] %v144
          %v146 = vld [vmem:[%s18 + $0x7e] sm:$0x3]
          %147 = vst [vmem:[%s19 + $0x7e] sm:$0x3] %v146
        $region18: #{reverse} parent=12 // loop_footer
          %s17 = sadd.s32 1, %s13
        $region19: #{reverse} parent=12 // loop_footer_branch
          %12 = sbr.rel target = $region15
        $region20: #{reverse} parent=12 // loop_exit
          _
      $region13: #{reverse} parent=4 // pred_fallthru
        _
    $region5: #{reverse} parent=1 // pred_fallthru
      _
    %295 = vnop
    %s297 = smul.u32 2, 2
    %s298 = sshllo.u32 0, %s297
    %s299 = smul.addr 2, 63
    %s300 = scalar_lea.vmem [#allocation1], %s299
    %s301 = sshrl.u32 %s298, 1
    %s302 = sor.u32 %s298, %s301
    %s303 = sand.u32 %s302, 85
    %s304 = sshrl.u32 %s303, 1
    %s305 = sor.u32 %s303, %s304
    %s306 = sand.u32 51, %s305
    %s307 = sshrl.u32 %s306, 2
    %s308 = sor.u32 %s306, %s307
    %s309 = sand.u32 15, %s308
    %v310 = vld [vmem:[%s300] sm:%s309]
    %v311 = vunpack.c.l.bf16 %v310
    %v312 = vunpack.c.h.bf16 %v310
    %s313 = scalar_lea.vmem [#allocation0], 504
    %314 = vst [vmem:[%s313] sm:%s298] %v311
    %s315 = smul.addr 2, 62
    %s316 = scalar_lea.vmem [#allocation1], %s315
    %s317 = sshrl.u32 %s298, 1
    %s318 = sor.u32 %s298, %s317
    %s319 = sand.u32 %s318, 85
    %s320 = sshrl.u32 %s319, 1
    %s321 = sor.u32 %s319, %s320
    %s322 = sand.u32 51, %s321
    %s323 = sshrl.u32 %s322, 2
    %s324 = sor.u32 %s322, %s323
    %s325 = sand.u32 15, %s324
    %v326 = vld [vmem:[%s316] sm:%s325]
    %v327 = vunpack.c.l.bf16 %v326
    %v328 = vunpack.c.h.bf16 %v326
    %s329 = scalar_lea.vmem [#allocation0], 496
    %330 = vst [vmem:[%s329] sm:%s298] %v327
    %s331 = smul.addr 2, 61
    %s332 = scalar_lea.vmem [#allocation1], %s331
    %s333 = sshrl.u32 %s298, 1
    %s334 = sor.u32 %s298, %s333
    %s335 = sand.u32 %s334, 85
    %s336 = sshrl.u32 %s335, 1
    %s337 = sor.u32 %s335, %s336
    %s338 = sand.u32 51, %s337
    %s339 = sshrl.u32 %s338, 2
    %s340 = sor.u32 %s338, %s339
    %s341 = sand.u32 15, %s340
    %v342 = vld [vmem:[%s332] sm:%s341]
    %v343 = vunpack.c.l.bf16 %v342
    %v344 = vunpack.c.h.bf16 %v342
    %s345 = scalar_lea.vmem [#allocation0], 488
    %346 = vst [vmem:[%s345] sm:%s298] %v343
    %s347 = smul.addr 2, 60
    %s348 = scalar_lea.vmem [#allocation1], %s347
    %s349 = sshrl.u32 %s298, 1
    %s350 = sor.u32 %s298, %s349
    %s351 = sand.u32 %s350, 85
    %s352 = sshrl.u32 %s351, 1
    %s353 = sor.u32 %s351, %s352
    %s354 = sand.u32 51, %s353
    %s355 = sshrl.u32 %s354, 2
    %s356 = sor.u32 %s354, %s355
    %s357 = sand.u32 15, %s356
    %v358 = vld [vmem:[%s348] sm:%s357]
    %v359 = vunpack.c.l.bf16 %v358
    %v360 = vunpack.c.h.bf16 %v358
    %s361 = scalar_lea.vmem [#allocation0], 480
    %362 = vst [vmem:[%s361] sm:%s298] %v359
    %s363 = smul.addr 2, 59
    %s364 = scalar_lea.vmem [#allocation1], %s363
    %s365 = sshrl.u32 %s298, 1
    %s366 = sor.u32 %s298, %s365
    %s367 = sand.u32 %s366, 85
    %s368 = sshrl.u32 %s367, 1
    %s369 = sor.u32 %s367, %s368
    %s370 = sand.u32 51, %s369
    %s371 = sshrl.u32 %s370, 2
    %s372 = sor.u32 %s370, %s371
    %s373 = sand.u32 15, %s372
    %v374 = vld [vmem:[%s364] sm:%s373]
    %v375 = vunpack.c.l.bf16 %v374
    %v376 = vunpack.c.h.bf16 %v374
    %s377 = scalar_lea.vmem [#allocation0], 472
    %378 = vst [vmem:[%s377] sm:%s298] %v375
    %s379 = smul.addr 2, 58
    %s380 = scalar_lea.vmem [#allocation1], %s379
    %s381 = sshrl.u32 %s298, 1
    %s382 = sor.u32 %s298, %s381
    %s383 = sand.u32 %s382, 85
    %s384 = sshrl.u32 %s383, 1
    %s385 = sor.u32 %s383, %s384
    %s386 = sand.u32 51, %s385
    %s387 = sshrl.u32 %s386, 2
    %s388 = sor.u32 %s386, %s387
    %s389 = sand.u32 15, %s388
    %v390 = vld [vmem:[%s380] sm:%s389]
    %v391 = vunpack.c.l.bf16 %v390
    %v392 = vunpack.c.h.bf16 %v390
    %s393 = scalar_lea.vmem [#allocation0], 464
    %394 = vst [vmem:[%s393] sm:%s298] %v391
    %s395 = smul.addr 2, 57
    %s396 = scalar_lea.vmem [#allocation1], %s395
    %s397 = sshrl.u32 %s298, 1
    %s398 = sor.u32 %s298, %s397
    %s399 = sand.u32 %s398, 85
    %s400 = sshrl.u32 %s399, 1
    %s401 = sor.u32 %s399, %s400
    %s402 = sand.u32 51, %s401
    %s403 = sshrl.u32 %s402, 2
    %s404 = sor.u32 %s402, %s403
    %s405 = sand.u32 15, %s404
    %v406 = vld [vmem:[%s396] sm:%s405]
    %v407 = vunpack.c.l.bf16 %v406
    %v408 = vunpack.c.h.bf16 %v406
    %s409 = scalar_lea.vmem [#allocation0], 456
    %410 = vst [vmem:[%s409] sm:%s298] %v407
    %s411 = smul.addr 2, 56
    %s412 = scalar_lea.vmem [#allocation1], %s411
    %s413 = sshrl.u32 %s298, 1
    %s414 = sor.u32 %s298, %s413
    %s415 = sand.u32 %s414, 85
    %s416 = sshrl.u32 %s415, 1
    %s417 = sor.u32 %s415, %s416
    %s418 = sand.u32 51, %s417
    %s419 = sshrl.u32 %s418, 2
    %s420 = sor.u32 %s418, %s419
    %s421 = sand.u32 15, %s420
    %v422 = vld [vmem:[%s412] sm:%s421]
    %v423 = vunpack.c.l.bf16 %v422
    %v424 = vunpack.c.h.bf16 %v422
    %s425 = scalar_lea.vmem [#allocation0], 448
    %426 = vst [vmem:[%s425] sm:%s298] %v423
    %s427 = smul.addr 2, 55
    %s428 = scalar_lea.vmem [#allocation1], %s427
    %s429 = sshrl.u32 %s298, 1
    %s430 = sor.u32 %s298, %s429
    %s431 = sand.u32 %s430, 85
    %s432 = sshrl.u32 %s431, 1
    %s433 = sor.u32 %s431, %s432
    %s434 = sand.u32 51, %s433
    %s435 = sshrl.u32 %s434, 2
    %s436 = sor.u32 %s434, %s435
    %s437 = sand.u32 15, %s436
    %v438 = vld [vmem:[%s428] sm:%s437]
    %v439 = vunpack.c.l.bf16 %v438
    %v440 = vunpack.c.h.bf16 %v438
    %s441 = scalar_lea.vmem [#allocation0], 440
    %442 = vst [vmem:[%s441] sm:%s298] %v439
    %s443 = smul.addr 2, 54
    %s444 = scalar_lea.vmem [#allocation1], %s443
    %s445 = sshrl.u32 %s298, 1
    %s446 = sor.u32 %s298, %s445
    %s447 = sand.u32 %s446, 85
    %s448 = sshrl.u32 %s447, 1
    %s449 = sor.u32 %s447, %s448
    %s450 = sand.u32 51, %s449
    %s451 = sshrl.u32 %s450, 2
    %s452 = sor.u32 %s450, %s451
    %s453 = sand.u32 15, %s452
    %v454 = vld [vmem:[%s444] sm:%s453]
    %v455 = vunpack.c.l.bf16 %v454
    %v456 = vunpack.c.h.bf16 %v454
    %s457 = scalar_lea.vmem [#allocation0], 432
    %458 = vst [vmem:[%s457] sm:%s298] %v455
    %s459 = smul.addr 2, 53
    %s460 = scalar_lea.vmem [#allocation1], %s459
    %s461 = sshrl.u32 %s298, 1
    %s462 = sor.u32 %s298, %s461
    %s463 = sand.u32 %s462, 85
    %s464 = sshrl.u32 %s463, 1
    %s465 = sor.u32 %s463, %s464
    %s466 = sand.u32 51, %s465
    %s467 = sshrl.u32 %s466, 2
    %s468 = sor.u32 %s466, %s467
    %s469 = sand.u32 15, %s468
    %v470 = vld [vmem:[%s460] sm:%s469]
    %v471 = vunpack.c.l.bf16 %v470
    %v472 = vunpack.c.h.bf16 %v470
    %s473 = scalar_lea.vmem [#allocation0], 424
    %474 = vst [vmem:[%s473] sm:%s298] %v471
    %s475 = smul.addr 2, 52
    %s476 = scalar_lea.vmem [#allocation1], %s475
    %s477 = sshrl.u32 %s298, 1
    %s478 = sor.u32 %s298, %s477
    %s479 = sand.u32 %s478, 85
    %s480 = sshrl.u32 %s479, 1
    %s481 = sor.u32 %s479, %s480
    %s482 = sand.u32 51, %s481
    %s483 = sshrl.u32 %s482, 2
    %s484 = sor.u32 %s482, %s483
    %s485 = sand.u32 15, %s484
    %v486 = vld [vmem:[%s476] sm:%s485]
    %v487 = vunpack.c.l.bf16 %v486
    %v488 = vunpack.c.h.bf16 %v486
    %s489 = scalar_lea.vmem [#allocation0], 416
    %490 = vst [vmem:[%s489] sm:%s298] %v487
    %s491 = smul.addr 2, 51
    %s492 = scalar_lea.vmem [#allocation1], %s491
    %s493 = sshrl.u32 %s298, 1
    %s494 = sor.u32 %s298, %s493
    %s495 = sand.u32 %s494, 85
    %s496 = sshrl.u32 %s495, 1
    %s497 = sor.u32 %s495, %s496
    %s498 = sand.u32 51, %s497
    %s499 = sshrl.u32 %s498, 2
    %s500 = sor.u32 %s498, %s499
    %s501 = sand.u32 15, %s500
    %v502 = vld [vmem:[%s492] sm:%s501]
    %v503 = vunpack.c.l.bf16 %v502
    %v504 = vunpack.c.h.bf16 %v502
    %s505 = scalar_lea.vmem [#allocation0], 408
    %506 = vst [vmem:[%s505] sm:%s298] %v503
    %s507 = smul.addr 2, 50
    %s508 = scalar_lea.vmem [#allocation1], %s507
    %s509 = sshrl.u32 %s298, 1
    %s510 = sor.u32 %s298, %s509
    %s511 = sand.u32 %s510, 85
    %s512 = sshrl.u32 %s511, 1
    %s513 = sor.u32 %s511, %s512
    %s514 = sand.u32 51, %s513
    %s515 = sshrl.u32 %s514, 2
    %s516 = sor.u32 %s514, %s515
    %s517 = sand.u32 15, %s516
    %v518 = vld [vmem:[%s508] sm:%s517]
    %v519 = vunpack.c.l.bf16 %v518
    %v520 = vunpack.c.h.bf16 %v518
    %s521 = scalar_lea.vmem [#allocation0], 400
    %522 = vst [vmem:[%s521] sm:%s298] %v519
    %s523 = smul.addr 2, 49
    %s524 = scalar_lea.vmem [#allocation1], %s523
    %s525 = sshrl.u32 %s298, 1
    %s526 = sor.u32 %s298, %s525
    %s527 = sand.u32 %s526, 85
    %s528 = sshrl.u32 %s527, 1
    %s529 = sor.u32 %s527, %s528
    %s530 = sand.u32 51, %s529
    %s531 = sshrl.u32 %s530, 2
    %s532 = sor.u32 %s530, %s531
    %s533 = sand.u32 15, %s532
    %v534 = vld [vmem:[%s524] sm:%s533]
    %v535 = vunpack.c.l.bf16 %v534
    %v536 = vunpack.c.h.bf16 %v534
    %s537 = scalar_lea.vmem [#allocation0], 392
    %538 = vst [vmem:[%s537] sm:%s298] %v535
    %s539 = smul.addr 2, 48
    %s540 = scalar_lea.vmem [#allocation1], %s539
    %s541 = sshrl.u32 %s298, 1
    %s542 = sor.u32 %s298, %s541
    %s543 = sand.u32 %s542, 85
    %s544 = sshrl.u32 %s543, 1
    %s545 = sor.u32 %s543, %s544
    %s546 = sand.u32 51, %s545
    %s547 = sshrl.u32 %s546, 2
    %s548 = sor.u32 %s546, %s547
    %s549 = sand.u32 15, %s548
    %v550 = vld [vmem:[%s540] sm:%s549]
    %v551 = vunpack.c.l.bf16 %v550
    %v552 = vunpack.c.h.bf16 %v550
    %s553 = scalar_lea.vmem [#allocation0], 384
    %554 = vst [vmem:[%s553] sm:%s298] %v551
    %s555 = smul.addr 2, 47
    %s556 = scalar_lea.vmem [#allocation1], %s555
    %s557 = sshrl.u32 %s298, 1
    %s558 = sor.u32 %s298, %s557
    %s559 = sand.u32 %s558, 85
    %s560 = sshrl.u32 %s559, 1
    %s561 = sor.u32 %s559, %s560
    %s562 = sand.u32 51, %s561
    %s563 = sshrl.u32 %s562, 2
    %s564 = sor.u32 %s562, %s563
    %s565 = sand.u32 15, %s564
    %v566 = vld [vmem:[%s556] sm:%s565]
    %v567 = vunpack.c.l.bf16 %v566
    %v568 = vunpack.c.h.bf16 %v566
    %s569 = scalar_lea.vmem [#allocation0], 376
    %570 = vst [vmem:[%s569] sm:%s298] %v567
    %s571 = smul.addr 2, 46
    %s572 = scalar_lea.vmem [#allocation1], %s571
    %s573 = sshrl.u32 %s298, 1
    %s574 = sor.u32 %s298, %s573
    %s575 = sand.u32 %s574, 85
    %s576 = sshrl.u32 %s575, 1
    %s577 = sor.u32 %s575, %s576
    %s578 = sand.u32 51, %s577
    %s579 = sshrl.u32 %s578, 2
    %s580 = sor.u32 %s578, %s579
    %s581 = sand.u32 15, %s580
    %v582 = vld [vmem:[%s572] sm:%s581]
    %v583 = vunpack.c.l.bf16 %v582
    %v584 = vunpack.c.h.bf16 %v582
    %s585 = scalar_lea.vmem [#allocation0], 368
    %586 = vst [vmem:[%s585] sm:%s298] %v583
    %s587 = smul.addr 2, 45
    %s588 = scalar_lea.vmem [#allocation1], %s587
    %s589 = sshrl.u32 %s298, 1
    %s590 = sor.u32 %s298, %s589
    %s591 = sand.u32 %s590, 85
    %s592 = sshrl.u32 %s591, 1
    %s593 = sor.u32 %s591, %s592
    %s594 = sand.u32 51, %s593
    %s595 = sshrl.u32 %s594, 2
    %s596 = sor.u32 %s594, %s595
    %s597 = sand.u32 15, %s596
    %v598 = vld [vmem:[%s588] sm:%s597]
    %v599 = vunpack.c.l.bf16 %v598
    %v600 = vunpack.c.h.bf16 %v598
    %s601 = scalar_lea.vmem [#allocation0], 360
    %602 = vst [vmem:[%s601] sm:%s298] %v599
    %s603 = smul.addr 2, 44
    %s604 = scalar_lea.vmem [#allocation1], %s603
    %s605 = sshrl.u32 %s298, 1
    %s606 = sor.u32 %s298, %s605
    %s607 = sand.u32 %s606, 85
    %s608 = sshrl.u32 %s607, 1
    %s609 = sor.u32 %s607, %s608
    %s610 = sand.u32 51, %s609
    %s611 = sshrl.u32 %s610, 2
    %s612 = sor.u32 %s610, %s611
    %s613 = sand.u32 15, %s612
    %v614 = vld [vmem:[%s604] sm:%s613]
    %v615 = vunpack.c.l.bf16 %v614
    %v616 = vunpack.c.h.bf16 %v614
    %s617 = scalar_lea.vmem [#allocation0], 352
    %618 = vst [vmem:[%s617] sm:%s298] %v615
    %s619 = smul.addr 2, 43
    %s620 = scalar_lea.vmem [#allocation1], %s619
    %s621 = sshrl.u32 %s298, 1
    %s622 = sor.u32 %s298, %s621
    %s623 = sand.u32 %s622, 85
    %s624 = sshrl.u32 %s623, 1
    %s625 = sor.u32 %s623, %s624
    %s626 = sand.u32 51, %s625
    %s627 = sshrl.u32 %s626, 2
    %s628 = sor.u32 %s626, %s627
    %s629 = sand.u32 15, %s628
    %v630 = vld [vmem:[%s620] sm:%s629]
    %v631 = vunpack.c.l.bf16 %v630
    %v632 = vunpack.c.h.bf16 %v630
    %s633 = scalar_lea.vmem [#allocation0], 344
    %634 = vst [vmem:[%s633] sm:%s298] %v631
    %s635 = smul.addr 2, 42
    %s636 = scalar_lea.vmem [#allocation1], %s635
    %s637 = sshrl.u32 %s298, 1
    %s638 = sor.u32 %s298, %s637
    %s639 = sand.u32 %s638, 85
    %s640 = sshrl.u32 %s639, 1
    %s641 = sor.u32 %s639, %s640
    %s642 = sand.u32 51, %s641
    %s643 = sshrl.u32 %s642, 2
    %s644 = sor.u32 %s642, %s643
    %s645 = sand.u32 15, %s644
    %v646 = vld [vmem:[%s636] sm:%s645]
    %v647 = vunpack.c.l.bf16 %v646
    %v648 = vunpack.c.h.bf16 %v646
    %s649 = scalar_lea.vmem [#allocation0], 336
    %650 = vst [vmem:[%s649] sm:%s298] %v647
    %s651 = smul.addr 2, 41
    %s652 = scalar_lea.vmem [#allocation1], %s651
    %s653 = sshrl.u32 %s298, 1
    %s654 = sor.u32 %s298, %s653
    %s655 = sand.u32 %s654, 85
    %s656 = sshrl.u32 %s655, 1
    %s657 = sor.u32 %s655, %s656
    %s658 = sand.u32 51, %s657
    %s659 = sshrl.u32 %s658, 2
    %s660 = sor.u32 %s658, %s659
    %s661 = sand.u32 15, %s660
    %v662 = vld [vmem:[%s652] sm:%s661]
    %v663 = vunpack.c.l.bf16 %v662
    %v664 = vunpack.c.h.bf16 %v662
    %s665 = scalar_lea.vmem [#allocation0], 328
    %666 = vst [vmem:[%s665] sm:%s298] %v663
    %s667 = smul.addr 2, 40
    %s668 = scalar_lea.vmem [#allocation1], %s667
    %s669 = sshrl.u32 %s298, 1
    %s670 = sor.u32 %s298, %s669
    %s671 = sand.u32 %s670, 85
    %s672 = sshrl.u32 %s671, 1
    %s673 = sor.u32 %s671, %s672
    %s674 = sand.u32 51, %s673
    %s675 = sshrl.u32 %s674, 2
    %s676 = sor.u32 %s674, %s675
    %s677 = sand.u32 15, %s676
    %v678 = vld [vmem:[%s668] sm:%s677]
    %v679 = vunpack.c.l.bf16 %v678
    %v680 = vunpack.c.h.bf16 %v678
    %s681 = scalar_lea.vmem [#allocation0], 320
    %682 = vst [vmem:[%s681] sm:%s298] %v679
    %s683 = smul.addr 2, 39
    %s684 = scalar_lea.vmem [#allocation1], %s683
    %s685 = sshrl.u32 %s298, 1
    %s686 = sor.u32 %s298, %s685
    %s687 = sand.u32 %s686, 85
    %s688 = sshrl.u32 %s687, 1
    %s689 = sor.u32 %s687, %s688
    %s690 = sand.u32 51, %s689
    %s691 = sshrl.u32 %s690, 2
    %s692 = sor.u32 %s690, %s691
    %s693 = sand.u32 15, %s692
    %v694 = vld [vmem:[%s684] sm:%s693]
    %v695 = vunpack.c.l.bf16 %v694
    %v696 = vunpack.c.h.bf16 %v694
    %s697 = scalar_lea.vmem [#allocation0], 312
    %698 = vst [vmem:[%s697] sm:%s298] %v695
    %s699 = smul.addr 2, 38
    %s700 = scalar_lea.vmem [#allocation1], %s699
    %s701 = sshrl.u32 %s298, 1
    %s702 = sor.u32 %s298, %s701
    %s703 = sand.u32 %s702, 85
    %s704 = sshrl.u32 %s703, 1
    %s705 = sor.u32 %s703, %s704
    %s706 = sand.u32 51, %s705
    %s707 = sshrl.u32 %s706, 2
    %s708 = sor.u32 %s706, %s707
    %s709 = sand.u32 15, %s708
    %v710 = vld [vmem:[%s700] sm:%s709]
    %v711 = vunpack.c.l.bf16 %v710
    %v712 = vunpack.c.h.bf16 %v710
    %s713 = scalar_lea.vmem [#allocation0], 304
    %714 = vst [vmem:[%s713] sm:%s298] %v711
    %s715 = smul.addr 2, 37
    %s716 = scalar_lea.vmem [#allocation1], %s715
    %s717 = sshrl.u32 %s298, 1
    %s718 = sor.u32 %s298, %s717
    %s719 = sand.u32 %s718, 85
    %s720 = sshrl.u32 %s719, 1
    %s721 = sor.u32 %s719, %s720
    %s722 = sand.u32 51, %s721
    %s723 = sshrl.u32 %s722, 2
    %s724 = sor.u32 %s722, %s723
    %s725 = sand.u32 15, %s724
    %v726 = vld [vmem:[%s716] sm:%s725]
    %v727 = vunpack.c.l.bf16 %v726
    %v728 = vunpack.c.h.bf16 %v726
    %s729 = scalar_lea.vmem [#allocation0], 296
    %730 = vst [vmem:[%s729] sm:%s298] %v727
    %s731 = smul.addr 2, 36
    %s732 = scalar_lea.vmem [#allocation1], %s731
    %s733 = sshrl.u32 %s298, 1
    %s734 = sor.u32 %s298, %s733
    %s735 = sand.u32 %s734, 85
    %s736 = sshrl.u32 %s735, 1
    %s737 = sor.u32 %s735, %s736
    %s738 = sand.u32 51, %s737
    %s739 = sshrl.u32 %s738, 2
    %s740 = sor.u32 %s738, %s739
    %s741 = sand.u32 15, %s740
    %v742 = vld [vmem:[%s732] sm:%s741]
    %v743 = vunpack.c.l.bf16 %v742
    %v744 = vunpack.c.h.bf16 %v742
    %s745 = scalar_lea.vmem [#allocation0], 288
    %746 = vst [vmem:[%s745] sm:%s298] %v743
    %s747 = smul.addr 2, 35
    %s748 = scalar_lea.vmem [#allocation1], %s747
    %s749 = sshrl.u32 %s298, 1
    %s750 = sor.u32 %s298, %s749
    %s751 = sand.u32 %s750, 85
    %s752 = sshrl.u32 %s751, 1
    %s753 = sor.u32 %s751, %s752
    %s754 = sand.u32 51, %s753
    %s755 = sshrl.u32 %s754, 2
    %s756 = sor.u32 %s754, %s755
    %s757 = sand.u32 15, %s756
    %v758 = vld [vmem:[%s748] sm:%s757]
    %v759 = vunpack.c.l.bf16 %v758
    %v760 = vunpack.c.h.bf16 %v758
    %s761 = scalar_lea.vmem [#allocation0], 280
    %762 = vst [vmem:[%s761] sm:%s298] %v759
    %s763 = smul.addr 2, 34
    %s764 = scalar_lea.vmem [#allocation1], %s763
    %s765 = sshrl.u32 %s298, 1
    %s766 = sor.u32 %s298, %s765
    %s767 = sand.u32 %s766, 85
    %s768 = sshrl.u32 %s767, 1
    %s769 = sor.u32 %s767, %s768
    %s770 = sand.u32 51, %s769
    %s771 = sshrl.u32 %s770, 2
    %s772 = sor.u32 %s770, %s771
    %s773 = sand.u32 15, %s772
    %v774 = vld [vmem:[%s764] sm:%s773]
    %v775 = vunpack.c.l.bf16 %v774
    %v776 = vunpack.c.h.bf16 %v774
    %s777 = scalar_lea.vmem [#allocation0], 272
    %778 = vst [vmem:[%s777] sm:%s298] %v775
    %s779 = smul.addr 2, 33
    %s780 = scalar_lea.vmem [#allocation1], %s779
    %s781 = sshrl.u32 %s298, 1
    %s782 = sor.u32 %s298, %s781
    %s783 = sand.u32 %s782, 85
    %s784 = sshrl.u32 %s783, 1
    %s785 = sor.u32 %s783, %s784
    %s786 = sand.u32 51, %s785
    %s787 = sshrl.u32 %s786, 2
    %s788 = sor.u32 %s786, %s787
    %s789 = sand.u32 15, %s788
    %v790 = vld [vmem:[%s780] sm:%s789]
    %v791 = vunpack.c.l.bf16 %v790
    %v792 = vunpack.c.h.bf16 %v790
    %s793 = scalar_lea.vmem [#allocation0], 264
    %794 = vst [vmem:[%s793] sm:%s298] %v791
    %s795 = smul.addr 2, 32
    %s796 = scalar_lea.vmem [#allocation1], %s795
    %s797 = sshrl.u32 %s298, 1
    %s798 = sor.u32 %s298, %s797
    %s799 = sand.u32 %s798, 85
    %s800 = sshrl.u32 %s799, 1
    %s801 = sor.u32 %s799, %s800
    %s802 = sand.u32 51, %s801
    %s803 = sshrl.u32 %s802, 2
    %s804 = sor.u32 %s802, %s803
    %s805 = sand.u32 15, %s804
    %v806 = vld [vmem:[%s796] sm:%s805]
    %v807 = vunpack.c.l.bf16 %v806
    %v808 = vunpack.c.h.bf16 %v806
    %s809 = scalar_lea.vmem [#allocation0], 256
    %810 = vst [vmem:[%s809] sm:%s298] %v807
    %s811 = smul.addr 2, 31
    %s812 = scalar_lea.vmem [#allocation1], %s811
    %s813 = sshrl.u32 %s298, 1
    %s814 = sor.u32 %s298, %s813
    %s815 = sand.u32 %s814, 85
    %s816 = sshrl.u32 %s815, 1
    %s817 = sor.u32 %s815, %s816
    %s818 = sand.u32 51, %s817
    %s819 = sshrl.u32 %s818, 2
    %s820 = sor.u32 %s818, %s819
    %s821 = sand.u32 15, %s820
    %v822 = vld [vmem:[%s812] sm:%s821]
    %v823 = vunpack.c.l.bf16 %v822
    %v824 = vunpack.c.h.bf16 %v822
    %s825 = scalar_lea.vmem [#allocation0], 248
    %826 = vst [vmem:[%s825] sm:%s298] %v823
    %s827 = smul.addr 2, 30
    %s828 = scalar_lea.vmem [#allocation1], %s827
    %s829 = sshrl.u32 %s298, 1
    %s830 = sor.u32 %s298, %s829
    %s831 = sand.u32 %s830, 85
    %s832 = sshrl.u32 %s831, 1
    %s833 = sor.u32 %s831, %s832
    %s834 = sand.u32 51, %s833
    %s835 = sshrl.u32 %s834, 2
    %s836 = sor.u32 %s834, %s835
    %s837 = sand.u32 15, %s836
    %v838 = vld [vmem:[%s828] sm:%s837]
    %v839 = vunpack.c.l.bf16 %v838
    %v840 = vunpack.c.h.bf16 %v838
    %s841 = scalar_lea.vmem [#allocation0], 240
    %842 = vst [vmem:[%s841] sm:%s298] %v839
    %s843 = smul.addr 2, 29
    %s844 = scalar_lea.vmem [#allocation1], %s843
    %s845 = sshrl.u32 %s298, 1
    %s846 = sor.u32 %s298, %s845
    %s847 = sand.u32 %s846, 85
    %s848 = sshrl.u32 %s847, 1
    %s849 = sor.u32 %s847, %s848
    %s850 = sand.u32 51, %s849
    %s851 = sshrl.u32 %s850, 2
    %s852 = sor.u32 %s850, %s851
    %s853 = sand.u32 15, %s852
    %v854 = vld [vmem:[%s844] sm:%s853]
    %v855 = vunpack.c.l.bf16 %v854
    %v856 = vunpack.c.h.bf16 %v854
    %s857 = scalar_lea.vmem [#allocation0], 232
    %858 = vst [vmem:[%s857] sm:%s298] %v855
    %s859 = smul.addr 2, 28
    %s860 = scalar_lea.vmem [#allocation1], %s859
    %s861 = sshrl.u32 %s298, 1
    %s862 = sor.u32 %s298, %s861
    %s863 = sand.u32 %s862, 85
    %s864 = sshrl.u32 %s863, 1
    %s865 = sor.u32 %s863, %s864
    %s866 = sand.u32 51, %s865
    %s867 = sshrl.u32 %s866, 2
    %s868 = sor.u32 %s866, %s867
    %s869 = sand.u32 15, %s868
    %v870 = vld [vmem:[%s860] sm:%s869]
    %v871 = vunpack.c.l.bf16 %v870
    %v872 = vunpack.c.h.bf16 %v870
    %s873 = scalar_lea.vmem [#allocation0], 224
    %874 = vst [vmem:[%s873] sm:%s298] %v871
    %s875 = smul.addr 2, 27
    %s876 = scalar_lea.vmem [#allocation1], %s875
    %s877 = sshrl.u32 %s298, 1
    %s878 = sor.u32 %s298, %s877
    %s879 = sand.u32 %s878, 85
    %s880 = sshrl.u32 %s879, 1
    %s881 = sor.u32 %s879, %s880
    %s882 = sand.u32 51, %s881
    %s883 = sshrl.u32 %s882, 2
    %s884 = sor.u32 %s882, %s883
    %s885 = sand.u32 15, %s884
    %v886 = vld [vmem:[%s876] sm:%s885]
    %v887 = vunpack.c.l.bf16 %v886
    %v888 = vunpack.c.h.bf16 %v886
    %s889 = scalar_lea.vmem [#allocation0], 216
    %890 = vst [vmem:[%s889] sm:%s298] %v887
    %s891 = smul.addr 2, 26
    %s892 = scalar_lea.vmem [#allocation1], %s891
    %s893 = sshrl.u32 %s298, 1
    %s894 = sor.u32 %s298, %s893
    %s895 = sand.u32 %s894, 85
    %s896 = sshrl.u32 %s895, 1
    %s897 = sor.u32 %s895, %s896
    %s898 = sand.u32 51, %s897
    %s899 = sshrl.u32 %s898, 2
    %s900 = sor.u32 %s898, %s899
    %s901 = sand.u32 15, %s900
    %v902 = vld [vmem:[%s892] sm:%s901]
    %v903 = vunpack.c.l.bf16 %v902
    %v904 = vunpack.c.h.bf16 %v902
    %s905 = scalar_lea.vmem [#allocation0], 208
    %906 = vst [vmem:[%s905] sm:%s298] %v903
    %s907 = smul.addr 2, 25
    %s908 = scalar_lea.vmem [#allocation1], %s907
    %s909 = sshrl.u32 %s298, 1
    %s910 = sor.u32 %s298, %s909
    %s911 = sand.u32 %s910, 85
    %s912 = sshrl.u32 %s911, 1
    %s913 = sor.u32 %s911, %s912
    %s914 = sand.u32 51, %s913
    %s915 = sshrl.u32 %s914, 2
    %s916 = sor.u32 %s914, %s915
    %s917 = sand.u32 15, %s916
    %v918 = vld [vmem:[%s908] sm:%s917]
    %v919 = vunpack.c.l.bf16 %v918
    %v920 = vunpack.c.h.bf16 %v918
    %s921 = scalar_lea.vmem [#allocation0], 200
    %922 = vst [vmem:[%s921] sm:%s298] %v919
    %s923 = smul.addr 2, 24
    %s924 = scalar_lea.vmem [#allocation1], %s923
    %s925 = sshrl.u32 %s298, 1
    %s926 = sor.u32 %s298, %s925
    %s927 = sand.u32 %s926, 85
    %s928 = sshrl.u32 %s927, 1
    %s929 = sor.u32 %s927, %s928
    %s930 = sand.u32 51, %s929
    %s931 = sshrl.u32 %s930, 2
    %s932 = sor.u32 %s930, %s931
    %s933 = sand.u32 15, %s932
    %v934 = vld [vmem:[%s924] sm:%s933]
    %v935 = vunpack.c.l.bf16 %v934
    %v936 = vunpack.c.h.bf16 %v934
    %s937 = scalar_lea.vmem [#allocation0], 192
    %938 = vst [vmem:[%s937] sm:%s298] %v935
    %s939 = smul.addr 2, 23
    %s940 = scalar_lea.vmem [#allocation1], %s939
    %s941 = sshrl.u32 %s298, 1
    %s942 = sor.u32 %s298, %s941
    %s943 = sand.u32 %s942, 85
    %s944 = sshrl.u32 %s943, 1
    %s945 = sor.u32 %s943, %s944
    %s946 = sand.u32 51, %s945
    %s947 = sshrl.u32 %s946, 2
    %s948 = sor.u32 %s946, %s947
    %s949 = sand.u32 15, %s948
    %v950 = vld [vmem:[%s940] sm:%s949]
    %v951 = vunpack.c.l.bf16 %v950
    %v952 = vunpack.c.h.bf16 %v950
    %s953 = scalar_lea.vmem [#allocation0], 184
    %954 = vst [vmem:[%s953] sm:%s298] %v951
    %s955 = smul.addr 2, 22
    %s956 = scalar_lea.vmem [#allocation1], %s955
    %s957 = sshrl.u32 %s298, 1
    %s958 = sor.u32 %s298, %s957
    %s959 = sand.u32 %s958, 85
    %s960 = sshrl.u32 %s959, 1
    %s961 = sor.u32 %s959, %s960
    %s962 = sand.u32 51, %s961
    %s963 = sshrl.u32 %s962, 2
    %s964 = sor.u32 %s962, %s963
    %s965 = sand.u32 15, %s964
    %v966 = vld [vmem:[%s956] sm:%s965]
    %v967 = vunpack.c.l.bf16 %v966
    %v968 = vunpack.c.h.bf16 %v966
    %s969 = scalar_lea.vmem [#allocation0], 176
    %970 = vst [vmem:[%s969] sm:%s298] %v967
    %s971 = smul.addr 2, 21
    %s972 = scalar_lea.vmem [#allocation1], %s971
    %s973 = sshrl.u32 %s298, 1
    %s974 = sor.u32 %s298, %s973
    %s975 = sand.u32 %s974, 85
    %s976 = sshrl.u32 %s975, 1
    %s977 = sor.u32 %s975, %s976
    %s978 = sand.u32 51, %s977
    %s979 = sshrl.u32 %s978, 2
    %s980 = sor.u32 %s978, %s979
    %s981 = sand.u32 15, %s980
    %v982 = vld [vmem:[%s972] sm:%s981]
    %v983 = vunpack.c.l.bf16 %v982
    %v984 = vunpack.c.h.bf16 %v982
    %s985 = scalar_lea.vmem [#allocation0], 168
    %986 = vst [vmem:[%s985] sm:%s298] %v983
    %s987 = smul.addr 2, 20
    %s988 = scalar_lea.vmem [#allocation1], %s987
    %s989 = sshrl.u32 %s298, 1
    %s990 = sor.u32 %s298, %s989
    %s991 = sand.u32 %s990, 85
    %s992 = sshrl.u32 %s991, 1
    %s993 = sor.u32 %s991, %s992
    %s994 = sand.u32 51, %s993
    %s995 = sshrl.u32 %s994, 2
    %s996 = sor.u32 %s994, %s995
    %s997 = sand.u32 15, %s996
    %v998 = vld [vmem:[%s988] sm:%s997]
    %v999 = vunpack.c.l.bf16 %v998
    %v1000 = vunpack.c.h.bf16 %v998
    %s1001 = scalar_lea.vmem [#allocation0], 160
    %1002 = vst [vmem:[%s1001] sm:%s298] %v999
    %s1003 = smul.addr 2, 19
    %s1004 = scalar_lea.vmem [#allocation1], %s1003
    %s1005 = sshrl.u32 %s298, 1
    %s1006 = sor.u32 %s298, %s1005
    %s1007 = sand.u32 %s1006, 85
    %s1008 = sshrl.u32 %s1007, 1
    %s1009 = sor.u32 %s1007, %s1008
    %s1010 = sand.u32 51, %s1009
    %s1011 = sshrl.u32 %s1010, 2
    %s1012 = sor.u32 %s1010, %s1011
    %s1013 = sand.u32 15, %s1012
    %v1014 = vld [vmem:[%s1004] sm:%s1013]
    %v1015 = vunpack.c.l.bf16 %v1014
    %v1016 = vunpack.c.h.bf16 %v1014
    %s1017 = scalar_lea.vmem [#allocation0], 152
    %1018 = vst [vmem:[%s1017] sm:%s298] %v1015
    %s1019 = smul.addr 2, 18
    %s1020 = scalar_lea.vmem [#allocation1], %s1019
    %s1021 = sshrl.u32 %s298, 1
    %s1022 = sor.u32 %s298, %s1021
    %s1023 = sand.u32 %s1022, 85
    %s1024 = sshrl.u32 %s1023, 1
    %s1025 = sor.u32 %s1023, %s1024
    %s1026 = sand.u32 51, %s1025
    %s1027 = sshrl.u32 %s1026, 2
    %s1028 = sor.u32 %s1026, %s1027
    %s1029 = sand.u32 15, %s1028
    %v1030 = vld [vmem:[%s1020] sm:%s1029]
    %v1031 = vunpack.c.l.bf16 %v1030
    %v1032 = vunpack.c.h.bf16 %v1030
    %s1033 = scalar_lea.vmem [#allocation0], 144
    %1034 = vst [vmem:[%s1033] sm:%s298] %v1031
    %s1035 = smul.addr 2, 17
    %s1036 = scalar_lea.vmem [#allocation1], %s1035
    %s1037 = sshrl.u32 %s298, 1
    %s1038 = sor.u32 %s298, %s1037
    %s1039 = sand.u32 %s1038, 85
    %s1040 = sshrl.u32 %s1039, 1
    %s1041 = sor.u32 %s1039, %s1040
    %s1042 = sand.u32 51, %s1041
    %s1043 = sshrl.u32 %s1042, 2
    %s1044 = sor.u32 %s1042, %s1043
    %s1045 = sand.u32 15, %s1044
    %v1046 = vld [vmem:[%s1036] sm:%s1045]
    %v1047 = vunpack.c.l.bf16 %v1046
    %v1048 = vunpack.c.h.bf16 %v1046
    %s1049 = scalar_lea.vmem [#allocation0], 136
    %1050 = vst [vmem:[%s1049] sm:%s298] %v1047
    %s1051 = smul.addr 2, 16
    %s1052 = scalar_lea.vmem [#allocation1], %s1051
    %s1053 = sshrl.u32 %s298, 1
    %s1054 = sor.u32 %s298, %s1053
    %s1055 = sand.u32 %s1054, 85
    %s1056 = sshrl.u32 %s1055, 1
    %s1057 = sor.u32 %s1055, %s1056
    %s1058 = sand.u32 51, %s1057
    %s1059 = sshrl.u32 %s1058, 2
    %s1060 = sor.u32 %s1058, %s1059
    %s1061 = sand.u32 15, %s1060
    %v1062 = vld [vmem:[%s1052] sm:%s1061]
    %v1063 = vunpack.c.l.bf16 %v1062
    %v1064 = vunpack.c.h.bf16 %v1062
    %s1065 = scalar_lea.vmem [#allocation0], 128
    %1066 = vst [vmem:[%s1065] sm:%s298] %v1063
    %s1067 = smul.addr 2, 15
    %s1068 = scalar_lea.vmem [#allocation1], %s1067
    %s1069 = sshrl.u32 %s298, 1
    %s1070 = sor.u32 %s298, %s1069
    %s1071 = sand.u32 %s1070, 85
    %s1072 = sshrl.u32 %s1071, 1
    %s1073 = sor.u32 %s1071, %s1072
    %s1074 = sand.u32 51, %s1073
    %s1075 = sshrl.u32 %s1074, 2
    %s1076 = sor.u32 %s1074, %s1075
    %s1077 = sand.u32 15, %s1076
    %v1078 = vld [vmem:[%s1068] sm:%s1077]
    %v1079 = vunpack.c.l.bf16 %v1078
    %v1080 = vunpack.c.h.bf16 %v1078
    %s1081 = scalar_lea.vmem [#allocation0], 120
    %1082 = vst [vmem:[%s1081] sm:%s298] %v1079
    %s1083 = smul.addr 2, 14
    %s1084 = scalar_lea.vmem [#allocation1], %s1083
    %s1085 = sshrl.u32 %s298, 1
    %s1086 = sor.u32 %s298, %s1085
    %s1087 = sand.u32 %s1086, 85
    %s1088 = sshrl.u32 %s1087, 1
    %s1089 = sor.u32 %s1087, %s1088
    %s1090 = sand.u32 51, %s1089
    %s1091 = sshrl.u32 %s1090, 2
    %s1092 = sor.u32 %s1090, %s1091
    %s1093 = sand.u32 15, %s1092
    %v1094 = vld [vmem:[%s1084] sm:%s1093]
    %v1095 = vunpack.c.l.bf16 %v1094
    %v1096 = vunpack.c.h.bf16 %v1094
    %s1097 = scalar_lea.vmem [#allocation0], 112
    %1098 = vst [vmem:[%s1097] sm:%s298] %v1095
    %s1099 = smul.addr 2, 13
    %s1100 = scalar_lea.vmem [#allocation1], %s1099
    %s1101 = sshrl.u32 %s298, 1
    %s1102 = sor.u32 %s298, %s1101
    %s1103 = sand.u32 %s1102, 85
    %s1104 = sshrl.u32 %s1103, 1
    %s1105 = sor.u32 %s1103, %s1104
    %s1106 = sand.u32 51, %s1105
    %s1107 = sshrl.u32 %s1106, 2
    %s1108 = sor.u32 %s1106, %s1107
    %s1109 = sand.u32 15, %s1108
    %v1110 = vld [vmem:[%s1100] sm:%s1109]
    %v1111 = vunpack.c.l.bf16 %v1110
    %v1112 = vunpack.c.h.bf16 %v1110
    %s1113 = scalar_lea.vmem [#allocation0], 104
    %1114 = vst [vmem:[%s1113] sm:%s298] %v1111
    %s1115 = smul.addr 2, 12
    %s1116 = scalar_lea.vmem [#allocation1], %s1115
    %s1117 = sshrl.u32 %s298, 1
    %s1118 = sor.u32 %s298, %s1117
    %s1119 = sand.u32 %s1118, 85
    %s1120 = sshrl.u32 %s1119, 1
    %s1121 = sor.u32 %s1119, %s1120
    %s1122 = sand.u32 51, %s1121
    %s1123 = sshrl.u32 %s1122, 2
    %s1124 = sor.u32 %s1122, %s1123
    %s1125 = sand.u32 15, %s1124
    %v1126 = vld [vmem:[%s1116] sm:%s1125]
    %v1127 = vunpack.c.l.bf16 %v1126
    %v1128 = vunpack.c.h.bf16 %v1126
    %s1129 = scalar_lea.vmem [#allocation0], 96
    %1130 = vst [vmem:[%s1129] sm:%s298] %v1127
    %s1131 = smul.addr 2, 11
    %s1132 = scalar_lea.vmem [#allocation1], %s1131
    %s1133 = sshrl.u32 %s298, 1
    %s1134 = sor.u32 %s298, %s1133
    %s1135 = sand.u32 %s1134, 85
    %s1136 = sshrl.u32 %s1135, 1
    %s1137 = sor.u32 %s1135, %s1136
    %s1138 = sand.u32 51, %s1137
    %s1139 = sshrl.u32 %s1138, 2
    %s1140 = sor.u32 %s1138, %s1139
    %s1141 = sand.u32 15, %s1140
    %v1142 = vld [vmem:[%s1132] sm:%s1141]
    %v1143 = vunpack.c.l.bf16 %v1142
    %v1144 = vunpack.c.h.bf16 %v1142
    %s1145 = scalar_lea.vmem [#allocation0], 88
    %1146 = vst [vmem:[%s1145] sm:%s298] %v1143
    %s1147 = smul.addr 2, 10
    %s1148 = scalar_lea.vmem [#allocation1], %s1147
    %s1149 = sshrl.u32 %s298, 1
    %s1150 = sor.u32 %s298, %s1149
    %s1151 = sand.u32 %s1150, 85
    %s1152 = sshrl.u32 %s1151, 1
    %s1153 = sor.u32 %s1151, %s1152
    %s1154 = sand.u32 51, %s1153
    %s1155 = sshrl.u32 %s1154, 2
    %s1156 = sor.u32 %s1154, %s1155
    %s1157 = sand.u32 15, %s1156
    %v1158 = vld [vmem:[%s1148] sm:%s1157]
    %v1159 = vunpack.c.l.bf16 %v1158
    %v1160 = vunpack.c.h.bf16 %v1158
    %s1161 = scalar_lea.vmem [#allocation0], 80
    %1162 = vst [vmem:[%s1161] sm:%s298] %v1159
    %s1163 = smul.addr 2, 9
    %s1164 = scalar_lea.vmem [#allocation1], %s1163
    %s1165 = sshrl.u32 %s298, 1
    %s1166 = sor.u32 %s298, %s1165
    %s1167 = sand.u32 %s1166, 85
    %s1168 = sshrl.u32 %s1167, 1
    %s1169 = sor.u32 %s1167, %s1168
    %s1170 = sand.u32 51, %s1169
    %s1171 = sshrl.u32 %s1170, 2
    %s1172 = sor.u32 %s1170, %s1171
    %s1173 = sand.u32 15, %s1172
    %v1174 = vld [vmem:[%s1164] sm:%s1173]
    %v1175 = vunpack.c.l.bf16 %v1174
    %v1176 = vunpack.c.h.bf16 %v1174
    %s1177 = scalar_lea.vmem [#allocation0], 72
    %1178 = vst [vmem:[%s1177] sm:%s298] %v1175
    %s1179 = smul.addr 2, 8
    %s1180 = scalar_lea.vmem [#allocation1], %s1179
    %s1181 = sshrl.u32 %s298, 1
    %s1182 = sor.u32 %s298, %s1181
    %s1183 = sand.u32 %s1182, 85
    %s1184 = sshrl.u32 %s1183, 1
    %s1185 = sor.u32 %s1183, %s1184
    %s1186 = sand.u32 51, %s1185
    %s1187 = sshrl.u32 %s1186, 2
    %s1188 = sor.u32 %s1186, %s1187
    %s1189 = sand.u32 15, %s1188
    %v1190 = vld [vmem:[%s1180] sm:%s1189]
    %v1191 = vunpack.c.l.bf16 %v1190
    %v1192 = vunpack.c.h.bf16 %v1190
    %s1193 = scalar_lea.vmem [#allocation0], 64
    %1194 = vst [vmem:[%s1193] sm:%s298] %v1191
    %s1195 = smul.addr 2, 7
    %s1196 = scalar_lea.vmem [#allocation1], %s1195
    %s1197 = sshrl.u32 %s298, 1
    %s1198 = sor.u32 %s298, %s1197
    %s1199 = sand.u32 %s1198, 85
    %s1200 = sshrl.u32 %s1199, 1
    %s1201 = sor.u32 %s1199, %s1200
    %s1202 = sand.u32 51, %s1201
    %s1203 = sshrl.u32 %s1202, 2
    %s1204 = sor.u32 %s1202, %s1203
    %s1205 = sand.u32 15, %s1204
    %v1206 = vld [vmem:[%s1196] sm:%s1205]
    %v1207 = vunpack.c.l.bf16 %v1206
    %v1208 = vunpack.c.h.bf16 %v1206
    %s1209 = scalar_lea.vmem [#allocation0], 56
    %1210 = vst [vmem:[%s1209] sm:%s298] %v1207
    %s1211 = smul.addr 2, 6
    %s1212 = scalar_lea.vmem [#allocation1], %s1211
    %s1213 = sshrl.u32 %s298, 1
    %s1214 = sor.u32 %s298, %s1213
    %s1215 = sand.u32 %s1214, 85
    %s1216 = sshrl.u32 %s1215, 1
    %s1217 = sor.u32 %s1215, %s1216
    %s1218 = sand.u32 51, %s1217
    %s1219 = sshrl.u32 %s1218, 2
    %s1220 = sor.u32 %s1218, %s1219
    %s1221 = sand.u32 15, %s1220
    %v1222 = vld [vmem:[%s1212] sm:%s1221]
    %v1223 = vunpack.c.l.bf16 %v1222
    %v1224 = vunpack.c.h.bf16 %v1222
    %s1225 = scalar_lea.vmem [#allocation0], 48
    %1226 = vst [vmem:[%s1225] sm:%s298] %v1223
    %s1227 = smul.addr 2, 5
    %s1228 = scalar_lea.vmem [#allocation1], %s1227
    %s1229 = sshrl.u32 %s298, 1
    %s1230 = sor.u32 %s298, %s1229
    %s1231 = sand.u32 %s1230, 85
    %s1232 = sshrl.u32 %s1231, 1
    %s1233 = sor.u32 %s1231, %s1232
    %s1234 = sand.u32 51, %s1233
    %s1235 = sshrl.u32 %s1234, 2
    %s1236 = sor.u32 %s1234, %s1235
    %s1237 = sand.u32 15, %s1236
    %v1238 = vld [vmem:[%s1228] sm:%s1237]
    %v1239 = vunpack.c.l.bf16 %v1238
    %v1240 = vunpack.c.h.bf16 %v1238
    %s1241 = scalar_lea.vmem [#allocation0], 40
    %1242 = vst [vmem:[%s1241] sm:%s298] %v1239
    %s1243 = smul.addr 2, 4
    %s1244 = scalar_lea.vmem [#allocation1], %s1243
    %s1245 = sshrl.u32 %s298, 1
    %s1246 = sor.u32 %s298, %s1245
    %s1247 = sand.u32 %s1246, 85
    %s1248 = sshrl.u32 %s1247, 1
    %s1249 = sor.u32 %s1247, %s1248
    %s1250 = sand.u32 51, %s1249
    %s1251 = sshrl.u32 %s1250, 2
    %s1252 = sor.u32 %s1250, %s1251
    %s1253 = sand.u32 15, %s1252
    %v1254 = vld [vmem:[%s1244] sm:%s1253]
    %v1255 = vunpack.c.l.bf16 %v1254
    %v1256 = vunpack.c.h.bf16 %v1254
    %s1257 = scalar_lea.vmem [#allocation0], 32
    %1258 = vst [vmem:[%s1257] sm:%s298] %v1255
    %s1259 = smul.addr 2, 3
    %s1260 = scalar_lea.vmem [#allocation1], %s1259
    %s1261 = sshrl.u32 %s298, 1
    %s1262 = sor.u32 %s298, %s1261
    %s1263 = sand.u32 %s1262, 85
    %s1264 = sshrl.u32 %s1263, 1
    %s1265 = sor.u32 %s1263, %s1264
    %s1266 = sand.u32 51, %s1265
    %s1267 = sshrl.u32 %s1266, 2
    %s1268 = sor.u32 %s1266, %s1267
    %s1269 = sand.u32 15, %s1268
    %v1270 = vld [vmem:[%s1260] sm:%s1269]
    %v1271 = vunpack.c.l.bf16 %v1270
    %v1272 = vunpack.c.h.bf16 %v1270
    %s1273 = scalar_lea.vmem [#allocation0], 24
    %1274 = vst [vmem:[%s1273] sm:%s298] %v1271
    %s1275 = smul.addr 2, 2
    %s1276 = scalar_lea.vmem [#allocation1], %s1275
    %s1277 = sshrl.u32 %s298, 1
    %s1278 = sor.u32 %s298, %s1277
    %s1279 = sand.u32 %s1278, 85
    %s1280 = sshrl.u32 %s1279, 1
    %s1281 = sor.u32 %s1279, %s1280
    %s1282 = sand.u32 51, %s1281
    %s1283 = sshrl.u32 %s1282, 2
    %s1284 = sor.u32 %s1282, %s1283
    %s1285 = sand.u32 15, %s1284
    %v1286 = vld [vmem:[%s1276] sm:%s1285]
    %v1287 = vunpack.c.l.bf16 %v1286
    %v1288 = vunpack.c.h.bf16 %v1286
    %s1289 = scalar_lea.vmem [#allocation0], 16
    %1290 = vst [vmem:[%s1289] sm:%s298] %v1287
    %s1291 = scalar_lea.vmem [#allocation1], 2
    %s1292 = sshrl.u32 %s298, 1
    %s1293 = sor.u32 %s298, %s1292
    %s1294 = sand.u32 %s1293, 85
    %s1295 = sshrl.u32 %s1294, 1
    %s1296 = sor.u32 %s1294, %s1295
    %s1297 = sand.u32 51, %s1296
    %s1298 = sshrl.u32 %s1297, 2
    %s1299 = sor.u32 %s1297, %s1298
    %s1300 = sand.u32 15, %s1299
    %v1301 = vld [vmem:[%s1291] sm:%s1300]
    %v1302 = vunpack.c.l.bf16 %v1301
    %v1303 = vunpack.c.h.bf16 %v1301
    %s1304 = scalar_lea.vmem [#allocation0], 8
    %1305 = vst [vmem:[%s1304] sm:%s298] %v1302
    %s1306 = sshrl.u32 %s298, 1
    %s1307 = sor.u32 %s298, %s1306
    %s1308 = sand.u32 %s1307, 85
    %s1309 = sshrl.u32 %s1308, 1
    %s1310 = sor.u32 %s1308, %s1309
    %s1311 = sand.u32 51, %s1310
    %s1312 = sshrl.u32 %s1311, 2
    %s1313 = sor.u32 %s1311, %s1312
    %s1314 = sand.u32 15, %s1313
    %v1315 = vld [vmem:[#allocation1] sm:%s1314]
    %v1316 = vunpack.c.l.bf16 %v1315
    %v1317 = vunpack.c.h.bf16 %v1315
    %1318 = vst [vmem:[#allocation0] sm:%s298] %v1316
    %v1319 = vld [vmem:[#allocation0] sm:$0xff]
    %1320 = vperm.xlu0 %4, %v1319
    %v1321 = vpop.permute.xlu0 %1320
    %1322 = vst [vmem:[#allocation2] sm:$0xff] %v1321
    %s1323 = scalar_lea.vmem [#allocation2], 8
    %s1324 = scalar_lea.vmem [#allocation0], 8
    %v1325 = vld [vmem:[%s1324] sm:$0xff]
    %1326 = vperm.xlu0 %4, %v1325
    %v1327 = vpop.permute.xlu0 %1326
    %1328 = vst [vmem:[%s1323] sm:$0xff] %v1327
    %s1329 = scalar_lea.vmem [#allocation2], 16
    %s1330 = scalar_lea.vmem [#allocation0], 16
    %v1331 = vld [vmem:[%s1330] sm:$0xff]
    %1332 = vperm.xlu0 %4, %v1331
    %v1333 = vpop.permute.xlu0 %1332
    %1334 = vst [vmem:[%s1329] sm:$0xff] %v1333
    %s1335 = scalar_lea.vmem [#allocation2], 24
    %s1336 = scalar_lea.vmem [#allocation0], 24
    %v1337 = vld [vmem:[%s1336] sm:$0xff]
    %1338 = vperm.xlu0 %4, %v1337
    %v1339 = vpop.permute.xlu0 %1338
    %1340 = vst [vmem:[%s1335] sm:$0xff] %v1339
    %s1341 = scalar_lea.vmem [#allocation2], 32
    %s1342 = scalar_lea.vmem [#allocation0], 32
    %v1343 = vld [vmem:[%s1342] sm:$0xff]
    %1344 = vperm.xlu0 %4, %v1343
    %v1345 = vpop.permute.xlu0 %1344
    %1346 = vst [vmem:[%s1341] sm:$0xff] %v1345
    %s1347 = scalar_lea.vmem [#allocation2], 40
    %s1348 = scalar_lea.vmem [#allocation0], 40
    %v1349 = vld [vmem:[%s1348] sm:$0xff]
    %1350 = vperm.xlu0 %4, %v1349
    %v1351 = vpop.permute.xlu0 %1350
    %1352 = vst [vmem:[%s1347] sm:$0xff] %v1351
    %s1353 = scalar_lea.vmem [#allocation2], 48
    %s1354 = scalar_lea.vmem [#allocation0], 48
    %v1355 = vld [vmem:[%s1354] sm:$0xff]
    %1356 = vperm.xlu0 %4, %v1355
    %v1357 = vpop.permute.xlu0 %1356
    %1358 = vst [vmem:[%s1353] sm:$0xff] %v1357
    %s1359 = scalar_lea.vmem [#allocation2], 56
    %s1360 = scalar_lea.vmem [#allocation0], 56
    %v1361 = vld [vmem:[%s1360] sm:$0xff]
    %1362 = vperm.xlu0 %4, %v1361
    %v1363 = vpop.permute.xlu0 %1362
    %1364 = vst [vmem:[%s1359] sm:$0xff] %v1363
    %s1365 = scalar_lea.vmem [#allocation2], 64
    %s1366 = scalar_lea.vmem [#allocation0], 64
    %v1367 = vld [vmem:[%s1366] sm:$0xff]
    %1368 = vperm.xlu0 %4, %v1367
    %v1369 = vpop.permute.xlu0 %1368
    %1370 = vst [vmem:[%s1365] sm:$0xff] %v1369
    %s1371 = scalar_lea.vmem [#allocation2], 72
    %s1372 = scalar_lea.vmem [#allocation0], 72
    %v1373 = vld [vmem:[%s1372] sm:$0xff]
    %1374 = vperm.xlu0 %4, %v1373
    %v1375 = vpop.permute.xlu0 %1374
    %1376 = vst [vmem:[%s1371] sm:$0xff] %v1375
    %s1377 = scalar_lea.vmem [#allocation2], 80
    %s1378 = scalar_lea.vmem [#allocation0], 80
    %v1379 = vld [vmem:[%s1378] sm:$0xff]
    %1380 = vperm.xlu0 %4, %v1379
    %v1381 = vpop.permute.xlu0 %1380
    %1382 = vst [vmem:[%s1377] sm:$0xff] %v1381
    %s1383 = scalar_lea.vmem [#allocation2], 88
    %s1384 = scalar_lea.vmem [#allocation0], 88
    %v1385 = vld [vmem:[%s1384] sm:$0xff]
    %1386 = vperm.xlu0 %4, %v1385
    %v1387 = vpop.permute.xlu0 %1386
    %1388 = vst [vmem:[%s1383] sm:$0xff] %v1387
    %s1389 = scalar_lea.vmem [#allocation2], 96
    %s1390 = scalar_lea.vmem [#allocation0], 96
    %v1391 = vld [vmem:[%s1390] sm:$0xff]
    %1392 = vperm.xlu0 %4, %v1391
    %v1393 = vpop.permute.xlu0 %1392
    %1394 = vst [vmem:[%s1389] sm:$0xff] %v1393
    %s1395 = scalar_lea.vmem [#allocation2], 104
    %s1396 = scalar_lea.vmem [#allocation0], 104
    %v1397 = vld [vmem:[%s1396] sm:$0xff]
    %1398 = vperm.xlu0 %4, %v1397
    %v1399 = vpop.permute.xlu0 %1398
    %1400 = vst [vmem:[%s1395] sm:$0xff] %v1399
    %s1401 = scalar_lea.vmem [#allocation2], 112
    %s1402 = scalar_lea.vmem [#allocation0], 112
    %v1403 = vld [vmem:[%s1402] sm:$0xff]
    %1404 = vperm.xlu0 %4, %v1403
    %v1405 = vpop.permute.xlu0 %1404
    %1406 = vst [vmem:[%s1401] sm:$0xff] %v1405
    %s1407 = scalar_lea.vmem [#allocation2], 120
    %s1408 = scalar_lea.vmem [#allocation0], 120
    %v1409 = vld [vmem:[%s1408] sm:$0xff]
    %1410 = vperm.xlu0 %4, %v1409
    %v1411 = vpop.permute.xlu0 %1410
    %1412 = vst [vmem:[%s1407] sm:$0xff] %v1411
    %s1413 = scalar_lea.vmem [#allocation2], 128
    %s1414 = scalar_lea.vmem [#allocation0], 128
    %v1415 = vld [vmem:[%s1414] sm:$0xff]
    %1416 = vperm.xlu0 %4, %v1415
    %v1417 = vpop.permute.xlu0 %1416
    %1418 = vst [vmem:[%s1413] sm:$0xff] %v1417
    %s1419 = scalar_lea.vmem [#allocation2], 136
    %s1420 = scalar_lea.vmem [#allocation0], 136
    %v1421 = vld [vmem:[%s1420] sm:$0xff]
    %1422 = vperm.xlu0 %4, %v1421
    %v1423 = vpop.permute.xlu0 %1422
    %1424 = vst [vmem:[%s1419] sm:$0xff] %v1423
    %s1425 = scalar_lea.vmem [#allocation2], 144
    %s1426 = scalar_lea.vmem [#allocation0], 144
    %v1427 = vld [vmem:[%s1426] sm:$0xff]
    %1428 = vperm.xlu0 %4, %v1427
    %v1429 = vpop.permute.xlu0 %1428
    %1430 = vst [vmem:[%s1425] sm:$0xff] %v1429
    %s1431 = scalar_lea.vmem [#allocation2], 152
    %s1432 = scalar_lea.vmem [#allocation0], 152
    %v1433 = vld [vmem:[%s1432] sm:$0xff]
    %1434 = vperm.xlu0 %4, %v1433
    %v1435 = vpop.permute.xlu0 %1434
    %1436 = vst [vmem:[%s1431] sm:$0xff] %v1435
    %s1437 = scalar_lea.vmem [#allocation2], 160
    %s1438 = scalar_lea.vmem [#allocation0], 160
    %v1439 = vld [vmem:[%s1438] sm:$0xff]
    %1440 = vperm.xlu0 %4, %v1439
    %v1441 = vpop.permute.xlu0 %1440
    %1442 = vst [vmem:[%s1437] sm:$0xff] %v1441
    %s1443 = scalar_lea.vmem [#allocation2], 168
    %s1444 = scalar_lea.vmem [#allocation0], 168
    %v1445 = vld [vmem:[%s1444] sm:$0xff]
    %1446 = vperm.xlu0 %4, %v1445
    %v1447 = vpop.permute.xlu0 %1446
    %1448 = vst [vmem:[%s1443] sm:$0xff] %v1447
    %s1449 = scalar_lea.vmem [#allocation2], 176
    %s1450 = scalar_lea.vmem [#allocation0], 176
    %v1451 = vld [vmem:[%s1450] sm:$0xff]
    %1452 = vperm.xlu0 %4, %v1451
    %v1453 = vpop.permute.xlu0 %1452
    %1454 = vst [vmem:[%s1449] sm:$0xff] %v1453
    %s1455 = scalar_lea.vmem [#allocation2], 184
    %s1456 = scalar_lea.vmem [#allocation0], 184
    %v1457 = vld [vmem:[%s1456] sm:$0xff]
    %1458 = vperm.xlu0 %4, %v1457
    %v1459 = vpop.permute.xlu0 %1458
    %1460 = vst [vmem:[%s1455] sm:$0xff] %v1459
    %s1461 = scalar_lea.vmem [#allocation2], 192
    %s1462 = scalar_lea.vmem [#allocation0], 192
    %v1463 = vld [vmem:[%s1462] sm:$0xff]
    %1464 = vperm.xlu0 %4, %v1463
    %v1465 = vpop.permute.xlu0 %1464
    %1466 = vst [vmem:[%s1461] sm:$0xff] %v1465
    %s1467 = scalar_lea.vmem [#allocation2], 200
    %s1468 = scalar_lea.vmem [#allocation0], 200
    %v1469 = vld [vmem:[%s1468] sm:$0xff]
    %1470 = vperm.xlu0 %4, %v1469
    %v1471 = vpop.permute.xlu0 %1470
    %1472 = vst [vmem:[%s1467] sm:$0xff] %v1471
    %s1473 = scalar_lea.vmem [#allocation2], 208
    %s1474 = scalar_lea.vmem [#allocation0], 208
    %v1475 = vld [vmem:[%s1474] sm:$0xff]
    %1476 = vperm.xlu0 %4, %v1475
    %v1477 = vpop.permute.xlu0 %1476
    %1478 = vst [vmem:[%s1473] sm:$0xff] %v1477
    %s1479 = scalar_lea.vmem [#allocation2], 216
    %s1480 = scalar_lea.vmem [#allocation0], 216
    %v1481 = vld [vmem:[%s1480] sm:$0xff]
    %1482 = vperm.xlu0 %4, %v1481
    %v1483 = vpop.permute.xlu0 %1482
    %1484 = vst [vmem:[%s1479] sm:$0xff] %v1483
    %s1485 = scalar_lea.vmem [#allocation2], 224
    %s1486 = scalar_lea.vmem [#allocation0], 224
    %v1487 = vld [vmem:[%s1486] sm:$0xff]
    %1488 = vperm.xlu0 %4, %v1487
    %v1489 = vpop.permute.xlu0 %1488
    %1490 = vst [vmem:[%s1485] sm:$0xff] %v1489
    %s1491 = scalar_lea.vmem [#allocation2], 232
    %s1492 = scalar_lea.vmem [#allocation0], 232
    %v1493 = vld [vmem:[%s1492] sm:$0xff]
    %1494 = vperm.xlu0 %4, %v1493
    %v1495 = vpop.permute.xlu0 %1494
    %1496 = vst [vmem:[%s1491] sm:$0xff] %v1495
    %s1497 = scalar_lea.vmem [#allocation2], 240
    %s1498 = scalar_lea.vmem [#allocation0], 240
    %v1499 = vld [vmem:[%s1498] sm:$0xff]
    %1500 = vperm.xlu0 %4, %v1499
    %v1501 = vpop.permute.xlu0 %1500
    %1502 = vst [vmem:[%s1497] sm:$0xff] %v1501
    %s1503 = scalar_lea.vmem [#allocation2], 248
    %s1504 = scalar_lea.vmem [#allocation0], 248
    %v1505 = vld [vmem:[%s1504] sm:$0xff]
    %1506 = vperm.xlu0 %4, %v1505
    %v1507 = vpop.permute.xlu0 %1506
    %1508 = vst [vmem:[%s1503] sm:$0xff] %v1507
    %s1509 = scalar_lea.vmem [#allocation2], 256
    %s1510 = scalar_lea.vmem [#allocation0], 256
    %v1511 = vld [vmem:[%s1510] sm:$0xff]
    %1512 = vperm.xlu0 %4, %v1511
    %v1513 = vpop.permute.xlu0 %1512
    %1514 = vst [vmem:[%s1509] sm:$0xff] %v1513
    %s1515 = scalar_lea.vmem [#allocation2], 264
    %s1516 = scalar_lea.vmem [#allocation0], 264
    %v1517 = vld [vmem:[%s1516] sm:$0xff]
    %1518 = vperm.xlu0 %4, %v1517
    %v1519 = vpop.permute.xlu0 %1518
    %1520 = vst [vmem:[%s1515] sm:$0xff] %v1519
    %s1521 = scalar_lea.vmem [#allocation2], 272
    %s1522 = scalar_lea.vmem [#allocation0], 272
    %v1523 = vld [vmem:[%s1522] sm:$0xff]
    %1524 = vperm.xlu0 %4, %v1523
    %v1525 = vpop.permute.xlu0 %1524
    %1526 = vst [vmem:[%s1521] sm:$0xff] %v1525
    %s1527 = scalar_lea.vmem [#allocation2], 280
    %s1528 = scalar_lea.vmem [#allocation0], 280
    %v1529 = vld [vmem:[%s1528] sm:$0xff]
    %1530 = vperm.xlu0 %4, %v1529
    %v1531 = vpop.permute.xlu0 %1530
    %1532 = vst [vmem:[%s1527] sm:$0xff] %v1531
    %s1533 = scalar_lea.vmem [#allocation2], 288
    %s1534 = scalar_lea.vmem [#allocation0], 288
    %v1535 = vld [vmem:[%s1534] sm:$0xff]
    %1536 = vperm.xlu0 %4, %v1535
    %v1537 = vpop.permute.xlu0 %1536
    %1538 = vst [vmem:[%s1533] sm:$0xff] %v1537
    %s1539 = scalar_lea.vmem [#allocation2], 296
    %s1540 = scalar_lea.vmem [#allocation0], 296
    %v1541 = vld [vmem:[%s1540] sm:$0xff]
    %1542 = vperm.xlu0 %4, %v1541
    %v1543 = vpop.permute.xlu0 %1542
    %1544 = vst [vmem:[%s1539] sm:$0xff] %v1543
    %s1545 = scalar_lea.vmem [#allocation2], 304
    %s1546 = scalar_lea.vmem [#allocation0], 304
    %v1547 = vld [vmem:[%s1546] sm:$0xff]
    %1548 = vperm.xlu0 %4, %v1547
    %v1549 = vpop.permute.xlu0 %1548
    %1550 = vst [vmem:[%s1545] sm:$0xff] %v1549
    %s1551 = scalar_lea.vmem [#allocation2], 312
    %s1552 = scalar_lea.vmem [#allocation0], 312
    %v1553 = vld [vmem:[%s1552] sm:$0xff]
    %1554 = vperm.xlu0 %4, %v1553
    %v1555 = vpop.permute.xlu0 %1554
    %1556 = vst [vmem:[%s1551] sm:$0xff] %v1555
    %s1557 = scalar_lea.vmem [#allocation2], 320
    %s1558 = scalar_lea.vmem [#allocation0], 320
    %v1559 = vld [vmem:[%s1558] sm:$0xff]
    %1560 = vperm.xlu0 %4, %v1559
    %v1561 = vpop.permute.xlu0 %1560
    %1562 = vst [vmem:[%s1557] sm:$0xff] %v1561
    %s1563 = scalar_lea.vmem [#allocation2], 328
    %s1564 = scalar_lea.vmem [#allocation0], 328
    %v1565 = vld [vmem:[%s1564] sm:$0xff]
    %1566 = vperm.xlu0 %4, %v1565
    %v1567 = vpop.permute.xlu0 %1566
    %1568 = vst [vmem:[%s1563] sm:$0xff] %v1567
    %s1569 = scalar_lea.vmem [#allocation2], 336
    %s1570 = scalar_lea.vmem [#allocation0], 336
    %v1571 = vld [vmem:[%s1570] sm:$0xff]
    %1572 = vperm.xlu0 %4, %v1571
    %v1573 = vpop.permute.xlu0 %1572
    %1574 = vst [vmem:[%s1569] sm:$0xff] %v1573
    %s1575 = scalar_lea.vmem [#allocation2], 344
    %s1576 = scalar_lea.vmem [#allocation0], 344
    %v1577 = vld [vmem:[%s1576] sm:$0xff]
    %1578 = vperm.xlu0 %4, %v1577
    %v1579 = vpop.permute.xlu0 %1578
    %1580 = vst [vmem:[%s1575] sm:$0xff] %v1579
    %s1581 = scalar_lea.vmem [#allocation2], 352
    %s1582 = scalar_lea.vmem [#allocation0], 352
    %v1583 = vld [vmem:[%s1582] sm:$0xff]
    %1584 = vperm.xlu0 %4, %v1583
    %v1585 = vpop.permute.xlu0 %1584
    %1586 = vst [vmem:[%s1581] sm:$0xff] %v1585
    %s1587 = scalar_lea.vmem [#allocation2], 360
    %s1588 = scalar_lea.vmem [#allocation0], 360
    %v1589 = vld [vmem:[%s1588] sm:$0xff]
    %1590 = vperm.xlu0 %4, %v1589
    %v1591 = vpop.permute.xlu0 %1590
    %1592 = vst [vmem:[%s1587] sm:$0xff] %v1591
    %s1593 = scalar_lea.vmem [#allocation2], 368
    %s1594 = scalar_lea.vmem [#allocation0], 368
    %v1595 = vld [vmem:[%s1594] sm:$0xff]
    %1596 = vperm.xlu0 %4, %v1595
    %v1597 = vpop.permute.xlu0 %1596
    %1598 = vst [vmem:[%s1593] sm:$0xff] %v1597
    %s1599 = scalar_lea.vmem [#allocation2], 376
    %s1600 = scalar_lea.vmem [#allocation0], 376
    %v1601 = vld [vmem:[%s1600] sm:$0xff]
    %1602 = vperm.xlu0 %4, %v1601
    %v1603 = vpop.permute.xlu0 %1602
    %1604 = vst [vmem:[%s1599] sm:$0xff] %v1603
    %s1605 = scalar_lea.vmem [#allocation2], 384
    %s1606 = scalar_lea.vmem [#allocation0], 384
    %v1607 = vld [vmem:[%s1606] sm:$0xff]
    %1608 = vperm.xlu0 %4, %v1607
    %v1609 = vpop.permute.xlu0 %1608
    %1610 = vst [vmem:[%s1605] sm:$0xff] %v1609
    %s1611 = scalar_lea.vmem [#allocation2], 392
    %s1612 = scalar_lea.vmem [#allocation0], 392
    %v1613 = vld [vmem:[%s1612] sm:$0xff]
    %1614 = vperm.xlu0 %4, %v1613
    %v1615 = vpop.permute.xlu0 %1614
    %1616 = vst [vmem:[%s1611] sm:$0xff] %v1615
    %s1617 = scalar_lea.vmem [#allocation2], 400
    %s1618 = scalar_lea.vmem [#allocation0], 400
    %v1619 = vld [vmem:[%s1618] sm:$0xff]
    %1620 = vperm.xlu0 %4, %v1619
    %v1621 = vpop.permute.xlu0 %1620
    %1622 = vst [vmem:[%s1617] sm:$0xff] %v1621
    %s1623 = scalar_lea.vmem [#allocation2], 408
    %s1624 = scalar_lea.vmem [#allocation0], 408
    %v1625 = vld [vmem:[%s1624] sm:$0xff]
    %1626 = vperm.xlu0 %4, %v1625
    %v1627 = vpop.permute.xlu0 %1626
    %1628 = vst [vmem:[%s1623] sm:$0xff] %v1627
    %s1629 = scalar_lea.vmem [#allocation2], 416
    %s1630 = scalar_lea.vmem [#allocation0], 416
    %v1631 = vld [vmem:[%s1630] sm:$0xff]
    %1632 = vperm.xlu0 %4, %v1631
    %v1633 = vpop.permute.xlu0 %1632
    %1634 = vst [vmem:[%s1629] sm:$0xff] %v1633
    %s1635 = scalar_lea.vmem [#allocation2], 424
    %s1636 = scalar_lea.vmem [#allocation0], 424
    %v1637 = vld [vmem:[%s1636] sm:$0xff]
    %1638 = vperm.xlu0 %4, %v1637
    %v1639 = vpop.permute.xlu0 %1638
    %1640 = vst [vmem:[%s1635] sm:$0xff] %v1639
    %s1641 = scalar_lea.vmem [#allocation2], 432
    %s1642 = scalar_lea.vmem [#allocation0], 432
    %v1643 = vld [vmem:[%s1642] sm:$0xff]
    %1644 = vperm.xlu0 %4, %v1643
    %v1645 = vpop.permute.xlu0 %1644
    %1646 = vst [vmem:[%s1641] sm:$0xff] %v1645
    %s1647 = scalar_lea.vmem [#allocation2], 440
    %s1648 = scalar_lea.vmem [#allocation0], 440
    %v1649 = vld [vmem:[%s1648] sm:$0xff]
    %1650 = vperm.xlu0 %4, %v1649
    %v1651 = vpop.permute.xlu0 %1650
    %1652 = vst [vmem:[%s1647] sm:$0xff] %v1651
    %s1653 = scalar_lea.vmem [#allocation2], 448
    %s1654 = scalar_lea.vmem [#allocation0], 448
    %v1655 = vld [vmem:[%s1654] sm:$0xff]
    %1656 = vperm.xlu0 %4, %v1655
    %v1657 = vpop.permute.xlu0 %1656
    %1658 = vst [vmem:[%s1653] sm:$0xff] %v1657
    %s1659 = scalar_lea.vmem [#allocation2], 456
    %s1660 = scalar_lea.vmem [#allocation0], 456
    %v1661 = vld [vmem:[%s1660] sm:$0xff]
    %1662 = vperm.xlu0 %4, %v1661
    %v1663 = vpop.permute.xlu0 %1662
    %1664 = vst [vmem:[%s1659] sm:$0xff] %v1663
    %s1665 = scalar_lea.vmem [#allocation2], 464
    %s1666 = scalar_lea.vmem [#allocation0], 464
    %v1667 = vld [vmem:[%s1666] sm:$0xff]
    %1668 = vperm.xlu0 %4, %v1667
    %v1669 = vpop.permute.xlu0 %1668
    %1670 = vst [vmem:[%s1665] sm:$0xff] %v1669
    %s1671 = scalar_lea.vmem [#allocation2], 472
    %s1672 = scalar_lea.vmem [#allocation0], 472
    %v1673 = vld [vmem:[%s1672] sm:$0xff]
    %1674 = vperm.xlu0 %4, %v1673
    %v1675 = vpop.permute.xlu0 %1674
    %1676 = vst [vmem:[%s1671] sm:$0xff] %v1675
    %s1677 = scalar_lea.vmem [#allocation2], 480
    %s1678 = scalar_lea.vmem [#allocation0], 480
    %v1679 = vld [vmem:[%s1678] sm:$0xff]
    %1680 = vperm.xlu0 %4, %v1679
    %v1681 = vpop.permute.xlu0 %1680
    %1682 = vst [vmem:[%s1677] sm:$0xff] %v1681
    %s1683 = scalar_lea.vmem [#allocation2], 488
    %s1684 = scalar_lea.vmem [#allocation0], 488
    %v1685 = vld [vmem:[%s1684] sm:$0xff]
    %1686 = vperm.xlu0 %4, %v1685
    %v1687 = vpop.permute.xlu0 %1686
    %1688 = vst [vmem:[%s1683] sm:$0xff] %v1687
    %s1689 = scalar_lea.vmem [#allocation2], 496
    %s1690 = scalar_lea.vmem [#allocation0], 496
    %v1691 = vld [vmem:[%s1690] sm:$0xff]
    %1692 = vperm.xlu0 %4, %v1691
    %v1693 = vpop.permute.xlu0 %1692
    %1694 = vst [vmem:[%s1689] sm:$0xff] %v1693
    %s1695 = scalar_lea.vmem [#allocation2], 504
    %s1696 = scalar_lea.vmem [#allocation0], 504
    %v1697 = vld [vmem:[%s1696] sm:$0xff]
    %1698 = vperm.xlu0 %4, %v1697
    %v1699 = vpop.permute.xlu0 %1698
    %1700 = vst [vmem:[%s1695] sm:$0xff] %v1699
    %s1702 = smul.u32 2, 2
    %s1703 = sshllo.u32 0, %s1702
    %s1704 = sshrl.u32 %s1702, 1
    %v1705 = vld [vmem:[#allocation2] sm:%s1703]
    %v1706 = vpack.c.bf16 0.0, %v1705
    %s1707 = sshllo.u32 0, %s1704
    %1708 = vst [vmem:[#allocation3] sm:%s1707] %v1706
    %s1709 = scalar_lea.vmem [#allocation2], 8
    %v1710 = vld [vmem:[%s1709] sm:%s1703]
    %v1711 = vpack.c.bf16 0.0, %v1710
    %s1712 = sshllo.u32 0, %s1704
    %s1713 = scalar_lea.vmem [#allocation3], 2
    %1714 = vst [vmem:[%s1713] sm:%s1712] %v1711
    %s1715 = scalar_lea.vmem [#allocation2], 16
    %v1716 = vld [vmem:[%s1715] sm:%s1703]
    %v1717 = vpack.c.bf16 0.0, %v1716
    %s1718 = sshllo.u32 0, %s1704
    %s1719 = smul.addr 2, 2
    %s1720 = scalar_lea.vmem [#allocation3], %s1719
    %1721 = vst [vmem:[%s1720] sm:%s1718] %v1717
    %s1722 = scalar_lea.vmem [#allocation2], 24
    %v1723 = vld [vmem:[%s1722] sm:%s1703]
    %v1724 = vpack.c.bf16 0.0, %v1723
    %s1725 = sshllo.u32 0, %s1704
    %s1726 = smul.addr 2, 3
    %s1727 = scalar_lea.vmem [#allocation3], %s1726
    %1728 = vst [vmem:[%s1727] sm:%s1725] %v1724
    %s1729 = scalar_lea.vmem [#allocation2], 32
    %v1730 = vld [vmem:[%s1729] sm:%s1703]
    %v1731 = vpack.c.bf16 0.0, %v1730
    %s1732 = sshllo.u32 0, %s1704
    %s1733 = smul.addr 2, 4
    %s1734 = scalar_lea.vmem [#allocation3], %s1733
    %1735 = vst [vmem:[%s1734] sm:%s1732] %v1731
    %s1736 = scalar_lea.vmem [#allocation2], 40
    %v1737 = vld [vmem:[%s1736] sm:%s1703]
    %v1738 = vpack.c.bf16 0.0, %v1737
    %s1739 = sshllo.u32 0, %s1704
    %s1740 = smul.addr 2, 5
    %s1741 = scalar_lea.vmem [#allocation3], %s1740
    %1742 = vst [vmem:[%s1741] sm:%s1739] %v1738
    %s1743 = scalar_lea.vmem [#allocation2], 48
    %v1744 = vld [vmem:[%s1743] sm:%s1703]
    %v1745 = vpack.c.bf16 0.0, %v1744
    %s1746 = sshllo.u32 0, %s1704
    %s1747 = smul.addr 2, 6
    %s1748 = scalar_lea.vmem [#allocation3], %s1747
    %1749 = vst [vmem:[%s1748] sm:%s1746] %v1745
    %s1750 = scalar_lea.vmem [#allocation2], 56
    %v1751 = vld [vmem:[%s1750] sm:%s1703]
    %v1752 = vpack.c.bf16 0.0, %v1751
    %s1753 = sshllo.u32 0, %s1704
    %s1754 = smul.addr 2, 7
    %s1755 = scalar_lea.vmem [#allocation3], %s1754
    %1756 = vst [vmem:[%s1755] sm:%s1753] %v1752
    %s1757 = scalar_lea.vmem [#allocation2], 64
    %v1758 = vld [vmem:[%s1757] sm:%s1703]
    %v1759 = vpack.c.bf16 0.0, %v1758
    %s1760 = sshllo.u32 0, %s1704
    %s1761 = smul.addr 2, 8
    %s1762 = scalar_lea.vmem [#allocation3], %s1761
    %1763 = vst [vmem:[%s1762] sm:%s1760] %v1759
    %s1764 = scalar_lea.vmem [#allocation2], 72
    %v1765 = vld [vmem:[%s1764] sm:%s1703]
    %v1766 = vpack.c.bf16 0.0, %v1765
    %s1767 = sshllo.u32 0, %s1704
    %s1768 = smul.addr 2, 9
    %s1769 = scalar_lea.vmem [#allocation3], %s1768
    %1770 = vst [vmem:[%s1769] sm:%s1767] %v1766
    %s1771 = scalar_lea.vmem [#allocation2], 80
    %v1772 = vld [vmem:[%s1771] sm:%s1703]
    %v1773 = vpack.c.bf16 0.0, %v1772
    %s1774 = sshllo.u32 0, %s1704
    %s1775 = smul.addr 2, 10
    %s1776 = scalar_lea.vmem [#allocation3], %s1775
    %1777 = vst [vmem:[%s1776] sm:%s1774] %v1773
    %s1778 = scalar_lea.vmem [#allocation2], 88
    %v1779 = vld [vmem:[%s1778] sm:%s1703]
    %v1780 = vpack.c.bf16 0.0, %v1779
    %s1781 = sshllo.u32 0, %s1704
    %s1782 = smul.addr 2, 11
    %s1783 = scalar_lea.vmem [#allocation3], %s1782
    %1784 = vst [vmem:[%s1783] sm:%s1781] %v1780
    %s1785 = scalar_lea.vmem [#allocation2], 96
    %v1786 = vld [vmem:[%s1785] sm:%s1703]
    %v1787 = vpack.c.bf16 0.0, %v1786
    %s1788 = sshllo.u32 0, %s1704
    %s1789 = smul.addr 2, 12
    %s1790 = scalar_lea.vmem [#allocation3], %s1789
    %1791 = vst [vmem:[%s1790] sm:%s1788] %v1787
    %s1792 = scalar_lea.vmem [#allocation2], 104
    %v1793 = vld [vmem:[%s1792] sm:%s1703]
    %v1794 = vpack.c.bf16 0.0, %v1793
    %s1795 = sshllo.u32 0, %s1704
    %s1796 = smul.addr 2, 13
    %s1797 = scalar_lea.vmem [#allocation3], %s1796
    %1798 = vst [vmem:[%s1797] sm:%s1795] %v1794
    %s1799 = scalar_lea.vmem [#allocation2], 112
    %v1800 = vld [vmem:[%s1799] sm:%s1703]
    %v1801 = vpack.c.bf16 0.0, %v1800
    %s1802 = sshllo.u32 0, %s1704
    %s1803 = smul.addr 2, 14
    %s1804 = scalar_lea.vmem [#allocation3], %s1803
    %1805 = vst [vmem:[%s1804] sm:%s1802] %v1801
    %s1806 = scalar_lea.vmem [#allocation2], 120
    %v1807 = vld [vmem:[%s1806] sm:%s1703]
    %v1808 = vpack.c.bf16 0.0, %v1807
    %s1809 = sshllo.u32 0, %s1704
    %s1810 = smul.addr 2, 15
    %s1811 = scalar_lea.vmem [#allocation3], %s1810
    %1812 = vst [vmem:[%s1811] sm:%s1809] %v1808
    %s1813 = scalar_lea.vmem [#allocation2], 128
    %v1814 = vld [vmem:[%s1813] sm:%s1703]
    %v1815 = vpack.c.bf16 0.0, %v1814
    %s1816 = sshllo.u32 0, %s1704
    %s1817 = smul.addr 2, 16
    %s1818 = scalar_lea.vmem [#allocation3], %s1817
    %1819 = vst [vmem:[%s1818] sm:%s1816] %v1815
    %s1820 = scalar_lea.vmem [#allocation2], 136
    %v1821 = vld [vmem:[%s1820] sm:%s1703]
    %v1822 = vpack.c.bf16 0.0, %v1821
    %s1823 = sshllo.u32 0, %s1704
    %s1824 = smul.addr 2, 17
    %s1825 = scalar_lea.vmem [#allocation3], %s1824
    %1826 = vst [vmem:[%s1825] sm:%s1823] %v1822
    %s1827 = scalar_lea.vmem [#allocation2], 144
    %v1828 = vld [vmem:[%s1827] sm:%s1703]
    %v1829 = vpack.c.bf16 0.0, %v1828
    %s1830 = sshllo.u32 0, %s1704
    %s1831 = smul.addr 2, 18
    %s1832 = scalar_lea.vmem [#allocation3], %s1831
    %1833 = vst [vmem:[%s1832] sm:%s1830] %v1829
    %s1834 = scalar_lea.vmem [#allocation2], 152
    %v1835 = vld [vmem:[%s1834] sm:%s1703]
    %v1836 = vpack.c.bf16 0.0, %v1835
    %s1837 = sshllo.u32 0, %s1704
    %s1838 = smul.addr 2, 19
    %s1839 = scalar_lea.vmem [#allocation3], %s1838
    %1840 = vst [vmem:[%s1839] sm:%s1837] %v1836
    %s1841 = scalar_lea.vmem [#allocation2], 160
    %v1842 = vld [vmem:[%s1841] sm:%s1703]
    %v1843 = vpack.c.bf16 0.0, %v1842
    %s1844 = sshllo.u32 0, %s1704
    %s1845 = smul.addr 2, 20
    %s1846 = scalar_lea.vmem [#allocation3], %s1845
    %1847 = vst [vmem:[%s1846] sm:%s1844] %v1843
    %s1848 = scalar_lea.vmem [#allocation2], 168
    %v1849 = vld [vmem:[%s1848] sm:%s1703]
    %v1850 = vpack.c.bf16 0.0, %v1849
    %s1851 = sshllo.u32 0, %s1704
    %s1852 = smul.addr 2, 21
    %s1853 = scalar_lea.vmem [#allocation3], %s1852
    %1854 = vst [vmem:[%s1853] sm:%s1851] %v1850
    %s1855 = scalar_lea.vmem [#allocation2], 176
    %v1856 = vld [vmem:[%s1855] sm:%s1703]
    %v1857 = vpack.c.bf16 0.0, %v1856
    %s1858 = sshllo.u32 0, %s1704
    %s1859 = smul.addr 2, 22
    %s1860 = scalar_lea.vmem [#allocation3], %s1859
    %1861 = vst [vmem:[%s1860] sm:%s1858] %v1857
    %s1862 = scalar_lea.vmem [#allocation2], 184
    %v1863 = vld [vmem:[%s1862] sm:%s1703]
    %v1864 = vpack.c.bf16 0.0, %v1863
    %s1865 = sshllo.u32 0, %s1704
    %s1866 = smul.addr 2, 23
    %s1867 = scalar_lea.vmem [#allocation3], %s1866
    %1868 = vst [vmem:[%s1867] sm:%s1865] %v1864
    %s1869 = scalar_lea.vmem [#allocation2], 192
    %v1870 = vld [vmem:[%s1869] sm:%s1703]
    %v1871 = vpack.c.bf16 0.0, %v1870
    %s1872 = sshllo.u32 0, %s1704
    %s1873 = smul.addr 2, 24
    %s1874 = scalar_lea.vmem [#allocation3], %s1873
    %1875 = vst [vmem:[%s1874] sm:%s1872] %v1871
    %s1876 = scalar_lea.vmem [#allocation2], 200
    %v1877 = vld [vmem:[%s1876] sm:%s1703]
    %v1878 = vpack.c.bf16 0.0, %v1877
    %s1879 = sshllo.u32 0, %s1704
    %s1880 = smul.addr 2, 25
    %s1881 = scalar_lea.vmem [#allocation3], %s1880
    %1882 = vst [vmem:[%s1881] sm:%s1879] %v1878
    %s1883 = scalar_lea.vmem [#allocation2], 208
    %v1884 = vld [vmem:[%s1883] sm:%s1703]
    %v1885 = vpack.c.bf16 0.0, %v1884
    %s1886 = sshllo.u32 0, %s1704
    %s1887 = smul.addr 2, 26
    %s1888 = scalar_lea.vmem [#allocation3], %s1887
    %1889 = vst [vmem:[%s1888] sm:%s1886] %v1885
    %s1890 = scalar_lea.vmem [#allocation2], 216
    %v1891 = vld [vmem:[%s1890] sm:%s1703]
    %v1892 = vpack.c.bf16 0.0, %v1891
    %s1893 = sshllo.u32 0, %s1704
    %s1894 = smul.addr 2, 27
    %s1895 = scalar_lea.vmem [#allocation3], %s1894
    %1896 = vst [vmem:[%s1895] sm:%s1893] %v1892
    %s1897 = scalar_lea.vmem [#allocation2], 224
    %v1898 = vld [vmem:[%s1897] sm:%s1703]
    %v1899 = vpack.c.bf16 0.0, %v1898
    %s1900 = sshllo.u32 0, %s1704
    %s1901 = smul.addr 2, 28
    %s1902 = scalar_lea.vmem [#allocation3], %s1901
    %1903 = vst [vmem:[%s1902] sm:%s1900] %v1899
    %s1904 = scalar_lea.vmem [#allocation2], 232
    %v1905 = vld [vmem:[%s1904] sm:%s1703]
    %v1906 = vpack.c.bf16 0.0, %v1905
    %s1907 = sshllo.u32 0, %s1704
    %s1908 = smul.addr 2, 29
    %s1909 = scalar_lea.vmem [#allocation3], %s1908
    %1910 = vst [vmem:[%s1909] sm:%s1907] %v1906
    %s1911 = scalar_lea.vmem [#allocation2], 240
    %v1912 = vld [vmem:[%s1911] sm:%s1703]
    %v1913 = vpack.c.bf16 0.0, %v1912
    %s1914 = sshllo.u32 0, %s1704
    %s1915 = smul.addr 2, 30
    %s1916 = scalar_lea.vmem [#allocation3], %s1915
    %1917 = vst [vmem:[%s1916] sm:%s1914] %v1913
    %s1918 = scalar_lea.vmem [#allocation2], 248
    %v1919 = vld [vmem:[%s1918] sm:%s1703]
    %v1920 = vpack.c.bf16 0.0, %v1919
    %s1921 = sshllo.u32 0, %s1704
    %s1922 = smul.addr 2, 31
    %s1923 = scalar_lea.vmem [#allocation3], %s1922
    %1924 = vst [vmem:[%s1923] sm:%s1921] %v1920
    %s1925 = scalar_lea.vmem [#allocation2], 256
    %v1926 = vld [vmem:[%s1925] sm:%s1703]
    %v1927 = vpack.c.bf16 0.0, %v1926
    %s1928 = sshllo.u32 0, %s1704
    %s1929 = smul.addr 2, 32
    %s1930 = scalar_lea.vmem [#allocation3], %s1929
    %1931 = vst [vmem:[%s1930] sm:%s1928] %v1927
    %s1932 = scalar_lea.vmem [#allocation2], 264
    %v1933 = vld [vmem:[%s1932] sm:%s1703]
    %v1934 = vpack.c.bf16 0.0, %v1933
    %s1935 = sshllo.u32 0, %s1704
    %s1936 = smul.addr 2, 33
    %s1937 = scalar_lea.vmem [#allocation3], %s1936
    %1938 = vst [vmem:[%s1937] sm:%s1935] %v1934
    %s1939 = scalar_lea.vmem [#allocation2], 272
    %v1940 = vld [vmem:[%s1939] sm:%s1703]
    %v1941 = vpack.c.bf16 0.0, %v1940
    %s1942 = sshllo.u32 0, %s1704
    %s1943 = smul.addr 2, 34
    %s1944 = scalar_lea.vmem [#allocation3], %s1943
    %1945 = vst [vmem:[%s1944] sm:%s1942] %v1941
    %s1946 = scalar_lea.vmem [#allocation2], 280
    %v1947 = vld [vmem:[%s1946] sm:%s1703]
    %v1948 = vpack.c.bf16 0.0, %v1947
    %s1949 = sshllo.u32 0, %s1704
    %s1950 = smul.addr 2, 35
    %s1951 = scalar_lea.vmem [#allocation3], %s1950
    %1952 = vst [vmem:[%s1951] sm:%s1949] %v1948
    %s1953 = scalar_lea.vmem [#allocation2], 288
    %v1954 = vld [vmem:[%s1953] sm:%s1703]
    %v1955 = vpack.c.bf16 0.0, %v1954
    %s1956 = sshllo.u32 0, %s1704
    %s1957 = smul.addr 2, 36
    %s1958 = scalar_lea.vmem [#allocation3], %s1957
    %1959 = vst [vmem:[%s1958] sm:%s1956] %v1955
    %s1960 = scalar_lea.vmem [#allocation2], 296
    %v1961 = vld [vmem:[%s1960] sm:%s1703]
    %v1962 = vpack.c.bf16 0.0, %v1961
    %s1963 = sshllo.u32 0, %s1704
    %s1964 = smul.addr 2, 37
    %s1965 = scalar_lea.vmem [#allocation3], %s1964
    %1966 = vst [vmem:[%s1965] sm:%s1963] %v1962
    %s1967 = scalar_lea.vmem [#allocation2], 304
    %v1968 = vld [vmem:[%s1967] sm:%s1703]
    %v1969 = vpack.c.bf16 0.0, %v1968
    %s1970 = sshllo.u32 0, %s1704
    %s1971 = smul.addr 2, 38
    %s1972 = scalar_lea.vmem [#allocation3], %s1971
    %1973 = vst [vmem:[%s1972] sm:%s1970] %v1969
    %s1974 = scalar_lea.vmem [#allocation2], 312
    %v1975 = vld [vmem:[%s1974] sm:%s1703]
    %v1976 = vpack.c.bf16 0.0, %v1975
    %s1977 = sshllo.u32 0, %s1704
    %s1978 = smul.addr 2, 39
    %s1979 = scalar_lea.vmem [#allocation3], %s1978
    %1980 = vst [vmem:[%s1979] sm:%s1977] %v1976
    %s1981 = scalar_lea.vmem [#allocation2], 320
    %v1982 = vld [vmem:[%s1981] sm:%s1703]
    %v1983 = vpack.c.bf16 0.0, %v1982
    %s1984 = sshllo.u32 0, %s1704
    %s1985 = smul.addr 2, 40
    %s1986 = scalar_lea.vmem [#allocation3], %s1985
    %1987 = vst [vmem:[%s1986] sm:%s1984] %v1983
    %s1988 = scalar_lea.vmem [#allocation2], 328
    %v1989 = vld [vmem:[%s1988] sm:%s1703]
    %v1990 = vpack.c.bf16 0.0, %v1989
    %s1991 = sshllo.u32 0, %s1704
    %s1992 = smul.addr 2, 41
    %s1993 = scalar_lea.vmem [#allocation3], %s1992
    %1994 = vst [vmem:[%s1993] sm:%s1991] %v1990
    %s1995 = scalar_lea.vmem [#allocation2], 336
    %v1996 = vld [vmem:[%s1995] sm:%s1703]
    %v1997 = vpack.c.bf16 0.0, %v1996
    %s1998 = sshllo.u32 0, %s1704
    %s1999 = smul.addr 2, 42
    %s2000 = scalar_lea.vmem [#allocation3], %s1999
    %2001 = vst [vmem:[%s2000] sm:%s1998] %v1997
    %s2002 = scalar_lea.vmem [#allocation2], 344
    %v2003 = vld [vmem:[%s2002] sm:%s1703]
    %v2004 = vpack.c.bf16 0.0, %v2003
    %s2005 = sshllo.u32 0, %s1704
    %s2006 = smul.addr 2, 43
    %s2007 = scalar_lea.vmem [#allocation3], %s2006
    %2008 = vst [vmem:[%s2007] sm:%s2005] %v2004
    %s2009 = scalar_lea.vmem [#allocation2], 352
    %v2010 = vld [vmem:[%s2009] sm:%s1703]
    %v2011 = vpack.c.bf16 0.0, %v2010
    %s2012 = sshllo.u32 0, %s1704
    %s2013 = smul.addr 2, 44
    %s2014 = scalar_lea.vmem [#allocation3], %s2013
    %2015 = vst [vmem:[%s2014] sm:%s2012] %v2011
    %s2016 = scalar_lea.vmem [#allocation2], 360
    %v2017 = vld [vmem:[%s2016] sm:%s1703]
    %v2018 = vpack.c.bf16 0.0, %v2017
    %s2019 = sshllo.u32 0, %s1704
    %s2020 = smul.addr 2, 45
    %s2021 = scalar_lea.vmem [#allocation3], %s2020
    %2022 = vst [vmem:[%s2021] sm:%s2019] %v2018
    %s2023 = scalar_lea.vmem [#allocation2], 368
    %v2024 = vld [vmem:[%s2023] sm:%s1703]
    %v2025 = vpack.c.bf16 0.0, %v2024
    %s2026 = sshllo.u32 0, %s1704
    %s2027 = smul.addr 2, 46
    %s2028 = scalar_lea.vmem [#allocation3], %s2027
    %2029 = vst [vmem:[%s2028] sm:%s2026] %v2025
    %s2030 = scalar_lea.vmem [#allocation2], 376
    %v2031 = vld [vmem:[%s2030] sm:%s1703]
    %v2032 = vpack.c.bf16 0.0, %v2031
    %s2033 = sshllo.u32 0, %s1704
    %s2034 = smul.addr 2, 47
    %s2035 = scalar_lea.vmem [#allocation3], %s2034
    %2036 = vst [vmem:[%s2035] sm:%s2033] %v2032
    %s2037 = scalar_lea.vmem [#allocation2], 384
    %v2038 = vld [vmem:[%s2037] sm:%s1703]
    %v2039 = vpack.c.bf16 0.0, %v2038
    %s2040 = sshllo.u32 0, %s1704
    %s2041 = smul.addr 2, 48
    %s2042 = scalar_lea.vmem [#allocation3], %s2041
    %2043 = vst [vmem:[%s2042] sm:%s2040] %v2039
    %s2044 = scalar_lea.vmem [#allocation2], 392
    %v2045 = vld [vmem:[%s2044] sm:%s1703]
    %v2046 = vpack.c.bf16 0.0, %v2045
    %s2047 = sshllo.u32 0, %s1704
    %s2048 = smul.addr 2, 49
    %s2049 = scalar_lea.vmem [#allocation3], %s2048
    %2050 = vst [vmem:[%s2049] sm:%s2047] %v2046
    %s2051 = scalar_lea.vmem [#allocation2], 400
    %v2052 = vld [vmem:[%s2051] sm:%s1703]
    %v2053 = vpack.c.bf16 0.0, %v2052
    %s2054 = sshllo.u32 0, %s1704
    %s2055 = smul.addr 2, 50
    %s2056 = scalar_lea.vmem [#allocation3], %s2055
    %2057 = vst [vmem:[%s2056] sm:%s2054] %v2053
    %s2058 = scalar_lea.vmem [#allocation2], 408
    %v2059 = vld [vmem:[%s2058] sm:%s1703]
    %v2060 = vpack.c.bf16 0.0, %v2059
    %s2061 = sshllo.u32 0, %s1704
    %s2062 = smul.addr 2, 51
    %s2063 = scalar_lea.vmem [#allocation3], %s2062
    %2064 = vst [vmem:[%s2063] sm:%s2061] %v2060
    %s2065 = scalar_lea.vmem [#allocation2], 416
    %v2066 = vld [vmem:[%s2065] sm:%s1703]
    %v2067 = vpack.c.bf16 0.0, %v2066
    %s2068 = sshllo.u32 0, %s1704
    %s2069 = smul.addr 2, 52
    %s2070 = scalar_lea.vmem [#allocation3], %s2069
    %2071 = vst [vmem:[%s2070] sm:%s2068] %v2067
    %s2072 = scalar_lea.vmem [#allocation2], 424
    %v2073 = vld [vmem:[%s2072] sm:%s1703]
    %v2074 = vpack.c.bf16 0.0, %v2073
    %s2075 = sshllo.u32 0, %s1704
    %s2076 = smul.addr 2, 53
    %s2077 = scalar_lea.vmem [#allocation3], %s2076
    %2078 = vst [vmem:[%s2077] sm:%s2075] %v2074
    %s2079 = scalar_lea.vmem [#allocation2], 432
    %v2080 = vld [vmem:[%s2079] sm:%s1703]
    %v2081 = vpack.c.bf16 0.0, %v2080
    %s2082 = sshllo.u32 0, %s1704
    %s2083 = smul.addr 2, 54
    %s2084 = scalar_lea.vmem [#allocation3], %s2083
    %2085 = vst [vmem:[%s2084] sm:%s2082] %v2081
    %s2086 = scalar_lea.vmem [#allocation2], 440
    %v2087 = vld [vmem:[%s2086] sm:%s1703]
    %v2088 = vpack.c.bf16 0.0, %v2087
    %s2089 = sshllo.u32 0, %s1704
    %s2090 = smul.addr 2, 55
    %s2091 = scalar_lea.vmem [#allocation3], %s2090
    %2092 = vst [vmem:[%s2091] sm:%s2089] %v2088
    %s2093 = scalar_lea.vmem [#allocation2], 448
    %v2094 = vld [vmem:[%s2093] sm:%s1703]
    %v2095 = vpack.c.bf16 0.0, %v2094
    %s2096 = sshllo.u32 0, %s1704
    %s2097 = smul.addr 2, 56
    %s2098 = scalar_lea.vmem [#allocation3], %s2097
    %2099 = vst [vmem:[%s2098] sm:%s2096] %v2095
    %s2100 = scalar_lea.vmem [#allocation2], 456
    %v2101 = vld [vmem:[%s2100] sm:%s1703]
    %v2102 = vpack.c.bf16 0.0, %v2101
    %s2103 = sshllo.u32 0, %s1704
    %s2104 = smul.addr 2, 57
    %s2105 = scalar_lea.vmem [#allocation3], %s2104
    %2106 = vst [vmem:[%s2105] sm:%s2103] %v2102
    %s2107 = scalar_lea.vmem [#allocation2], 464
    %v2108 = vld [vmem:[%s2107] sm:%s1703]
    %v2109 = vpack.c.bf16 0.0, %v2108
    %s2110 = sshllo.u32 0, %s1704
    %s2111 = smul.addr 2, 58
    %s2112 = scalar_lea.vmem [#allocation3], %s2111
    %2113 = vst [vmem:[%s2112] sm:%s2110] %v2109
    %s2114 = scalar_lea.vmem [#allocation2], 472
    %v2115 = vld [vmem:[%s2114] sm:%s1703]
    %v2116 = vpack.c.bf16 0.0, %v2115
    %s2117 = sshllo.u32 0, %s1704
    %s2118 = smul.addr 2, 59
    %s2119 = scalar_lea.vmem [#allocation3], %s2118
    %2120 = vst [vmem:[%s2119] sm:%s2117] %v2116
    %s2121 = scalar_lea.vmem [#allocation2], 480
    %v2122 = vld [vmem:[%s2121] sm:%s1703]
    %v2123 = vpack.c.bf16 0.0, %v2122
    %s2124 = sshllo.u32 0, %s1704
    %s2125 = smul.addr 2, 60
    %s2126 = scalar_lea.vmem [#allocation3], %s2125
    %2127 = vst [vmem:[%s2126] sm:%s2124] %v2123
    %s2128 = scalar_lea.vmem [#allocation2], 488
    %v2129 = vld [vmem:[%s2128] sm:%s1703]
    %v2130 = vpack.c.bf16 0.0, %v2129
    %s2131 = sshllo.u32 0, %s1704
    %s2132 = smul.addr 2, 61
    %s2133 = scalar_lea.vmem [#allocation3], %s2132
    %2134 = vst [vmem:[%s2133] sm:%s2131] %v2130
    %s2135 = scalar_lea.vmem [#allocation2], 496
    %v2136 = vld [vmem:[%s2135] sm:%s1703]
    %v2137 = vpack.c.bf16 0.0, %v2136
    %s2138 = sshllo.u32 0, %s1704
    %s2139 = smul.addr 2, 62
    %s2140 = scalar_lea.vmem [#allocation3], %s2139
    %2141 = vst [vmem:[%s2140] sm:%s2138] %v2137
    %s2142 = scalar_lea.vmem [#allocation2], 504
    %v2143 = vld [vmem:[%s2142] sm:%s1703]
    %v2144 = vpack.c.bf16 0.0, %v2143
    %s2145 = sshllo.u32 0, %s1704
    %s2146 = smul.addr 2, 63
    %s2147 = scalar_lea.vmem [#allocation3], %s2146
    %2148 = vst [vmem:[%s2147] sm:%s2145] %v2144
    // Predicated region
    $region39: #{reverse} parent=1 // pred_check
      _
    $region40: #{reverse} parent=1 // pred_check_branch
      %2150 = sbr.rel (0) target = $region42
    $region41: #{reverse} parent=1 // pred_region
      // Predicated region
      $region43: #{reverse} parent=41 // pred_check
        _
      $region44: #{reverse} parent=41 // pred_check_branch
        %2152 = sbr.rel target = $region46
      $region45: #{reverse} parent=41 // pred_region
        // Predicated region
        $region58: #{reverse} parent=45 // pred_check
          _
        $region59: #{reverse} parent=45 // pred_check_branch
          %2293 = sbr.rel (0) target = $region61
        $region60: #{reverse} parent=45 // pred_region
          loop: start=0, step=1, limit=1
          $region62: #{reverse} parent=60 // loop_pre_header
            _
          $region63: #{reverse} parent=60 // loop_header
            %s2295 = sphi 0, %s2299
            %p2296 = scmp.ge.s32.totalorder %s2295, 1
            %s2300 = sphi [#allocation3], [#allocation3]
            %s2301 = sphi %s1, %s1
          $region64: #{reverse} parent=60 // loop_header_branch
            %2298 = sbr.rel (%p2296) target = $region68
          $region65: #{reverse} parent=60 // loop_body
            _
          $region66: #{reverse} parent=60 // loop_footer
            %s2299 = sadd.s32 1, %s2295
          $region67: #{reverse} parent=60 // loop_footer_branch
            %2294 = sbr.rel target = $region63
          $region68: #{reverse} parent=60 // loop_exit
            _
          loop: start=0, step=1, limit=1
          $region69: #{reverse} parent=60 // loop_pre_header
            _
          $region70: #{reverse} parent=60 // loop_header
            %s2304 = sphi 0, %s2308
            %p2305 = scmp.ge.s32.totalorder %s2304, 1
            %s2309 = sphi [#allocation3], [#allocation3]
            %s2310 = sphi %s1, %s1
          $region71: #{reverse} parent=60 // loop_header_branch
            %2307 = sbr.rel (%p2305) target = $region75
          $region72: #{reverse} parent=60 // loop_body
            %v2311 = vld [vmem:[%s2309] sm:$0x3]
            %2312 = vst [vmem:[%s2310] sm:$0x3] %v2311
            %v2313 = vld [vmem:[%s2309 + $0x2] sm:$0x3]
            %2314 = vst [vmem:[%s2310 + $0x2] sm:$0x3] %v2313
            %v2315 = vld [vmem:[%s2309 + $0x4] sm:$0x3]
            %2316 = vst [vmem:[%s2310 + $0x4] sm:$0x3] %v2315
            %v2317 = vld [vmem:[%s2309 + $0x6] sm:$0x3]
            %2318 = vst [vmem:[%s2310 + $0x6] sm:$0x3] %v2317
            %v2319 = vld [vmem:[%s2309 + $0x8] sm:$0x3]
            %2320 = vst [vmem:[%s2310 + $0x8] sm:$0x3] %v2319
            %v2321 = vld [vmem:[%s2309 + $0xa] sm:$0x3]
            %2322 = vst [vmem:[%s2310 + $0xa] sm:$0x3] %v2321
            %v2323 = vld [vmem:[%s2309 + $0xc] sm:$0x3]
            %2324 = vst [vmem:[%s2310 + $0xc] sm:$0x3] %v2323
            %v2325 = vld [vmem:[%s2309 + $0xe] sm:$0x3]
            %2326 = vst [vmem:[%s2310 + $0xe] sm:$0x3] %v2325
            %v2327 = vld [vmem:[%s2309 + $0x10] sm:$0x3]
            %2328 = vst [vmem:[%s2310 + $0x10] sm:$0x3] %v2327
            %v2329 = vld [vmem:[%s2309 + $0x12] sm:$0x3]
            %2330 = vst [vmem:[%s2310 + $0x12] sm:$0x3] %v2329
            %v2331 = vld [vmem:[%s2309 + $0x14] sm:$0x3]
            %2332 = vst [vmem:[%s2310 + $0x14] sm:$0x3] %v2331
            %v2333 = vld [vmem:[%s2309 + $0x16] sm:$0x3]
            %2334 = vst [vmem:[%s2310 + $0x16] sm:$0x3] %v2333
            %v2335 = vld [vmem:[%s2309 + $0x18] sm:$0x3]
            %2336 = vst [vmem:[%s2310 + $0x18] sm:$0x3] %v2335
            %v2337 = vld [vmem:[%s2309 + $0x1a] sm:$0x3]
            %2338 = vst [vmem:[%s2310 + $0x1a] sm:$0x3] %v2337
            %v2339 = vld [vmem:[%s2309 + $0x1c] sm:$0x3]
            %2340 = vst [vmem:[%s2310 + $0x1c] sm:$0x3] %v2339
            %v2341 = vld [vmem:[%s2309 + $0x1e] sm:$0x3]
            %2342 = vst [vmem:[%s2310 + $0x1e] sm:$0x3] %v2341
            %v2343 = vld [vmem:[%s2309 + $0x20] sm:$0x3]
            %2344 = vst [vmem:[%s2310 + $0x20] sm:$0x3] %v2343
            %v2345 = vld [vmem:[%s2309 + $0x22] sm:$0x3]
            %2346 = vst [vmem:[%s2310 + $0x22] sm:$0x3] %v2345
            %v2347 = vld [vmem:[%s2309 + $0x24] sm:$0x3]
            %2348 = vst [vmem:[%s2310 + $0x24] sm:$0x3] %v2347
            %v2349 = vld [vmem:[%s2309 + $0x26] sm:$0x3]
            %2350 = vst [vmem:[%s2310 + $0x26] sm:$0x3] %v2349
            %v2351 = vld [vmem:[%s2309 + $0x28] sm:$0x3]
            %2352 = vst [vmem:[%s2310 + $0x28] sm:$0x3] %v2351
            %v2353 = vld [vmem:[%s2309 + $0x2a] sm:$0x3]
            %2354 = vst [vmem:[%s2310 + $0x2a] sm:$0x3] %v2353
            %v2355 = vld [vmem:[%s2309 + $0x2c] sm:$0x3]
            %2356 = vst [vmem:[%s2310 + $0x2c] sm:$0x3] %v2355
            %v2357 = vld [vmem:[%s2309 + $0x2e] sm:$0x3]
            %2358 = vst [vmem:[%s2310 + $0x2e] sm:$0x3] %v2357
            %v2359 = vld [vmem:[%s2309 + $0x30] sm:$0x3]
            %2360 = vst [vmem:[%s2310 + $0x30] sm:$0x3] %v2359
            %v2361 = vld [vmem:[%s2309 + $0x32] sm:$0x3]
            %2362 = vst [vmem:[%s2310 + $0x32] sm:$0x3] %v2361
            %v2363 = vld [vmem:[%s2309 + $0x34] sm:$0x3]
            %2364 = vst [vmem:[%s2310 + $0x34] sm:$0x3] %v2363
            %v2365 = vld [vmem:[%s2309 + $0x36] sm:$0x3]
            %2366 = vst [vmem:[%s2310 + $0x36] sm:$0x3] %v2365
            %v2367 = vld [vmem:[%s2309 + $0x38] sm:$0x3]
            %2368 = vst [vmem:[%s2310 + $0x38] sm:$0x3] %v2367
            %v2369 = vld [vmem:[%s2309 + $0x3a] sm:$0x3]
            %2370 = vst [vmem:[%s2310 + $0x3a] sm:$0x3] %v2369
            %v2371 = vld [vmem:[%s2309 + $0x3c] sm:$0x3]
            %2372 = vst [vmem:[%s2310 + $0x3c] sm:$0x3] %v2371
            %v2373 = vld [vmem:[%s2309 + $0x3e] sm:$0x3]
            %2374 = vst [vmem:[%s2310 + $0x3e] sm:$0x3] %v2373
            %v2375 = vld [vmem:[%s2309 + $0x40] sm:$0x3]
            %2376 = vst [vmem:[%s2310 + $0x40] sm:$0x3] %v2375
            %v2377 = vld [vmem:[%s2309 + $0x42] sm:$0x3]
            %2378 = vst [vmem:[%s2310 + $0x42] sm:$0x3] %v2377
            %v2379 = vld [vmem:[%s2309 + $0x44] sm:$0x3]
            %2380 = vst [vmem:[%s2310 + $0x44] sm:$0x3] %v2379
            %v2381 = vld [vmem:[%s2309 + $0x46] sm:$0x3]
            %2382 = vst [vmem:[%s2310 + $0x46] sm:$0x3] %v2381
            %v2383 = vld [vmem:[%s2309 + $0x48] sm:$0x3]
            %2384 = vst [vmem:[%s2310 + $0x48] sm:$0x3] %v2383
            %v2385 = vld [vmem:[%s2309 + $0x4a] sm:$0x3]
            %2386 = vst [vmem:[%s2310 + $0x4a] sm:$0x3] %v2385
            %v2387 = vld [vmem:[%s2309 + $0x4c] sm:$0x3]
            %2388 = vst [vmem:[%s2310 + $0x4c] sm:$0x3] %v2387
            %v2389 = vld [vmem:[%s2309 + $0x4e] sm:$0x3]
            %2390 = vst [vmem:[%s2310 + $0x4e] sm:$0x3] %v2389
            %v2391 = vld [vmem:[%s2309 + $0x50] sm:$0x3]
            %2392 = vst [vmem:[%s2310 + $0x50] sm:$0x3] %v2391
            %v2393 = vld [vmem:[%s2309 + $0x52] sm:$0x3]
            %2394 = vst [vmem:[%s2310 + $0x52] sm:$0x3] %v2393
            %v2395 = vld [vmem:[%s2309 + $0x54] sm:$0x3]
            %2396 = vst [vmem:[%s2310 + $0x54] sm:$0x3] %v2395
            %v2397 = vld [vmem:[%s2309 + $0x56] sm:$0x3]
            %2398 = vst [vmem:[%s2310 + $0x56] sm:$0x3] %v2397
            %v2399 = vld [vmem:[%s2309 + $0x58] sm:$0x3]
            %2400 = vst [vmem:[%s2310 + $0x58] sm:$0x3] %v2399
            %v2401 = vld [vmem:[%s2309 + $0x5a] sm:$0x3]
            %2402 = vst [vmem:[%s2310 + $0x5a] sm:$0x3] %v2401
            %v2403 = vld [vmem:[%s2309 + $0x5c] sm:$0x3]
            %2404 = vst [vmem:[%s2310 + $0x5c] sm:$0x3] %v2403
            %v2405 = vld [vmem:[%s2309 + $0x5e] sm:$0x3]
            %2406 = vst [vmem:[%s2310 + $0x5e] sm:$0x3] %v2405
            %v2407 = vld [vmem:[%s2309 + $0x60] sm:$0x3]
            %2408 = vst [vmem:[%s2310 + $0x60] sm:$0x3] %v2407
            %v2409 = vld [vmem:[%s2309 + $0x62] sm:$0x3]
            %2410 = vst [vmem:[%s2310 + $0x62] sm:$0x3] %v2409
            %v2411 = vld [vmem:[%s2309 + $0x64] sm:$0x3]
            %2412 = vst [vmem:[%s2310 + $0x64] sm:$0x3] %v2411
            %v2413 = vld [vmem:[%s2309 + $0x66] sm:$0x3]
            %2414 = vst [vmem:[%s2310 + $0x66] sm:$0x3] %v2413
            %v2415 = vld [vmem:[%s2309 + $0x68] sm:$0x3]
            %2416 = vst [vmem:[%s2310 + $0x68] sm:$0x3] %v2415
            %v2417 = vld [vmem:[%s2309 + $0x6a] sm:$0x3]
            %2418 = vst [vmem:[%s2310 + $0x6a] sm:$0x3] %v2417
            %v2419 = vld [vmem:[%s2309 + $0x6c] sm:$0x3]
            %2420 = vst [vmem:[%s2310 + $0x6c] sm:$0x3] %v2419
            %v2421 = vld [vmem:[%s2309 + $0x6e] sm:$0x3]
            %2422 = vst [vmem:[%s2310 + $0x6e] sm:$0x3] %v2421
            %v2423 = vld [vmem:[%s2309 + $0x70] sm:$0x3]
            %2424 = vst [vmem:[%s2310 + $0x70] sm:$0x3] %v2423
            %v2425 = vld [vmem:[%s2309 + $0x72] sm:$0x3]
            %2426 = vst [vmem:[%s2310 + $0x72] sm:$0x3] %v2425
            %v2427 = vld [vmem:[%s2309 + $0x74] sm:$0x3]
            %2428 = vst [vmem:[%s2310 + $0x74] sm:$0x3] %v2427
            %v2429 = vld [vmem:[%s2309 + $0x76] sm:$0x3]
            %2430 = vst [vmem:[%s2310 + $0x76] sm:$0x3] %v2429
            %v2431 = vld [vmem:[%s2309 + $0x78] sm:$0x3]
            %2432 = vst [vmem:[%s2310 + $0x78] sm:$0x3] %v2431
            %v2433 = vld [vmem:[%s2309 + $0x7a] sm:$0x3]
            %2434 = vst [vmem:[%s2310 + $0x7a] sm:$0x3] %v2433
            %v2435 = vld [vmem:[%s2309 + $0x7c] sm:$0x3]
            %2436 = vst [vmem:[%s2310 + $0x7c] sm:$0x3] %v2435
            %v2437 = vld [vmem:[%s2309 + $0x7e] sm:$0x3]
            %2438 = vst [vmem:[%s2310 + $0x7e] sm:$0x3] %v2437
          $region73: #{reverse} parent=60 // loop_footer
            %s2308 = sadd.s32 1, %s2304
          $region74: #{reverse} parent=60 // loop_footer_branch
            %2303 = sbr.rel target = $region70
          $region75: #{reverse} parent=60 // loop_exit
            _
        $region61: #{reverse} parent=45 // pred_fallthru
          _
      $region46: #{reverse} parent=41 // pred_fallthru
        _
      // Predicated region
      $region47: #{reverse} parent=41 // pred_check
        _
      $region48: #{reverse} parent=41 // pred_check_branch
        %2154 = sbr.rel (0) target = $region50
      $region49: #{reverse} parent=41 // pred_region
        loop: start=0, step=1, limit=1
        $region51: #{reverse} parent=49 // loop_pre_header
          _
        $region52: #{reverse} parent=49 // loop_header
          %s2157 = sphi 0, %s2161
          %p2158 = scmp.ge.s32.totalorder %s2157, 1
          %s2162 = sphi [#allocation3], [#allocation3]
          %s2163 = sphi %s1, %s1
        $region53: #{reverse} parent=49 // loop_header_branch
          %2160 = sbr.rel (%p2158) target = $region57
        $region54: #{reverse} parent=49 // loop_body
          %v2164 = vld [vmem:[%s2162] sm:$0x3]
          %2165 = vst [vmem:[%s2163] sm:$0x3] %v2164
          %v2166 = vld [vmem:[%s2162 + $0x2] sm:$0x3]
          %2167 = vst [vmem:[%s2163 + $0x2] sm:$0x3] %v2166
          %v2168 = vld [vmem:[%s2162 + $0x4] sm:$0x3]
          %2169 = vst [vmem:[%s2163 + $0x4] sm:$0x3] %v2168
          %v2170 = vld [vmem:[%s2162 + $0x6] sm:$0x3]
          %2171 = vst [vmem:[%s2163 + $0x6] sm:$0x3] %v2170
          %v2172 = vld [vmem:[%s2162 + $0x8] sm:$0x3]
          %2173 = vst [vmem:[%s2163 + $0x8] sm:$0x3] %v2172
          %v2174 = vld [vmem:[%s2162 + $0xa] sm:$0x3]
          %2175 = vst [vmem:[%s2163 + $0xa] sm:$0x3] %v2174
          %v2176 = vld [vmem:[%s2162 + $0xc] sm:$0x3]
          %2177 = vst [vmem:[%s2163 + $0xc] sm:$0x3] %v2176
          %v2178 = vld [vmem:[%s2162 + $0xe] sm:$0x3]
          %2179 = vst [vmem:[%s2163 + $0xe] sm:$0x3] %v2178
          %v2180 = vld [vmem:[%s2162 + $0x10] sm:$0x3]
          %2181 = vst [vmem:[%s2163 + $0x10] sm:$0x3] %v2180
          %v2182 = vld [vmem:[%s2162 + $0x12] sm:$0x3]
          %2183 = vst [vmem:[%s2163 + $0x12] sm:$0x3] %v2182
          %v2184 = vld [vmem:[%s2162 + $0x14] sm:$0x3]
          %2185 = vst [vmem:[%s2163 + $0x14] sm:$0x3] %v2184
          %v2186 = vld [vmem:[%s2162 + $0x16] sm:$0x3]
          %2187 = vst [vmem:[%s2163 + $0x16] sm:$0x3] %v2186
          %v2188 = vld [vmem:[%s2162 + $0x18] sm:$0x3]
          %2189 = vst [vmem:[%s2163 + $0x18] sm:$0x3] %v2188
          %v2190 = vld [vmem:[%s2162 + $0x1a] sm:$0x3]
          %2191 = vst [vmem:[%s2163 + $0x1a] sm:$0x3] %v2190
          %v2192 = vld [vmem:[%s2162 + $0x1c] sm:$0x3]
          %2193 = vst [vmem:[%s2163 + $0x1c] sm:$0x3] %v2192
          %v2194 = vld [vmem:[%s2162 + $0x1e] sm:$0x3]
          %2195 = vst [vmem:[%s2163 + $0x1e] sm:$0x3] %v2194
          %v2196 = vld [vmem:[%s2162 + $0x20] sm:$0x3]
          %2197 = vst [vmem:[%s2163 + $0x20] sm:$0x3] %v2196
          %v2198 = vld [vmem:[%s2162 + $0x22] sm:$0x3]
          %2199 = vst [vmem:[%s2163 + $0x22] sm:$0x3] %v2198
          %v2200 = vld [vmem:[%s2162 + $0x24] sm:$0x3]
          %2201 = vst [vmem:[%s2163 + $0x24] sm:$0x3] %v2200
          %v2202 = vld [vmem:[%s2162 + $0x26] sm:$0x3]
          %2203 = vst [vmem:[%s2163 + $0x26] sm:$0x3] %v2202
          %v2204 = vld [vmem:[%s2162 + $0x28] sm:$0x3]
          %2205 = vst [vmem:[%s2163 + $0x28] sm:$0x3] %v2204
          %v2206 = vld [vmem:[%s2162 + $0x2a] sm:$0x3]
          %2207 = vst [vmem:[%s2163 + $0x2a] sm:$0x3] %v2206
          %v2208 = vld [vmem:[%s2162 + $0x2c] sm:$0x3]
          %2209 = vst [vmem:[%s2163 + $0x2c] sm:$0x3] %v2208
          %v2210 = vld [vmem:[%s2162 + $0x2e] sm:$0x3]
          %2211 = vst [vmem:[%s2163 + $0x2e] sm:$0x3] %v2210
          %v2212 = vld [vmem:[%s2162 + $0x30] sm:$0x3]
          %2213 = vst [vmem:[%s2163 + $0x30] sm:$0x3] %v2212
          %v2214 = vld [vmem:[%s2162 + $0x32] sm:$0x3]
          %2215 = vst [vmem:[%s2163 + $0x32] sm:$0x3] %v2214
          %v2216 = vld [vmem:[%s2162 + $0x34] sm:$0x3]
          %2217 = vst [vmem:[%s2163 + $0x34] sm:$0x3] %v2216
          %v2218 = vld [vmem:[%s2162 + $0x36] sm:$0x3]
          %2219 = vst [vmem:[%s2163 + $0x36] sm:$0x3] %v2218
          %v2220 = vld [vmem:[%s2162 + $0x38] sm:$0x3]
          %2221 = vst [vmem:[%s2163 + $0x38] sm:$0x3] %v2220
          %v2222 = vld [vmem:[%s2162 + $0x3a] sm:$0x3]
          %2223 = vst [vmem:[%s2163 + $0x3a] sm:$0x3] %v2222
          %v2224 = vld [vmem:[%s2162 + $0x3c] sm:$0x3]
          %2225 = vst [vmem:[%s2163 + $0x3c] sm:$0x3] %v2224
          %v2226 = vld [vmem:[%s2162 + $0x3e] sm:$0x3]
          %2227 = vst [vmem:[%s2163 + $0x3e] sm:$0x3] %v2226
          %v2228 = vld [vmem:[%s2162 + $0x40] sm:$0x3]
          %2229 = vst [vmem:[%s2163 + $0x40] sm:$0x3] %v2228
          %v2230 = vld [vmem:[%s2162 + $0x42] sm:$0x3]
          %2231 = vst [vmem:[%s2163 + $0x42] sm:$0x3] %v2230
          %v2232 = vld [vmem:[%s2162 + $0x44] sm:$0x3]
          %2233 = vst [vmem:[%s2163 + $0x44] sm:$0x3] %v2232
          %v2234 = vld [vmem:[%s2162 + $0x46] sm:$0x3]
          %2235 = vst [vmem:[%s2163 + $0x46] sm:$0x3] %v2234
          %v2236 = vld [vmem:[%s2162 + $0x48] sm:$0x3]
          %2237 = vst [vmem:[%s2163 + $0x48] sm:$0x3] %v2236
          %v2238 = vld [vmem:[%s2162 + $0x4a] sm:$0x3]
          %2239 = vst [vmem:[%s2163 + $0x4a] sm:$0x3] %v2238
          %v2240 = vld [vmem:[%s2162 + $0x4c] sm:$0x3]
          %2241 = vst [vmem:[%s2163 + $0x4c] sm:$0x3] %v2240
          %v2242 = vld [vmem:[%s2162 + $0x4e] sm:$0x3]
          %2243 = vst [vmem:[%s2163 + $0x4e] sm:$0x3] %v2242
          %v2244 = vld [vmem:[%s2162 + $0x50] sm:$0x3]
          %2245 = vst [vmem:[%s2163 + $0x50] sm:$0x3] %v2244
          %v2246 = vld [vmem:[%s2162 + $0x52] sm:$0x3]
          %2247 = vst [vmem:[%s2163 + $0x52] sm:$0x3] %v2246
          %v2248 = vld [vmem:[%s2162 + $0x54] sm:$0x3]
          %2249 = vst [vmem:[%s2163 + $0x54] sm:$0x3] %v2248
          %v2250 = vld [vmem:[%s2162 + $0x56] sm:$0x3]
          %2251 = vst [vmem:[%s2163 + $0x56] sm:$0x3] %v2250
          %v2252 = vld [vmem:[%s2162 + $0x58] sm:$0x3]
          %2253 = vst [vmem:[%s2163 + $0x58] sm:$0x3] %v2252
          %v2254 = vld [vmem:[%s2162 + $0x5a] sm:$0x3]
          %2255 = vst [vmem:[%s2163 + $0x5a] sm:$0x3] %v2254
          %v2256 = vld [vmem:[%s2162 + $0x5c] sm:$0x3]
          %2257 = vst [vmem:[%s2163 + $0x5c] sm:$0x3] %v2256
          %v2258 = vld [vmem:[%s2162 + $0x5e] sm:$0x3]
          %2259 = vst [vmem:[%s2163 + $0x5e] sm:$0x3] %v2258
          %v2260 = vld [vmem:[%s2162 + $0x60] sm:$0x3]
          %2261 = vst [vmem:[%s2163 + $0x60] sm:$0x3] %v2260
          %v2262 = vld [vmem:[%s2162 + $0x62] sm:$0x3]
          %2263 = vst [vmem:[%s2163 + $0x62] sm:$0x3] %v2262
          %v2264 = vld [vmem:[%s2162 + $0x64] sm:$0x3]
          %2265 = vst [vmem:[%s2163 + $0x64] sm:$0x3] %v2264
          %v2266 = vld [vmem:[%s2162 + $0x66] sm:$0x3]
          %2267 = vst [vmem:[%s2163 + $0x66] sm:$0x3] %v2266
          %v2268 = vld [vmem:[%s2162 + $0x68] sm:$0x3]
          %2269 = vst [vmem:[%s2163 + $0x68] sm:$0x3] %v2268
          %v2270 = vld [vmem:[%s2162 + $0x6a] sm:$0x3]
          %2271 = vst [vmem:[%s2163 + $0x6a] sm:$0x3] %v2270
          %v2272 = vld [vmem:[%s2162 + $0x6c] sm:$0x3]
          %2273 = vst [vmem:[%s2163 + $0x6c] sm:$0x3] %v2272
          %v2274 = vld [vmem:[%s2162 + $0x6e] sm:$0x3]
          %2275 = vst [vmem:[%s2163 + $0x6e] sm:$0x3] %v2274
          %v2276 = vld [vmem:[%s2162 + $0x70] sm:$0x3]
          %2277 = vst [vmem:[%s2163 + $0x70] sm:$0x3] %v2276
          %v2278 = vld [vmem:[%s2162 + $0x72] sm:$0x3]
          %2279 = vst [vmem:[%s2163 + $0x72] sm:$0x3] %v2278
          %v2280 = vld [vmem:[%s2162 + $0x74] sm:$0x3]
          %2281 = vst [vmem:[%s2163 + $0x74] sm:$0x3] %v2280
          %v2282 = vld [vmem:[%s2162 + $0x76] sm:$0x3]
          %2283 = vst [vmem:[%s2163 + $0x76] sm:$0x3] %v2282
          %v2284 = vld [vmem:[%s2162 + $0x78] sm:$0x3]
          %2285 = vst [vmem:[%s2163 + $0x78] sm:$0x3] %v2284
          %v2286 = vld [vmem:[%s2162 + $0x7a] sm:$0x3]
          %2287 = vst [vmem:[%s2163 + $0x7a] sm:$0x3] %v2286
          %v2288 = vld [vmem:[%s2162 + $0x7c] sm:$0x3]
          %2289 = vst [vmem:[%s2163 + $0x7c] sm:$0x3] %v2288
          %v2290 = vld [vmem:[%s2162 + $0x7e] sm:$0x3]
          %2291 = vst [vmem:[%s2163 + $0x7e] sm:$0x3] %v2290
        $region55: #{reverse} parent=49 // loop_footer
          %s2161 = sadd.s32 1, %s2157
        $region56: #{reverse} parent=49 // loop_footer_branch
          %2156 = sbr.rel target = $region52
        $region57: #{reverse} parent=49 // loop_exit
          _
      $region50: #{reverse} parent=41 // pred_fallthru
        _
    $region42: #{reverse} parent=1 // pred_fallthru
      _
    %2439 = vnop

// kernel: dit_forward.8
$region0: #{dit_forward.8}
  #allocation0 [shape = 'u32[]', space=smem, size = 0x4, offset = 0x4, fixed_abs, tag = 'smem constant byte address 0x4 - core index']
  #allocation1 [shape = 'u32[144,128]{1,0:T(1,128)}', space=vmem, size = 0x12000, scoped, tag = 'internal scratch']
  %s0 = inlined_call_operand.hbm [shape: f32[2,16,48], index: 0, kind: input, shape index: {}]
  %s1 = inlined_call_operand.hbm [shape: f32[48,64], index: 1, kind: input, shape index: {}]
  %s2 = inlined_call_operand.hbm [shape: f32[1,64], index: 2, kind: input, shape index: {}]
  %s3 = inlined_call_operand.hbm [shape: f32[2,16,64], index: 3, kind: output, shape index: {}]
  %s4 = sld [smem:[#allocation0]]
  $region57: #{dit_forward.8} parent=0
    _
  %s6 = ssub.s32 1, %s4
  %s7 = scalar_select 0, %s6, %s4
  $region1: #{dit_forward.8} parent=0
    #allocation2 [shape = 'u8[16384]{0}', space=vmem, size = 0x4000, scoped, tag = 'input window, operand 0']
    #allocation3 [shape = 's32[2]{0}', space=sflag, size = 0x8, scoped, tag = 'scoped memory for dit_forward.8']
    #allocation4 [shape = 's32[2]{0}', space=sflag, size = 0x8, scoped, tag = 'scoped memory for dit_forward.8']
    #allocation5 [shape = 'u8[24576]{0}', space=vmem, size = 0x6000, scoped, tag = 'input window, operand 1, single buffered']
    #allocation6 [shape = 's32[1]{0}', space=sflag, size = 0x4, scoped, tag = 'scoped memory for dit_forward.8']
    #allocation7 [shape = 'u8[512]{0}', space=vmem, size = 0x400, scoped, tag = 'input window, operand 2, single buffered']
    #allocation8 [shape = 'u8[16384]{0}', space=vmem, size = 0x4000, scoped, tag = 'output window, operand 0']
    %8 = vsyncpa [#allocation3], 0
    %s9 = scalar_lea.sflag [#allocation3], 1
    %10 = vsyncpa %s9, 0
    %11 = vsyncpa [#allocation6], 0
    %12 = vsyncpa [#allocation4], 0
    %s13 = scalar_lea.sflag [#allocation4], 1
    %14 = vsyncpa %s13, 0
    loop: start=0, step=1, limit=4
    $region2: #{dit_forward.8} parent=1 // loop_pre_header
      _
    $region3: #{dit_forward.8} parent=1 // loop_header
      %s16 = sphi 0, %s20
      %p17 = scmp.ge.s32.totalorder %s16, 4
      %s23 = sphi 0, %s35
      %s24 = sphi 0, %s31
      %s25 = sphi 0, %s23
      %s26 = sphi 0, %s24
      %s27 = sphi 0, %s25
      %s28 = sphi 0, %s26
      %s40 = sphi 0, %s42
      %s43 = sphi 0, %s40
      %s44 = sphi 0, %s43
      %s60 = sphi 0, %s44
      %s64 = sphi 0, %s64
      %s66 = sphi 0, %s64
      %s67 = sphi 0, %s66
      %s81 = sphi 0, %s67
      %s85 = sphi 0, %s85
      %s87 = sphi 0, %s85
      %s88 = sphi 0, %s87
      %s102 = sphi 0, %s88
      %s110 = sphi 0, %s112
      %s113 = sphi 0, %s110
      %s114 = sphi 0, %s113
      %s130 = sphi 0, %s114
    $region4: #{dit_forward.8} parent=1 // loop_header_branch
      %19 = sbr.rel (%p17) target = $region8
    $region5: #{dit_forward.8} parent=1 // loop_body
      %s21 = ssub.s32 %s16, 1
      %s22 = ssub.s32 %s16, 2
      %s29 = sadd.s32 1, %s24
      %p30 = scmp.ge.s32.totalorder %s29, 1
      %s31 = scalar_select %p30, 0, %s29
      %s32 = sadd.s32 1, %s23
      %s33 = scalar_select %p30, %s32, %s23
      %p34 = scmp.ge.s32.totalorder %s33, 2
      %s35 = scalar_select %p34, 0, %s33
      %s36 = ssub.s32 %s23, %s35
      %s37 = ssub.s32 %s24, %s31
      %s38 = sor.u32 %s36, %s37
      %p39 = scmp.eq.s32.totalorder %s38, 0
      %s41 = sadd.s32 %s40, 1
      %s42 = scalar_select %p39, %s40, %s41
      %p45 = pneg %p39
      %p46 = scmp.eq.s32.totalorder %s16, 1
      %p47 = por %p45, %p46
      %p48 = scmp.ne.s32.totalorder %s40, %s43
      %p49 = scmp.eq.s32.totalorder %s16, 0
      %p50 = por %p48, %p49
      %p51 = scmp.ne.s32.totalorder %s40, %s43
      %p52 = scmp.eq.s32.totalorder %s21, 1
      %p53 = por %p51, %p52
      %p54 = scmp.ne.s32.totalorder %s43, %s44
      %p55 = scmp.eq.s32.totalorder %s21, 0
      %p56 = por %p54, %p55
      %p57 = scmp.ne.s32.totalorder %s43, %s44
      %p58 = scmp.eq.s32.totalorder %s22, 1
      %p59 = por %p57, %p58
      %p61 = scmp.ne.s32.totalorder %s44, %s60
      %p62 = scmp.eq.s32.totalorder %s22, 0
      %p63 = por %p61, %p62
      %s65 = sadd.s32 %s64, 1
      %p68 = scmp.eq.s32.totalorder %s16, 1
      %p69 = scmp.ne.s32.totalorder %s64, %s66
      %p70 = scmp.eq.s32.totalorder %s16, 0
      %p71 = por %p69, %p70
      %p72 = scmp.ne.s32.totalorder %s64, %s66
      %p73 = scmp.eq.s32.totalorder %s21, 1
      %p74 = por %p72, %p73
      %p75 = scmp.ne.s32.totalorder %s66, %s67
      %p76 = scmp.eq.s32.totalorder %s21, 0
      %p77 = por %p75, %p76
      %p78 = scmp.ne.s32.totalorder %s66, %s67
      %p79 = scmp.eq.s32.totalorder %s22, 1
      %p80 = por %p78, %p79
      %p82 = scmp.ne.s32.totalorder %s67, %s81
      %p83 = scmp.eq.s32.totalorder %s22, 0
      %p84 = por %p82, %p83
      %s86 = sadd.s32 %s85, 1
      %p89 = scmp.eq.s32.totalorder %s16, 1
      %p90 = scmp.ne.s32.totalorder %s85, %s87
      %p91 = scmp.eq.s32.totalorder %s16, 0
      %p92 = por %p90, %p91
      %p93 = scmp.ne.s32.totalorder %s85, %s87
      %p94 = scmp.eq.s32.totalorder %s21, 1
      %p95 = por %p93, %p94
      %p96 = scmp.ne.s32.totalorder %s87, %s88
      %p97 = scmp.eq.s32.totalorder %s21, 0
      %p98 = por %p96, %p97
      %p99 = scmp.ne.s32.totalorder %s87, %s88
      %p100 = scmp.eq.s32.totalorder %s22, 1
      %p101 = por %p99, %p100
      %p103 = scmp.ne.s32.totalorder %s88, %s102
      %p104 = scmp.eq.s32.totalorder %s22, 0
      %p105 = por %p103, %p104
      %s106 = ssub.s32 %s23, %s35
      %s107 = ssub.s32 %s24, %s31
      %s108 = sor.u32 %s106, %s107
      %p109 = scmp.eq.s32.totalorder %s108, 0
      %s111 = sadd.s32 %s110, 1
      %s112 = scalar_select %p109, %s110, %s111
      %p115 = pneg %p109
      %p116 = scmp.eq.s32.totalorder %s16, 1
      %p117 = por %p115, %p116
      %p118 = scmp.ne.s32.totalorder %s110, %s113
      %p119 = scmp.eq.s32.totalorder %s16, 0
      %p120 = por %p118, %p119
      %p121 = scmp.ne.s32.totalorder %s110, %s113
      %p122 = scmp.eq.s32.totalorder %s21, 1
      %p123 = por %p121, %p122
      %p124 = scmp.ne.s32.totalorder %s113, %s114
      %p125 = scmp.eq.s32.totalorder %s21, 0
      %p126 = por %p124, %p125
      %p127 = scmp.ne.s32.totalorder %s113, %s114
      %p128 = scmp.eq.s32.totalorder %s22, 1
      %p129 = por %p127, %p128
      %p131 = scmp.ne.s32.totalorder %s114, %s130
      %p132 = scmp.eq.s32.totalorder %s22, 0
      %p133 = por %p131, %p132
      %p134 = scmp.le.s32.totalorder 1, %s16
      %p135 = scmp.lt.s32.totalorder %s16, 3
      %p136 = pnand %p134, %p135
      %p137 = pneg %p136
      // Predicated region
      $region9: #{dit_forward.8} parent=5 // pred_check
        _
      $region10: #{dit_forward.8} parent=5 // pred_check_branch
        %139 = sbr.rel (%p136) target = $region12
      $region11: #{dit_forward.8} parent=5 // pred_region
        %s140 = ssub.s32 %s16, 1
        // Predicated region
        $region13: #{dit_forward.8} parent=11 // pred_check
          %p141 = pneg %p77
        $region14: #{dit_forward.8} parent=11 // pred_check_branch
          %143 = sbr.rel (%p141) target = $region16
        $region15: #{dit_forward.8} parent=11 // pred_region
          %s145 = ssub.s32 768, 768
          %146 = vsyncadd [#allocation6], %s145
          %s147 = sshll.u32 [#allocation5], 4
          %s148 = int_to_ptr.vmem [resolvable:$true] %s147
          %153 = dma.hbm_to_vmem [thread:$0]  %s1, 768, %s148, [#allocation6], 128, 128, 8
        $region16: #{dit_forward.8} parent=11 // pred_fallthru
          _
        // Predicated region
        $region17: #{dit_forward.8} parent=11 // pred_check
          %p154 = pneg %p98
        $region18: #{dit_forward.8} parent=11 // pred_check_branch
          %156 = sbr.rel (%p154) target = $region20
        $region19: #{dit_forward.8} parent=11 // pred_region
          %s158 = ssub.s32 16, 16
          %159 = vsyncadd [#allocation6], %s158
          %s161 = sshll.u32 [#allocation7], 4
          %s162 = int_to_ptr.vmem [resolvable:$true] %s161
          %164 = dma.hbm_to_vmem [thread:$0]  %s2, 16, %s162, [#allocation6]
        $region20: #{dit_forward.8} parent=11 // pred_fallthru
          _
      $region12: #{dit_forward.8} parent=5 // pred_fallthru
        _
      %p165 = scmp.lt.s32.totalorder %s16, 2
      // Predicated region
      $region21: #{dit_forward.8} parent=5 // pred_check
        %p166 = pneg %p165
      $region22: #{dit_forward.8} parent=5 // pred_check_branch
        %168 = sbr.rel (%p166) target = $region24
      $region23: #{dit_forward.8} parent=5 // pred_region
        // Predicated region
        $region25: #{dit_forward.8} parent=23 // pred_check
          %p169 = pneg %p50
        $region26: #{dit_forward.8} parent=23 // pred_check_branch
          %171 = sbr.rel (%p169) target = $region28
        $region27: #{dit_forward.8} parent=23 // pred_region
          %s172 = sand.u32 %s40, 1
          %s173 = scalar_lea.sflag [#allocation3], %s172
          %s174 = sand.u32 %s40, 1
          %s175 = smul.addr %s174, 16
          %s176 = scalar_lea.vmem [#allocation2], %s175
          %s177 = smul.u32 2, %s24
          %s179 = ssub.s32 256, 256
          %180 = vsyncadd %s173, %s179
          %s181 = smul.addr %s23, 2
          %s182 = sadd.s32 %s177, %s181
          %s183 = smul.addr %s182, 128
          %s184 = scalar_lea.hbm %s0, %s183
          %s185 = sshll.u32 %s176, 4
          %s186 = int_to_ptr.vmem [resolvable:$true] %s185
          %191 = dma.hbm_to_vmem [thread:$0]  %s184, 256, %s186, %s173, 128, 128, 8
        $region28: #{dit_forward.8} parent=23 // pred_fallthru
          _
      $region24: #{dit_forward.8} parent=5 // pred_fallthru
        _
      %p192 = scmp.le.s32.totalorder 1, %s16
      %p193 = scmp.lt.s32.totalorder %s16, 3
      %p194 = pnand %p192, %p193
      %p195 = pneg %p194
      // Predicated region
      $region29: #{dit_forward.8} parent=5 // pred_check
        _
      $region30: #{dit_forward.8} parent=5 // pred_check_branch
        %197 = sbr.rel (%p194) target = $region32
      $region31: #{dit_forward.8} parent=5 // pred_region
        %s198 = ssub.s32 %s16, 1
        %s199 = sand.u32 %s43, 1
        %s200 = scalar_lea.sflag [#allocation3], %s199
        %s201 = sand.u32 %s43, 1
        %s202 = smul.addr %s201, 16
        %s203 = scalar_lea.vmem [#allocation2], %s202
        // Predicated region
        $region33: #{dit_forward.8} parent=31 // pred_check
          %p204 = pneg %p56
        $region34: #{dit_forward.8} parent=31 // pred_check_branch
          %206 = sbr.rel (%p204) target = $region36
        $region35: #{dit_forward.8} parent=31 // pred_region
          %207 = dma.done %s200, 256
        $region36: #{dit_forward.8} parent=31 // pred_fallthru
          _
        // Predicated region
        $region37: #{dit_forward.8} parent=31 // pred_check
          %p208 = pneg %p77
        $region38: #{dit_forward.8} parent=31 // pred_check_branch
          %210 = sbr.rel (%p208) target = $region40
        $region39: #{dit_forward.8} parent=31 // pred_region
          %211 = dma.done [#allocation6], 768
        $region40: #{dit_forward.8} parent=31 // pred_fallthru
          _
        // Predicated region
        $region41: #{dit_forward.8} parent=31 // pred_check
          %p212 = pneg %p98
        $region42: #{dit_forward.8} parent=31 // pred_check_branch
          %214 = sbr.rel (%p212) target = $region44
        $region43: #{dit_forward.8} parent=31 // pred_region
          %215 = dma.done [#allocation6], 16
        $region44: #{dit_forward.8} parent=31 // pred_fallthru
          _
        %s216 = sand.u32 %s43, 1
        %s217 = scalar_lea.sflag [#allocation3], %s216
        %s218 = sand.u32 %s43, 1
        %s219 = smul.addr %s218, 16
        %s220 = scalar_lea.vmem [#allocation2], %s219
        %p221 = pneg %p56
        %p222 = pneg %p53
        %p223 = pneg %p77
        %p224 = pneg %p74
        %p225 = pneg %p98
        %p226 = pneg %p95
        %p227 = pneg %p126
        %p228 = pneg %p123
        %s229 = sand.u32 %s113, 1
        %s230 = scalar_lea.sflag [#allocation4], %s229
        %s231 = sand.u32 %s113, 1
        %s232 = smul.addr %s231, 16
        %s233 = scalar_lea.vmem [#allocation8], %s232
        %s234 = smul.u32 2, %s26
        %s235 = smul.u32 2, %s26
        %v236 = vld [vmem:[%s203] sm:$0xff]
        %v237 = vld [vmem:[%s203 + $0x8] sm:$0xff]
        %v238 = vld [vmem:[#allocation5] sm:$0xff]
        %v239 = vld [vmem:[#allocation5 + $0x8] sm:$0xff]
        %v240 = vld [vmem:[#allocation5 + $0x10] sm:$0xff]
        %v241 = vld [vmem:[#allocation5 + $0x18] sm:$0xff]
        %v242 = vld [vmem:[#allocation5 + $0x20] sm:$0xff]
        %v243 = vld [vmem:[#allocation5 + $0x28] sm:$0xff]
        %v244 = vld [vmem:[#allocation7] sm:$0x1]
        %v246 = vlaneseq
        %v247 = vshrl.u32 %v246, 7
        %v248 = vsub.s32 0, %v247
        %v249 = vrot.slane %v244, %v248
        %vm251 = vcmask 392192
        %v253 = vsel %vm251, %v236, 0
        %v256 = vsel %vm251, %v237, 0
        %258 = vmatprep.subr.mxu0 0.0
        %259 = vmatpush1.msra.mxu0 %v238
        %260 = vmatprep.subr.mxu0 0.0
        %261 = vmatpush1.msra.mxu0 %v239
        %262 = vmatprep.subr.mxu0 0.0
        %263 = vmatpush1.msra.mxu0 %v240
        %264 = vmatprep.subr.mxu0 0.0
        %265 = vmatpush1.msra.mxu0 %v241
        %266 = vmatprep.subr.mxu0 0.0
        %267 = vmatpush1.msra.mxu0 %v242
        %268 = vmatprep.subr.mxu0 0.0
        %269 = vmatpush1.msra.mxu0 %v243
        %270 = vmatprep.subr.mxu0 0.0
        %271 = vmatpush1.msra.mxu0 0.0
        %272 = vmatprep.subr.mxu0 0.0
        %273 = vmatpush1.msra.mxu0 0.0
        %274 = vmatprep.subr.mxu0 0.0
        %275 = vmatpush1.msra.mxu0 0.0
        %276 = vmatprep.subr.mxu0 0.0
        %277 = vmatpush1.msra.mxu0 0.0
        %278 = vmatprep.subr.mxu0 0.0
        %279 = vmatpush1.msra.mxu0 0.0
        %280 = vmatprep.subr.mxu0 0.0
        %281 = vmatpush1.msra.mxu0 0.0
        %282 = vmatprep.subr.mxu0 0.0
        %283 = vmatpush1.msra.mxu0 0.0
        %284 = vmatprep.subr.mxu0 0.0
        %285 = vmatpush1.msra.mxu0 0.0
        %286 = vmatprep.subr.mxu0 0.0
        %287 = vmatpush1.msra.mxu0 0.0
        %288 = vmatprep.subr.mxu0 0.0
        %289 = vmatpush1.msra.mxu0 0.0
        %290 = vmatprep.subr.mxu0 0.0
        %291 = vmatpush1.msra.mxu0 0.0
        %292 = vmatprep.subr.mxu0 0.0
        %293 = vmatpush1.msra.mxu0 0.0
        %294 = vmatprep.subr.mxu0 0.0
        %295 = vmatpush1.msra.mxu0 0.0
        %296 = vmatprep.subr.mxu0 0.0
        %297 = vmatpush1.msra.mxu0 0.0
        %298 = vmatprep.subr.mxu0 0.0
        %299 = vmatpush1.msra.mxu0 0.0
        %300 = vmatprep.subr.mxu0 0.0
        %301 = vmatpush1.msra.mxu0 0.0
        %302 = vmatprep.subr.mxu0 0.0
        %303 = vmatpush1.msra.mxu0 0.0
        %304 = vmatprep.subr.mxu0 0.0
        %305 = vmatpush1.msra.mxu0 0.0
        %306 = vmatprep.subr.mxu0 0.0
        %307 = vmatpush1.msra.mxu0 0.0
        %308 = vmatprep.subr.mxu0 0.0
        %309 = vmatpush1.msra.mxu0 0.0
        %310 = vmatprep.subr.mxu0 0.0
        %311 = vmatpush1.msra.mxu0 0.0
        %312 = vmatprep.subr.mxu0 0.0
        %313 = vmatpush1.msra.mxu0 0.0
        %314 = vmatprep.subr.mxu0 0.0
        %315 = vmatpush1.msra.mxu0 0.0
        %316 = vmatprep.subr.mxu0 0.0
        %317 = vmatpush1.msra.mxu0 0.0
        %318 = vmatprep.subr.mxu0 0.0
        %319 = vmatpush1.msra.mxu0 0.0
        %320 = vmatprep.subr.mxu0 0.0
        %321 = vmatpush1.msra.mxu0 0.0
        %322 = vmatprep.mubr.f32.mxu0 0.0
        %323 = vmatmul.mubr.f32.gmra.mrb[0].mxu0 %v253
        %v324 = vpop.f32.mrb[0].mxu0
        %v325 = vadd.f32 %v249, %v324
        %v326 = vpop.f32.mrb[0].mxu0
        %327 = vmatprep.mubr.f32.mxu0 0.0
        %328 = vmatmul.mubr.f32.gmra.mrb[0].mxu0 %v256
        %v329 = vpop.f32.mrb[0].mxu0
        %v330 = vadd.f32 %v249, %v329
        %v331 = vpop.f32.mrb[0].mxu0
        %332 = vdwg.mxu0
        %vm333 = vcmask 523264
        %334 = vst.msk [vmem:[%s233] sm:$0xff] %vm333, %v325
        %335 = vst.msk [vmem:[%s233 + $0x8] sm:$0xff] %vm333, %v330
        %s336 = sand.u32 %s113, 1
        %s337 = scalar_lea.sflag [#allocation4], %s336
        %s338 = sand.u32 %s113, 1
        %s339 = smul.addr %s338, 16
        %s340 = scalar_lea.vmem [#allocation8], %s339
        // Predicated region
        $region45: #{dit_forward.8} parent=31 // pred_check
          %p341 = pneg %p123
        $region46: #{dit_forward.8} parent=31 // pred_check_branch
          %343 = sbr.rel (%p341) target = $region48
        $region47: #{dit_forward.8} parent=31 // pred_region
          %s344 = smul.u32 2, %s26
          %s346 = ssub.s32 256, 256
          %347 = vsyncadd %s337, %s346
          %s348 = smul.addr %s25, 2
          %s349 = sadd.s32 %s344, %s348
          %s350 = smul.addr %s349, 128
          %s351 = scalar_lea.hbm %s3, %s350
          %s352 = sshll.u32 %s340, 4
          %s353 = int_to_ptr.vmem [resolvable:$true] %s352
          %358 = dma.vmem_to_hbm [thread:$0]  %s353, 256, %s351, %s337, 128, 128, 8
        $region48: #{dit_forward.8} parent=31 // pred_fallthru
          _
      $region32: #{dit_forward.8} parent=5 // pred_fallthru
        _
      %p359 = scmp.le.s32.totalorder 2, %s16
      // Predicated region
      $region49: #{dit_forward.8} parent=5 // pred_check
        %p360 = pneg %p359
      $region50: #{dit_forward.8} parent=5 // pred_check_branch
        %362 = sbr.rel (%p360) target = $region52
      $region51: #{dit_forward.8} parent=5 // pred_region
        %s363 = ssub.s32 %s16, 2
        // Predicated region
        $region53: #{dit_forward.8} parent=51 // pred_check
          %p364 = pneg %p129
        $region54: #{dit_forward.8} parent=51 // pred_check_branch
          %366 = sbr.rel (%p364) target = $region56
        $region55: #{dit_forward.8} parent=51 // pred_region
          %s367 = sand.u32 %s114, 1
          %s368 = scalar_lea.sflag [#allocation4], %s367
          %s369 = sand.u32 %s114, 1
          %s370 = smul.addr %s369, 16
          %s371 = scalar_lea.vmem [#allocation8], %s370
          %372 = dma.done %s368, 256
        $region56: #{dit_forward.8} parent=51 // pred_fallthru
          _
      $region52: #{dit_forward.8} parent=5 // pred_fallthru
        _
    $region6: #{dit_forward.8} parent=1 // loop_footer
      %s20 = sadd.s32 1, %s16
    $region7: #{dit_forward.8} parent=1 // loop_footer_branch
      %15 = sbr.rel target = $region3
    $region8: #{dit_forward.8} parent=1 // loop_exit
      _
    %373 = vsyncpa [#allocation3], 1
    %s374 = scalar_lea.sflag [#allocation3], 1
    %375 = vsyncpa %s374, 1
    %376 = vsyncpa [#allocation6], 1
    %377 = vsyncpa [#allocation4], 1
    %s378 = scalar_lea.sflag [#allocation4], 1
    %379 = vsyncpa %s378, 1

// kernel: dit_forward.9
$region0: #{dit_forward.9}
  #allocation0 [shape = 'u32[]', space=smem, size = 0x4, offset = 0x4, fixed_abs, tag = 'smem constant byte address 0x4 - core index']
  #allocation1 [shape = 'u32[144,128]{1,0:T(1,128)}', space=vmem, size = 0x12000, scoped, tag = 'internal scratch']
  %s0 = inlined_call_operand.hbm [shape: f32[2,16,64], index: 0, kind: input, shape index: {}]
  %s1 = inlined_call_operand.hbm [shape: f32[2,1,64], index: 1, kind: input, shape index: {}]
  %s2 = inlined_call_operand.hbm [shape: f32[2,1,64], index: 2, kind: input, shape index: {}]
  %s3 = inlined_call_operand.hbm [shape: f32[64,192], index: 3, kind: input, shape index: {}]
  %s4 = inlined_call_operand.hbm [shape: f32[1,192], index: 4, kind: input, shape index: {}]
  %s5 = inlined_call_operand.hbm [shape: f32[16,16], index: 5, kind: input, shape index: {}]
  %s6 = inlined_call_operand.hbm [shape: f32[16,16], index: 6, kind: input, shape index: {}]
  %s7 = inlined_call_operand.hbm [shape: f32[2,16,64], index: 7, kind: output, shape index: {0}]
  %s8 = inlined_call_operand.hbm [shape: f32[2,16,64], index: 8, kind: output, shape index: {1}]
  %s9 = inlined_call_operand.hbm [shape: f32[2,16,64], index: 9, kind: output, shape index: {2}]
  %10 = xla_tuple %s7, %s8, %s9
  %s11 = sld [smem:[#allocation0]]
  $region105: #{dit_forward.9} parent=0
    _
  %s13 = ssub.s32 1, %s11
  %s14 = scalar_select 0, %s13, %s11
  $region1: #{dit_forward.9} parent=0
    #allocation2 [shape = 'u8[16384]{0}', space=vmem, size = 0x4000, scoped, tag = 'input window, operand 0']
    #allocation3 [shape = 's32[2]{0}', space=sflag, size = 0x8, scoped, tag = 'scoped memory for dit_forward.9']
    #allocation4 [shape = 's32[2]{0}', space=sflag, size = 0x8, scoped, tag = 'scoped memory for dit_forward.9']
    #allocation5 [shape = 'u8[1024]{0}', space=vmem, size = 0x400, scoped, tag = 'input window, operand 1']
    #allocation6 [shape = 's32[2]{0}', space=sflag, size = 0x8, scoped, tag = 'scoped memory for dit_forward.9']
    #allocation7 [shape = 'u8[1024]{0}', space=vmem, size = 0x400, scoped, tag = 'input window, operand 2']
    #allocation8 [shape = 'u8[65536]{0}', space=vmem, size = 0x10000, scoped, tag = 'input window, operand 3, single buffered']
    #allocation9 [shape = 's32[1]{0}', space=sflag, size = 0x4, scoped, tag = 'scoped memory for dit_forward.9']
    #allocation10 [shape = 'u8[1024]{0}', space=vmem, size = 0x400, scoped, tag = 'input window, operand 4, single buffered']
    #allocation11 [shape = 'u8[8192]{0}', space=vmem, size = 0x2000, scoped, tag = 'input window, operand 5, single buffered']
    #allocation12 [shape = 's32[1]{0}', space=sflag, size = 0x4, scoped, tag = 'scoped memory for dit_forward.9']
    #allocation13 [shape = 'u8[8192]{0}', space=vmem, size = 0x2000, scoped, tag = 'input window, operand 6, single buffered']
    #allocation14 [shape = 'u8[16384]{0}', space=vmem, size = 0x4000, scoped, tag = 'output window, operand 0']
    #allocation15 [shape = 'u8[16384]{0}', space=vmem, size = 0x4000, scoped, tag = 'output window, operand 1']
    #allocation16 [shape = 's32[2]{0}', space=sflag, size = 0x8, scoped, tag = 'scoped memory for dit_forward.9']
    #allocation17 [shape = 'u8[16384]{0}', space=vmem, size = 0x4000, scoped, tag = 'output window, operand 2']
    %15 = vsyncpa [#allocation3], 0
    %s16 = scalar_lea.sflag [#allocation3], 1
    %17 = vsyncpa %s16, 0
    %18 = vsyncpa [#allocation6], 0
    %s19 = scalar_lea.sflag [#allocation6], 1
    %20 = vsyncpa %s19, 0
    %21 = vsyncpa [#allocation9], 0
    %22 = vsyncpa [#allocation12], 0
    %23 = vsyncpa [#allocation4], 0
    %s24 = scalar_lea.sflag [#allocation4], 1
    %25 = vsyncpa %s24, 0
    %26 = vsyncpa [#allocation16], 0
    %s27 = scalar_lea.sflag [#allocation16], 1
    %28 = vsyncpa %s27, 0
    loop: start=0, step=1, limit=4
    $region2: #{dit_forward.9} parent=1 // loop_pre_header
      _
    $region3: #{dit_forward.9} parent=1 // loop_header
      %s30 = sphi 0, %s34
      %p31 = scmp.ge.s32.totalorder %s30, 4
      %s37 = sphi 0, %s49
      %s38 = sphi 0, %s45
      %s39 = sphi 0, %s37
      %s40 = sphi 0, %s38
      %s41 = sphi 0, %s39
      %s42 = sphi 0, %s40
      %s54 = sphi 0, %s56
      %s57 = sphi 0, %s54
      %s58 = sphi 0, %s57
      %s74 = sphi 0, %s58
      %s80 = sphi 0, %s82
      %s83 = sphi 0, %s80
      %s84 = sphi 0, %s83
      %s100 = sphi 0, %s84
      %s106 = sphi 0, %s108
      %s109 = sphi 0, %s106
      %s110 = sphi 0, %s109
      %s126 = sphi 0, %s110
      %s130 = sphi 0, %s130
      %s132 = sphi 0, %s130
      %s133 = sphi 0, %s132
      %s147 = sphi 0, %s133
      %s151 = sphi 0, %s151
      %s153 = sphi 0, %s151
      %s154 = sphi 0, %s153
      %s168 = sphi 0, %s154
      %s174 = sphi 0, %s176
      %s177 = sphi 0, %s174
      %s178 = sphi 0, %s177
      %s194 = sphi 0, %s178
      %s200 = sphi 0, %s202
      %s203 = sphi 0, %s200
      %s204 = sphi 0, %s203
      %s220 = sphi 0, %s204
      %s228 = sphi 0, %s230
      %s231 = sphi 0, %s228
      %s232 = sphi 0, %s231
      %s248 = sphi 0, %s232
      %s256 = sphi 0, %s258
      %s259 = sphi 0, %s256
      %s260 = sphi 0, %s259
      %s276 = sphi 0, %s260
      %s284 = sphi 0, %s286
      %s287 = sphi 0, %s284
      %s288 = sphi 0, %s287
      %s304 = sphi 0, %s288
    $region4: #{dit_forward.9} parent=1 // loop_header_branch
      %33 = sbr.rel (%p31) target = $region8
    $region5: #{dit_forward.9} parent=1 // loop_body
      %s35 = ssub.s32 %s30, 1
      %s36 = ssub.s32 %s30, 2
      %s43 = sadd.s32 1, %s38
      %p44 = scmp.ge.s32.totalorder %s43, 1
      %s45 = scalar_select %p44, 0, %s43
      %s46 = sadd.s32 1, %s37
      %s47 = scalar_select %p44, %s46, %s37
      %p48 = scmp.ge.s32.totalorder %s47, 2
      %s49 = scalar_select %p48, 0, %s47
      %s50 = ssub.s32 %s37, %s49
      %s51 = ssub.s32 %s38, %s45
      %s52 = sor.u32 %s50, %s51
      %p53 = scmp.eq.s32.totalorder %s52, 0
      %s55 = sadd.s32 %s54, 1
      %s56 = scalar_select %p53, %s54, %s55
      %p59 = pneg %p53
      %p60 = scmp.eq.s32.totalorder %s30, 1
      %p61 = por %p59, %p60
      %p62 = scmp.ne.s32.totalorder %s54, %s57
      %p63 = scmp.eq.s32.totalorder %s30, 0
      %p64 = por %p62, %p63
      %p65 = scmp.ne.s32.totalorder %s54, %s57
      %p66 = scmp.eq.s32.totalorder %s35, 1
      %p67 = por %p65, %p66
      %p68 = scmp.ne.s32.totalorder %s57, %s58
      %p69 = scmp.eq.s32.totalorder %s35, 0
      %p70 = por %p68, %p69
      %p71 = scmp.ne.s32.totalorder %s57, %s58
      %p72 = scmp.eq.s32.totalorder %s36, 1
      %p73 = por %p71, %p72
      %p75 = scmp.ne.s32.totalorder %s58, %s74
      %p76 = scmp.eq.s32.totalorder %s36, 0
      %p77 = por %p75, %p76
      %s78 = ssub.s32 %s37, %s49
      %p79 = scmp.eq.s32.totalorder %s78, 0
      %s81 = sadd.s32 %s80, 1
      %s82 = scalar_select %p79, %s80, %s81
      %p85 = pneg %p79
      %p86 = scmp.eq.s32.totalorder %s30, 1
      %p87 = por %p85, %p86
      %p88 = scmp.ne.s32.totalorder %s80, %s83
      %p89 = scmp.eq.s32.totalorder %s30, 0
      %p90 = por %p88, %p89
      %p91 = scmp.ne.s32.totalorder %s80, %s83
      %p92 = scmp.eq.s32.totalorder %s35, 1
      %p93 = por %p91, %p92
      %p94 = scmp.ne.s32.totalorder %s83, %s84
      %p95 = scmp.eq.s32.totalorder %s35, 0
      %p96 = por %p94, %p95
      %p97 = scmp.ne.s32.totalorder %s83, %s84
      %p98 = scmp.eq.s32.totalorder %s36, 1
      %p99 = por %p97, %p98
      %p101 = scmp.ne.s32.totalorder %s84, %s100
      %p102 = scmp.eq.s32.totalorder %s36, 0
      %p103 = por %p101, %p102
      %s104 = ssub.s32 %s37, %s49
      %p105 = scmp.eq.s32.totalorder %s104, 0
      %s107 = sadd.s32 %s106, 1
      %s108 = scalar_select %p105, %s106, %s107
      %p111 = pneg %p105
      %p112 = scmp.eq.s32.totalorder %s30, 1
      %p113 = por %p111, %p112
      %p114 = scmp.ne.s32.totalorder %s106, %s109
      %p115 = scmp.eq.s32.totalorder %s30, 0
      %p116 = por %p114, %p115
      %p117 = scmp.ne.s32.totalorder %s106, %s109
      %p118 = scmp.eq.s32.totalorder %s35, 1
      %p119 = por %p117, %p118
      %p120 = scmp.ne.s32.totalorder %s109, %s110
      %p121 = scmp.eq.s32.totalorder %s35, 0
      %p122 = por %p120, %p121
      %p123 = scmp.ne.s32.totalorder %s109, %s110
      %p124 = scmp.eq.s32.totalorder %s36, 1
      %p125 = por %p123, %p124
      %p127 = scmp.ne.s32.totalorder %s110, %s126
      %p128 = scmp.eq.s32.totalorder %s36, 0
      %p129 = por %p127, %p128
      %s131 = sadd.s32 %s130, 1
      %p134 = scmp.eq.s32.totalorder %s30, 1
      %p135 = scmp.ne.s32.totalorder %s130, %s132
      %p136 = scmp.eq.s32.totalorder %s30, 0
      %p137 = por %p135, %p136
      %p138 = scmp.ne.s32.totalorder %s130, %s132
      %p139 = scmp.eq.s32.totalorder %s35, 1
      %p140 = por %p138, %p139
      %p141 = scmp.ne.s32.totalorder %s132, %s133
      %p142 = scmp.eq.s32.totalorder %s35, 0
      %p143 = por %p141, %p142
      %p144 = scmp.ne.s32.totalorder %s132, %s133
      %p145 = scmp.eq.s32.totalorder %s36, 1
      %p146 = por %p144, %p145
      %p148 = scmp.ne.s32.totalorder %s133, %s147
      %p149 = scmp.eq.s32.totalorder %s36, 0
      %p150 = por %p148, %p149
      %s152 = sadd.s32 %s151, 1
      %p155 = scmp.eq.s32.totalorder %s30, 1
      %p156 = scmp.ne.s32.totalorder %s151, %s153
      %p157 = scmp.eq.s32.totalorder %s30, 0
      %p158 = por %p156, %p157
      %p159 = scmp.ne.s32.totalorder %s151, %s153
      %p160 = scmp.eq.s32.totalorder %s35, 1
      %p161 = por %p159, %p160
      %p162 = scmp.ne.s32.totalorder %s153, %s154
      %p163 = scmp.eq.s32.totalorder %s35, 0
      %p164 = por %p162, %p163
      %p165 = scmp.ne.s32.totalorder %s153, %s154
      %p166 = scmp.eq.s32.totalorder %s36, 1
      %p167 = por %p165, %p166
      %p169 = scmp.ne.s32.totalorder %s154, %s168
      %p170 = scmp.eq.s32.totalorder %s36, 0
      %p171 = por %p169, %p170
      %s172 = ssub.s32 %s38, %s45
      %p173 = scmp.eq.s32.totalorder %s172, 0
      %s175 = sadd.s32 %s174, 1
      %s176 = scalar_select %p173, %s174, %s175
      %p179 = pneg %p173
      %p180 = scmp.eq.s32.totalorder %s30, 1
      %p181 = por %p179, %p180
      %p182 = scmp.ne.s32.totalorder %s174, %s177
      %p183 = scmp.eq.s32.totalorder %s30, 0
      %p184 = por %p182, %p183
      %p185 = scmp.ne.s32.totalorder %s174, %s177
      %p186 = scmp.eq.s32.totalorder %s35, 1
      %p187 = por %p185, %p186
      %p188 = scmp.ne.s32.totalorder %s177, %s178
      %p189 = scmp.eq.s32.totalorder %s35, 0
      %p190 = por %p188, %p189
      %p191 = scmp.ne.s32.totalorder %s177, %s178
      %p192 = scmp.eq.s32.totalorder %s36, 1
      %p193 = por %p191, %p192
      %p195 = scmp.ne.s32.totalorder %s178, %s194
      %p196 = scmp.eq.s32.totalorder %s36, 0
      %p197 = por %p195, %p196
      %s198 = ssub.s32 %s38, %s45
      %p199 = scmp.eq.s32.totalorder %s198, 0
      %s201 = sadd.s32 %s200, 1
      %s202 = scalar_select %p199, %s200, %s201
      %p205 = pneg %p199
      %p206 = scmp.eq.s32.totalorder %s30, 1
      %p207 = por %p205, %p206
      %p208 = scmp.ne.s32.totalorder %s200, %s203
      %p209 = scmp.eq.s32.totalorder %s30, 0
      %p210 = por %p208, %p209
      %p211 = scmp.ne.s32.totalorder %s200, %s203
      %p212 = scmp.eq.s32.totalorder %s35, 1
      %p213 = por %p211, %p212
      %p214 = scmp.ne.s32.totalorder %s203, %s204
      %p215 = scmp.eq.s32.totalorder %s35, 0
      %p216 = por %p214, %p215
      %p217 = scmp.ne.s32.totalorder %s203, %s204
      %p218 = scmp.eq.s32.totalorder %s36, 1
      %p219 = por %p217, %p218
      %p221 = scmp.ne.s32.totalorder %s204, %s220
      %p222 = scmp.eq.s32.totalorder %s36, 0
      %p223 = por %p221, %p222
      %s224 = ssub.s32 %s37, %s49
      %s225 = ssub.s32 %s38, %s45
      %s226 = sor.u32 %s224, %s225
      %p227 = scmp.eq.s32.totalorder %s226, 0
      %s229 = sadd.s32 %s228, 1
      %s230 = scalar_select %p227, %s228, %s229
      %p233 = pneg %p227
      %p234 = scmp.eq.s32.totalorder %s30, 1
      %p235 = por %p233, %p234
      %p236 = scmp.ne.s32.totalorder %s228, %s231
      %p237 = scmp.eq.s32.totalorder %s30, 0
      %p238 = por %p236, %p237
      %p239 = scmp.ne.s32.totalorder %s228, %s231
      %p240 = scmp.eq.s32.totalorder %s35, 1
      %p241 = por %p239, %p240
      %p242 = scmp.ne.s32.totalorder %s231, %s232
      %p243 = scmp.eq.s32.totalorder %s35, 0
      %p244 = por %p242, %p243
      %p245 = scmp.ne.s32.totalorder %s231, %s232
      %p246 = scmp.eq.s32.totalorder %s36, 1
      %p247 = por %p245, %p246
      %p249 = scmp.ne.s32.totalorder %s232, %s248
      %p250 = scmp.eq.s32.totalorder %s36, 0
      %p251 = por %p249, %p250
      %s252 = ssub.s32 %s37, %s49
      %s253 = ssub.s32 %s38, %s45
      %s254 = sor.u32 %s252, %s253
      %p255 = scmp.eq.s32.totalorder %s254, 0
      %s257 = sadd.s32 %s256, 1
      %s258 = scalar_select %p255, %s256, %s257
      %p261 = pneg %p255
      %p262 = scmp.eq.s32.totalorder %s30, 1
      %p263 = por %p261, %p262
      %p264 = scmp.ne.s32.totalorder %s256, %s259
      %p265 = scmp.eq.s32.totalorder %s30, 0
      %p266 = por %p264, %p265
      %p267 = scmp.ne.s32.totalorder %s256, %s259
      %p268 = scmp.eq.s32.totalorder %s35, 1
      %p269 = por %p267, %p268
      %p270 = scmp.ne.s32.totalorder %s259, %s260
      %p271 = scmp.eq.s32.totalorder %s35, 0
      %p272 = por %p270, %p271
      %p273 = scmp.ne.s32.totalorder %s259, %s260
      %p274 = scmp.eq.s32.totalorder %s36, 1
      %p275 = por %p273, %p274
      %p277 = scmp.ne.s32.totalorder %s260, %s276
      %p278 = scmp.eq.s32.totalorder %s36, 0
      %p279 = por %p277, %p278
      %s280 = ssub.s32 %s37, %s49
      %s281 = ssub.s32 %s38, %s45
      %s282 = sor.u32 %s280, %s281
      %p283 = scmp.eq.s32.totalorder %s282, 0
      %s285 = sadd.s32 %s284, 1
      %s286 = scalar_select %p283, %s284, %s285
      %p289 = pneg %p283
      %p290 = scmp.eq.s32.totalorder %s30, 1
      %p291 = por %p289, %p290
      %p292 = scmp.ne.s32.totalorder %s284, %s287
      %p293 = scmp.eq.s32.totalorder %s30, 0
      %p294 = por %p292, %p293
      %p295 = scmp.ne.s32.totalorder %s284, %s287
      %p296 = scmp.eq.s32.totalorder %s35, 1
      %p297 = por %p295, %p296
      %p298 = scmp.ne.s32.totalorder %s287, %s288
      %p299 = scmp.eq.s32.totalorder %s35, 0
      %p300 = por %p298, %p299
      %p301 = scmp.ne.s32.totalorder %s287, %s288
      %p302 = scmp.eq.s32.totalorder %s36, 1
      %p303 = por %p301, %p302
      %p305 = scmp.ne.s32.totalorder %s288, %s304
      %p306 = scmp.eq.s32.totalorder %s36, 0
      %p307 = por %p305, %p306
      %p308 = scmp.le.s32.totalorder 1, %s30
      %p309 = scmp.lt.s32.totalorder %s30, 3
      %p310 = pnand %p308, %p309
      %p311 = pneg %p310
      // Predicated region
      $region9: #{dit_forward.9} parent=5 // pred_check
        _
      $region10: #{dit_forward.9} parent=5 // pred_check_branch
        %313 = sbr.rel (%p310) target = $region12
      $region11: #{dit_forward.9} parent=5 // pred_region
        %s314 = ssub.s32 %s30, 1
        // Predicated region
        $region13: #{dit_forward.9} parent=11 // pred_check
          %p315 = pneg %p143
        $region14: #{dit_forward.9} parent=11 // pred_check_branch
          %317 = sbr.rel (%p315) target = $region16
        $region15: #{dit_forward.9} parent=11 // pred_region
          %s319 = ssub.s32 2048, 2048
          %320 = vsyncadd [#allocation9], %s319
          %s321 = sshll.u32 [#allocation8], 4
          %s322 = int_to_ptr.vmem [resolvable:$true] %s321
          %327 = dma.hbm_to_vmem [thread:$0]  %s3, 2048, %s322, [#allocation9], 256, 256, 16
        $region16: #{dit_forward.9} parent=11 // pred_fallthru
          _
        // Predicated region
        $region17: #{dit_forward.9} parent=11 // pred_check
          %p328 = pneg %p164
        $region18: #{dit_forward.9} parent=11 // pred_check_branch
          %330 = sbr.rel (%p328) target = $region20
        $region19: #{dit_forward.9} parent=11 // pred_region
          %s332 = ssub.s32 32, 32
          %333 = vsyncadd [#allocation9], %s332
          %s335 = sshll.u32 [#allocation10], 4
          %s336 = int_to_ptr.vmem [resolvable:$true] %s335
          %338 = dma.hbm_to_vmem [thread:$0]  %s4, 32, %s336, [#allocation9]
        $region20: #{dit_forward.9} parent=11 // pred_fallthru
          _
        // Predicated region
        $region21: #{dit_forward.9} parent=11 // pred_check
          %p339 = pneg %p190
        $region22: #{dit_forward.9} parent=11 // pred_check_branch
          %341 = sbr.rel (%p339) target = $region24
        $region23: #{dit_forward.9} parent=11 // pred_region
          %s342 = smul.u32 2, %s40
          %s344 = ssub.s32 256, 256
          %345 = vsyncadd [#allocation12], %s344
          %s346 = smul.addr %s342, 128
          %s347 = scalar_lea.hbm %s5, %s346
          %s348 = sshll.u32 [#allocation11], 4
          %s349 = int_to_ptr.vmem [resolvable:$true] %s348
          %354 = dma.hbm_to_vmem [thread:$0]  %s347, 256, %s349, [#allocation12], 128, 128, 8
        $region24: #{dit_forward.9} parent=11 // pred_fallthru
          _
        // Predicated region
        $region25: #{dit_forward.9} parent=11 // pred_check
          %p355 = pneg %p216
        $region26: #{dit_forward.9} parent=11 // pred_check_branch
          %357 = sbr.rel (%p355) target = $region28
        $region27: #{dit_forward.9} parent=11 // pred_region
          %s358 = smul.u32 2, %s40
          %s360 = ssub.s32 256, 256
          %361 = vsyncadd [#allocation12], %s360
          %s362 = smul.addr %s358, 128
          %s363 = scalar_lea.hbm %s6, %s362
          %s364 = sshll.u32 [#allocation13], 4
          %s365 = int_to_ptr.vmem [resolvable:$true] %s364
          %370 = dma.hbm_to_vmem [thread:$0]  %s363, 256, %s365, [#allocation12], 128, 128, 8
        $region28: #{dit_forward.9} parent=11 // pred_fallthru
          _
      $region12: #{dit_forward.9} parent=5 // pred_fallthru
        _
      %p371 = scmp.lt.s32.totalorder %s30, 2
      // Predicated region
      $region29: #{dit_forward.9} parent=5 // pred_check
        %p372 = pneg %p371
      $region30: #{dit_forward.9} parent=5 // pred_check_branch
        %374 = sbr.rel (%p372) target = $region32
      $region31: #{dit_forward.9} parent=5 // pred_region
        // Predicated region
        $region33: #{dit_forward.9} parent=31 // pred_check
          %p375 = pneg %p64
        $region34: #{dit_forward.9} parent=31 // pred_check_branch
          %377 = sbr.rel (%p375) target = $region36
        $region35: #{dit_forward.9} parent=31 // pred_region
          %s378 = sand.u32 %s54, 1
          %s379 = scalar_lea.sflag [#allocation3], %s378
          %s380 = sand.u32 %s54, 1
          %s381 = smul.addr %s380, 16
          %s382 = scalar_lea.vmem [#allocation2], %s381
          %s383 = smul.u32 2, %s38
          %s385 = ssub.s32 256, 256
          %386 = vsyncadd %s379, %s385
          %s387 = smul.addr %s37, 2
          %s388 = sadd.s32 %s383, %s387
          %s389 = smul.addr %s388, 128
          %s390 = scalar_lea.hbm %s0, %s389
          %s391 = sshll.u32 %s382, 4
          %s392 = int_to_ptr.vmem [resolvable:$true] %s391
          %397 = dma.hbm_to_vmem [thread:$0]  %s390, 256, %s392, %s379, 128, 128, 8
        $region36: #{dit_forward.9} parent=31 // pred_fallthru
          _
        // Predicated region
        $region37: #{dit_forward.9} parent=31 // pred_check
          %p398 = pneg %p90
        $region38: #{dit_forward.9} parent=31 // pred_check_branch
          %400 = sbr.rel (%p398) target = $region40
        $region39: #{dit_forward.9} parent=31 // pred_region
          %s401 = sand.u32 %s30, 1
          %s402 = scalar_lea.sflag [#allocation6], %s401
          %s403 = sand.u32 %s80, 1
          %s404 = scalar_lea.vmem [#allocation5], %s403
          %s406 = ssub.s32 16, 16
          %407 = vsyncadd %s402, %s406
          %s408 = smul.addr %s37, 16
          %s409 = scalar_lea.hbm %s1, %s408
          %s411 = sshll.u32 %s404, 4
          %s412 = int_to_ptr.vmem [resolvable:$true] %s411
          %414 = dma.hbm_to_vmem [thread:$0]  %s409, 16, %s412, %s402
        $region40: #{dit_forward.9} parent=31 // pred_fallthru
          _
        // Predicated region
        $region41: #{dit_forward.9} parent=31 // pred_check
          %p415 = pneg %p116
        $region42: #{dit_forward.9} parent=31 // pred_check_branch
          %417 = sbr.rel (%p415) target = $region44
        $region43: #{dit_forward.9} parent=31 // pred_region
          %s418 = sand.u32 %s30, 1
          %s419 = scalar_lea.sflag [#allocation6], %s418
          %s420 = sand.u32 %s106, 1
          %s421 = scalar_lea.vmem [#allocation7], %s420
          %s423 = ssub.s32 16, 16
          %424 = vsyncadd %s419, %s423
          %s425 = smul.addr %s37, 16
          %s426 = scalar_lea.hbm %s2, %s425
          %s428 = sshll.u32 %s421, 4
          %s429 = int_to_ptr.vmem [resolvable:$true] %s428
          %431 = dma.hbm_to_vmem [thread:$0]  %s426, 16, %s429, %s419
        $region44: #{dit_forward.9} parent=31 // pred_fallthru
          _
      $region32: #{dit_forward.9} parent=5 // pred_fallthru
        _
      %p432 = scmp.le.s32.totalorder 1, %s30
      %p433 = scmp.lt.s32.totalorder %s30, 3
      %p434 = pnand %p432, %p433
      %p435 = pneg %p434
      // Predicated region
      $region45: #{dit_forward.9} parent=5 // pred_check
        _
      $region46: #{dit_forward.9} parent=5 // pred_check_branch
        %437 = sbr.rel (%p434) target = $region48
      $region47: #{dit_forward.9} parent=5 // pred_region
        %s438 = ssub.s32 %s30, 1
        %s439 = sand.u32 %s57, 1
        %s440 = scalar_lea.sflag [#allocation3], %s439
        %s441 = sand.u32 %s57, 1
        %s442 = smul.addr %s441, 16
        %s443 = scalar_lea.vmem [#allocation2], %s442
        // Predicated region
        $region49: #{dit_forward.9} parent=47 // pred_check
          %p444 = pneg %p70
        $region50: #{dit_forward.9} parent=47 // pred_check_branch
          %446 = sbr.rel (%p444) target = $region52
        $region51: #{dit_forward.9} parent=47 // pred_region
          %447 = dma.done %s440, 256
        $region52: #{dit_forward.9} parent=47 // pred_fallthru
          _
        %s448 = sand.u32 %s35, 1
        %s449 = scalar_lea.sflag [#allocation6], %s448
        %s450 = sand.u32 %s83, 1
        %s451 = scalar_lea.vmem [#allocation5], %s450
        // Predicated region
        $region53: #{dit_forward.9} parent=47 // pred_check
          %p452 = pneg %p96
        $region54: #{dit_forward.9} parent=47 // pred_check_branch
          %454 = sbr.rel (%p452) target = $region56
        $region55: #{dit_forward.9} parent=47 // pred_region
          %455 = dma.done %s449, 16
        $region56: #{dit_forward.9} parent=47 // pred_fallthru
          _
        %s456 = sand.u32 %s35, 1
        %s457 = scalar_lea.sflag [#allocation6], %s456
        %s458 = sand.u32 %s109, 1
        %s459 = scalar_lea.vmem [#allocation7], %s458
        // Predicated region
        $region57: #{dit_forward.9} parent=47 // pred_check
          %p460 = pneg %p122
        $region58: #{dit_forward.9} parent=47 // pred_check_branch
          %462 = sbr.rel (%p460) target = $region60
        $region59: #{dit_forward.9} parent=47 // pred_region
          %463 = dma.done %s457, 16
        $region60: #{dit_forward.9} parent=47 // pred_fallthru
          _
        // Predicated region
        $region61: #{dit_forward.9} parent=47 // pred_check
          %p464 = pneg %p143
        $region62: #{dit_forward.9} parent=47 // pred_check_branch
          %466 = sbr.rel (%p464) target = $region64
        $region63: #{dit_forward.9} parent=47 // pred_region
          %467 = dma.done [#allocation9], 2048
        $region64: #{dit_forward.9} parent=47 // pred_fallthru
          _
        // Predicated region
        $region65: #{dit_forward.9} parent=47 // pred_check
          %p468 = pneg %p164
        $region66: #{dit_forward.9} parent=47 // pred_check_branch
          %470 = sbr.rel (%p468) target = $region68
        $region67: #{dit_forward.9} parent=47 // pred_region
          %471 = dma.done [#allocation9], 32
        $region68: #{dit_forward.9} parent=47 // pred_fallthru
          _
        // Predicated region
        $region69: #{dit_forward.9} parent=47 // pred_check
          %p472 = pneg %p190
        $region70: #{dit_forward.9} parent=47 // pred_check_branch
          %474 = sbr.rel (%p472) target = $region72
        $region71: #{dit_forward.9} parent=47 // pred_region
          %475 = dma.done [#allocation12], 256
        $region72: #{dit_forward.9} parent=47 // pred_fallthru
          _
        // Predicated region
        $region73: #{dit_forward.9} parent=47 // pred_check
          %p476 = pneg %p216
        $region74: #{dit_forward.9} parent=47 // pred_check_branch
          %478 = sbr.rel (%p476) target = $region76
        $region75: #{dit_forward.9} parent=47 // pred_region
          %479 = dma.done [#allocation12], 256
        $region76: #{dit_forward.9} parent=47 // pred_fallthru
          _
        %s480 = sand.u32 %s57, 1
        %s481 = scalar_lea.sflag [#allocation3], %s480
        %s482 = sand.u32 %s57, 1
        %s483 = smul.addr %s482, 16
        %s484 = scalar_lea.vmem [#allocation2], %s483
        %p485 = pneg %p70
        %p486 = pneg %p67
        %s487 = sand.u32 %s35, 1
        %s488 = scalar_lea.sflag [#allocation6], %s487
        %s489 = sand.u32 %s83, 1
        %s490 = scalar_lea.vmem [#allocation5], %s489
        %p491 = pneg %p96
        %p492 = pneg %p93
        %s493 = sand.u32 %s35, 1
        %s494 = scalar_lea.sflag [#allocation6], %s493
        %s495 = sand.u32 %s109, 1
        %s496 = scalar_lea.vmem [#allocation7], %s495
        %p497 = pneg %p122
        %p498 = pneg %p119
        %p499 = pneg %p143
        %p500 = pneg %p140
        %p501 = pneg %p164
        %p502 = pneg %p161
        %p503 = pneg %p190
        %p504 = pneg %p187
        %p505 = pneg %p216
        %p506 = pneg %p213
        %p507 = pneg %p244
        %p508 = pneg %p241
        %s509 = sand.u32 %s231, 1
        %s510 = scalar_lea.sflag [#allocation4], %s509
        %s511 = sand.u32 %s231, 1
        %s512 = smul.addr %s511, 16
        %s513 = scalar_lea.vmem [#allocation14], %s512
        %p514 = pneg %p272
        %p515 = pneg %p269
        %s516 = sand.u32 %s35, 1
        %s517 = scalar_lea.sflag [#allocation16], %s516
        %s518 = sand.u32 %s259, 1
        %s519 = smul.addr %s518, 16
        %s520 = scalar_lea.vmem [#allocation15], %s519
        %p521 = pneg %p300
        %p522 = pneg %p297
        %s523 = sand.u32 %s35, 1
        %s524 = scalar_lea.sflag [#allocation16], %s523
        %s525 = sand.u32 %s287, 1
        %s526 = smul.addr %s525, 16
        %s527 = scalar_lea.vmem [#allocation17], %s526
        %s528 = smul.u32 2, %s40
        %s529 = smul.u32 2, %s40
        %s530 = smul.u32 2, %s40
        %s531 = smul.u32 2, %s40
        %s532 = smul.u32 2, %s40
        %s533 = smul.u32 2, %s40
        %v534 = vld [vmem:[%s443] sm:$0xff]
        %v535 = vld [vmem:[%s443 + $0x8] sm:$0xff]
        %v536 = vld [vmem:[%s451] sm:$0x1]
        %v537 = vld [vmem:[%s459] sm:$0x1]
        %vm538 = vcmask 523264
        %v539 = vsel %vm538, %v534, 0.0
        %540 = vadd.xlane.f32.xlu0 %v539
        %v541 = vpop.xlane.xlu0 %540
        %v542 = vsel %vm538, %v535, 0.0
        %543 = vadd.xlane.f32.xlu0 %v542
        %v544 = vpop.xlane.xlu0 %543
        %v545 = vrcp.pop 64.0
        %v546 = vmul.f32 %v541, %v545
        %v547 = vmul.f32 %v544, %v545
        %v548 = vsub.f32 %v534, %v546
        %v549 = vsub.f32 %v535, %v547
        %v550 = vmul.f32 %v548, %v548
        %v551 = vmul.f32 %v549, %v549
        %v552 = vsel %vm538, %v550, 0.0
        %553 = vadd.xlane.f32.xlu0 %v552
        %v554 = vpop.xlane.xlu0 %553
        %v555 = vsel %vm538, %v551, 0.0
        %556 = vadd.xlane.f32.xlu0 %v555
        %v557 = vpop.xlane.xlu0 %556
        %v558 = vmul.f32 %v554, %v545
        %v559 = vmul.f32 %v557, %v545
        %v560 = vadd.f32 %v558, 1e-06
        %v561 = vadd.f32 %v559, 1e-06
        %v562 = vrsqrt.pop %v560
        %v563 = vrsqrt.pop %v561
        %v564 = vmul.f32 %v548, %v562
        %v565 = vmul.f32 %v549, %v563
        %v566 = vadd.f32 %v536, 1.0
        %v568 = vlaneseq
        %v569 = vshrl.u32 %v568, 7
        %v570 = vsub.s32 0, %v569
        %v571 = vrot.slane %v566, %v570
        %v573 = vmul.f32 %v564, %v571
        %v574 = vmul.f32 %v565, %v571
        %v576 = vlaneseq
        %v577 = vshrl.u32 %v576, 7
        %v578 = vsub.s32 0, %v577
        %v579 = vrot.slane %v537, %v578
        %v581 = vadd.f32 %v573, %v579
        %v582 = vadd.f32 %v574, %v579
        %v583 = vld [vmem:[#allocation8] sm:$0xff]
        %v584 = vld [vmem:[#allocation8 + $0x8] sm:$0xff]
        %v585 = vld [vmem:[#allocation8 + $0x10] sm:$0xff]
        %v586 = vld [vmem:[#allocation8 + $0x18] sm:$0xff]
        %v587 = vld [vmem:[#allocation8 + $0x20] sm:$0xff]
        %v588 = vld [vmem:[#allocation8 + $0x28] sm:$0xff]
        %v589 = vld [vmem:[#allocation8 + $0x30] sm:$0xff]
        %v590 = vld [vmem:[#allocation8 + $0x38] sm:$0xff]
        %v591 = vld [vmem:[#allocation8 + $0x40] sm:$0xff]
        %v592 = vld [vmem:[#allocation8 + $0x48] sm:$0xff]
        %v593 = vld [vmem:[#allocation8 + $0x50] sm:$0xff]
        %v594 = vld [vmem:[#allocation8 + $0x58] sm:$0xff]
        %v595 = vld [vmem:[#allocation8 + $0x60] sm:$0xff]
        %v596 = vld [vmem:[#allocation8 + $0x68] sm:$0xff]
        %v597 = vld [vmem:[#allocation8 + $0x70] sm:$0xff]
        %v598 = vld [vmem:[#allocation8 + $0x78] sm:$0xff]
        %v599 = vld [vmem:[#allocation10] sm:$0x3]
        %v601 = vlaneseq
        %v602 = vshrl.u32 %v601, 7
        %v603 = vsub.s32 0, %v602
        %v604 = vrot.slane %v599, %v603
        %v605 = vlaneseq
        %v606 = vshrl.u32 %v605, 7
        %v607 = vsub.s32 1, %v606
        %v608 = vrot.slane %v599, %v607
        %v612 = vsel %vm538, %v581, 0
        %v615 = vsel %vm538, %v582, 0
        %617 = vmatprep.subr.mxu0 %v584
        %618 = vmatpush1.msra.mxu0 %v583
        %619 = vmatprep.subr.mxu0 %v586
        %620 = vmatpush1.msra.mxu0 %v585
        %621 = vmatprep.subr.mxu0 %v588
        %622 = vmatpush1.msra.mxu0 %v587
        %623 = vmatprep.subr.mxu0 %v590
        %624 = vmatpush1.msra.mxu0 %v589
        %625 = vmatprep.subr.mxu0 %v592
        %626 = vmatpush1.msra.mxu0 %v591
        %627 = vmatprep.subr.mxu0 %v594
        %628 = vmatpush1.msra.mxu0 %v593
        %629 = vmatprep.subr.mxu0 %v596
        %630 = vmatpush1.msra.mxu0 %v595
        %631 = vmatprep.subr.mxu0 %v598
        %632 = vmatpush1.msra.mxu0 %v597
        %633 = vmatprep.subr.mxu0 0.0
        %634 = vmatpush1.msra.mxu0 0.0
        %635 = vmatprep.subr.mxu0 0.0
        %636 = vmatpush1.msra.mxu0 0.0
        %637 = vmatprep.subr.mxu0 0.0
        %638 = vmatpush1.msra.mxu0 0.0
        %639 = vmatprep.subr.mxu0 0.0
        %640 = vmatpush1.msra.mxu0 0.0
        %641 = vmatprep.subr.mxu0 0.0
        %642 = vmatpush1.msra.mxu0 0.0
        %643 = vmatprep.subr.mxu0 0.0
        %644 = vmatpush1.msra.mxu0 0.0
        %645 = vmatprep.subr.mxu0 0.0
        %646 = vmatpush1.msra.mxu0 0.0
        %647 = vmatprep.subr.mxu0 0.0
        %648 = vmatpush1.msra.mxu0 0.0
        %649 = vmatprep.subr.mxu0 0.0
        %650 = vmatpush1.msra.mxu0 0.0
        %651 = vmatprep.subr.mxu0 0.0
        %652 = vmatpush1.msra.mxu0 0.0
        %653 = vmatprep.subr.mxu0 0.0
        %654 = vmatpush1.msra.mxu0 0.0
        %655 = vmatprep.subr.mxu0 0.0
        %656 = vmatpush1.msra.mxu0 0.0
        %657 = vmatprep.subr.mxu0 0.0
        %658 = vmatpush1.msra.mxu0 0.0
        %659 = vmatprep.subr.mxu0 0.0
        %660 = vmatpush1.msra.mxu0 0.0
        %661 = vmatprep.subr.mxu0 0.0
        %662 = vmatpush1.msra.mxu0 0.0
        %663 = vmatprep.subr.mxu0 0.0
        %664 = vmatpush1.msra.mxu0 0.0
        %665 = vmatprep.subr.mxu0 0.0
        %666 = vmatpush1.msra.mxu0 0.0
        %667 = vmatprep.subr.mxu0 0.0
        %668 = vmatpush1.msra.mxu0 0.0
        %669 = vmatprep.subr.mxu0 0.0
        %670 = vmatpush1.msra.mxu0 0.0
        %671 = vmatprep.subr.mxu0 0.0
        %672 = vmatpush1.msra.mxu0 0.0
        %673 = vmatprep.subr.mxu0 0.0
        %674 = vmatpush1.msra.mxu0 0.0
        %675 = vmatprep.subr.mxu0 0.0
        %676 = vmatpush1.msra.mxu0 0.0
        %677 = vmatprep.subr.mxu0 0.0
        %678 = vmatpush1.msra.mxu0 0.0
        %679 = vmatprep.subr.mxu0 0.0
        %680 = vmatpush1.msra.mxu0 0.0
        %681 = vmatprep.mubr.f32.mxu0 0.0
        %682 = vmatmul.mubr.f32.gmra.mrb[0].mxu0 %v612
        %v683 = vpop.f32.mrb[0].mxu0
        %v684 = vadd.f32 %v604, %v683
        %v685 = vpop.f32.mrb[0].mxu0
        %v686 = vadd.f32 %v608, %v685
        %687 = vmatprep.mubr.f32.mxu0 0.0
        %688 = vmatmul.mubr.f32.gmra.mrb[0].mxu0 %v615
        %v689 = vpop.f32.mrb[0].mxu0
        %v690 = vadd.f32 %v604, %v689
        %v691 = vpop.f32.mrb[0].mxu0
        %v692 = vadd.f32 %v608, %v691
        %693 = vdwg.mxu0
        %v694 = vld [vmem:[#allocation11] sm:$0xff]
        %v695 = vld [vmem:[#allocation11 + $0x8] sm:$0xff]
        %v696 = vld [vmem:[#allocation13] sm:$0xff]
        %v697 = vld [vmem:[#allocation13 + $0x8] sm:$0xff]
        %vm698 = vcmask 130048
        %v699 = vsel %vm698, %v694, 1.0
        %v700 = vsel %vm698, %v695, 1.0
        %v701 = vsel %vm698, %v696, 0.0
        %v702 = vsel %vm698, %v697, 0.0
        %v703 = vmul.f32 %v684, %v699
        %v704 = vmul.f32 %v690, %v700
        %707 = vrot.lane.b32.xlu0 %v684, 127
        %v708 = vpop.permute.xlu0 %707
        %709 = vrot.lane.b32.xlu0 %v690, 127
        %v710 = vpop.permute.xlu0 %709
        %713 = vrot.lane.b32.xlu0 %v684, 63
        %v714 = vpop.permute.xlu0 %713
        %715 = vrot.lane.b32.xlu0 %v690, 63
        %v716 = vpop.permute.xlu0 %715
        %vm719 = vcmask 515072
        %v720 = vsel %vm719, %v708, %v714
        %v721 = vsel %vm719, %v710, %v716
        %722 = vrot.lane.b32.xlu0 %v684, 65
        %v723 = vpop.permute.xlu0 %722
        %724 = vrot.lane.b32.xlu0 %v690, 65
        %v725 = vpop.permute.xlu0 %724
        %728 = vrot.lane.b32.xlu0 %v684, 1
        %v729 = vpop.permute.xlu0 %728
        %730 = vrot.lane.b32.xlu0 %v690, 1
        %v731 = vpop.permute.xlu0 %730
        %vm734 = vcmask 7168
        %v735 = vsel %vm734, %v723, %v729
        %v736 = vsel %vm734, %v725, %v731
        %v737 = vlaneseq
        %v738 = vand.u32 %v737, 127
        %vm739 = vcmp.lt.s32.totalorder %v738, 0
        %v740 = vsub.s32 0, %v738
        %v741 = vsel %vm739, %v740, %v738
        %v742 = vshrl.u32 %v741, 1
        %v743 = vand.u32 %v741, 1
        %v744 = vsub.s32 0, %v743
        %v745 = vsel %vm739, %v744, %v743
        %vm746 = vcmp.ne.s32.totalorder %v745, 0
        %vm747 = vcmp.lt.s32.totalorder %v745, 0
        %vm748 = vmand %vm747, %vm746
        %v749 = vadd.s32 %v745, 2
        %v750 = vsel %vm748, %v749, %v745
        %vm751 = vcmp.eq.s32.totalorder %v750, 0
        %v752 = vsub.f32 0.0, %v720
        %v753 = vsub.f32 0.0, %v721
        %v754 = vsel %vm751, %v752, %v735
        %v755 = vsel %vm751, %v753, %v736
        %v756 = vmul.f32 %v754, %v701
        %v757 = vmul.f32 %v755, %v702
        %v758 = vadd.f32 %v703, %v756
        %v759 = vadd.f32 %v704, %v757
        %760 = vst.msk [vmem:[%s513] sm:$0xff] %vm538, %v758
        %761 = vst.msk [vmem:[%s513 + $0x8] sm:$0xff] %vm538, %v759
        %764 = vrot.lane.b32.xlu0 %v699, 64
        %v765 = vpop.permute.xlu0 %764
        %766 = vrot.lane.b32.xlu0 %v700, 64
        %v767 = vpop.permute.xlu0 %766
        %v770 = vmul.f32 %v684, %v765
        %v771 = vmul.f32 %v690, %v767
        %v772 = vsel %vm719, %v714, %v708
        %v773 = vsel %vm719, %v716, %v710
        %v774 = vsel %vm734, %v729, %v723
        %v775 = vsel %vm734, %v731, %v725
        %v776 = vsub.f32 0.0, %v772
        %v777 = vsub.f32 0.0, %v773
        %v778 = vsel %vm751, %v776, %v774
        %v779 = vsel %vm751, %v777, %v775
        %v780 = vmul.f32 %v778, %v701
        %v781 = vmul.f32 %v779, %v702
        %784 = vrot.lane.b32.xlu0 %v780, 64
        %v785 = vpop.permute.xlu0 %784
        %786 = vrot.lane.b32.xlu0 %v781, 64
        %v787 = vpop.permute.xlu0 %786
        %v790 = vadd.f32 %v770, %v785
        %v791 = vadd.f32 %v771, %v787
        %794 = vrot.lane.b32.xlu0 %v790, 64
        %v795 = vpop.permute.xlu0 %794
        %796 = vrot.lane.b32.xlu0 %v791, 64
        %v797 = vpop.permute.xlu0 %796
        %800 = vst.msk [vmem:[%s520] sm:$0xff] %vm538, %v795
        %801 = vst.msk [vmem:[%s520 + $0x8] sm:$0xff] %vm538, %v797
        %802 = vst.msk [vmem:[%s527] sm:$0xff] %vm538, %v686
        %803 = vst.msk [vmem:[%s527 + $0x8] sm:$0xff] %vm538, %v692
        %s804 = sand.u32 %s231, 1
        %s805 = scalar_lea.sflag [#allocation4], %s804
        %s806 = sand.u32 %s231, 1
        %s807 = smul.addr %s806, 16
        %s808 = scalar_lea.vmem [#allocation14], %s807
        %s809 = sand.u32 %s35, 1
        %s810 = scalar_lea.sflag [#allocation16], %s809
        %s811 = sand.u32 %s259, 1
        %s812 = smul.addr %s811, 16
        %s813 = scalar_lea.vmem [#allocation15], %s812
        %s814 = sand.u32 %s35, 1
        %s815 = scalar_lea.sflag [#allocation16], %s814
        %s816 = sand.u32 %s287, 1
        %s817 = smul.addr %s816, 16
        %s818 = scalar_lea.vmem [#allocation17], %s817
        // Predicated region
        $region77: #{dit_forward.9} parent=47 // pred_check
          %p819 = pneg %p241
        $region78: #{dit_forward.9} parent=47 // pred_check_branch
          %821 = sbr.rel (%p819) target = $region80
        $region79: #{dit_forward.9} parent=47 // pred_region
          %s822 = smul.u32 2, %s40
          %s824 = ssub.s32 256, 256
          %825 = vsyncadd %s805, %s824
          %s826 = smul.addr %s39, 2
          %s827 = sadd.s32 %s822, %s826
          %s828 = smul.addr %s827, 128
          %s829 = scalar_lea.hbm %s7, %s828
          %s830 = sshll.u32 %s808, 4
          %s831 = int_to_ptr.vmem [resolvable:$true] %s830
          %836 = dma.vmem_to_hbm [thread:$0]  %s831, 256, %s829, %s805, 128, 128, 8
        $region80: #{dit_forward.9} parent=47 // pred_fallthru
          _
        // Predicated region
        $region81: #{dit_forward.9} parent=47 // pred_check
          %p837 = pneg %p269
        $region82: #{dit_forward.9} parent=47 // pred_check_branch
          %839 = sbr.rel (%p837) target = $region84
        $region83: #{dit_forward.9} parent=47 // pred_region
          %s840 = smul.u32 2, %s40
          %s842 = ssub.s32 256, 256
          %843 = vsyncadd %s810, %s842
          %s844 = smul.addr %s39, 2
          %s845 = sadd.s32 %s840, %s844
          %s846 = smul.addr %s845, 128
          %s847 = scalar_lea.hbm %s8, %s846
          %s848 = sshll.u32 %s813, 4
          %s849 = int_to_ptr.vmem [resolvable:$true] %s848
          %854 = dma.vmem_to_hbm [thread:$0]  %s849, 256, %s847, %s810, 128, 128, 8
        $region84: #{dit_forward.9} parent=47 // pred_fallthru
          _
        // Predicated region
        $region85: #{dit_forward.9} parent=47 // pred_check
          %p855 = pneg %p297
        $region86: #{dit_forward.9} parent=47 // pred_check_branch
          %857 = sbr.rel (%p855) target = $region88
        $region87: #{dit_forward.9} parent=47 // pred_region
          %s858 = smul.u32 2, %s40
          %s860 = ssub.s32 256, 256
          %861 = vsyncadd %s815, %s860
          %s862 = smul.addr %s39, 2
          %s863 = sadd.s32 %s858, %s862
          %s864 = smul.addr %s863, 128
          %s865 = scalar_lea.hbm %s9, %s864
          %s866 = sshll.u32 %s818, 4
          %s867 = int_to_ptr.vmem [resolvable:$true] %s866
          %872 = dma.vmem_to_hbm [thread:$0]  %s867, 256, %s865, %s815, 128, 128, 8
        $region88: #{dit_forward.9} parent=47 // pred_fallthru
          _
      $region48: #{dit_forward.9} parent=5 // pred_fallthru
        _
      %p873 = scmp.le.s32.totalorder 2, %s30
      // Predicated region
      $region89: #{dit_forward.9} parent=5 // pred_check
        %p874 = pneg %p873
      $region90: #{dit_forward.9} parent=5 // pred_check_branch
        %876 = sbr.rel (%p874) target = $region92
      $region91: #{dit_forward.9} parent=5 // pred_region
        %s877 = ssub.s32 %s30, 2
        // Predicated region
        $region93: #{dit_forward.9} parent=91 // pred_check
          %p878 = pneg %p247
        $region94: #{dit_forward.9} parent=91 // pred_check_branch
          %880 = sbr.rel (%p878) target = $region96
        $region95: #{dit_forward.9} parent=91 // pred_region
          %s881 = sand.u32 %s232, 1
          %s882 = scalar_lea.sflag [#allocation4], %s881
          %s883 = sand.u32 %s232, 1
          %s884 = smul.addr %s883, 16
          %s885 = scalar_lea.vmem [#allocation14], %s884
          %886 = dma.done %s882, 256
        $region96: #{dit_forward.9} parent=91 // pred_fallthru
          _
        // Predicated region
        $region97: #{dit_forward.9} parent=91 // pred_check
          %p887 = pneg %p275
        $region98: #{dit_forward.9} parent=91 // pred_check_branch
          %889 = sbr.rel (%p887) target = $region100
        $region99: #{dit_forward.9} parent=91 // pred_region
          %s890 = sand.u32 %s36, 1
          %s891 = scalar_lea.sflag [#allocation16], %s890
          %s892 = sand.u32 %s260, 1
          %s893 = smul.addr %s892, 16
          %s894 = scalar_lea.vmem [#allocation15], %s893
          %895 = dma.done %s891, 256
        $region100: #{dit_forward.9} parent=91 // pred_fallthru
          _
        // Predicated region
        $region101: #{dit_forward.9} parent=91 // pred_check
          %p896 = pneg %p303
        $region102: #{dit_forward.9} parent=91 // pred_check_branch
          %898 = sbr.rel (%p896) target = $region104
        $region103: #{dit_forward.9} parent=91 // pred_region
          %s899 = sand.u32 %s36, 1
          %s900 = scalar_lea.sflag [#allocation16], %s899
          %s901 = sand.u32 %s288, 1
          %s902 = smul.addr %s901, 16
          %s903 = scalar_lea.vmem [#allocation17], %s902
          %904 = dma.done %s900, 256
        $region104: #{dit_forward.9} parent=91 // pred_fallthru
          _
      $region92: #{dit_forward.9} parent=5 // pred_fallthru
        _
    $region6: #{dit_forward.9} parent=1 // loop_footer
      %s34 = sadd.s32 1, %s30
    $region7: #{dit_forward.9} parent=1 // loop_footer_branch
      %29 = sbr.rel target = $region3
    $region8: #{dit_forward.9} parent=1 // loop_exit
      _
    %905 = vsyncpa [#allocation3], 1
    %s906 = scalar_lea.sflag [#allocation3], 1
    %907 = vsyncpa %s906, 1
    %908 = vsyncpa [#allocation6], 1
    %s909 = scalar_lea.sflag [#allocation6], 1
    %910 = vsyncpa %s909, 1
    %911 = vsyncpa [#allocation9], 1
    %912 = vsyncpa [#allocation12], 1
    %913 = vsyncpa [#allocation4], 1
    %s914 = scalar_lea.sflag [#allocation4], 1
    %915 = vsyncpa %s914, 1
    %916 = vsyncpa [#allocation16], 1
    %s917 = scalar_lea.sflag [#allocation16], 1
    %918 = vsyncpa %s917, 1

// kernel: dit_forward.10
$region0: #{dit_forward.10}
  #allocation0 [shape = 'u32[]', space=smem, size = 0x4, offset = 0x4, fixed_abs, tag = 'smem constant byte address 0x4 - core index']
  #allocation1 [shape = 'u32[144,128]{1,0:T(1,128)}', space=vmem, size = 0x12000, scoped, tag = 'internal scratch']
  %s0 = inlined_call_operand.hbm [shape: f32[2,16,64], index: 0, kind: input, shape index: {}]
  %s1 = inlined_call_operand.hbm [shape: f32[2,16,64], index: 1, kind: input, shape index: {}]
  %s2 = inlined_call_operand.hbm [shape: f32[2,16,64], index: 2, kind: input, shape index: {}]
  %s3 = inlined_call_operand.hbm [shape: f32[64,64], index: 3, kind: input, shape index: {}]
  %s4 = inlined_call_operand.hbm [shape: f32[2,1,64], index: 4, kind: input, shape index: {}]
  %s5 = inlined_call_operand.hbm [shape: f32[2,16,64], index: 5, kind: input, shape index: {}]
  %s6 = inlined_call_operand.hbm [shape: f32[2,16,64], index: 6, kind: output, shape index: {}]
  %s7 = sld [smem:[#allocation0]]
  $region81: #{dit_forward.10} parent=0
    _
  %s9 = ssub.s32 1, %s7
  %s10 = scalar_select 0, %s9, %s7
  $region1: #{dit_forward.10} parent=0
    #allocation2 [shape = 'u8[16384]{0}', space=vmem, size = 0x4000, scoped, tag = 'input window, operand 0']
    #allocation3 [shape = 's32[2]{0}', space=sflag, size = 0x8, scoped, tag = 'scoped memory for dit_forward.10']
    #allocation4 [shape = 's32[2]{0}', space=sflag, size = 0x8, scoped, tag = 'scoped memory for dit_forward.10']
    #allocation5 [shape = 'u8[16384]{0}', space=vmem, size = 0x4000, scoped, tag = 'input window, operand 1']
    #allocation6 [shape = 's32[2]{0}', space=sflag, size = 0x8, scoped, tag = 'scoped memory for dit_forward.10']
    #allocation7 [shape = 'u8[16384]{0}', space=vmem, size = 0x4000, scoped, tag = 'input window, operand 2']
    #allocation8 [shape = 'u8[32768]{0}', space=vmem, size = 0x8000, scoped, tag = 'input window, operand 3, single buffered']
    #allocation9 [shape = 's32[1]{0}', space=sflag, size = 0x4, scoped, tag = 'scoped memory for dit_forward.10']
    #allocation10 [shape = 'u8[1024]{0}', space=vmem, size = 0x400, scoped, tag = 'input window, operand 4']
    #allocation11 [shape = 'u8[16384]{0}', space=vmem, size = 0x4000, scoped, tag = 'input window, operand 5']
    #allocation12 [shape = 'u8[16384]{0}', space=vmem, size = 0x4000, scoped, tag = 'output window, operand 0']
    %11 = vsyncpa [#allocation3], 0
    %s12 = scalar_lea.sflag [#allocation3], 1
    %13 = vsyncpa %s12, 0
    %14 = vsyncpa [#allocation6], 0
    %s15 = scalar_lea.sflag [#allocation6], 1
    %16 = vsyncpa %s15, 0
    %17 = vsyncpa [#allocation9], 0
    %18 = vsyncpa [#allocation4], 0
    %s19 = scalar_lea.sflag [#allocation4], 1
    %20 = vsyncpa %s19, 0
    loop: start=0, step=1, limit=4
    $region2: #{dit_forward.10} parent=1 // loop_pre_header
      _
    $region3: #{dit_forward.10} parent=1 // loop_header
      %s22 = sphi 0, %s26
      %p23 = scmp.ge.s32.totalorder %s22, 4
      %s29 = sphi 0, %s41
      %s30 = sphi 0, %s37
      %s31 = sphi 0, %s29
      %s32 = sphi 0, %s30
      %s33 = sphi 0, %s31
      %s34 = sphi 0, %s32
      %s46 = sphi 0, %s48
      %s49 = sphi 0, %s46
      %s50 = sphi 0, %s49
      %s66 = sphi 0, %s50
      %s72 = sphi 0, %s74
      %s75 = sphi 0, %s72
      %s76 = sphi 0, %s75
      %s92 = sphi 0, %s76
      %s98 = sphi 0, %s100
      %s101 = sphi 0, %s98
      %s102 = sphi 0, %s101
      %s118 = sphi 0, %s102
      %s122 = sphi 0, %s122
      %s124 = sphi 0, %s122
      %s125 = sphi 0, %s124
      %s139 = sphi 0, %s125
      %s145 = sphi 0, %s147
      %s148 = sphi 0, %s145
      %s149 = sphi 0, %s148
      %s165 = sphi 0, %s149
      %s173 = sphi 0, %s175
      %s176 = sphi 0, %s173
      %s177 = sphi 0, %s176
      %s193 = sphi 0, %s177
      %s201 = sphi 0, %s203
      %s204 = sphi 0, %s201
      %s205 = sphi 0, %s204
      %s221 = sphi 0, %s205
    $region4: #{dit_forward.10} parent=1 // loop_header_branch
      %25 = sbr.rel (%p23) target = $region8
    $region5: #{dit_forward.10} parent=1 // loop_body
      %s27 = ssub.s32 %s22, 1
      %s28 = ssub.s32 %s22, 2
      %s35 = sadd.s32 1, %s30
      %p36 = scmp.ge.s32.totalorder %s35, 1
      %s37 = scalar_select %p36, 0, %s35
      %s38 = sadd.s32 1, %s29
      %s39 = scalar_select %p36, %s38, %s29
      %p40 = scmp.ge.s32.totalorder %s39, 2
      %s41 = scalar_select %p40, 0, %s39
      %s42 = ssub.s32 %s29, %s41
      %s43 = ssub.s32 %s30, %s37
      %s44 = sor.u32 %s42, %s43
      %p45 = scmp.eq.s32.totalorder %s44, 0
      %s47 = sadd.s32 %s46, 1
      %s48 = scalar_select %p45, %s46, %s47
      %p51 = pneg %p45
      %p52 = scmp.eq.s32.totalorder %s22, 1
      %p53 = por %p51, %p52
      %p54 = scmp.ne.s32.totalorder %s46, %s49
      %p55 = scmp.eq.s32.totalorder %s22, 0
      %p56 = por %p54, %p55
      %p57 = scmp.ne.s32.totalorder %s46, %s49
      %p58 = scmp.eq.s32.totalorder %s27, 1
      %p59 = por %p57, %p58
      %p60 = scmp.ne.s32.totalorder %s49, %s50
      %p61 = scmp.eq.s32.totalorder %s27, 0
      %p62 = por %p60, %p61
      %p63 = scmp.ne.s32.totalorder %s49, %s50
      %p64 = scmp.eq.s32.totalorder %s28, 1
      %p65 = por %p63, %p64
      %p67 = scmp.ne.s32.totalorder %s50, %s66
      %p68 = scmp.eq.s32.totalorder %s28, 0
      %p69 = por %p67, %p68
      %s70 = ssub.s32 %s29, %s41
      %p71 = scmp.eq.s32.totalorder %s70, 0
      %s73 = sadd.s32 %s72, 1
      %s74 = scalar_select %p71, %s72, %s73
      %p77 = pneg %p71
      %p78 = scmp.eq.s32.totalorder %s22, 1
      %p79 = por %p77, %p78
      %p80 = scmp.ne.s32.totalorder %s72, %s75
      %p81 = scmp.eq.s32.totalorder %s22, 0
      %p82 = por %p80, %p81
      %p83 = scmp.ne.s32.totalorder %s72, %s75
      %p84 = scmp.eq.s32.totalorder %s27, 1
      %p85 = por %p83, %p84
      %p86 = scmp.ne.s32.totalorder %s75, %s76
      %p87 = scmp.eq.s32.totalorder %s27, 0
      %p88 = por %p86, %p87
      %p89 = scmp.ne.s32.totalorder %s75, %s76
      %p90 = scmp.eq.s32.totalorder %s28, 1
      %p91 = por %p89, %p90
      %p93 = scmp.ne.s32.totalorder %s76, %s92
      %p94 = scmp.eq.s32.totalorder %s28, 0
      %p95 = por %p93, %p94
      %s96 = ssub.s32 %s29, %s41
      %p97 = scmp.eq.s32.totalorder %s96, 0
      %s99 = sadd.s32 %s98, 1
      %s100 = scalar_select %p97, %s98, %s99
      %p103 = pneg %p97
      %p104 = scmp.eq.s32.totalorder %s22, 1
      %p105 = por %p103, %p104
      %p106 = scmp.ne.s32.totalorder %s98, %s101
      %p107 = scmp.eq.s32.totalorder %s22, 0
      %p108 = por %p106, %p107
      %p109 = scmp.ne.s32.totalorder %s98, %s101
      %p110 = scmp.eq.s32.totalorder %s27, 1
      %p111 = por %p109, %p110
      %p112 = scmp.ne.s32.totalorder %s101, %s102
      %p113 = scmp.eq.s32.totalorder %s27, 0
      %p114 = por %p112, %p113
      %p115 = scmp.ne.s32.totalorder %s101, %s102
      %p116 = scmp.eq.s32.totalorder %s28, 1
      %p117 = por %p115, %p116
      %p119 = scmp.ne.s32.totalorder %s102, %s118
      %p120 = scmp.eq.s32.totalorder %s28, 0
      %p121 = por %p119, %p120
      %s123 = sadd.s32 %s122, 1
      %p126 = scmp.eq.s32.totalorder %s22, 1
      %p127 = scmp.ne.s32.totalorder %s122, %s124
      %p128 = scmp.eq.s32.totalorder %s22, 0
      %p129 = por %p127, %p128
      %p130 = scmp.ne.s32.totalorder %s122, %s124
      %p131 = scmp.eq.s32.totalorder %s27, 1
      %p132 = por %p130, %p131
      %p133 = scmp.ne.s32.totalorder %s124, %s125
      %p134 = scmp.eq.s32.totalorder %s27, 0
      %p135 = por %p133, %p134
      %p136 = scmp.ne.s32.totalorder %s124, %s125
      %p137 = scmp.eq.s32.totalorder %s28, 1
      %p138 = por %p136, %p137
      %p140 = scmp.ne.s32.totalorder %s125, %s139
      %p141 = scmp.eq.s32.totalorder %s28, 0
      %p142 = por %p140, %p141
      %s143 = ssub.s32 %s29, %s41
      %p144 = scmp.eq.s32.totalorder %s143, 0
      %s146 = sadd.s32 %s145, 1
      %s147 = scalar_select %p144, %s145, %s146
      %p150 = pneg %p144
      %p151 = scmp.eq.s32.totalorder %s22, 1
      %p152 = por %p150, %p151
      %p153 = scmp.ne.s32.totalorder %s145, %s148
      %p154 = scmp.eq.s32.totalorder %s22, 0
      %p155 = por %p153, %p154
      %p156 = scmp.ne.s32.totalorder %s145, %s148
      %p157 = scmp.eq.s32.totalorder %s27, 1
      %p158 = por %p156, %p157
      %p159 = scmp.ne.s32.totalorder %s148, %s149
      %p160 = scmp.eq.s32.totalorder %s27, 0
      %p161 = por %p159, %p160
      %p162 = scmp.ne.s32.totalorder %s148, %s149
      %p163 = scmp.eq.s32.totalorder %s28, 1
      %p164 = por %p162, %p163
      %p166 = scmp.ne.s32.totalorder %s149, %s165
      %p167 = scmp.eq.s32.totalorder %s28, 0
      %p168 = por %p166, %p167
      %s169 = ssub.s32 %s29, %s41
      %s170 = ssub.s32 %s30, %s37
      %s171 = sor.u32 %s169, %s170
      %p172 = scmp.eq.s32.totalorder %s171, 0
      %s174 = sadd.s32 %s173, 1
      %s175 = scalar_select %p172, %s173, %s174
      %p178 = pneg %p172
      %p179 = scmp.eq.s32.totalorder %s22, 1
      %p180 = por %p178, %p179
      %p181 = scmp.ne.s32.totalorder %s173, %s176
      %p182 = scmp.eq.s32.totalorder %s22, 0
      %p183 = por %p181, %p182
      %p184 = scmp.ne.s32.totalorder %s173, %s176
      %p185 = scmp.eq.s32.totalorder %s27, 1
      %p186 = por %p184, %p185
      %p187 = scmp.ne.s32.totalorder %s176, %s177
      %p188 = scmp.eq.s32.totalorder %s27, 0
      %p189 = por %p187, %p188
      %p190 = scmp.ne.s32.totalorder %s176, %s177
      %p191 = scmp.eq.s32.totalorder %s28, 1
      %p192 = por %p190, %p191
      %p194 = scmp.ne.s32.totalorder %s177, %s193
      %p195 = scmp.eq.s32.totalorder %s28, 0
      %p196 = por %p194, %p195
      %s197 = ssub.s32 %s29, %s41
      %s198 = ssub.s32 %s30, %s37
      %s199 = sor.u32 %s197, %s198
      %p200 = scmp.eq.s32.totalorder %s199, 0
      %s202 = sadd.s32 %s201, 1
      %s203 = scalar_select %p200, %s201, %s202
      %p206 = pneg %p200
      %p207 = scmp.eq.s32.totalorder %s22, 1
      %p208 = por %p206, %p207
      %p209 = scmp.ne.s32.totalorder %s201, %s204
      %p210 = scmp.eq.s32.totalorder %s22, 0
      %p211 = por %p209, %p210
      %p212 = scmp.ne.s32.totalorder %s201, %s204
      %p213 = scmp.eq.s32.totalorder %s27, 1
      %p214 = por %p212, %p213
      %p215 = scmp.ne.s32.totalorder %s204, %s205
      %p216 = scmp.eq.s32.totalorder %s27, 0
      %p217 = por %p215, %p216
      %p218 = scmp.ne.s32.totalorder %s204, %s205
      %p219 = scmp.eq.s32.totalorder %s28, 1
      %p220 = por %p218, %p219
      %p222 = scmp.ne.s32.totalorder %s205, %s221
      %p223 = scmp.eq.s32.totalorder %s28, 0
      %p224 = por %p222, %p223
      %p225 = scmp.le.s32.totalorder 1, %s22
      %p226 = scmp.lt.s32.totalorder %s22, 3
      %p227 = pnand %p225, %p226
      %p228 = pneg %p227
      // Predicated region
      $region9: #{dit_forward.10} parent=5 // pred_check
        _
      $region10: #{dit_forward.10} parent=5 // pred_check_branch
        %230 = sbr.rel (%p227) target = $region12
      $region11: #{dit_forward.10} parent=5 // pred_region
        %s231 = ssub.s32 %s22, 1
        // Predicated region
        $region13: #{dit_forward.10} parent=11 // pred_check
          %p232 = pneg %p135
        $region14: #{dit_forward.10} parent=11 // pred_check_branch
          %234 = sbr.rel (%p232) target = $region16
        $region15: #{dit_forward.10} parent=11 // pred_region
          %s236 = ssub.s32 1024, 1024
          %237 = vsyncadd [#allocation9], %s236
          %s238 = sshll.u32 [#allocation8], 4
          %s239 = int_to_ptr.vmem [resolvable:$true] %s238
          %244 = dma.hbm_to_vmem [thread:$0]  %s3, 1024, %s239, [#allocation9], 128, 128, 8
        $region16: #{dit_forward.10} parent=11 // pred_fallthru
          _
      $region12: #{dit_forward.10} parent=5 // pred_fallthru
        _
      %p245 = scmp.lt.s32.totalorder %s22, 2
      // Predicated region
      $region17: #{dit_forward.10} parent=5 // pred_check
        %p246 = pneg %p245
      $region18: #{dit_forward.10} parent=5 // pred_check_branch
        %248 = sbr.rel (%p246) target = $region20
      $region19: #{dit_forward.10} parent=5 // pred_region
        // Predicated region
        $region21: #{dit_forward.10} parent=19 // pred_check
          %p249 = pneg %p56
        $region22: #{dit_forward.10} parent=19 // pred_check_branch
          %251 = sbr.rel (%p249) target = $region24
        $region23: #{dit_forward.10} parent=19 // pred_region
          %s252 = sand.u32 %s22, 1
          %s253 = scalar_lea.sflag [#allocation3], %s252
          %s254 = sand.u32 %s46, 1
          %s255 = smul.addr %s254, 16
          %s256 = scalar_lea.vmem [#allocation2], %s255
          %s257 = smul.u32 2, %s30
          %s259 = ssub.s32 256, 256
          %260 = vsyncadd %s253, %s259
          %s261 = smul.addr %s29, 2
          %s262 = sadd.s32 %s257, %s261
          %s263 = smul.addr %s262, 128
          %s264 = scalar_lea.hbm %s0, %s263
          %s265 = sshll.u32 %s256, 4
          %s266 = int_to_ptr.vmem [resolvable:$true] %s265
          %271 = dma.hbm_to_vmem [thread:$0]  %s264, 256, %s266, %s253, 128, 128, 8
        $region24: #{dit_forward.10} parent=19 // pred_fallthru
          _
        // Predicated region
        $region25: #{dit_forward.10} parent=19 // pred_check
          %p272 = pneg %p82
        $region26: #{dit_forward.10} parent=19 // pred_check_branch
          %274 = sbr.rel (%p272) target = $region28
        $region27: #{dit_forward.10} parent=19 // pred_region
          %s275 = sand.u32 %s22, 1
          %s276 = scalar_lea.sflag [#allocation6], %s275
          %s277 = sand.u32 %s72, 1
          %s278 = smul.addr %s277, 16
          %s279 = scalar_lea.vmem [#allocation5], %s278
          %s281 = ssub.s32 256, 256
          %282 = vsyncadd %s276, %s281
          %s283 = smul.addr %s29, 2
          %s284 = smul.addr %s283, 128
          %s285 = scalar_lea.hbm %s1, %s284
          %s286 = sshll.u32 %s279, 4
          %s287 = int_to_ptr.vmem [resolvable:$true] %s286
          %292 = dma.hbm_to_vmem [thread:$0]  %s285, 256, %s287, %s276, 128, 128, 8
        $region28: #{dit_forward.10} parent=19 // pred_fallthru
          _
        // Predicated region
        $region29: #{dit_forward.10} parent=19 // pred_check
          %p293 = pneg %p108
        $region30: #{dit_forward.10} parent=19 // pred_check_branch
          %295 = sbr.rel (%p293) target = $region32
        $region31: #{dit_forward.10} parent=19 // pred_region
          %s296 = sand.u32 %s22, 1
          %s297 = scalar_lea.sflag [#allocation6], %s296
          %s298 = sand.u32 %s98, 1
          %s299 = smul.addr %s298, 16
          %s300 = scalar_lea.vmem [#allocation7], %s299
          %s302 = ssub.s32 256, 256
          %303 = vsyncadd %s297, %s302
          %s304 = smul.addr %s29, 2
          %s305 = smul.addr %s304, 128
          %s306 = scalar_lea.hbm %s2, %s305
          %s307 = sshll.u32 %s300, 4
          %s308 = int_to_ptr.vmem [resolvable:$true] %s307
          %313 = dma.hbm_to_vmem [thread:$0]  %s306, 256, %s308, %s297, 128, 128, 8
        $region32: #{dit_forward.10} parent=19 // pred_fallthru
          _
        // Predicated region
        $region33: #{dit_forward.10} parent=19 // pred_check
          %p314 = pneg %p155
        $region34: #{dit_forward.10} parent=19 // pred_check_branch
          %316 = sbr.rel (%p314) target = $region36
        $region35: #{dit_forward.10} parent=19 // pred_region
          %s317 = sand.u32 %s22, 1
          %s318 = scalar_lea.sflag [#allocation3], %s317
          %s319 = sand.u32 %s145, 1
          %s320 = scalar_lea.vmem [#allocation10], %s319
          %s322 = ssub.s32 16, 16
          %323 = vsyncadd %s318, %s322
          %s324 = smul.addr %s29, 16
          %s325 = scalar_lea.hbm %s4, %s324
          %s327 = sshll.u32 %s320, 4
          %s328 = int_to_ptr.vmem [resolvable:$true] %s327
          %330 = dma.hbm_to_vmem [thread:$0]  %s325, 16, %s328, %s318
        $region36: #{dit_forward.10} parent=19 // pred_fallthru
          _
        // Predicated region
        $region37: #{dit_forward.10} parent=19 // pred_check
          %p331 = pneg %p183
        $region38: #{dit_forward.10} parent=19 // pred_check_branch
          %333 = sbr.rel (%p331) target = $region40
        $region39: #{dit_forward.10} parent=19 // pred_region
          %s334 = sand.u32 %s22, 1
          %s335 = scalar_lea.sflag [#allocation6], %s334
          %s336 = sand.u32 %s173, 1
          %s337 = smul.addr %s336, 16
          %s338 = scalar_lea.vmem [#allocation11], %s337
          %s339 = smul.u32 2, %s30
          %s341 = ssub.s32 256, 256
          %342 = vsyncadd %s335, %s341
          %s343 = smul.addr %s29, 2
          %s344 = sadd.s32 %s339, %s343
          %s345 = smul.addr %s344, 128
          %s346 = scalar_lea.hbm %s5, %s345
          %s347 = sshll.u32 %s338, 4
          %s348 = int_to_ptr.vmem [resolvable:$true] %s347
          %353 = dma.hbm_to_vmem [thread:$0]  %s346, 256, %s348, %s335, 128, 128, 8
        $region40: #{dit_forward.10} parent=19 // pred_fallthru
          _
      $region20: #{dit_forward.10} parent=5 // pred_fallthru
        _
      %p354 = scmp.le.s32.totalorder 1, %s22
      %p355 = scmp.lt.s32.totalorder %s22, 3
      %p356 = pnand %p354, %p355
      %p357 = pneg %p356
      // Predicated region
      $region41: #{dit_forward.10} parent=5 // pred_check
        _
      $region42: #{dit_forward.10} parent=5 // pred_check_branch
        %359 = sbr.rel (%p356) target = $region44
      $region43: #{dit_forward.10} parent=5 // pred_region
        %s360 = ssub.s32 %s22, 1
        %s361 = sand.u32 %s27, 1
        %s362 = scalar_lea.sflag [#allocation3], %s361
        %s363 = sand.u32 %s49, 1
        %s364 = smul.addr %s363, 16
        %s365 = scalar_lea.vmem [#allocation2], %s364
        // Predicated region
        $region45: #{dit_forward.10} parent=43 // pred_check
          %p366 = pneg %p62
        $region46: #{dit_forward.10} parent=43 // pred_check_branch
          %368 = sbr.rel (%p366) target = $region48
        $region47: #{dit_forward.10} parent=43 // pred_region
          %369 = dma.done %s362, 256
        $region48: #{dit_forward.10} parent=43 // pred_fallthru
          _
        %s370 = sand.u32 %s27, 1
        %s371 = scalar_lea.sflag [#allocation6], %s370
        %s372 = sand.u32 %s75, 1
        %s373 = smul.addr %s372, 16
        %s374 = scalar_lea.vmem [#allocation5], %s373
        // Predicated region
        $region49: #{dit_forward.10} parent=43 // pred_check
          %p375 = pneg %p88
        $region50: #{dit_forward.10} parent=43 // pred_check_branch
          %377 = sbr.rel (%p375) target = $region52
        $region51: #{dit_forward.10} parent=43 // pred_region
          %378 = dma.done %s371, 256
        $region52: #{dit_forward.10} parent=43 // pred_fallthru
          _
        %s379 = sand.u32 %s27, 1
        %s380 = scalar_lea.sflag [#allocation6], %s379
        %s381 = sand.u32 %s101, 1
        %s382 = smul.addr %s381, 16
        %s383 = scalar_lea.vmem [#allocation7], %s382
        // Predicated region
        $region53: #{dit_forward.10} parent=43 // pred_check
          %p384 = pneg %p114
        $region54: #{dit_forward.10} parent=43 // pred_check_branch
          %386 = sbr.rel (%p384) target = $region56
        $region55: #{dit_forward.10} parent=43 // pred_region
          %387 = dma.done %s380, 256
        $region56: #{dit_forward.10} parent=43 // pred_fallthru
          _
        // Predicated region
        $region57: #{dit_forward.10} parent=43 // pred_check
          %p388 = pneg %p135
        $region58: #{dit_forward.10} parent=43 // pred_check_branch
          %390 = sbr.rel (%p388) target = $region60
        $region59: #{dit_forward.10} parent=43 // pred_region
          %391 = dma.done [#allocation9], 1024
        $region60: #{dit_forward.10} parent=43 // pred_fallthru
          _
        %s392 = sand.u32 %s27, 1
        %s393 = scalar_lea.sflag [#allocation3], %s392
        %s394 = sand.u32 %s148, 1
        %s395 = scalar_lea.vmem [#allocation10], %s394
        // Predicated region
        $region61: #{dit_forward.10} parent=43 // pred_check
          %p396 = pneg %p161
        $region62: #{dit_forward.10} parent=43 // pred_check_branch
          %398 = sbr.rel (%p396) target = $region64
        $region63: #{dit_forward.10} parent=43 // pred_region
          %399 = dma.done %s393, 16
        $region64: #{dit_forward.10} parent=43 // pred_fallthru
          _
        %s400 = sand.u32 %s27, 1
        %s401 = scalar_lea.sflag [#allocation6], %s400
        %s402 = sand.u32 %s176, 1
        %s403 = smul.addr %s402, 16
        %s404 = scalar_lea.vmem [#allocation11], %s403
        // Predicated region
        $region65: #{dit_forward.10} parent=43 // pred_check
          %p405 = pneg %p189
        $region66: #{dit_forward.10} parent=43 // pred_check_branch
          %407 = sbr.rel (%p405) target = $region68
        $region67: #{dit_forward.10} parent=43 // pred_region
          %408 = dma.done %s401, 256
        $region68: #{dit_forward.10} parent=43 // pred_fallthru
          _
        %s409 = sand.u32 %s27, 1
        %s410 = scalar_lea.sflag [#allocation3], %s409
        %s411 = sand.u32 %s49, 1
        %s412 = smul.addr %s411, 16
        %s413 = scalar_lea.vmem [#allocation2], %s412
        %p414 = pneg %p62
        %p415 = pneg %p59
        %s416 = sand.u32 %s27, 1
        %s417 = scalar_lea.sflag [#allocation6], %s416
        %s418 = sand.u32 %s75, 1
        %s419 = smul.addr %s418, 16
        %s420 = scalar_lea.vmem [#allocation5], %s419
        %p421 = pneg %p88
        %p422 = pneg %p85
        %s423 = sand.u32 %s27, 1
        %s424 = scalar_lea.sflag [#allocation6], %s423
        %s425 = sand.u32 %s101, 1
        %s426 = smul.addr %s425, 16
        %s427 = scalar_lea.vmem [#allocation7], %s426
        %p428 = pneg %p114
        %p429 = pneg %p111
        %p430 = pneg %p135
        %p431 = pneg %p132
        %s432 = sand.u32 %s27, 1
        %s433 = scalar_lea.sflag [#allocation3], %s432
        %s434 = sand.u32 %s148, 1
        %s435 = scalar_lea.vmem [#allocation10], %s434
        %p436 = pneg %p161
        %p437 = pneg %p158
        %s438 = sand.u32 %s27, 1
        %s439 = scalar_lea.sflag [#allocation6], %s438
        %s440 = sand.u32 %s176, 1
        %s441 = smul.addr %s440, 16
        %s442 = scalar_lea.vmem [#allocation11], %s441
        %p443 = pneg %p189
        %p444 = pneg %p186
        %p445 = pneg %p217
        %p446 = pneg %p214
        %s447 = sand.u32 %s204, 1
        %s448 = scalar_lea.sflag [#allocation4], %s447
        %s449 = sand.u32 %s204, 1
        %s450 = smul.addr %s449, 16
        %s451 = scalar_lea.vmem [#allocation12], %s450
        %s452 = smul.u32 2, %s32
        %s453 = smul.u32 2, %s32
        %s454 = smul.u32 2, %s32
        %v455 = vld [vmem:[%s365] sm:$0xff]
        %v456 = vld [vmem:[%s365 + $0x8] sm:$0xff]
        %v457 = vld [vmem:[%s374] sm:$0xff]
        %v458 = vld [vmem:[%s374 + $0x8] sm:$0xff]
        %v459 = vld [vmem:[%s383] sm:$0xff]
        %v460 = vld [vmem:[%s383 + $0x8] sm:$0xff]
        %vm461 = vcmask 130048
        %v463 = vsel %vm461, %v455, 0
        %v466 = vsel %vm461, %v456, 0
        %v469 = vsel %vm461, %v457, 0
        %v472 = vsel %vm461, %v458, 0
        %474 = vmatprep.subr.mxu0 0.0
        %475 = vmatpush1.xpose.msra.mxu0 %v469
        %476 = vmatprep.subr.mxu0 0.0
        %477 = vmatpush1.xpose.msra.mxu0 %v472
        %478 = vmatprep.subr.mxu0 0.0
        %479 = vmatpush1.xpose.msra.mxu0 0.0
        %480 = vmatprep.subr.mxu0 0.0
        %481 = vmatpush1.xpose.msra.mxu0 0.0
        %482 = vmatprep.subr.mxu0 0.0
        %483 = vmatpush1.xpose.msra.mxu0 0.0
        %484 = vmatprep.subr.mxu0 0.0
        %485 = vmatpush1.xpose.msra.mxu0 0.0
        %486 = vmatprep.subr.mxu0 0.0
        %487 = vmatpush1.xpose.msra.mxu0 0.0
        %488 = vmatprep.subr.mxu0 0.0
        %489 = vmatpush1.xpose.msra.mxu0 0.0
        %490 = vmatprep.subr.mxu0 0.0
        %491 = vmatpush1.xpose.msra.mxu0 0.0
        %492 = vmatprep.subr.mxu0 0.0
        %493 = vmatpush1.xpose.msra.mxu0 0.0
        %494 = vmatprep.subr.mxu0 0.0
        %495 = vmatpush1.xpose.msra.mxu0 0.0
        %496 = vmatprep.subr.mxu0 0.0
        %497 = vmatpush1.xpose.msra.mxu0 0.0
        %498 = vmatprep.subr.mxu0 0.0
        %499 = vmatpush1.xpose.msra.mxu0 0.0
        %500 = vmatprep.subr.mxu0 0.0
        %501 = vmatpush1.xpose.msra.mxu0 0.0
        %502 = vmatprep.subr.mxu0 0.0
        %503 = vmatpush1.xpose.msra.mxu0 0.0
        %504 = vmatprep.subr.mxu0 0.0
        %505 = vmatpush1.xpose.msra.mxu0 0.0
        %506 = vmatprep.subr.mxu0 0.0
        %507 = vmatpush1.xpose.msra.mxu0 0.0
        %508 = vmatprep.subr.mxu0 0.0
        %509 = vmatpush1.xpose.msra.mxu0 0.0
        %510 = vmatprep.subr.mxu0 0.0
        %511 = vmatpush1.xpose.msra.mxu0 0.0
        %512 = vmatprep.subr.mxu0 0.0
        %513 = vmatpush1.xpose.msra.mxu0 0.0
        %514 = vmatprep.subr.mxu0 0.0
        %515 = vmatpush1.xpose.msra.mxu0 0.0
        %516 = vmatprep.subr.mxu0 0.0
        %517 = vmatpush1.xpose.msra.mxu0 0.0
        %518 = vmatprep.subr.mxu0 0.0
        %519 = vmatpush1.xpose.msra.mxu0 0.0
        %520 = vmatprep.subr.mxu0 0.0
        %521 = vmatpush1.xpose.msra.mxu0 0.0
        %522 = vmatprep.subr.mxu0 0.0
        %523 = vmatpush1.xpose.msra.mxu0 0.0
        %524 = vmatprep.subr.mxu0 0.0
        %525 = vmatpush1.xpose.msra.mxu0 0.0
        %526 = vmatprep.subr.mxu0 0.0
        %527 = vmatpush1.xpose.msra.mxu0 0.0
        %528 = vmatprep.subr.mxu0 0.0
        %529 = vmatpush1.xpose.msra.mxu0 0.0
        %530 = vmatprep.subr.mxu0 0.0
        %531 = vmatpush1.xpose.msra.mxu0 0.0
        %532 = vmatprep.subr.mxu0 0.0
        %533 = vmatpush1.xpose.msra.mxu0 0.0
        %534 = vmatprep.subr.mxu0 0.0
        %535 = vmatpush1.xpose.msra.mxu0 0.0
        %536 = vmatprep.subr.mxu0 0.0
        %537 = vmatpush1.xpose.msra.mxu0 0.0
        %538 = vmatprep.mubr.f32.mxu0 0.0
        %539 = vmatmul.mubr.f32.gmra.mrb[0].mxu0 %v463
        %v540 = vpop.f32.mrb[0].mxu0
        %v541 = vadd.f32 0.0, %v540
        %v542 = vpop.f32.mrb[0].mxu0
        %543 = vmatprep.mubr.f32.mxu0 0.0
        %544 = vmatmul.mubr.f32.gmra.mrb[0].mxu0 %v466
        %v545 = vpop.f32.mrb[0].mxu0
        %v546 = vadd.f32 0.0, %v545
        %v547 = vpop.f32.mrb[0].mxu0
        %548 = vdwg.mxu0
        %v549 = vmul.f32 %v541, 0.25
        %v550 = vmul.f32 %v546, 0.25
        %v551 = vsel %vm461, %v549, -inf
        %552 = vmax.xlane.f32.xlu0 %v551
        %v553 = vpop.xlane.xlu0 %552
        %v554 = vsel %vm461, %v550, -inf
        %555 = vmax.xlane.f32.xlu0 %v554
        %v556 = vpop.xlane.xlu0 %555
        %v557 = vsub.f32 %v549, %v553
        %v558 = vsub.f32 %v550, %v556
        %v559 = vmul.f32 %v557, 1.442695
        %v560 = vpow.pop %v559
        %v561 = vmul.f32 %v558, 1.442695
        %v562 = vpow.pop %v561
        %v563 = vsel %vm461, %v560, 0.0
        %564 = vadd.xlane.f32.xlu0 %v563
        %v565 = vpop.xlane.xlu0 %564
        %v566 = vsel %vm461, %v562, 0.0
        %567 = vadd.xlane.f32.xlu0 %v566
        %v568 = vpop.xlane.xlu0 %567
        %v570 = vsel %vm461, %v560, 0
        %v573 = vsel %vm461, %v562, 0
        %575 = vmatprep.subr.mxu0 0.0
        %576 = vmatpush1.msra.mxu0 %v459
        %577 = vmatprep.subr.mxu0 0.0
        %578 = vmatpush1.msra.mxu0 %v460
        %579 = vmatprep.subr.mxu0 0.0
        %580 = vmatpush1.msra.mxu0 0.0
        %581 = vmatprep.subr.mxu0 0.0
        %582 = vmatpush1.msra.mxu0 0.0
        %583 = vmatprep.subr.mxu0 0.0
        %584 = vmatpush1.msra.mxu0 0.0
        %585 = vmatprep.subr.mxu0 0.0
        %586 = vmatpush1.msra.mxu0 0.0
        %587 = vmatprep.subr.mxu0 0.0
        %588 = vmatpush1.msra.mxu0 0.0
        %589 = vmatprep.subr.mxu0 0.0
        %590 = vmatpush1.msra.mxu0 0.0
        %591 = vmatprep.subr.mxu0 0.0
        %592 = vmatpush1.msra.mxu0 0.0
        %593 = vmatprep.subr.mxu0 0.0
        %594 = vmatpush1.msra.mxu0 0.0
        %595 = vmatprep.subr.mxu0 0.0
        %596 = vmatpush1.msra.mxu0 0.0
        %597 = vmatprep.subr.mxu0 0.0
        %598 = vmatpush1.msra.mxu0 0.0
        %599 = vmatprep.subr.mxu0 0.0
        %600 = vmatpush1.msra.mxu0 0.0
        %601 = vmatprep.subr.mxu0 0.0
        %602 = vmatpush1.msra.mxu0 0.0
        %603 = vmatprep.subr.mxu0 0.0
        %604 = vmatpush1.msra.mxu0 0.0
        %605 = vmatprep.subr.mxu0 0.0
        %606 = vmatpush1.msra.mxu0 0.0
        %607 = vmatprep.subr.mxu0 0.0
        %608 = vmatpush1.msra.mxu0 0.0
        %609 = vmatprep.subr.mxu0 0.0
        %610 = vmatpush1.msra.mxu0 0.0
        %611 = vmatprep.subr.mxu0 0.0
        %612 = vmatpush1.msra.mxu0 0.0
        %613 = vmatprep.subr.mxu0 0.0
        %614 = vmatpush1.msra.mxu0 0.0
        %615 = vmatprep.subr.mxu0 0.0
        %616 = vmatpush1.msra.mxu0 0.0
        %617 = vmatprep.subr.mxu0 0.0
        %618 = vmatpush1.msra.mxu0 0.0
        %619 = vmatprep.subr.mxu0 0.0
        %620 = vmatpush1.msra.mxu0 0.0
        %621 = vmatprep.subr.mxu0 0.0
        %622 = vmatpush1.msra.mxu0 0.0
        %623 = vmatprep.subr.mxu0 0.0
        %624 = vmatpush1.msra.mxu0 0.0
        %625 = vmatprep.subr.mxu0 0.0
        %626 = vmatpush1.msra.mxu0 0.0
        %627 = vmatprep.subr.mxu0 0.0
        %628 = vmatpush1.msra.mxu0 0.0
        %629 = vmatprep.subr.mxu0 0.0
        %630 = vmatpush1.msra.mxu0 0.0
        %631 = vmatprep.subr.mxu0 0.0
        %632 = vmatpush1.msra.mxu0 0.0
        %633 = vmatprep.subr.mxu0 0.0
        %634 = vmatpush1.msra.mxu0 0.0
        %635 = vmatprep.subr.mxu0 0.0
        %636 = vmatpush1.msra.mxu0 0.0
        %637 = vmatprep.subr.mxu0 0.0
        %638 = vmatpush1.msra.mxu0 0.0
        %639 = vmatprep.mubr.f32.mxu0 0.0
        %640 = vmatmul.mubr.f32.gmra.mrb[0].mxu0 %v570
        %v641 = vpop.f32.mrb[0].mxu0
        %v642 = vadd.f32 0.0, %v641
        %v643 = vpop.f32.mrb[0].mxu0
        %644 = vmatprep.mubr.f32.mxu0 0.0
        %645 = vmatmul.mubr.f32.gmra.mrb[0].mxu0 %v573
        %v646 = vpop.f32.mrb[0].mxu0
        %v647 = vadd.f32 0.0, %v646
        %v648 = vpop.f32.mrb[0].mxu0
        %649 = vdwg.mxu0
        %v650 = vrcp.pop %v565
        %v651 = vrcp.pop %v568
        %v652 = vmul.f32 %v642, %v650
        %v653 = vmul.f32 %v647, %v651
        %654 = vrot.lane.b32.xlu0 %v455, 112
        %v655 = vpop.permute.xlu0 %654
        %656 = vrot.lane.b32.xlu0 %v456, 112
        %v657 = vpop.permute.xlu0 %656
        %658 = vrot.lane.b32.xlu0 %v457, 112
        %v659 = vpop.permute.xlu0 %658
        %660 = vrot.lane.b32.xlu0 %v458, 112
        %v661 = vpop.permute.xlu0 %660
        %v662 = vsel %vm461, %v655, 0
        %v664 = vsel %vm461, %v657, 0
        %v666 = vsel %vm461, %v659, 0
        %v668 = vsel %vm461, %v661, 0
        %670 = vmatprep.subr.mxu0 0.0
        %671 = vmatpush1.xpose.msra.mxu0 %v666
        %672 = vmatprep.subr.mxu0 0.0
        %673 = vmatpush1.xpose.msra.mxu0 %v668
        %674 = vmatprep.subr.mxu0 0.0
        %675 = vmatpush1.xpose.msra.mxu0 0.0
        %676 = vmatprep.subr.mxu0 0.0
        %677 = vmatpush1.xpose.msra.mxu0 0.0
        %678 = vmatprep.subr.mxu0 0.0
        %679 = vmatpush1.xpose.msra.mxu0 0.0
        %680 = vmatprep.subr.mxu0 0.0
        %681 = vmatpush1.xpose.msra.mxu0 0.0
        %682 = vmatprep.subr.mxu0 0.0
        %683 = vmatpush1.xpose.msra.mxu0 0.0
        %684 = vmatprep.subr.mxu0 0.0
        %685 = vmatpush1.xpose.msra.mxu0 0.0
        %686 = vmatprep.subr.mxu0 0.0
        %687 = vmatpush1.xpose.msra.mxu0 0.0
        %688 = vmatprep.subr.mxu0 0.0
        %689 = vmatpush1.xpose.msra.mxu0 0.0
        %690 = vmatprep.subr.mxu0 0.0
        %691 = vmatpush1.xpose.msra.mxu0 0.0
        %692 = vmatprep.subr.mxu0 0.0
        %693 = vmatpush1.xpose.msra.mxu0 0.0
        %694 = vmatprep.subr.mxu0 0.0
        %695 = vmatpush1.xpose.msra.mxu0 0.0
        %696 = vmatprep.subr.mxu0 0.0
        %697 = vmatpush1.xpose.msra.mxu0 0.0
        %698 = vmatprep.subr.mxu0 0.0
        %699 = vmatpush1.xpose.msra.mxu0 0.0
        %700 = vmatprep.subr.mxu0 0.0
        %701 = vmatpush1.xpose.msra.mxu0 0.0
        %702 = vmatprep.subr.mxu0 0.0
        %703 = vmatpush1.xpose.msra.mxu0 0.0
        %704 = vmatprep.subr.mxu0 0.0
        %705 = vmatpush1.xpose.msra.mxu0 0.0
        %706 = vmatprep.subr.mxu0 0.0
        %707 = vmatpush1.xpose.msra.mxu0 0.0
        %708 = vmatprep.subr.mxu0 0.0
        %709 = vmatpush1.xpose.msra.mxu0 0.0
        %710 = vmatprep.subr.mxu0 0.0
        %711 = vmatpush1.xpose.msra.mxu0 0.0
        %712 = vmatprep.subr.mxu0 0.0
        %713 = vmatpush1.xpose.msra.mxu0 0.0
        %714 = vmatprep.subr.mxu0 0.0
        %715 = vmatpush1.xpose.msra.mxu0 0.0
        %716 = vmatprep.subr.mxu0 0.0
        %717 = vmatpush1.xpose.msra.mxu0 0.0
        %718 = vmatprep.subr.mxu0 0.0
        %719 = vmatpush1.xpose.msra.mxu0 0.0
        %720 = vmatprep.subr.mxu0 0.0
        %721 = vmatpush1.xpose.msra.mxu0 0.0
        %722 = vmatprep.subr.mxu0 0.0
        %723 = vmatpush1.xpose.msra.mxu0 0.0
        %724 = vmatprep.subr.mxu0 0.0
        %725 = vmatpush1.xpose.msra.mxu0 0.0
        %726 = vmatprep.subr.mxu0 0.0
        %727 = vmatpush1.xpose.msra.mxu0 0.0
        %728 = vmatprep.subr.mxu0 0.0
        %729 = vmatpush1.xpose.msra.mxu0 0.0
        %730 = vmatprep.subr.mxu0 0.0
        %731 = vmatpush1.xpose.msra.mxu0 0.0
        %732 = vmatprep.subr.mxu0 0.0
        %733 = vmatpush1.xpose.msra.mxu0 0.0
        %734 = vmatprep.mubr.f32.mxu0 0.0
        %735 = vmatmul.mubr.f32.gmra.mrb[0].mxu0 %v662
        %v736 = vpop.f32.mrb[0].mxu0
        %v737 = vadd.f32 0.0, %v736
        %v738 = vpop.f32.mrb[0].mxu0
        %739 = vmatprep.mubr.f32.mxu0 0.0
        %740 = vmatmul.mubr.f32.gmra.mrb[0].mxu0 %v664
        %v741 = vpop.f32.mrb[0].mxu0
        %v742 = vadd.f32 0.0, %v741
        %v743 = vpop.f32.mrb[0].mxu0
        %744 = vdwg.mxu0
        %v745 = vmul.f32 %v737, 0.25
        %v746 = vmul.f32 %v742, 0.25
        %v747 = vsel %vm461, %v745, -inf
        %748 = vmax.xlane.f32.xlu0 %v747
        %v749 = vpop.xlane.xlu0 %748
        %v750 = vsel %vm461, %v746, -inf
        %751 = vmax.xlane.f32.xlu0 %v750
        %v752 = vpop.xlane.xlu0 %751
        %v753 = vsub.f32 %v745, %v749
        %v754 = vsub.f32 %v746, %v752
        %v755 = vmul.f32 %v753, 1.442695
        %v756 = vpow.pop %v755
        %v757 = vmul.f32 %v754, 1.442695
        %v758 = vpow.pop %v757
        %v759 = vsel %vm461, %v756, 0.0
        %760 = vadd.xlane.f32.xlu0 %v759
        %v761 = vpop.xlane.xlu0 %760
        %v762 = vsel %vm461, %v758, 0.0
        %763 = vadd.xlane.f32.xlu0 %v762
        %v764 = vpop.xlane.xlu0 %763
        %767 = vrot.lane.b32.xlu0 %v459, 112
        %v768 = vpop.permute.xlu0 %767
        %769 = vrot.lane.b32.xlu0 %v460, 112
        %v770 = vpop.permute.xlu0 %769
        %v774 = vsel %vm461, %v756, 0
        %v777 = vsel %vm461, %v758, 0
        %779 = vmatprep.subr.mxu0 0.0
        %780 = vmatpush1.msra.mxu0 %v768
        %781 = vmatprep.subr.mxu0 0.0
        %782 = vmatpush1.msra.mxu0 %v770
        %783 = vmatprep.subr.mxu0 0.0
        %784 = vmatpush1.msra.mxu0 0.0
        %785 = vmatprep.subr.mxu0 0.0
        %786 = vmatpush1.msra.mxu0 0.0
        %787 = vmatprep.subr.mxu0 0.0
        %788 = vmatpush1.msra.mxu0 0.0
        %789 = vmatprep.subr.mxu0 0.0
        %790 = vmatpush1.msra.mxu0 0.0
        %791 = vmatprep.subr.mxu0 0.0
        %792 = vmatpush1.msra.mxu0 0.0
        %793 = vmatprep.subr.mxu0 0.0
        %794 = vmatpush1.msra.mxu0 0.0
        %795 = vmatprep.subr.mxu0 0.0
        %796 = vmatpush1.msra.mxu0 0.0
        %797 = vmatprep.subr.mxu0 0.0
        %798 = vmatpush1.msra.mxu0 0.0
        %799 = vmatprep.subr.mxu0 0.0
        %800 = vmatpush1.msra.mxu0 0.0
        %801 = vmatprep.subr.mxu0 0.0
        %802 = vmatpush1.msra.mxu0 0.0
        %803 = vmatprep.subr.mxu0 0.0
        %804 = vmatpush1.msra.mxu0 0.0
        %805 = vmatprep.subr.mxu0 0.0
        %806 = vmatpush1.msra.mxu0 0.0
        %807 = vmatprep.subr.mxu0 0.0
        %808 = vmatpush1.msra.mxu0 0.0
        %809 = vmatprep.subr.mxu0 0.0
        %810 = vmatpush1.msra.mxu0 0.0
        %811 = vmatprep.subr.mxu0 0.0
        %812 = vmatpush1.msra.mxu0 0.0
        %813 = vmatprep.subr.mxu0 0.0
        %814 = vmatpush1.msra.mxu0 0.0
        %815 = vmatprep.subr.mxu0 0.0
        %816 = vmatpush1.msra.mxu0 0.0
        %817 = vmatprep.subr.mxu0 0.0
        %818 = vmatpush1.msra.mxu0 0.0
        %819 = vmatprep.subr.mxu0 0.0
        %820 = vmatpush1.msra.mxu0 0.0
        %821 = vmatprep.subr.mxu0 0.0
        %822 = vmatpush1.msra.mxu0 0.0
        %823 = vmatprep.subr.mxu0 0.0
        %824 = vmatpush1.msra.mxu0 0.0
        %825 = vmatprep.subr.mxu0 0.0
        %826 = vmatpush1.msra.mxu0 0.0
        %827 = vmatprep.subr.mxu0 0.0
        %828 = vmatpush1.msra.mxu0 0.0
        %829 = vmatprep.subr.mxu0 0.0
        %830 = vmatpush1.msra.mxu0 0.0
        %831 = vmatprep.subr.mxu0 0.0
        %832 = vmatpush1.msra.mxu0 0.0
        %833 = vmatprep.subr.mxu0 0.0
        %834 = vmatpush1.msra.mxu0 0.0
        %835 = vmatprep.subr.mxu0 0.0
        %836 = vmatpush1.msra.mxu0 0.0
        %837 = vmatprep.subr.mxu0 0.0
        %838 = vmatpush1.msra.mxu0 0.0
        %839 = vmatprep.subr.mxu0 0.0
        %840 = vmatpush1.msra.mxu0 0.0
        %841 = vmatprep.subr.mxu0 0.0
        %842 = vmatpush1.msra.mxu0 0.0
        %843 = vmatprep.mubr.f32.mxu0 0.0
        %844 = vmatmul.mubr.f32.gmra.mrb[0].mxu0 %v774
        %v845 = vpop.f32.mrb[0].mxu0
        %v846 = vadd.f32 0.0, %v845
        %v847 = vpop.f32.mrb[0].mxu0
        %848 = vmatprep.mubr.f32.mxu0 0.0
        %849 = vmatmul.mubr.f32.gmra.mrb[0].mxu0 %v777
        %v850 = vpop.f32.mrb[0].mxu0
        %v851 = vadd.f32 0.0, %v850
        %v852 = vpop.f32.mrb[0].mxu0
        %853 = vdwg.mxu0
        %v854 = vrcp.pop %v761
        %v855 = vrcp.pop %v764
        %v856 = vmul.f32 %v846, %v854
        %v857 = vmul.f32 %v851, %v855
        %858 = vrot.lane.b32.xlu0 %v455, 96
        %v859 = vpop.permute.xlu0 %858
        %860 = vrot.lane.b32.xlu0 %v456, 96
        %v861 = vpop.permute.xlu0 %860
        %862 = vrot.lane.b32.xlu0 %v457, 96
        %v863 = vpop.permute.xlu0 %862
        %864 = vrot.lane.b32.xlu0 %v458, 96
        %v865 = vpop.permute.xlu0 %864
        %v866 = vsel %vm461, %v859, 0
        %v868 = vsel %vm461, %v861, 0
        %v870 = vsel %vm461, %v863, 0
        %v872 = vsel %vm461, %v865, 0
        %874 = vmatprep.subr.mxu0 0.0
        %875 = vmatpush1.xpose.msra.mxu0 %v870
        %876 = vmatprep.subr.mxu0 0.0
        %877 = vmatpush1.xpose.msra.mxu0 %v872
        %878 = vmatprep.subr.mxu0 0.0
        %879 = vmatpush1.xpose.msra.mxu0 0.0
        %880 = vmatprep.subr.mxu0 0.0
        %881 = vmatpush1.xpose.msra.mxu0 0.0
        %882 = vmatprep.subr.mxu0 0.0
        %883 = vmatpush1.xpose.msra.mxu0 0.0
        %884 = vmatprep.subr.mxu0 0.0
        %885 = vmatpush1.xpose.msra.mxu0 0.0
        %886 = vmatprep.subr.mxu0 0.0
        %887 = vmatpush1.xpose.msra.mxu0 0.0
        %888 = vmatprep.subr.mxu0 0.0
        %889 = vmatpush1.xpose.msra.mxu0 0.0
        %890 = vmatprep.subr.mxu0 0.0
        %891 = vmatpush1.xpose.msra.mxu0 0.0
        %892 = vmatprep.subr.mxu0 0.0
        %893 = vmatpush1.xpose.msra.mxu0 0.0
        %894 = vmatprep.subr.mxu0 0.0
        %895 = vmatpush1.xpose.msra.mxu0 0.0
        %896 = vmatprep.subr.mxu0 0.0
        %897 = vmatpush1.xpose.msra.mxu0 0.0
        %898 = vmatprep.subr.mxu0 0.0
        %899 = vmatpush1.xpose.msra.mxu0 0.0
        %900 = vmatprep.subr.mxu0 0.0
        %901 = vmatpush1.xpose.msra.mxu0 0.0
        %902 = vmatprep.subr.mxu0 0.0
        %903 = vmatpush1.xpose.msra.mxu0 0.0
        %904 = vmatprep.subr.mxu0 0.0
        %905 = vmatpush1.xpose.msra.mxu0 0.0
        %906 = vmatprep.subr.mxu0 0.0
        %907 = vmatpush1.xpose.msra.mxu0 0.0
        %908 = vmatprep.subr.mxu0 0.0
        %909 = vmatpush1.xpose.msra.mxu0 0.0
        %910 = vmatprep.subr.mxu0 0.0
        %911 = vmatpush1.xpose.msra.mxu0 0.0
        %912 = vmatprep.subr.mxu0 0.0
        %913 = vmatpush1.xpose.msra.mxu0 0.0
        %914 = vmatprep.subr.mxu0 0.0
        %915 = vmatpush1.xpose.msra.mxu0 0.0
        %916 = vmatprep.subr.mxu0 0.0
        %917 = vmatpush1.xpose.msra.mxu0 0.0
        %918 = vmatprep.subr.mxu0 0.0
        %919 = vmatpush1.xpose.msra.mxu0 0.0
        %920 = vmatprep.subr.mxu0 0.0
        %921 = vmatpush1.xpose.msra.mxu0 0.0
        %922 = vmatprep.subr.mxu0 0.0
        %923 = vmatpush1.xpose.msra.mxu0 0.0
        %924 = vmatprep.subr.mxu0 0.0
        %925 = vmatpush1.xpose.msra.mxu0 0.0
        %926 = vmatprep.subr.mxu0 0.0
        %927 = vmatpush1.xpose.msra.mxu0 0.0
        %928 = vmatprep.subr.mxu0 0.0
        %929 = vmatpush1.xpose.msra.mxu0 0.0
        %930 = vmatprep.subr.mxu0 0.0
        %931 = vmatpush1.xpose.msra.mxu0 0.0
        %932 = vmatprep.subr.mxu0 0.0
        %933 = vmatpush1.xpose.msra.mxu0 0.0
        %934 = vmatprep.subr.mxu0 0.0
        %935 = vmatpush1.xpose.msra.mxu0 0.0
        %936 = vmatprep.subr.mxu0 0.0
        %937 = vmatpush1.xpose.msra.mxu0 0.0
        %938 = vmatprep.mubr.f32.mxu0 0.0
        %939 = vmatmul.mubr.f32.gmra.mrb[0].mxu0 %v866
        %v940 = vpop.f32.mrb[0].mxu0
        %v941 = vadd.f32 0.0, %v940
        %v942 = vpop.f32.mrb[0].mxu0
        %943 = vmatprep.mubr.f32.mxu0 0.0
        %944 = vmatmul.mubr.f32.gmra.mrb[0].mxu0 %v868
        %v945 = vpop.f32.mrb[0].mxu0
        %v946 = vadd.f32 0.0, %v945
        %v947 = vpop.f32.mrb[0].mxu0
        %948 = vdwg.mxu0
        %v949 = vmul.f32 %v941, 0.25
        %v950 = vmul.f32 %v946, 0.25
        %v951 = vsel %vm461, %v949, -inf
        %952 = vmax.xlane.f32.xlu0 %v951
        %v953 = vpop.xlane.xlu0 %952
        %v954 = vsel %vm461, %v950, -inf
        %955 = vmax.xlane.f32.xlu0 %v954
        %v956 = vpop.xlane.xlu0 %955
        %v957 = vsub.f32 %v949, %v953
        %v958 = vsub.f32 %v950, %v956
        %v959 = vmul.f32 %v957, 1.442695
        %v960 = vpow.pop %v959
        %v961 = vmul.f32 %v958, 1.442695
        %v962 = vpow.pop %v961
        %v963 = vsel %vm461, %v960, 0.0
        %964 = vadd.xlane.f32.xlu0 %v963
        %v965 = vpop.xlane.xlu0 %964
        %v966 = vsel %vm461, %v962, 0.0
        %967 = vadd.xlane.f32.xlu0 %v966
        %v968 = vpop.xlane.xlu0 %967
        %969 = vrot.lane.b32.xlu0 %v459, 96
        %v970 = vpop.permute.xlu0 %969
        %971 = vrot.lane.b32.xlu0 %v460, 96
        %v972 = vpop.permute.xlu0 %971
        %v976 = vsel %vm461, %v960, 0
        %v979 = vsel %vm461, %v962, 0
        %981 = vmatprep.subr.mxu0 0.0
        %982 = vmatpush1.msra.mxu0 %v970
        %983 = vmatprep.subr.mxu0 0.0
        %984 = vmatpush1.msra.mxu0 %v972
        %985 = vmatprep.subr.mxu0 0.0
        %986 = vmatpush1.msra.mxu0 0.0
        %987 = vmatprep.subr.mxu0 0.0
        %988 = vmatpush1.msra.mxu0 0.0
        %989 = vmatprep.subr.mxu0 0.0
        %990 = vmatpush1.msra.mxu0 0.0
        %991 = vmatprep.subr.mxu0 0.0
        %992 = vmatpush1.msra.mxu0 0.0
        %993 = vmatprep.subr.mxu0 0.0
        %994 = vmatpush1.msra.mxu0 0.0
        %995 = vmatprep.subr.mxu0 0.0
        %996 = vmatpush1.msra.mxu0 0.0
        %997 = vmatprep.subr.mxu0 0.0
        %998 = vmatpush1.msra.mxu0 0.0
        %999 = vmatprep.subr.mxu0 0.0
        %1000 = vmatpush1.msra.mxu0 0.0
        %1001 = vmatprep.subr.mxu0 0.0
        %1002 = vmatpush1.msra.mxu0 0.0
        %1003 = vmatprep.subr.mxu0 0.0
        %1004 = vmatpush1.msra.mxu0 0.0
        %1005 = vmatprep.subr.mxu0 0.0
        %1006 = vmatpush1.msra.mxu0 0.0
        %1007 = vmatprep.subr.mxu0 0.0
        %1008 = vmatpush1.msra.mxu0 0.0
        %1009 = vmatprep.subr.mxu0 0.0
        %1010 = vmatpush1.msra.mxu0 0.0
        %1011 = vmatprep.subr.mxu0 0.0
        %1012 = vmatpush1.msra.mxu0 0.0
        %1013 = vmatprep.subr.mxu0 0.0
        %1014 = vmatpush1.msra.mxu0 0.0
        %1015 = vmatprep.subr.mxu0 0.0
        %1016 = vmatpush1.msra.mxu0 0.0
        %1017 = vmatprep.subr.mxu0 0.0
        %1018 = vmatpush1.msra.mxu0 0.0
        %1019 = vmatprep.subr.mxu0 0.0
        %1020 = vmatpush1.msra.mxu0 0.0
        %1021 = vmatprep.subr.mxu0 0.0
        %1022 = vmatpush1.msra.mxu0 0.0
        %1023 = vmatprep.subr.mxu0 0.0
        %1024 = vmatpush1.msra.mxu0 0.0
        %1025 = vmatprep.subr.mxu0 0.0
        %1026 = vmatpush1.msra.mxu0 0.0
        %1027 = vmatprep.subr.mxu0 0.0
        %1028 = vmatpush1.msra.mxu0 0.0
        %1029 = vmatprep.subr.mxu0 0.0
        %1030 = vmatpush1.msra.mxu0 0.0
        %1031 = vmatprep.subr.mxu0 0.0
        %1032 = vmatpush1.msra.mxu0 0.0
        %1033 = vmatprep.subr.mxu0 0.0
        %1034 = vmatpush1.msra.mxu0 0.0
        %1035 = vmatprep.subr.mxu0 0.0
        %1036 = vmatpush1.msra.mxu0 0.0
        %1037 = vmatprep.subr.mxu0 0.0
        %1038 = vmatpush1.msra.mxu0 0.0
        %1039 = vmatprep.subr.mxu0 0.0
        %1040 = vmatpush1.msra.mxu0 0.0
        %1041 = vmatprep.subr.mxu0 0.0
        %1042 = vmatpush1.msra.mxu0 0.0
        %1043 = vmatprep.subr.mxu0 0.0
        %1044 = vmatpush1.msra.mxu0 0.0
        %1045 = vmatprep.mubr.f32.mxu0 0.0
        %1046 = vmatmul.mubr.f32.gmra.mrb[0].mxu0 %v976
        %v1047 = vpop.f32.mrb[0].mxu0
        %v1048 = vadd.f32 0.0, %v1047
        %v1049 = vpop.f32.mrb[0].mxu0
        %1050 = vmatprep.mubr.f32.mxu0 0.0
        %1051 = vmatmul.mubr.f32.gmra.mrb[0].mxu0 %v979
        %v1052 = vpop.f32.mrb[0].mxu0
        %v1053 = vadd.f32 0.0, %v1052
        %v1054 = vpop.f32.mrb[0].mxu0
        %1055 = vdwg.mxu0
        %v1056 = vrcp.pop %v965
        %v1057 = vrcp.pop %v968
        %v1058 = vmul.f32 %v1048, %v1056
        %v1059 = vmul.f32 %v1053, %v1057
        %1060 = vrot.lane.b32.xlu0 %v455, 80
        %v1061 = vpop.permute.xlu0 %1060
        %1062 = vrot.lane.b32.xlu0 %v456, 80
        %v1063 = vpop.permute.xlu0 %1062
        %1064 = vrot.lane.b32.xlu0 %v457, 80
        %v1065 = vpop.permute.xlu0 %1064
        %1066 = vrot.lane.b32.xlu0 %v458, 80
        %v1067 = vpop.permute.xlu0 %1066
        %v1068 = vsel %vm461, %v1061, 0
        %v1070 = vsel %vm461, %v1063, 0
        %v1072 = vsel %vm461, %v1065, 0
        %v1074 = vsel %vm461, %v1067, 0
        %1076 = vmatprep.subr.mxu0 0.0
        %1077 = vmatpush1.xpose.msra.mxu0 %v1072
        %1078 = vmatprep.subr.mxu0 0.0
        %1079 = vmatpush1.xpose.msra.mxu0 %v1074
        %1080 = vmatprep.subr.mxu0 0.0
        %1081 = vmatpush1.xpose.msra.mxu0 0.0
        %1082 = vmatprep.subr.mxu0 0.0
        %1083 = vmatpush1.xpose.msra.mxu0 0.0
        %1084 = vmatprep.subr.mxu0 0.0
        %1085 = vmatpush1.xpose.msra.mxu0 0.0
        %1086 = vmatprep.subr.mxu0 0.0
        %1087 = vmatpush1.xpose.msra.mxu0 0.0
        %1088 = vmatprep.subr.mxu0 0.0
        %1089 = vmatpush1.xpose.msra.mxu0 0.0
        %1090 = vmatprep.subr.mxu0 0.0
        %1091 = vmatpush1.xpose.msra.mxu0 0.0
        %1092 = vmatprep.subr.mxu0 0.0
        %1093 = vmatpush1.xpose.msra.mxu0 0.0
        %1094 = vmatprep.subr.mxu0 0.0
        %1095 = vmatpush1.xpose.msra.mxu0 0.0
        %1096 = vmatprep.subr.mxu0 0.0
        %1097 = vmatpush1.xpose.msra.mxu0 0.0
        %1098 = vmatprep.subr.mxu0 0.0
        %1099 = vmatpush1.xpose.msra.mxu0 0.0
        %1100 = vmatprep.subr.mxu0 0.0
        %1101 = vmatpush1.xpose.msra.mxu0 0.0
        %1102 = vmatprep.subr.mxu0 0.0
        %1103 = vmatpush1.xpose.msra.mxu0 0.0
        %1104 = vmatprep.subr.mxu0 0.0
        %1105 = vmatpush1.xpose.msra.mxu0 0.0
        %1106 = vmatprep.subr.mxu0 0.0
        %1107 = vmatpush1.xpose.msra.mxu0 0.0
        %1108 = vmatprep.subr.mxu0 0.0
        %1109 = vmatpush1.xpose.msra.mxu0 0.0
        %1110 = vmatprep.subr.mxu0 0.0
        %1111 = vmatpush1.xpose.msra.mxu0 0.0
        %1112 = vmatprep.subr.mxu0 0.0
        %1113 = vmatpush1.xpose.msra.mxu0 0.0
        %1114 = vmatprep.subr.mxu0 0.0
        %1115 = vmatpush1.xpose.msra.mxu0 0.0
        %1116 = vmatprep.subr.mxu0 0.0
        %1117 = vmatpush1.xpose.msra.mxu0 0.0
        %1118 = vmatprep.subr.mxu0 0.0
        %1119 = vmatpush1.xpose.msra.mxu0 0.0
        %1120 = vmatprep.subr.mxu0 0.0
        %1121 = vmatpush1.xpose.msra.mxu0 0.0
        %1122 = vmatprep.subr.mxu0 0.0
        %1123 = vmatpush1.xpose.msra.mxu0 0.0
        %1124 = vmatprep.subr.mxu0 0.0
        %1125 = vmatpush1.xpose.msra.mxu0 0.0
        %1126 = vmatprep.subr.mxu0 0.0
        %1127 = vmatpush1.xpose.msra.mxu0 0.0
        %1128 = vmatprep.subr.mxu0 0.0
        %1129 = vmatpush1.xpose.msra.mxu0 0.0
        %1130 = vmatprep.subr.mxu0 0.0
        %1131 = vmatpush1.xpose.msra.mxu0 0.0
        %1132 = vmatprep.subr.mxu0 0.0
        %1133 = vmatpush1.xpose.msra.mxu0 0.0
        %1134 = vmatprep.subr.mxu0 0.0
        %1135 = vmatpush1.xpose.msra.mxu0 0.0
        %1136 = vmatprep.subr.mxu0 0.0
        %1137 = vmatpush1.xpose.msra.mxu0 0.0
        %1138 = vmatprep.subr.mxu0 0.0
        %1139 = vmatpush1.xpose.msra.mxu0 0.0
        %1140 = vmatprep.mubr.f32.mxu0 0.0
        %1141 = vmatmul.mubr.f32.gmra.mrb[0].mxu0 %v1068
        %v1142 = vpop.f32.mrb[0].mxu0
        %v1143 = vadd.f32 0.0, %v1142
        %v1144 = vpop.f32.mrb[0].mxu0
        %1145 = vmatprep.mubr.f32.mxu0 0.0
        %1146 = vmatmul.mubr.f32.gmra.mrb[0].mxu0 %v1070
        %v1147 = vpop.f32.mrb[0].mxu0
        %v1148 = vadd.f32 0.0, %v1147
        %v1149 = vpop.f32.mrb[0].mxu0
        %1150 = vdwg.mxu0
        %v1151 = vmul.f32 %v1143, 0.25
        %v1152 = vmul.f32 %v1148, 0.25
        %v1153 = vsel %vm461, %v1151, -inf
        %1154 = vmax.xlane.f32.xlu0 %v1153
        %v1155 = vpop.xlane.xlu0 %1154
        %v1156 = vsel %vm461, %v1152, -inf
        %1157 = vmax.xlane.f32.xlu0 %v1156
        %v1158 = vpop.xlane.xlu0 %1157
        %v1159 = vsub.f32 %v1151, %v1155
        %v1160 = vsub.f32 %v1152, %v1158
        %v1161 = vmul.f32 %v1159, 1.442695
        %v1162 = vpow.pop %v1161
        %v1163 = vmul.f32 %v1160, 1.442695
        %v1164 = vpow.pop %v1163
        %v1165 = vsel %vm461, %v1162, 0.0
        %1166 = vadd.xlane.f32.xlu0 %v1165
        %v1167 = vpop.xlane.xlu0 %1166
        %v1168 = vsel %vm461, %v1164, 0.0
        %1169 = vadd.xlane.f32.xlu0 %v1168
        %v1170 = vpop.xlane.xlu0 %1169
        %1171 = vrot.lane.b32.xlu0 %v459, 80
        %v1172 = vpop.permute.xlu0 %1171
        %1173 = vrot.lane.b32.xlu0 %v460, 80
        %v1174 = vpop.permute.xlu0 %1173
        %v1178 = vsel %vm461, %v1162, 0
        %v1181 = vsel %vm461, %v1164, 0
        %1183 = vmatprep.subr.mxu0 0.0
        %1184 = vmatpush1.msra.mxu0 %v1172
        %1185 = vmatprep.subr.mxu0 0.0
        %1186 = vmatpush1.msra.mxu0 %v1174
        %1187 = vmatprep.subr.mxu0 0.0
        %1188 = vmatpush1.msra.mxu0 0.0
        %1189 = vmatprep.subr.mxu0 0.0
        %1190 = vmatpush1.msra.mxu0 0.0
        %1191 = vmatprep.subr.mxu0 0.0
        %1192 = vmatpush1.msra.mxu0 0.0
        %1193 = vmatprep.subr.mxu0 0.0
        %1194 = vmatpush1.msra.mxu0 0.0
        %1195 = vmatprep.subr.mxu0 0.0
        %1196 = vmatpush1.msra.mxu0 0.0
        %1197 = vmatprep.subr.mxu0 0.0
        %1198 = vmatpush1.msra.mxu0 0.0
        %1199 = vmatprep.subr.mxu0 0.0
        %1200 = vmatpush1.msra.mxu0 0.0
        %1201 = vmatprep.subr.mxu0 0.0
        %1202 = vmatpush1.msra.mxu0 0.0
        %1203 = vmatprep.subr.mxu0 0.0
        %1204 = vmatpush1.msra.mxu0 0.0
        %1205 = vmatprep.subr.mxu0 0.0
        %1206 = vmatpush1.msra.mxu0 0.0
        %1207 = vmatprep.subr.mxu0 0.0
        %1208 = vmatpush1.msra.mxu0 0.0
        %1209 = vmatprep.subr.mxu0 0.0
        %1210 = vmatpush1.msra.mxu0 0.0
        %1211 = vmatprep.subr.mxu0 0.0
        %1212 = vmatpush1.msra.mxu0 0.0
        %1213 = vmatprep.subr.mxu0 0.0
        %1214 = vmatpush1.msra.mxu0 0.0
        %1215 = vmatprep.subr.mxu0 0.0
        %1216 = vmatpush1.msra.mxu0 0.0
        %1217 = vmatprep.subr.mxu0 0.0
        %1218 = vmatpush1.msra.mxu0 0.0
        %1219 = vmatprep.subr.mxu0 0.0
        %1220 = vmatpush1.msra.mxu0 0.0
        %1221 = vmatprep.subr.mxu0 0.0
        %1222 = vmatpush1.msra.mxu0 0.0
        %1223 = vmatprep.subr.mxu0 0.0
        %1224 = vmatpush1.msra.mxu0 0.0
        %1225 = vmatprep.subr.mxu0 0.0
        %1226 = vmatpush1.msra.mxu0 0.0
        %1227 = vmatprep.subr.mxu0 0.0
        %1228 = vmatpush1.msra.mxu0 0.0
        %1229 = vmatprep.subr.mxu0 0.0
        %1230 = vmatpush1.msra.mxu0 0.0
        %1231 = vmatprep.subr.mxu0 0.0
        %1232 = vmatpush1.msra.mxu0 0.0
        %1233 = vmatprep.subr.mxu0 0.0
        %1234 = vmatpush1.msra.mxu0 0.0
        %1235 = vmatprep.subr.mxu0 0.0
        %1236 = vmatpush1.msra.mxu0 0.0
        %1237 = vmatprep.subr.mxu0 0.0
        %1238 = vmatpush1.msra.mxu0 0.0
        %1239 = vmatprep.subr.mxu0 0.0
        %1240 = vmatpush1.msra.mxu0 0.0
        %1241 = vmatprep.subr.mxu0 0.0
        %1242 = vmatpush1.msra.mxu0 0.0
        %1243 = vmatprep.subr.mxu0 0.0
        %1244 = vmatpush1.msra.mxu0 0.0
        %1245 = vmatprep.subr.mxu0 0.0
        %1246 = vmatpush1.msra.mxu0 0.0
        %1247 = vmatprep.mubr.f32.mxu0 0.0
        %1248 = vmatmul.mubr.f32.gmra.mrb[0].mxu0 %v1178
        %v1249 = vpop.f32.mrb[0].mxu0
        %v1250 = vadd.f32 0.0, %v1249
        %v1251 = vpop.f32.mrb[0].mxu0
        %1252 = vmatprep.mubr.f32.mxu0 0.0
        %1253 = vmatmul.mubr.f32.gmra.mrb[0].mxu0 %v1181
        %v1254 = vpop.f32.mrb[0].mxu0
        %v1255 = vadd.f32 0.0, %v1254
        %v1256 = vpop.f32.mrb[0].mxu0
        %1257 = vdwg.mxu0
        %v1258 = vrcp.pop %v1167
        %v1259 = vrcp.pop %v1170
        %v1260 = vmul.f32 %v1250, %v1258
        %v1261 = vmul.f32 %v1255, %v1259
        %1264 = vrot.lane.b32.xlu0 %v856, 16
        %v1265 = vpop.permute.xlu0 %1264
        %1266 = vrot.lane.b32.xlu0 %v857, 16
        %v1267 = vpop.permute.xlu0 %1266
        %1272 = vrot.lane.b32.xlu0 %v1058, 32
        %v1273 = vpop.permute.xlu0 %1272
        %1274 = vrot.lane.b32.xlu0 %v1059, 32
        %v1275 = vpop.permute.xlu0 %1274
        %1280 = vrot.lane.b32.xlu0 %v1260, 48
        %v1281 = vpop.permute.xlu0 %1280
        %1282 = vrot.lane.b32.xlu0 %v1261, 48
        %v1283 = vpop.permute.xlu0 %1282
        %v1286 = vsel %vm461, %v652, %v1265
        %v1287 = vsel %vm461, %v653, %v1267
        %vm1288 = vcmask 261120
        %v1289 = vsel %vm1288, %v1286, %v1273
        %v1290 = vsel %vm1288, %v1287, %v1275
        %vm1291 = vcmask 392192
        %v1292 = vsel %vm1291, %v1289, %v1281
        %v1293 = vsel %vm1291, %v1290, %v1283
        %v1294 = vld [vmem:[#allocation8] sm:$0xff]
        %v1295 = vld [vmem:[#allocation8 + $0x8] sm:$0xff]
        %v1296 = vld [vmem:[#allocation8 + $0x10] sm:$0xff]
        %v1297 = vld [vmem:[#allocation8 + $0x18] sm:$0xff]
        %v1298 = vld [vmem:[#allocation8 + $0x20] sm:$0xff]
        %v1299 = vld [vmem:[#allocation8 + $0x28] sm:$0xff]
        %v1300 = vld [vmem:[#allocation8 + $0x30] sm:$0xff]
        %v1301 = vld [vmem:[#allocation8 + $0x38] sm:$0xff]
        %vm1302 = vcmask 523264
        %v1304 = vsel %vm1302, %v1292, 0
        %v1307 = vsel %vm1302, %v1293, 0
        %1309 = vmatprep.subr.mxu0 0.0
        %1310 = vmatpush1.msra.mxu0 %v1294
        %1311 = vmatprep.subr.mxu0 0.0
        %1312 = vmatpush1.msra.mxu0 %v1295
        %1313 = vmatprep.subr.mxu0 0.0
        %1314 = vmatpush1.msra.mxu0 %v1296
        %1315 = vmatprep.subr.mxu0 0.0
        %1316 = vmatpush1.msra.mxu0 %v1297
        %1317 = vmatprep.subr.mxu0 0.0
        %1318 = vmatpush1.msra.mxu0 %v1298
        %1319 = vmatprep.subr.mxu0 0.0
        %1320 = vmatpush1.msra.mxu0 %v1299
        %1321 = vmatprep.subr.mxu0 0.0
        %1322 = vmatpush1.msra.mxu0 %v1300
        %1323 = vmatprep.subr.mxu0 0.0
        %1324 = vmatpush1.msra.mxu0 %v1301
        %1325 = vmatprep.subr.mxu0 0.0
        %1326 = vmatpush1.msra.mxu0 0.0
        %1327 = vmatprep.subr.mxu0 0.0
        %1328 = vmatpush1.msra.mxu0 0.0
        %1329 = vmatprep.subr.mxu0 0.0
        %1330 = vmatpush1.msra.mxu0 0.0
        %1331 = vmatprep.subr.mxu0 0.0
        %1332 = vmatpush1.msra.mxu0 0.0
        %1333 = vmatprep.subr.mxu0 0.0
        %1334 = vmatpush1.msra.mxu0 0.0
        %1335 = vmatprep.subr.mxu0 0.0
        %1336 = vmatpush1.msra.mxu0 0.0
        %1337 = vmatprep.subr.mxu0 0.0
        %1338 = vmatpush1.msra.mxu0 0.0
        %1339 = vmatprep.subr.mxu0 0.0
        %1340 = vmatpush1.msra.mxu0 0.0
        %1341 = vmatprep.subr.mxu0 0.0
        %1342 = vmatpush1.msra.mxu0 0.0
        %1343 = vmatprep.subr.mxu0 0.0
        %1344 = vmatpush1.msra.mxu0 0.0
        %1345 = vmatprep.subr.mxu0 0.0
        %1346 = vmatpush1.msra.mxu0 0.0
        %1347 = vmatprep.subr.mxu0 0.0
        %1348 = vmatpush1.msra.mxu0 0.0
        %1349 = vmatprep.subr.mxu0 0.0
        %1350 = vmatpush1.msra.mxu0 0.0
        %1351 = vmatprep.subr.mxu0 0.0
        %1352 = vmatpush1.msra.mxu0 0.0
        %1353 = vmatprep.subr.mxu0 0.0
        %1354 = vmatpush1.msra.mxu0 0.0
        %1355 = vmatprep.subr.mxu0 0.0
        %1356 = vmatpush1.msra.mxu0 0.0
        %1357 = vmatprep.subr.mxu0 0.0
        %1358 = vmatpush1.msra.mxu0 0.0
        %1359 = vmatprep.subr.mxu0 0.0
        %1360 = vmatpush1.msra.mxu0 0.0
        %1361 = vmatprep.subr.mxu0 0.0
        %1362 = vmatpush1.msra.mxu0 0.0
        %1363 = vmatprep.subr.mxu0 0.0
        %1364 = vmatpush1.msra.mxu0 0.0
        %1365 = vmatprep.subr.mxu0 0.0
        %1366 = vmatpush1.msra.mxu0 0.0
        %1367 = vmatprep.subr.mxu0 0.0
        %1368 = vmatpush1.msra.mxu0 0.0
        %1369 = vmatprep.subr.mxu0 0.0
        %1370 = vmatpush1.msra.mxu0 0.0
        %1371 = vmatprep.subr.mxu0 0.0
        %1372 = vmatpush1.msra.mxu0 0.0
        %1373 = vmatprep.mubr.f32.mxu0 0.0
        %1374 = vmatmul.mubr.f32.gmra.mrb[0].mxu0 %v1304
        %v1375 = vpop.f32.mrb[0].mxu0
        %v1376 = vadd.f32 0.0, %v1375
        %v1377 = vpop.f32.mrb[0].mxu0
        %1378 = vmatprep.mubr.f32.mxu0 0.0
        %1379 = vmatmul.mubr.f32.gmra.mrb[0].mxu0 %v1307
        %v1380 = vpop.f32.mrb[0].mxu0
        %v1381 = vadd.f32 0.0, %v1380
        %v1382 = vpop.f32.mrb[0].mxu0
        %1383 = vdwg.mxu0
        %v1384 = vld [vmem:[%s404] sm:$0xff]
        %v1385 = vld [vmem:[%s404 + $0x8] sm:$0xff]
        %v1386 = vld [vmem:[%s395] sm:$0x1]
        %v1388 = vlaneseq
        %v1389 = vshrl.u32 %v1388, 7
        %v1390 = vsub.s32 0, %v1389
        %v1391 = vrot.slane %v1386, %v1390
        %v1393 = vmul.f32 %v1391, %v1376
        %v1394 = vmul.f32 %v1391, %v1381
        %v1395 = vadd.f32 %v1384, %v1393
        %v1396 = vadd.f32 %v1385, %v1394
        %1397 = vst.msk [vmem:[%s451] sm:$0xff] %vm1302, %v1395
        %1398 = vst.msk [vmem:[%s451 + $0x8] sm:$0xff] %vm1302, %v1396
        %s1399 = sand.u32 %s204, 1
        %s1400 = scalar_lea.sflag [#allocation4], %s1399
        %s1401 = sand.u32 %s204, 1
        %s1402 = smul.addr %s1401, 16
        %s1403 = scalar_lea.vmem [#allocation12], %s1402
        // Predicated region
        $region69: #{dit_forward.10} parent=43 // pred_check
          %p1404 = pneg %p214
        $region70: #{dit_forward.10} parent=43 // pred_check_branch
          %1406 = sbr.rel (%p1404) target = $region72
        $region71: #{dit_forward.10} parent=43 // pred_region
          %s1407 = smul.u32 2, %s32
          %s1409 = ssub.s32 256, 256
          %1410 = vsyncadd %s1400, %s1409
          %s1411 = smul.addr %s31, 2
          %s1412 = sadd.s32 %s1407, %s1411
          %s1413 = smul.addr %s1412, 128
          %s1414 = scalar_lea.hbm %s6, %s1413
          %s1415 = sshll.u32 %s1403, 4
          %s1416 = int_to_ptr.vmem [resolvable:$true] %s1415
          %1421 = dma.vmem_to_hbm [thread:$0]  %s1416, 256, %s1414, %s1400, 128, 128, 8
        $region72: #{dit_forward.10} parent=43 // pred_fallthru
          _
      $region44: #{dit_forward.10} parent=5 // pred_fallthru
        _
      %p1422 = scmp.le.s32.totalorder 2, %s22
      // Predicated region
      $region73: #{dit_forward.10} parent=5 // pred_check
        %p1423 = pneg %p1422
      $region74: #{dit_forward.10} parent=5 // pred_check_branch
        %1425 = sbr.rel (%p1423) target = $region76
      $region75: #{dit_forward.10} parent=5 // pred_region
        %s1426 = ssub.s32 %s22, 2
        // Predicated region
        $region77: #{dit_forward.10} parent=75 // pred_check
          %p1427 = pneg %p220
        $region78: #{dit_forward.10} parent=75 // pred_check_branch
          %1429 = sbr.rel (%p1427) target = $region80
        $region79: #{dit_forward.10} parent=75 // pred_region
          %s1430 = sand.u32 %s205, 1
          %s1431 = scalar_lea.sflag [#allocation4], %s1430
          %s1432 = sand.u32 %s205, 1
          %s1433 = smul.addr %s1432, 16
          %s1434 = scalar_lea.vmem [#allocation12], %s1433
          %1435 = dma.done %s1431, 256
        $region80: #{dit_forward.10} parent=75 // pred_fallthru
          _
      $region76: #{dit_forward.10} parent=5 // pred_fallthru
        _
    $region6: #{dit_forward.10} parent=1 // loop_footer
      %s26 = sadd.s32 1, %s22
    $region7: #{dit_forward.10} parent=1 // loop_footer_branch
      %21 = sbr.rel target = $region3
    $region8: #{dit_forward.10} parent=1 // loop_exit
      _
    %1436 = vsyncpa [#allocation3], 1
    %s1437 = scalar_lea.sflag [#allocation3], 1
    %1438 = vsyncpa %s1437, 1
    %1439 = vsyncpa [#allocation6], 1
    %s1440 = scalar_lea.sflag [#allocation6], 1
    %1441 = vsyncpa %s1440, 1
    %1442 = vsyncpa [#allocation9], 1
    %1443 = vsyncpa [#allocation4], 1
    %s1444 = scalar_lea.sflag [#allocation4], 1
    %1445 = vsyncpa %s1444, 1

// kernel: dit_forward.11
$region0: #{dit_forward.11}
  #allocation0 [shape = 'u32[]', space=smem, size = 0x4, offset = 0x4, fixed_abs, tag = 'smem constant byte address 0x4 - core index']
  #allocation1 [shape = 'u32[144,128]{1,0:T(1,128)}', space=vmem, size = 0x12000, scoped, tag = 'internal scratch']
  %s0 = inlined_call_operand.hbm [shape: f32[2,16,64], index: 0, kind: input, shape index: {}]
  %s1 = inlined_call_operand.hbm [shape: f32[2,1,64], index: 1, kind: input, shape index: {}]
  %s2 = inlined_call_operand.hbm [shape: f32[2,1,64], index: 2, kind: input, shape index: {}]
  %s3 = inlined_call_operand.hbm [shape: f32[2,1,64], index: 3, kind: input, shape index: {}]
  %s4 = inlined_call_operand.hbm [shape: f32[64,256], index: 4, kind: input, shape index: {}]
  %s5 = inlined_call_operand.hbm [shape: f32[1,256], index: 5, kind: input, shape index: {}]
  %s6 = inlined_call_operand.hbm [shape: f32[256,64], index: 6, kind: input, shape index: {}]
  %s7 = inlined_call_operand.hbm [shape: f32[1,64], index: 7, kind: input, shape index: {}]
  %s8 = inlined_call_operand.hbm [shape: f32[2,16,64], index: 8, kind: output, shape index: {}]
  %s9 = sld [smem:[#allocation0]]
  $region97: #{dit_forward.11} parent=0
    _
  %s11 = ssub.s32 1, %s9
  %s12 = scalar_select 0, %s11, %s9
  $region1: #{dit_forward.11} parent=0
    #allocation2 [shape = 'u8[16384]{0}', space=vmem, size = 0x4000, scoped, tag = 'input window, operand 0']
    #allocation3 [shape = 's32[2]{0}', space=sflag, size = 0x8, scoped, tag = 'scoped memory for dit_forward.11']
    #allocation4 [shape = 's32[2]{0}', space=sflag, size = 0x8, scoped, tag = 'scoped memory for dit_forward.11']
    #allocation5 [shape = 'u8[1024]{0}', space=vmem, size = 0x400, scoped, tag = 'input window, operand 1']
    #allocation6 [shape = 's32[2]{0}', space=sflag, size = 0x8, scoped, tag = 'scoped memory for dit_forward.11']
    #allocation7 [shape = 'u8[1024]{0}', space=vmem, size = 0x400, scoped, tag = 'input window, operand 2']
    #allocation8 [shape = 'u8[1024]{0}', space=vmem, size = 0x400, scoped, tag = 'input window, operand 3']
    #allocation9 [shape = 's32[2]{0}', space=sflag, size = 0x8, scoped, tag = 'scoped memory for dit_forward.11']
    #allocation10 [shape = 'u8[65536]{0}', space=vmem, size = 0x10000, scoped, tag = 'input window, operand 4, single buffered']
    #allocation11 [shape = 'u8[1024]{0}', space=vmem, size = 0x400, scoped, tag = 'input window, operand 5, single buffered']
    #allocation12 [shape = 's32[1]{0}', space=sflag, size = 0x4, scoped, tag = 'scoped memory for dit_forward.11']
    #allocation13 [shape = 'u8[131072]{0}', space=vmem, size = 0x20000, scoped, tag = 'input window, operand 6, single buffered']
    #allocation14 [shape = 'u8[512]{0}', space=vmem, size = 0x400, scoped, tag = 'input window, operand 7, single buffered']
    #allocation15 [shape = 's32[1]{0}', space=sflag, size = 0x4, scoped, tag = 'scoped memory for dit_forward.11']
    #allocation16 [shape = 'u8[16384]{0}', space=vmem, size = 0x4000, scoped, tag = 'output window, operand 0']
    %13 = vsyncpa [#allocation3], 0
    %s14 = scalar_lea.sflag [#allocation3], 1
    %15 = vsyncpa %s14, 0
    %16 = vsyncpa [#allocation6], 0
    %s17 = scalar_lea.sflag [#allocation6], 1
    %18 = vsyncpa %s17, 0
    %19 = vsyncpa [#allocation9], 0
    %s20 = scalar_lea.sflag [#allocation9], 1
    %21 = vsyncpa %s20, 0
    %22 = vsyncpa [#allocation12], 0
    %23 = vsyncpa [#allocation15], 0
    %24 = vsyncpa [#allocation4], 0
    %s25 = scalar_lea.sflag [#allocation4], 1
    %26 = vsyncpa %s25, 0
    loop: start=0, step=1, limit=4
    $region2: #{dit_forward.11} parent=1 // loop_pre_header
      _
    $region3: #{dit_forward.11} parent=1 // loop_header
      %s28 = sphi 0, %s32
      %p29 = scmp.ge.s32.totalorder %s28, 4
      %s35 = sphi 0, %s47
      %s36 = sphi 0, %s43
      %s37 = sphi 0, %s35
      %s38 = sphi 0, %s36
      %s39 = sphi 0, %s37
      %s40 = sphi 0, %s38
      %s52 = sphi 0, %s54
      %s55 = sphi 0, %s52
      %s56 = sphi 0, %s55
      %s72 = sphi 0, %s56
      %s78 = sphi 0, %s80
      %s81 = sphi 0, %s78
      %s82 = sphi 0, %s81
      %s98 = sphi 0, %s82
      %s104 = sphi 0, %s106
      %s107 = sphi 0, %s104
      %s108 = sphi 0, %s107
      %s124 = sphi 0, %s108
      %s130 = sphi 0, %s132
      %s133 = sphi 0, %s130
      %s134 = sphi 0, %s133
      %s150 = sphi 0, %s134
      %s154 = sphi 0, %s154
      %s156 = sphi 0, %s154
      %s157 = sphi 0, %s156
      %s171 = sphi 0, %s157
      %s175 = sphi 0, %s175
      %s177 = sphi 0, %s175
      %s178 = sphi 0, %s177
      %s192 = sphi 0, %s178
      %s196 = sphi 0, %s196
      %s198 = sphi 0, %s196
      %s199 = sphi 0, %s198
      %s213 = sphi 0, %s199
      %s217 = sphi 0, %s217
      %s219 = sphi 0, %s217
      %s220 = sphi 0, %s219
      %s234 = sphi 0, %s220
      %s242 = sphi 0, %s244
      %s245 = sphi 0, %s242
      %s246 = sphi 0, %s245
      %s262 = sphi 0, %s246
    $region4: #{dit_forward.11} parent=1 // loop_header_branch
      %31 = sbr.rel (%p29) target = $region8
    $region5: #{dit_forward.11} parent=1 // loop_body
      %s33 = ssub.s32 %s28, 1
      %s34 = ssub.s32 %s28, 2
      %s41 = sadd.s32 1, %s36
      %p42 = scmp.ge.s32.totalorder %s41, 1
      %s43 = scalar_select %p42, 0, %s41
      %s44 = sadd.s32 1, %s35
      %s45 = scalar_select %p42, %s44, %s35
      %p46 = scmp.ge.s32.totalorder %s45, 2
      %s47 = scalar_select %p46, 0, %s45
      %s48 = ssub.s32 %s35, %s47
      %s49 = ssub.s32 %s36, %s43
      %s50 = sor.u32 %s48, %s49
      %p51 = scmp.eq.s32.totalorder %s50, 0
      %s53 = sadd.s32 %s52, 1
      %s54 = scalar_select %p51, %s52, %s53
      %p57 = pneg %p51
      %p58 = scmp.eq.s32.totalorder %s28, 1
      %p59 = por %p57, %p58
      %p60 = scmp.ne.s32.totalorder %s52, %s55
      %p61 = scmp.eq.s32.totalorder %s28, 0
      %p62 = por %p60, %p61
      %p63 = scmp.ne.s32.totalorder %s52, %s55
      %p64 = scmp.eq.s32.totalorder %s33, 1
      %p65 = por %p63, %p64
      %p66 = scmp.ne.s32.totalorder %s55, %s56
      %p67 = scmp.eq.s32.totalorder %s33, 0
      %p68 = por %p66, %p67
      %p69 = scmp.ne.s32.totalorder %s55, %s56
      %p70 = scmp.eq.s32.totalorder %s34, 1
      %p71 = por %p69, %p70
      %p73 = scmp.ne.s32.totalorder %s56, %s72
      %p74 = scmp.eq.s32.totalorder %s34, 0
      %p75 = por %p73, %p74
      %s76 = ssub.s32 %s35, %s47
      %p77 = scmp.eq.s32.totalorder %s76, 0
      %s79 = sadd.s32 %s78, 1
      %s80 = scalar_select %p77, %s78, %s79
      %p83 = pneg %p77
      %p84 = scmp.eq.s32.totalorder %s28, 1
      %p85 = por %p83, %p84
      %p86 = scmp.ne.s32.totalorder %s78, %s81
      %p87 = scmp.eq.s32.totalorder %s28, 0
      %p88 = por %p86, %p87
      %p89 = scmp.ne.s32.totalorder %s78, %s81
      %p90 = scmp.eq.s32.totalorder %s33, 1
      %p91 = por %p89, %p90
      %p92 = scmp.ne.s32.totalorder %s81, %s82
      %p93 = scmp.eq.s32.totalorder %s33, 0
      %p94 = por %p92, %p93
      %p95 = scmp.ne.s32.totalorder %s81, %s82
      %p96 = scmp.eq.s32.totalorder %s34, 1
      %p97 = por %p95, %p96
      %p99 = scmp.ne.s32.totalorder %s82, %s98
      %p100 = scmp.eq.s32.totalorder %s34, 0
      %p101 = por %p99, %p100
      %s102 = ssub.s32 %s35, %s47
      %p103 = scmp.eq.s32.totalorder %s102, 0
      %s105 = sadd.s32 %s104, 1
      %s106 = scalar_select %p103, %s104, %s105
      %p109 = pneg %p103
      %p110 = scmp.eq.s32.totalorder %s28, 1
      %p111 = por %p109, %p110
      %p112 = scmp.ne.s32.totalorder %s104, %s107
      %p113 = scmp.eq.s32.totalorder %s28, 0
      %p114 = por %p112, %p113
      %p115 = scmp.ne.s32.totalorder %s104, %s107
      %p116 = scmp.eq.s32.totalorder %s33, 1
      %p117 = por %p115, %p116
      %p118 = scmp.ne.s32.totalorder %s107, %s108
      %p119 = scmp.eq.s32.totalorder %s33, 0
      %p120 = por %p118, %p119
      %p121 = scmp.ne.s32.totalorder %s107, %s108
      %p122 = scmp.eq.s32.totalorder %s34, 1
      %p123 = por %p121, %p122
      %p125 = scmp.ne.s32.totalorder %s108, %s124
      %p126 = scmp.eq.s32.totalorder %s34, 0
      %p127 = por %p125, %p126
      %s128 = ssub.s32 %s35, %s47
      %p129 = scmp.eq.s32.totalorder %s128, 0
      %s131 = sadd.s32 %s130, 1
      %s132 = scalar_select %p129, %s130, %s131
      %p135 = pneg %p129
      %p136 = scmp.eq.s32.totalorder %s28, 1
      %p137 = por %p135, %p136
      %p138 = scmp.ne.s32.totalorder %s130, %s133
      %p139 = scmp.eq.s32.totalorder %s28, 0
      %p140 = por %p138, %p139
      %p141 = scmp.ne.s32.totalorder %s130, %s133
      %p142 = scmp.eq.s32.totalorder %s33, 1
      %p143 = por %p141, %p142
      %p144 = scmp.ne.s32.totalorder %s133, %s134
      %p145 = scmp.eq.s32.totalorder %s33, 0
      %p146 = por %p144, %p145
      %p147 = scmp.ne.s32.totalorder %s133, %s134
      %p148 = scmp.eq.s32.totalorder %s34, 1
      %p149 = por %p147, %p148
      %p151 = scmp.ne.s32.totalorder %s134, %s150
      %p152 = scmp.eq.s32.totalorder %s34, 0
      %p153 = por %p151, %p152
      %s155 = sadd.s32 %s154, 1
      %p158 = scmp.eq.s32.totalorder %s28, 1
      %p159 = scmp.ne.s32.totalorder %s154, %s156
      %p160 = scmp.eq.s32.totalorder %s28, 0
      %p161 = por %p159, %p160
      %p162 = scmp.ne.s32.totalorder %s154, %s156
      %p163 = scmp.eq.s32.totalorder %s33, 1
      %p164 = por %p162, %p163
      %p165 = scmp.ne.s32.totalorder %s156, %s157
      %p166 = scmp.eq.s32.totalorder %s33, 0
      %p167 = por %p165, %p166
      %p168 = scmp.ne.s32.totalorder %s156, %s157
      %p169 = scmp.eq.s32.totalorder %s34, 1
      %p170 = por %p168, %p169
      %p172 = scmp.ne.s32.totalorder %s157, %s171
      %p173 = scmp.eq.s32.totalorder %s34, 0
      %p174 = por %p172, %p173
      %s176 = sadd.s32 %s175, 1
      %p179 = scmp.eq.s32.totalorder %s28, 1
      %p180 = scmp.ne.s32.totalorder %s175, %s177
      %p181 = scmp.eq.s32.totalorder %s28, 0
      %p182 = por %p180, %p181
      %p183 = scmp.ne.s32.totalorder %s175, %s177
      %p184 = scmp.eq.s32.totalorder %s33, 1
      %p185 = por %p183, %p184
      %p186 = scmp.ne.s32.totalorder %s177, %s178
      %p187 = scmp.eq.s32.totalorder %s33, 0
      %p188 = por %p186, %p187
      %p189 = scmp.ne.s32.totalorder %s177, %s178
      %p190 = scmp.eq.s32.totalorder %s34, 1
      %p191 = por %p189, %p190
      %p193 = scmp.ne.s32.totalorder %s178, %s192
      %p194 = scmp.eq.s32.totalorder %s34, 0
      %p195 = por %p193, %p194
      %s197 = sadd.s32 %s196, 1
      %p200 = scmp.eq.s32.totalorder %s28, 1
      %p201 = scmp.ne.s32.totalorder %s196, %s198
      %p202 = scmp.eq.s32.totalorder %s28, 0
      %p203 = por %p201, %p202
      %p204 = scmp.ne.s32.totalorder %s196, %s198
      %p205 = scmp.eq.s32.totalorder %s33, 1
      %p206 = por %p204, %p205
      %p207 = scmp.ne.s32.totalorder %s198, %s199
      %p208 = scmp.eq.s32.totalorder %s33, 0
      %p209 = por %p207, %p208
      %p210 = scmp.ne.s32.totalorder %s198, %s199
      %p211 = scmp.eq.s32.totalorder %s34, 1
      %p212 = por %p210, %p211
      %p214 = scmp.ne.s32.totalorder %s199, %s213
      %p215 = scmp.eq.s32.totalorder %s34, 0
      %p216 = por %p214, %p215
      %s218 = sadd.s32 %s217, 1
      %p221 = scmp.eq.s32.totalorder %s28, 1
      %p222 = scmp.ne.s32.totalorder %s217, %s219
      %p223 = scmp.eq.s32.totalorder %s28, 0
      %p224 = por %p222, %p223
      %p225 = scmp.ne.s32.totalorder %s217, %s219
      %p226 = scmp.eq.s32.totalorder %s33, 1
      %p227 = por %p225, %p226
      %p228 = scmp.ne.s32.totalorder %s219, %s220
      %p229 = scmp.eq.s32.totalorder %s33, 0
      %p230 = por %p228, %p229
      %p231 = scmp.ne.s32.totalorder %s219, %s220
      %p232 = scmp.eq.s32.totalorder %s34, 1
      %p233 = por %p231, %p232
      %p235 = scmp.ne.s32.totalorder %s220, %s234
      %p236 = scmp.eq.s32.totalorder %s34, 0
      %p237 = por %p235, %p236
      %s238 = ssub.s32 %s35, %s47
      %s239 = ssub.s32 %s36, %s43
      %s240 = sor.u32 %s238, %s239
      %p241 = scmp.eq.s32.totalorder %s240, 0
      %s243 = sadd.s32 %s242, 1
      %s244 = scalar_select %p241, %s242, %s243
      %p247 = pneg %p241
      %p248 = scmp.eq.s32.totalorder %s28, 1
      %p249 = por %p247, %p248
      %p250 = scmp.ne.s32.totalorder %s242, %s245
      %p251 = scmp.eq.s32.totalorder %s28, 0
      %p252 = por %p250, %p251
      %p253 = scmp.ne.s32.totalorder %s242, %s245
      %p254 = scmp.eq.s32.totalorder %s33, 1
      %p255 = por %p253, %p254
      %p256 = scmp.ne.s32.totalorder %s245, %s246
      %p257 = scmp.eq.s32.totalorder %s33, 0
      %p258 = por %p256, %p257
      %p259 = scmp.ne.s32.totalorder %s245, %s246
      %p260 = scmp.eq.s32.totalorder %s34, 1
      %p261 = por %p259, %p260
      %p263 = scmp.ne.s32.totalorder %s246, %s262
      %p264 = scmp.eq.s32.totalorder %s34, 0
      %p265 = por %p263, %p264
      %p266 = scmp.le.s32.totalorder 1, %s28
      %p267 = scmp.lt.s32.totalorder %s28, 3
      %p268 = pnand %p266, %p267
      %p269 = pneg %p268
      // Predicated region
      $region9: #{dit_forward.11} parent=5 // pred_check
        _
      $region10: #{dit_forward.11} parent=5 // pred_check_branch
        %271 = sbr.rel (%p268) target = $region12
      $region11: #{dit_forward.11} parent=5 // pred_region
        %s272 = ssub.s32 %s28, 1
        // Predicated region
        $region13: #{dit_forward.11} parent=11 // pred_check
          %p273 = pneg %p167
        $region14: #{dit_forward.11} parent=11 // pred_check_branch
          %275 = sbr.rel (%p273) target = $region16
        $region15: #{dit_forward.11} parent=11 // pred_region
          %s277 = ssub.s32 2048, 2048
          %278 = vsyncadd [#allocation9], %s277
          %s279 = sshll.u32 [#allocation10], 4
          %s280 = int_to_ptr.vmem [resolvable:$true] %s279
          %285 = dma.hbm_to_vmem [thread:$0]  %s4, 2048, %s280, [#allocation9], 256, 256, 16
        $region16: #{dit_forward.11} parent=11 // pred_fallthru
          _
        // Predicated region
        $region17: #{dit_forward.11} parent=11 // pred_check
          %p286 = pneg %p188
        $region18: #{dit_forward.11} parent=11 // pred_check_branch
          %288 = sbr.rel (%p286) target = $region20
        $region19: #{dit_forward.11} parent=11 // pred_region
          %s290 = ssub.s32 32, 32
          %291 = vsyncadd [#allocation12], %s290
          %s293 = sshll.u32 [#allocation11], 4
          %s294 = int_to_ptr.vmem [resolvable:$true] %s293
          %296 = dma.hbm_to_vmem [thread:$0]  %s5, 32, %s294, [#allocation12]
        $region20: #{dit_forward.11} parent=11 // pred_fallthru
          _
        // Predicated region
        $region21: #{dit_forward.11} parent=11 // pred_check
          %p297 = pneg %p209
        $region22: #{dit_forward.11} parent=11 // pred_check_branch
          %299 = sbr.rel (%p297) target = $region24
        $region23: #{dit_forward.11} parent=11 // pred_region
          %s301 = ssub.s32 4096, 4096
          %302 = vsyncadd [#allocation12], %s301
          %s303 = sshll.u32 [#allocation13], 4
          %s304 = int_to_ptr.vmem [resolvable:$true] %s303
          %309 = dma.hbm_to_vmem [thread:$0]  %s6, 4096, %s304, [#allocation12], 128, 128, 8
        $region24: #{dit_forward.11} parent=11 // pred_fallthru
          _
        // Predicated region
        $region25: #{dit_forward.11} parent=11 // pred_check
          %p310 = pneg %p230
        $region26: #{dit_forward.11} parent=11 // pred_check_branch
          %312 = sbr.rel (%p310) target = $region28
        $region27: #{dit_forward.11} parent=11 // pred_region
          %s314 = ssub.s32 16, 16
          %315 = vsyncadd [#allocation15], %s314
          %s317 = sshll.u32 [#allocation14], 4
          %s318 = int_to_ptr.vmem [resolvable:$true] %s317
          %320 = dma.hbm_to_vmem [thread:$0]  %s7, 16, %s318, [#allocation15]
        $region28: #{dit_forward.11} parent=11 // pred_fallthru
          _
      $region12: #{dit_forward.11} parent=5 // pred_fallthru
        _
      %p321 = scmp.lt.s32.totalorder %s28, 2
      // Predicated region
      $region29: #{dit_forward.11} parent=5 // pred_check
        %p322 = pneg %p321
      $region30: #{dit_forward.11} parent=5 // pred_check_branch
        %324 = sbr.rel (%p322) target = $region32
      $region31: #{dit_forward.11} parent=5 // pred_region
        // Predicated region
        $region33: #{dit_forward.11} parent=31 // pred_check
          %p325 = pneg %p62
        $region34: #{dit_forward.11} parent=31 // pred_check_branch
          %327 = sbr.rel (%p325) target = $region36
        $region35: #{dit_forward.11} parent=31 // pred_region
          %s328 = sand.u32 %s52, 1
          %s329 = scalar_lea.sflag [#allocation3], %s328
          %s330 = sand.u32 %s52, 1
          %s331 = smul.addr %s330, 16
          %s332 = scalar_lea.vmem [#allocation2], %s331
          %s333 = smul.u32 2, %s36
          %s335 = ssub.s32 256, 256
          %336 = vsyncadd %s329, %s335
          %s337 = smul.addr %s35, 2
          %s338 = sadd.s32 %s333, %s337
          %s339 = smul.addr %s338, 128
          %s340 = scalar_lea.hbm %s0, %s339
          %s341 = sshll.u32 %s332, 4
          %s342 = int_to_ptr.vmem [resolvable:$true] %s341
          %347 = dma.hbm_to_vmem [thread:$0]  %s340, 256, %s342, %s329, 128, 128, 8
        $region36: #{dit_forward.11} parent=31 // pred_fallthru
          _
        // Predicated region
        $region37: #{dit_forward.11} parent=31 // pred_check
          %p348 = pneg %p88
        $region38: #{dit_forward.11} parent=31 // pred_check_branch
          %350 = sbr.rel (%p348) target = $region40
        $region39: #{dit_forward.11} parent=31 // pred_region
          %s351 = sand.u32 %s28, 1
          %s352 = scalar_lea.sflag [#allocation6], %s351
          %s353 = sand.u32 %s78, 1
          %s354 = scalar_lea.vmem [#allocation5], %s353
          %s356 = ssub.s32 16, 16
          %357 = vsyncadd %s352, %s356
          %s358 = smul.addr %s35, 16
          %s359 = scalar_lea.hbm %s1, %s358
          %s361 = sshll.u32 %s354, 4
          %s362 = int_to_ptr.vmem [resolvable:$true] %s361
          %364 = dma.hbm_to_vmem [thread:$0]  %s359, 16, %s362, %s352
        $region40: #{dit_forward.11} parent=31 // pred_fallthru
          _
        // Predicated region
        $region41: #{dit_forward.11} parent=31 // pred_check
          %p365 = pneg %p114
        $region42: #{dit_forward.11} parent=31 // pred_check_branch
          %367 = sbr.rel (%p365) target = $region44
        $region43: #{dit_forward.11} parent=31 // pred_region
          %s368 = sand.u32 %s28, 1
          %s369 = scalar_lea.sflag [#allocation6], %s368
          %s370 = sand.u32 %s104, 1
          %s371 = scalar_lea.vmem [#allocation7], %s370
          %s373 = ssub.s32 16, 16
          %374 = vsyncadd %s369, %s373
          %s375 = smul.addr %s35, 16
          %s376 = scalar_lea.hbm %s2, %s375
          %s378 = sshll.u32 %s371, 4
          %s379 = int_to_ptr.vmem [resolvable:$true] %s378
          %381 = dma.hbm_to_vmem [thread:$0]  %s376, 16, %s379, %s369
        $region44: #{dit_forward.11} parent=31 // pred_fallthru
          _
        // Predicated region
        $region45: #{dit_forward.11} parent=31 // pred_check
          %p382 = pneg %p140
        $region46: #{dit_forward.11} parent=31 // pred_check_branch
          %384 = sbr.rel (%p382) target = $region48
        $region47: #{dit_forward.11} parent=31 // pred_region
          %s385 = sand.u32 %s28, 1
          %s386 = scalar_lea.sflag [#allocation9], %s385
          %s387 = sand.u32 %s130, 1
          %s388 = scalar_lea.vmem [#allocation8], %s387
          %s390 = ssub.s32 16, 16
          %391 = vsyncadd %s386, %s390
          %s392 = smul.addr %s35, 16
          %s393 = scalar_lea.hbm %s3, %s392
          %s395 = sshll.u32 %s388, 4
          %s396 = int_to_ptr.vmem [resolvable:$true] %s395
          %398 = dma.hbm_to_vmem [thread:$0]  %s393, 16, %s396, %s386
        $region48: #{dit_forward.11} parent=31 // pred_fallthru
          _
      $region32: #{dit_forward.11} parent=5 // pred_fallthru
        _
      %p399 = scmp.le.s32.totalorder 1, %s28
      %p400 = scmp.lt.s32.totalorder %s28, 3
      %p401 = pnand %p399, %p400
      %p402 = pneg %p401
      // Predicated region
      $region49: #{dit_forward.11} parent=5 // pred_check
        _
      $region50: #{dit_forward.11} parent=5 // pred_check_branch
        %404 = sbr.rel (%p401) target = $region52
      $region51: #{dit_forward.11} parent=5 // pred_region
        %s405 = ssub.s32 %s28, 1
        %s406 = sand.u32 %s55, 1
        %s407 = scalar_lea.sflag [#allocation3], %s406
        %s408 = sand.u32 %s55, 1
        %s409 = smul.addr %s408, 16
        %s410 = scalar_lea.vmem [#allocation2], %s409
        // Predicated region
        $region53: #{dit_forward.11} parent=51 // pred_check
          %p411 = pneg %p68
        $region54: #{dit_forward.11} parent=51 // pred_check_branch
          %413 = sbr.rel (%p411) target = $region56
        $region55: #{dit_forward.11} parent=51 // pred_region
          %414 = dma.done %s407, 256
        $region56: #{dit_forward.11} parent=51 // pred_fallthru
          _
        %s415 = sand.u32 %s33, 1
        %s416 = scalar_lea.sflag [#allocation6], %s415
        %s417 = sand.u32 %s81, 1
        %s418 = scalar_lea.vmem [#allocation5], %s417
        // Predicated region
        $region57: #{dit_forward.11} parent=51 // pred_check
          %p419 = pneg %p94
        $region58: #{dit_forward.11} parent=51 // pred_check_branch
          %421 = sbr.rel (%p419) target = $region60
        $region59: #{dit_forward.11} parent=51 // pred_region
          %422 = dma.done %s416, 16
        $region60: #{dit_forward.11} parent=51 // pred_fallthru
          _
        %s423 = sand.u32 %s33, 1
        %s424 = scalar_lea.sflag [#allocation6], %s423
        %s425 = sand.u32 %s107, 1
        %s426 = scalar_lea.vmem [#allocation7], %s425
        // Predicated region
        $region61: #{dit_forward.11} parent=51 // pred_check
          %p427 = pneg %p120
        $region62: #{dit_forward.11} parent=51 // pred_check_branch
          %429 = sbr.rel (%p427) target = $region64
        $region63: #{dit_forward.11} parent=51 // pred_region
          %430 = dma.done %s424, 16
        $region64: #{dit_forward.11} parent=51 // pred_fallthru
          _
        %s431 = sand.u32 %s33, 1
        %s432 = scalar_lea.sflag [#allocation9], %s431
        %s433 = sand.u32 %s133, 1
        %s434 = scalar_lea.vmem [#allocation8], %s433
        // Predicated region
        $region65: #{dit_forward.11} parent=51 // pred_check
          %p435 = pneg %p146
        $region66: #{dit_forward.11} parent=51 // pred_check_branch
          %437 = sbr.rel (%p435) target = $region68
        $region67: #{dit_forward.11} parent=51 // pred_region
          %438 = dma.done %s432, 16
        $region68: #{dit_forward.11} parent=51 // pred_fallthru
          _
        // Predicated region
        $region69: #{dit_forward.11} parent=51 // pred_check
          %p439 = pneg %p167
        $region70: #{dit_forward.11} parent=51 // pred_check_branch
          %441 = sbr.rel (%p439) target = $region72
        $region71: #{dit_forward.11} parent=51 // pred_region
          %442 = dma.done [#allocation9], 2048
        $region72: #{dit_forward.11} parent=51 // pred_fallthru
          _
        // Predicated region
        $region73: #{dit_forward.11} parent=51 // pred_check
          %p443 = pneg %p188
        $region74: #{dit_forward.11} parent=51 // pred_check_branch
          %445 = sbr.rel (%p443) target = $region76
        $region75: #{dit_forward.11} parent=51 // pred_region
          %446 = dma.done [#allocation12], 32
        $region76: #{dit_forward.11} parent=51 // pred_fallthru
          _
        // Predicated region
        $region77: #{dit_forward.11} parent=51 // pred_check
          %p447 = pneg %p209
        $region78: #{dit_forward.11} parent=51 // pred_check_branch
          %449 = sbr.rel (%p447) target = $region80
        $region79: #{dit_forward.11} parent=51 // pred_region
          %450 = dma.done [#allocation12], 4096
        $region80: #{dit_forward.11} parent=51 // pred_fallthru
          _
        // Predicated region
        $region81: #{dit_forward.11} parent=51 // pred_check
          %p451 = pneg %p230
        $region82: #{dit_forward.11} parent=51 // pred_check_branch
          %453 = sbr.rel (%p451) target = $region84
        $region83: #{dit_forward.11} parent=51 // pred_region
          %454 = dma.done [#allocation15], 16
        $region84: #{dit_forward.11} parent=51 // pred_fallthru
          _
        %s455 = sand.u32 %s55, 1
        %s456 = scalar_lea.sflag [#allocation3], %s455
        %s457 = sand.u32 %s55, 1
        %s458 = smul.addr %s457, 16
        %s459 = scalar_lea.vmem [#allocation2], %s458
        %p460 = pneg %p68
        %p461 = pneg %p65
        %s462 = sand.u32 %s33, 1
        %s463 = scalar_lea.sflag [#allocation6], %s462
        %s464 = sand.u32 %s81, 1
        %s465 = scalar_lea.vmem [#allocation5], %s464
        %p466 = pneg %p94
        %p467 = pneg %p91
        %s468 = sand.u32 %s33, 1
        %s469 = scalar_lea.sflag [#allocation6], %s468
        %s470 = sand.u32 %s107, 1
        %s471 = scalar_lea.vmem [#allocation7], %s470
        %p472 = pneg %p120
        %p473 = pneg %p117
        %s474 = sand.u32 %s33, 1
        %s475 = scalar_lea.sflag [#allocation9], %s474
        %s476 = sand.u32 %s133, 1
        %s477 = scalar_lea.vmem [#allocation8], %s476
        %p478 = pneg %p146
        %p479 = pneg %p143
        %p480 = pneg %p167
        %p481 = pneg %p164
        %p482 = pneg %p188
        %p483 = pneg %p185
        %p484 = pneg %p209
        %p485 = pneg %p206
        %p486 = pneg %p230
        %p487 = pneg %p227
        %p488 = pneg %p258
        %p489 = pneg %p255
        %s490 = sand.u32 %s245, 1
        %s491 = scalar_lea.sflag [#allocation4], %s490
        %s492 = sand.u32 %s245, 1
        %s493 = smul.addr %s492, 16
        %s494 = scalar_lea.vmem [#allocation16], %s493
        %s495 = smul.u32 2, %s38
        %s496 = smul.u32 2, %s38
        %v497 = vld [vmem:[%s410] sm:$0xff]
        %v498 = vld [vmem:[%s410 + $0x8] sm:$0xff]
        %v499 = vld [vmem:[%s418] sm:$0x1]
        %v500 = vld [vmem:[%s426] sm:$0x1]
        %vm501 = vcmask 523264
        %v502 = vsel %vm501, %v497, 0.0
        %503 = vadd.xlane.f32.xlu0 %v502
        %v504 = vpop.xlane.xlu0 %503
        %v505 = vsel %vm501, %v498, 0.0
        %506 = vadd.xlane.f32.xlu0 %v505
        %v507 = vpop.xlane.xlu0 %506
        %v508 = vrcp.pop 64.0
        %v509 = vmul.f32 %v504, %v508
        %v510 = vmul.f32 %v507, %v508
        %v511 = vsub.f32 %v497, %v509
        %v512 = vsub.f32 %v498, %v510
        %v513 = vmul.f32 %v511, %v511
        %v514 = vmul.f32 %v512, %v512
        %v515 = vsel %vm501, %v513, 0.0
        %516 = vadd.xlane.f32.xlu0 %v515
        %v517 = vpop.xlane.xlu0 %516
        %v518 = vsel %vm501, %v514, 0.0
        %519 = vadd.xlane.f32.xlu0 %v518
        %v520 = vpop.xlane.xlu0 %519
        %v521 = vmul.f32 %v517, %v508
        %v522 = vmul.f32 %v520, %v508
        %v523 = vadd.f32 %v521, 1e-06
        %v524 = vadd.f32 %v522, 1e-06
        %v525 = vrsqrt.pop %v523
        %v526 = vrsqrt.pop %v524
        %v527 = vmul.f32 %v511, %v525
        %v528 = vmul.f32 %v512, %v526
        %v529 = vadd.f32 %v499, 1.0
        %v531 = vlaneseq
        %v532 = vshrl.u32 %v531, 7
        %v533 = vsub.s32 0, %v532
        %v534 = vrot.slane %v529, %v533
        %v536 = vmul.f32 %v527, %v534
        %v537 = vmul.f32 %v528, %v534
        %v539 = vlaneseq
        %v540 = vshrl.u32 %v539, 7
        %v541 = vsub.s32 0, %v540
        %v542 = vrot.slane %v500, %v541
        %v544 = vadd.f32 %v536, %v542
        %v545 = vadd.f32 %v537, %v542
        %v546 = vld [vmem:[#allocation10] sm:$0xff]
        %v547 = vld [vmem:[#allocation10 + $0x8] sm:$0xff]
        %v548 = vld [vmem:[#allocation10 + $0x10] sm:$0xff]
        %v549 = vld [vmem:[#allocation10 + $0x18] sm:$0xff]
        %v550 = vld [vmem:[#allocation10 + $0x20] sm:$0xff]
        %v551 = vld [vmem:[#allocation10 + $0x28] sm:$0xff]
        %v552 = vld [vmem:[#allocation10 + $0x30] sm:$0xff]
        %v553 = vld [vmem:[#allocation10 + $0x38] sm:$0xff]
        %v554 = vld [vmem:[#allocation10 + $0x40] sm:$0xff]
        %v555 = vld [vmem:[#allocation10 + $0x48] sm:$0xff]
        %v556 = vld [vmem:[#allocation10 + $0x50] sm:$0xff]
        %v557 = vld [vmem:[#allocation10 + $0x58] sm:$0xff]
        %v558 = vld [vmem:[#allocation10 + $0x60] sm:$0xff]
        %v559 = vld [vmem:[#allocation10 + $0x68] sm:$0xff]
        %v560 = vld [vmem:[#allocation10 + $0x70] sm:$0xff]
        %v561 = vld [vmem:[#allocation10 + $0x78] sm:$0xff]
        %v562 = vld [vmem:[#allocation11] sm:$0x3]
        %v564 = vlaneseq
        %v565 = vshrl.u32 %v564, 7
        %v566 = vsub.s32 0, %v565
        %v567 = vrot.slane %v562, %v566
        %v568 = vlaneseq
        %v569 = vshrl.u32 %v568, 7
        %v570 = vsub.s32 1, %v569
        %v571 = vrot.slane %v562, %v570
        %v575 = vsel %vm501, %v544, 0
        %v578 = vsel %vm501, %v545, 0
        %580 = vmatprep.subr.mxu0 %v547
        %581 = vmatpush1.msra.mxu0 %v546
        %582 = vmatprep.subr.mxu0 %v549
        %583 = vmatpush1.msra.mxu0 %v548
        %584 = vmatprep.subr.mxu0 %v551
        %585 = vmatpush1.msra.mxu0 %v550
        %586 = vmatprep.subr.mxu0 %v553
        %587 = vmatpush1.msra.mxu0 %v552
        %588 = vmatprep.subr.mxu0 %v555
        %589 = vmatpush1.msra.mxu0 %v554
        %590 = vmatprep.subr.mxu0 %v557
        %591 = vmatpush1.msra.mxu0 %v556
        %592 = vmatprep.subr.mxu0 %v559
        %593 = vmatpush1.msra.mxu0 %v558
        %594 = vmatprep.subr.mxu0 %v561
        %595 = vmatpush1.msra.mxu0 %v560
        %596 = vmatprep.subr.mxu0 0.0
        %597 = vmatpush1.msra.mxu0 0.0
        %598 = vmatprep.subr.mxu0 0.0
        %599 = vmatpush1.msra.mxu0 0.0
        %600 = vmatprep.subr.mxu0 0.0
        %601 = vmatpush1.msra.mxu0 0.0
        %602 = vmatprep.subr.mxu0 0.0
        %603 = vmatpush1.msra.mxu0 0.0
        %604 = vmatprep.subr.mxu0 0.0
        %605 = vmatpush1.msra.mxu0 0.0
        %606 = vmatprep.subr.mxu0 0.0
        %607 = vmatpush1.msra.mxu0 0.0
        %608 = vmatprep.subr.mxu0 0.0
        %609 = vmatpush1.msra.mxu0 0.0
        %610 = vmatprep.subr.mxu0 0.0
        %611 = vmatpush1.msra.mxu0 0.0
        %612 = vmatprep.subr.mxu0 0.0
        %613 = vmatpush1.msra.mxu0 0.0
        %614 = vmatprep.subr.mxu0 0.0
        %615 = vmatpush1.msra.mxu0 0.0
        %616 = vmatprep.subr.mxu0 0.0
        %617 = vmatpush1.msra.mxu0 0.0
        %618 = vmatprep.subr.mxu0 0.0
        %619 = vmatpush1.msra.mxu0 0.0
        %620 = vmatprep.subr.mxu0 0.0
        %621 = vmatpush1.msra.mxu0 0.0
        %622 = vmatprep.subr.mxu0 0.0
        %623 = vmatpush1.msra.mxu0 0.0
        %624 = vmatprep.subr.mxu0 0.0
        %625 = vmatpush1.msra.mxu0 0.0
        %626 = vmatprep.subr.mxu0 0.0
        %627 = vmatpush1.msra.mxu0 0.0
        %628 = vmatprep.subr.mxu0 0.0
        %629 = vmatpush1.msra.mxu0 0.0
        %630 = vmatprep.subr.mxu0 0.0
        %631 = vmatpush1.msra.mxu0 0.0
        %632 = vmatprep.subr.mxu0 0.0
        %633 = vmatpush1.msra.mxu0 0.0
        %634 = vmatprep.subr.mxu0 0.0
        %635 = vmatpush1.msra.mxu0 0.0
        %636 = vmatprep.subr.mxu0 0.0
        %637 = vmatpush1.msra.mxu0 0.0
        %638 = vmatprep.subr.mxu0 0.0
        %639 = vmatpush1.msra.mxu0 0.0
        %640 = vmatprep.subr.mxu0 0.0
        %641 = vmatpush1.msra.mxu0 0.0
        %642 = vmatprep.subr.mxu0 0.0
        %643 = vmatpush1.msra.mxu0 0.0
        %644 = vmatprep.mubr.f32.mxu0 0.0
        %645 = vmatmul.mubr.f32.gmra.mrb[0].mxu0 %v575
        %v646 = vpop.f32.mrb[0].mxu0
        %v647 = vadd.f32 %v567, %v646
        %v648 = vpop.f32.mrb[0].mxu0
        %v649 = vadd.f32 %v571, %v648
        %650 = vmatprep.mubr.f32.mxu0 0.0
        %651 = vmatmul.mubr.f32.gmra.mrb[0].mxu0 %v578
        %v652 = vpop.f32.mrb[0].mxu0
        %v653 = vadd.f32 %v567, %v652
        %v654 = vpop.f32.mrb[0].mxu0
        %v655 = vadd.f32 %v571, %v654
        %656 = vdwg.mxu0
        %v657 = vmul.f32 %v647, 0.5
        %v658 = vmul.f32 %v649, 0.5
        %v659 = vmul.f32 %v653, 0.5
        %v660 = vmul.f32 %v655, 0.5
        %v661 = vmul.f32 %v647, 0.044715
        %v662 = vmul.f32 %v649, 0.044715
        %v663 = vmul.f32 %v653, 0.044715
        %v664 = vmul.f32 %v655, 0.044715
        %v665 = vmul.f32 %v661, %v647
        %v666 = vmul.f32 %v662, %v649
        %v667 = vmul.f32 %v663, %v653
        %v668 = vmul.f32 %v664, %v655
        %v669 = vmul.f32 %v665, %v647
        %v670 = vmul.f32 %v666, %v649
        %v671 = vmul.f32 %v667, %v653
        %v672 = vmul.f32 %v668, %v655
        %v673 = vadd.f32 %v647, %v669
        %v674 = vadd.f32 %v649, %v670
        %v675 = vadd.f32 %v653, %v671
        %v676 = vadd.f32 %v655, %v672
        %v677 = vmul.f32 %v673, 0.7978846
        %v678 = vmul.f32 %v674, 0.7978846
        %v679 = vmul.f32 %v675, 0.7978846
        %v680 = vmul.f32 %v676, 0.7978846
        %v681 = vtanh.pop %v677
        %v682 = vtanh.pop %v678
        %v683 = vtanh.pop %v679
        %v684 = vtanh.pop %v680
        %v685 = vadd.f32 %v681, 1.0
        %v686 = vadd.f32 %v682, 1.0
        %v687 = vadd.f32 %v683, 1.0
        %v688 = vadd.f32 %v684, 1.0
        %v689 = vmul.f32 %v657, %v685
        %v690 = vmul.f32 %v658, %v686
        %v691 = vmul.f32 %v659, %v687
        %v692 = vmul.f32 %v660, %v688
        %v693 = vld [vmem:[#allocation13] sm:$0xff]
        %v694 = vld [vmem:[#allocation13 + $0x8] sm:$0xff]
        %v695 = vld [vmem:[#allocation13 + $0x10] sm:$0xff]
        %v696 = vld [vmem:[#allocation13 + $0x18] sm:$0xff]
        %v697 = vld [vmem:[#allocation13 + $0x20] sm:$0xff]
        %v698 = vld [vmem:[#allocation13 + $0x28] sm:$0xff]
        %v699 = vld [vmem:[#allocation13 + $0x30] sm:$0xff]
        %v700 = vld [vmem:[#allocation13 + $0x38] sm:$0xff]
        %v701 = vld [vmem:[#allocation13 + $0x40] sm:$0xff]
        %v702 = vld [vmem:[#allocation13 + $0x48] sm:$0xff]
        %v703 = vld [vmem:[#allocation13 + $0x50] sm:$0xff]
        %v704 = vld [vmem:[#allocation13 + $0x58] sm:$0xff]
        %v705 = vld [vmem:[#allocation13 + $0x60] sm:$0xff]
        %v706 = vld [vmem:[#allocation13 + $0x68] sm:$0xff]
        %v707 = vld [vmem:[#allocation13 + $0x70] sm:$0xff]
        %v708 = vld [vmem:[#allocation13 + $0x78] sm:$0xff]
        %v709 = vld [vmem:[#allocation13 + $0x80] sm:$0xff]
        %v710 = vld [vmem:[#allocation13 + $0x88] sm:$0xff]
        %v711 = vld [vmem:[#allocation13 + $0x90] sm:$0xff]
        %v712 = vld [vmem:[#allocation13 + $0x98] sm:$0xff]
        %v713 = vld [vmem:[#allocation13 + $0xa0] sm:$0xff]
        %v714 = vld [vmem:[#allocation13 + $0xa8] sm:$0xff]
        %v715 = vld [vmem:[#allocation13 + $0xb0] sm:$0xff]
        %v716 = vld [vmem:[#allocation13 + $0xb8] sm:$0xff]
        %v717 = vld [vmem:[#allocation13 + $0xc0] sm:$0xff]
        %v718 = vld [vmem:[#allocation13 + $0xc8] sm:$0xff]
        %v719 = vld [vmem:[#allocation13 + $0xd0] sm:$0xff]
        %v720 = vld [vmem:[#allocation13 + $0xd8] sm:$0xff]
        %v721 = vld [vmem:[#allocation13 + $0xe0] sm:$0xff]
        %v722 = vld [vmem:[#allocation13 + $0xe8] sm:$0xff]
        %v723 = vld [vmem:[#allocation13 + $0xf0] sm:$0xff]
        %v724 = vld [vmem:[#allocation13 + $0xf8] sm:$0xff]
        %v725 = vld [vmem:[#allocation14] sm:$0x1]
        %v727 = vlaneseq
        %v728 = vshrl.u32 %v727, 7
        %v729 = vsub.s32 0, %v728
        %v730 = vrot.slane %v725, %v729
        %732 = vmatprep.subr.mxu0 0.0
        %733 = vmatpush1.msra.mxu0 %v693
        %734 = vmatprep.subr.mxu0 0.0
        %735 = vmatpush1.msra.mxu0 %v694
        %736 = vmatprep.subr.mxu0 0.0
        %737 = vmatpush1.msra.mxu0 %v695
        %738 = vmatprep.subr.mxu0 0.0
        %739 = vmatpush1.msra.mxu0 %v696
        %740 = vmatprep.subr.mxu0 0.0
        %741 = vmatpush1.msra.mxu0 %v697
        %742 = vmatprep.subr.mxu0 0.0
        %743 = vmatpush1.msra.mxu0 %v698
        %744 = vmatprep.subr.mxu0 0.0
        %745 = vmatpush1.msra.mxu0 %v699
        %746 = vmatprep.subr.mxu0 0.0
        %747 = vmatpush1.msra.mxu0 %v700
        %748 = vmatprep.subr.mxu0 0.0
        %749 = vmatpush1.msra.mxu0 %v701
        %750 = vmatprep.subr.mxu0 0.0
        %751 = vmatpush1.msra.mxu0 %v702
        %752 = vmatprep.subr.mxu0 0.0
        %753 = vmatpush1.msra.mxu0 %v703
        %754 = vmatprep.subr.mxu0 0.0
        %755 = vmatpush1.msra.mxu0 %v704
        %756 = vmatprep.subr.mxu0 0.0
        %757 = vmatpush1.msra.mxu0 %v705
        %758 = vmatprep.subr.mxu0 0.0
        %759 = vmatpush1.msra.mxu0 %v706
        %760 = vmatprep.subr.mxu0 0.0
        %761 = vmatpush1.msra.mxu0 %v707
        %762 = vmatprep.subr.mxu0 0.0
        %763 = vmatpush1.msra.mxu0 %v708
        %764 = vmatprep.subr.mxu0 0.0
        %765 = vmatpush1.msra.mxu0 %v709
        %766 = vmatprep.subr.mxu0 0.0
        %767 = vmatpush1.msra.mxu0 %v710
        %768 = vmatprep.subr.mxu0 0.0
        %769 = vmatpush1.msra.mxu0 %v711
        %770 = vmatprep.subr.mxu0 0.0
        %771 = vmatpush1.msra.mxu0 %v712
        %772 = vmatprep.subr.mxu0 0.0
        %773 = vmatpush1.msra.mxu0 %v713
        %774 = vmatprep.subr.mxu0 0.0
        %775 = vmatpush1.msra.mxu0 %v714
        %776 = vmatprep.subr.mxu0 0.0
        %777 = vmatpush1.msra.mxu0 %v715
        %778 = vmatprep.subr.mxu0 0.0
        %779 = vmatpush1.msra.mxu0 %v716
        %780 = vmatprep.subr.mxu0 0.0
        %781 = vmatpush1.msra.mxu0 %v717
        %782 = vmatprep.subr.mxu0 0.0
        %783 = vmatpush1.msra.mxu0 %v718
        %784 = vmatprep.subr.mxu0 0.0
        %785 = vmatpush1.msra.mxu0 %v719
        %786 = vmatprep.subr.mxu0 0.0
        %787 = vmatpush1.msra.mxu0 %v720
        %788 = vmatprep.subr.mxu0 0.0
        %789 = vmatpush1.msra.mxu0 %v721
        %790 = vmatprep.subr.mxu0 0.0
        %791 = vmatpush1.msra.mxu0 %v722
        %792 = vmatprep.subr.mxu0 0.0
        %793 = vmatpush1.msra.mxu0 %v723
        %794 = vmatprep.subr.mxu0 0.0
        %795 = vmatpush1.msra.mxu0 %v724
        %796 = vmatprep.mubr.f32.mxu0 %v690
        %797 = vmatmul.mubr.f32.gmra.mrb[0].mxu0 %v689
        %v798 = vpop.f32.mrb[0].mxu0
        %v799 = vadd.f32 %v730, %v798
        %v800 = vpop.f32.mrb[0].mxu0
        %801 = vmatprep.mubr.f32.mxu0 %v692
        %802 = vmatmul.mubr.f32.gmra.mrb[0].mxu0 %v691
        %v803 = vpop.f32.mrb[0].mxu0
        %v804 = vadd.f32 %v730, %v803
        %v805 = vpop.f32.mrb[0].mxu0
        %806 = vdwg.mxu0
        %v807 = vld [vmem:[%s434] sm:$0x1]
        %v809 = vlaneseq
        %v810 = vshrl.u32 %v809, 7
        %v811 = vsub.s32 0, %v810
        %v812 = vrot.slane %v807, %v811
        %v814 = vmul.f32 %v812, %v799
        %v815 = vmul.f32 %v812, %v804
        %v816 = vadd.f32 %v497, %v814
        %v817 = vadd.f32 %v498, %v815
        %818 = vst.msk [vmem:[%s494] sm:$0xff] %vm501, %v816
        %819 = vst.msk [vmem:[%s494 + $0x8] sm:$0xff] %vm501, %v817
        %s820 = sand.u32 %s245, 1
        %s821 = scalar_lea.sflag [#allocation4], %s820
        %s822 = sand.u32 %s245, 1
        %s823 = smul.addr %s822, 16
        %s824 = scalar_lea.vmem [#allocation16], %s823
        // Predicated region
        $region85: #{dit_forward.11} parent=51 // pred_check
          %p825 = pneg %p255
        $region86: #{dit_forward.11} parent=51 // pred_check_branch
          %827 = sbr.rel (%p825) target = $region88
        $region87: #{dit_forward.11} parent=51 // pred_region
          %s828 = smul.u32 2, %s38
          %s830 = ssub.s32 256, 256
          %831 = vsyncadd %s821, %s830
          %s832 = smul.addr %s37, 2
          %s833 = sadd.s32 %s828, %s832
          %s834 = smul.addr %s833, 128
          %s835 = scalar_lea.hbm %s8, %s834
          %s836 = sshll.u32 %s824, 4
          %s837 = int_to_ptr.vmem [resolvable:$true] %s836
          %842 = dma.vmem_to_hbm [thread:$0]  %s837, 256, %s835, %s821, 128, 128, 8
        $region88: #{dit_forward.11} parent=51 // pred_fallthru
          _
      $region52: #{dit_forward.11} parent=5 // pred_fallthru
        _
      %p843 = scmp.le.s32.totalorder 2, %s28
      // Predicated region
      $region89: #{dit_forward.11} parent=5 // pred_check
        %p844 = pneg %p843
      $region90: #{dit_forward.11} parent=5 // pred_check_branch
        %846 = sbr.rel (%p844) target = $region92
      $region91: #{dit_forward.11} parent=5 // pred_region
        %s847 = ssub.s32 %s28, 2
        // Predicated region
        $region93: #{dit_forward.11} parent=91 // pred_check
          %p848 = pneg %p261
        $region94: #{dit_forward.11} parent=91 // pred_check_branch
          %850 = sbr.rel (%p848) target = $region96
        $region95: #{dit_forward.11} parent=91 // pred_region
          %s851 = sand.u32 %s246, 1
          %s852 = scalar_lea.sflag [#allocation4], %s851
          %s853 = sand.u32 %s246, 1
          %s854 = smul.addr %s853, 16
          %s855 = scalar_lea.vmem [#allocation16], %s854
          %856 = dma.done %s852, 256
        $region96: #{dit_forward.11} parent=91 // pred_fallthru
          _
      $region92: #{dit_forward.11} parent=5 // pred_fallthru
        _
    $region6: #{dit_forward.11} parent=1 // loop_footer
      %s32 = sadd.s32 1, %s28
    $region7: #{dit_forward.11} parent=1 // loop_footer_branch
      %27 = sbr.rel target = $region3
    $region8: #{dit_forward.11} parent=1 // loop_exit
      _
    %857 = vsyncpa [#allocation3], 1
    %s858 = scalar_lea.sflag [#allocation3], 1
    %859 = vsyncpa %s858, 1
    %860 = vsyncpa [#allocation6], 1
    %s861 = scalar_lea.sflag [#allocation6], 1
    %862 = vsyncpa %s861, 1
    %863 = vsyncpa [#allocation9], 1
    %s864 = scalar_lea.sflag [#allocation9], 1
    %865 = vsyncpa %s864, 1
    %866 = vsyncpa [#allocation12], 1
    %867 = vsyncpa [#allocation15], 1
    %868 = vsyncpa [#allocation4], 1
    %s869 = scalar_lea.sflag [#allocation4], 1
    %870 = vsyncpa %s869, 1

// kernel: dit_forward.15
$region0: #{dit_forward.15}
  #allocation0 [shape = 'u32[]', space=smem, size = 0x4, offset = 0x4, fixed_abs, tag = 'smem constant byte address 0x4 - core index']
  #allocation1 [shape = 'u32[144,128]{1,0:T(1,128)}', space=vmem, size = 0x12000, scoped, tag = 'internal scratch']
  %s0 = inlined_call_operand.hbm [shape: f32[2,16,64], index: 0, kind: input, shape index: {}]
  %s1 = inlined_call_operand.hbm [shape: f32[2,1,64], index: 1, kind: input, shape index: {}]
  %s2 = inlined_call_operand.hbm [shape: f32[2,1,64], index: 2, kind: input, shape index: {}]
  %s3 = inlined_call_operand.hbm [shape: f32[64,128], index: 3, kind: input, shape index: {}]
  %s4 = inlined_call_operand.hbm [shape: f32[2,16,128], index: 4, kind: output, shape index: {}]
  %s5 = sld [smem:[#allocation0]]
  $region65: #{dit_forward.15} parent=0
    _
  %s7 = ssub.s32 1, %s5
  %s8 = scalar_select 0, %s7, %s5
  $region1: #{dit_forward.15} parent=0
    #allocation2 [shape = 'u8[16384]{0}', space=vmem, size = 0x4000, scoped, tag = 'input window, operand 0']
    #allocation3 [shape = 's32[2]{0}', space=sflag, size = 0x8, scoped, tag = 'scoped memory for dit_forward.15']
    #allocation4 [shape = 's32[2]{0}', space=sflag, size = 0x8, scoped, tag = 'scoped memory for dit_forward.15']
    #allocation5 [shape = 'u8[1024]{0}', space=vmem, size = 0x400, scoped, tag = 'input window, operand 1']
    #allocation6 [shape = 's32[2]{0}', space=sflag, size = 0x8, scoped, tag = 'scoped memory for dit_forward.15']
    #allocation7 [shape = 'u8[1024]{0}', space=vmem, size = 0x400, scoped, tag = 'input window, operand 2']
    #allocation8 [shape = 'u8[32768]{0}', space=vmem, size = 0x8000, scoped, tag = 'input window, operand 3, single buffered']
    #allocation9 [shape = 's32[1]{0}', space=sflag, size = 0x4, scoped, tag = 'scoped memory for dit_forward.15']
    #allocation10 [shape = 'u8[16384]{0}', space=vmem, size = 0x4000, scoped, tag = 'output window, operand 0']
    %9 = vsyncpa [#allocation3], 0
    %s10 = scalar_lea.sflag [#allocation3], 1
    %11 = vsyncpa %s10, 0
    %12 = vsyncpa [#allocation6], 0
    %s13 = scalar_lea.sflag [#allocation6], 1
    %14 = vsyncpa %s13, 0
    %15 = vsyncpa [#allocation9], 0
    %16 = vsyncpa [#allocation4], 0
    %s17 = scalar_lea.sflag [#allocation4], 1
    %18 = vsyncpa %s17, 0
    loop: start=0, step=1, limit=4
    $region2: #{dit_forward.15} parent=1 // loop_pre_header
      _
    $region3: #{dit_forward.15} parent=1 // loop_header
      %s20 = sphi 0, %s24
      %p21 = scmp.ge.s32.totalorder %s20, 4
      %s27 = sphi 0, %s39
      %s28 = sphi 0, %s35
      %s29 = sphi 0, %s27
      %s30 = sphi 0, %s28
      %s31 = sphi 0, %s29
      %s32 = sphi 0, %s30
      %s44 = sphi 0, %s46
      %s47 = sphi 0, %s44
      %s48 = sphi 0, %s47
      %s64 = sphi 0, %s48
      %s70 = sphi 0, %s72
      %s73 = sphi 0, %s70
      %s74 = sphi 0, %s73
      %s90 = sphi 0, %s74
      %s96 = sphi 0, %s98
      %s99 = sphi 0, %s96
      %s100 = sphi 0, %s99
      %s116 = sphi 0, %s100
      %s120 = sphi 0, %s120
      %s122 = sphi 0, %s120
      %s123 = sphi 0, %s122
      %s137 = sphi 0, %s123
      %s145 = sphi 0, %s147
      %s148 = sphi 0, %s145
      %s149 = sphi 0, %s148
      %s165 = sphi 0, %s149
    $region4: #{dit_forward.15} parent=1 // loop_header_branch
      %23 = sbr.rel (%p21) target = $region8
    $region5: #{dit_forward.15} parent=1 // loop_body
      %s25 = ssub.s32 %s20, 1
      %s26 = ssub.s32 %s20, 2
      %s33 = sadd.s32 1, %s28
      %p34 = scmp.ge.s32.totalorder %s33, 1
      %s35 = scalar_select %p34, 0, %s33
      %s36 = sadd.s32 1, %s27
      %s37 = scalar_select %p34, %s36, %s27
      %p38 = scmp.ge.s32.totalorder %s37, 2
      %s39 = scalar_select %p38, 0, %s37
      %s40 = ssub.s32 %s27, %s39
      %s41 = ssub.s32 %s28, %s35
      %s42 = sor.u32 %s40, %s41
      %p43 = scmp.eq.s32.totalorder %s42, 0
      %s45 = sadd.s32 %s44, 1
      %s46 = scalar_select %p43, %s44, %s45
      %p49 = pneg %p43
      %p50 = scmp.eq.s32.totalorder %s20, 1
      %p51 = por %p49, %p50
      %p52 = scmp.ne.s32.totalorder %s44, %s47
      %p53 = scmp.eq.s32.totalorder %s20, 0
      %p54 = por %p52, %p53
      %p55 = scmp.ne.s32.totalorder %s44, %s47
      %p56 = scmp.eq.s32.totalorder %s25, 1
      %p57 = por %p55, %p56
      %p58 = scmp.ne.s32.totalorder %s47, %s48
      %p59 = scmp.eq.s32.totalorder %s25, 0
      %p60 = por %p58, %p59
      %p61 = scmp.ne.s32.totalorder %s47, %s48
      %p62 = scmp.eq.s32.totalorder %s26, 1
      %p63 = por %p61, %p62
      %p65 = scmp.ne.s32.totalorder %s48, %s64
      %p66 = scmp.eq.s32.totalorder %s26, 0
      %p67 = por %p65, %p66
      %s68 = ssub.s32 %s27, %s39
      %p69 = scmp.eq.s32.totalorder %s68, 0
      %s71 = sadd.s32 %s70, 1
      %s72 = scalar_select %p69, %s70, %s71
      %p75 = pneg %p69
      %p76 = scmp.eq.s32.totalorder %s20, 1
      %p77 = por %p75, %p76
      %p78 = scmp.ne.s32.totalorder %s70, %s73
      %p79 = scmp.eq.s32.totalorder %s20, 0
      %p80 = por %p78, %p79
      %p81 = scmp.ne.s32.totalorder %s70, %s73
      %p82 = scmp.eq.s32.totalorder %s25, 1
      %p83 = por %p81, %p82
      %p84 = scmp.ne.s32.totalorder %s73, %s74
      %p85 = scmp.eq.s32.totalorder %s25, 0
      %p86 = por %p84, %p85
      %p87 = scmp.ne.s32.totalorder %s73, %s74
      %p88 = scmp.eq.s32.totalorder %s26, 1
      %p89 = por %p87, %p88
      %p91 = scmp.ne.s32.totalorder %s74, %s90
      %p92 = scmp.eq.s32.totalorder %s26, 0
      %p93 = por %p91, %p92
      %s94 = ssub.s32 %s27, %s39
      %p95 = scmp.eq.s32.totalorder %s94, 0
      %s97 = sadd.s32 %s96, 1
      %s98 = scalar_select %p95, %s96, %s97
      %p101 = pneg %p95
      %p102 = scmp.eq.s32.totalorder %s20, 1
      %p103 = por %p101, %p102
      %p104 = scmp.ne.s32.totalorder %s96, %s99
      %p105 = scmp.eq.s32.totalorder %s20, 0
      %p106 = por %p104, %p105
      %p107 = scmp.ne.s32.totalorder %s96, %s99
      %p108 = scmp.eq.s32.totalorder %s25, 1
      %p109 = por %p107, %p108
      %p110 = scmp.ne.s32.totalorder %s99, %s100
      %p111 = scmp.eq.s32.totalorder %s25, 0
      %p112 = por %p110, %p111
      %p113 = scmp.ne.s32.totalorder %s99, %s100
      %p114 = scmp.eq.s32.totalorder %s26, 1
      %p115 = por %p113, %p114
      %p117 = scmp.ne.s32.totalorder %s100, %s116
      %p118 = scmp.eq.s32.totalorder %s26, 0
      %p119 = por %p117, %p118
      %s121 = sadd.s32 %s120, 1
      %p124 = scmp.eq.s32.totalorder %s20, 1
      %p125 = scmp.ne.s32.totalorder %s120, %s122
      %p126 = scmp.eq.s32.totalorder %s20, 0
      %p127 = por %p125, %p126
      %p128 = scmp.ne.s32.totalorder %s120, %s122
      %p129 = scmp.eq.s32.totalorder %s25, 1
      %p130 = por %p128, %p129
      %p131 = scmp.ne.s32.totalorder %s122, %s123
      %p132 = scmp.eq.s32.totalorder %s25, 0
      %p133 = por %p131, %p132
      %p134 = scmp.ne.s32.totalorder %s122, %s123
      %p135 = scmp.eq.s32.totalorder %s26, 1
      %p136 = por %p134, %p135
      %p138 = scmp.ne.s32.totalorder %s123, %s137
      %p139 = scmp.eq.s32.totalorder %s26, 0
      %p140 = por %p138, %p139
      %s141 = ssub.s32 %s27, %s39
      %s142 = ssub.s32 %s28, %s35
      %s143 = sor.u32 %s141, %s142
      %p144 = scmp.eq.s32.totalorder %s143, 0
      %s146 = sadd.s32 %s145, 1
      %s147 = scalar_select %p144, %s145, %s146
      %p150 = pneg %p144
      %p151 = scmp.eq.s32.totalorder %s20, 1
      %p152 = por %p150, %p151
      %p153 = scmp.ne.s32.totalorder %s145, %s148
      %p154 = scmp.eq.s32.totalorder %s20, 0
      %p155 = por %p153, %p154
      %p156 = scmp.ne.s32.totalorder %s145, %s148
      %p157 = scmp.eq.s32.totalorder %s25, 1
      %p158 = por %p156, %p157
      %p159 = scmp.ne.s32.totalorder %s148, %s149
      %p160 = scmp.eq.s32.totalorder %s25, 0
      %p161 = por %p159, %p160
      %p162 = scmp.ne.s32.totalorder %s148, %s149
      %p163 = scmp.eq.s32.totalorder %s26, 1
      %p164 = por %p162, %p163
      %p166 = scmp.ne.s32.totalorder %s149, %s165
      %p167 = scmp.eq.s32.totalorder %s26, 0
      %p168 = por %p166, %p167
      %p169 = scmp.le.s32.totalorder 1, %s20
      %p170 = scmp.lt.s32.totalorder %s20, 3
      %p171 = pnand %p169, %p170
      %p172 = pneg %p171
      // Predicated region
      $region9: #{dit_forward.15} parent=5 // pred_check
        _
      $region10: #{dit_forward.15} parent=5 // pred_check_branch
        %174 = sbr.rel (%p171) target = $region12
      $region11: #{dit_forward.15} parent=5 // pred_region
        %s175 = ssub.s32 %s20, 1
        // Predicated region
        $region13: #{dit_forward.15} parent=11 // pred_check
          %p176 = pneg %p133
        $region14: #{dit_forward.15} parent=11 // pred_check_branch
          %178 = sbr.rel (%p176) target = $region16
        $region15: #{dit_forward.15} parent=11 // pred_region
          %s180 = ssub.s32 1024, 1024
          %181 = vsyncadd [#allocation9], %s180
          %s182 = sshll.u32 [#allocation8], 4
          %s183 = int_to_ptr.vmem [resolvable:$true] %s182
          %188 = dma.hbm_to_vmem [thread:$0]  %s3, 1024, %s183, [#allocation9], 128, 128, 8
        $region16: #{dit_forward.15} parent=11 // pred_fallthru
          _
      $region12: #{dit_forward.15} parent=5 // pred_fallthru
        _
      %p189 = scmp.lt.s32.totalorder %s20, 2
      // Predicated region
      $region17: #{dit_forward.15} parent=5 // pred_check
        %p190 = pneg %p189
      $region18: #{dit_forward.15} parent=5 // pred_check_branch
        %192 = sbr.rel (%p190) target = $region20
      $region19: #{dit_forward.15} parent=5 // pred_region
        // Predicated region
        $region21: #{dit_forward.15} parent=19 // pred_check
          %p193 = pneg %p54
        $region22: #{dit_forward.15} parent=19 // pred_check_branch
          %195 = sbr.rel (%p193) target = $region24
        $region23: #{dit_forward.15} parent=19 // pred_region
          %s196 = sand.u32 %s44, 1
          %s197 = scalar_lea.sflag [#allocation3], %s196
          %s198 = sand.u32 %s44, 1
          %s199 = smul.addr %s198, 16
          %s200 = scalar_lea.vmem [#allocation2], %s199
          %s201 = smul.u32 2, %s28
          %s203 = ssub.s32 256, 256
          %204 = vsyncadd %s197, %s203
          %s205 = smul.addr %s27, 2
          %s206 = sadd.s32 %s201, %s205
          %s207 = smul.addr %s206, 128
          %s208 = scalar_lea.hbm %s0, %s207
          %s209 = sshll.u32 %s200, 4
          %s210 = int_to_ptr.vmem [resolvable:$true] %s209
          %215 = dma.hbm_to_vmem [thread:$0]  %s208, 256, %s210, %s197, 128, 128, 8
        $region24: #{dit_forward.15} parent=19 // pred_fallthru
          _
        // Predicated region
        $region25: #{dit_forward.15} parent=19 // pred_check
          %p216 = pneg %p80
        $region26: #{dit_forward.15} parent=19 // pred_check_branch
          %218 = sbr.rel (%p216) target = $region28
        $region27: #{dit_forward.15} parent=19 // pred_region
          %s219 = sand.u32 %s20, 1
          %s220 = scalar_lea.sflag [#allocation6], %s219
          %s221 = sand.u32 %s70, 1
          %s222 = scalar_lea.vmem [#allocation5], %s221
          %s224 = ssub.s32 16, 16
          %225 = vsyncadd %s220, %s224
          %s226 = smul.addr %s27, 16
          %s227 = scalar_lea.hbm %s1, %s226
          %s229 = sshll.u32 %s222, 4
          %s230 = int_to_ptr.vmem [resolvable:$true] %s229
          %232 = dma.hbm_to_vmem [thread:$0]  %s227, 16, %s230, %s220
        $region28: #{dit_forward.15} parent=19 // pred_fallthru
          _
        // Predicated region
        $region29: #{dit_forward.15} parent=19 // pred_check
          %p233 = pneg %p106
        $region30: #{dit_forward.15} parent=19 // pred_check_branch
          %235 = sbr.rel (%p233) target = $region32
        $region31: #{dit_forward.15} parent=19 // pred_region
          %s236 = sand.u32 %s20, 1
          %s237 = scalar_lea.sflag [#allocation6], %s236
          %s238 = sand.u32 %s96, 1
          %s239 = scalar_lea.vmem [#allocation7], %s238
          %s241 = ssub.s32 16, 16
          %242 = vsyncadd %s237, %s241
          %s243 = smul.addr %s27, 16
          %s244 = scalar_lea.hbm %s2, %s243
          %s246 = sshll.u32 %s239, 4
          %s247 = int_to_ptr.vmem [resolvable:$true] %s246
          %249 = dma.hbm_to_vmem [thread:$0]  %s244, 16, %s247, %s237
        $region32: #{dit_forward.15} parent=19 // pred_fallthru
          _
      $region20: #{dit_forward.15} parent=5 // pred_fallthru
        _
      %p250 = scmp.le.s32.totalorder 1, %s20
      %p251 = scmp.lt.s32.totalorder %s20, 3
      %p252 = pnand %p250, %p251
      %p253 = pneg %p252
      // Predicated region
      $region33: #{dit_forward.15} parent=5 // pred_check
        _
      $region34: #{dit_forward.15} parent=5 // pred_check_branch
        %255 = sbr.rel (%p252) target = $region36
      $region35: #{dit_forward.15} parent=5 // pred_region
        %s256 = ssub.s32 %s20, 1
        %s257 = sand.u32 %s47, 1
        %s258 = scalar_lea.sflag [#allocation3], %s257
        %s259 = sand.u32 %s47, 1
        %s260 = smul.addr %s259, 16
        %s261 = scalar_lea.vmem [#allocation2], %s260
        // Predicated region
        $region37: #{dit_forward.15} parent=35 // pred_check
          %p262 = pneg %p60
        $region38: #{dit_forward.15} parent=35 // pred_check_branch
          %264 = sbr.rel (%p262) target = $region40
        $region39: #{dit_forward.15} parent=35 // pred_region
          %265 = dma.done %s258, 256
        $region40: #{dit_forward.15} parent=35 // pred_fallthru
          _
        %s266 = sand.u32 %s25, 1
        %s267 = scalar_lea.sflag [#allocation6], %s266
        %s268 = sand.u32 %s73, 1
        %s269 = scalar_lea.vmem [#allocation5], %s268
        // Predicated region
        $region41: #{dit_forward.15} parent=35 // pred_check
          %p270 = pneg %p86
        $region42: #{dit_forward.15} parent=35 // pred_check_branch
          %272 = sbr.rel (%p270) target = $region44
        $region43: #{dit_forward.15} parent=35 // pred_region
          %273 = dma.done %s267, 16
        $region44: #{dit_forward.15} parent=35 // pred_fallthru
          _
        %s274 = sand.u32 %s25, 1
        %s275 = scalar_lea.sflag [#allocation6], %s274
        %s276 = sand.u32 %s99, 1
        %s277 = scalar_lea.vmem [#allocation7], %s276
        // Predicated region
        $region45: #{dit_forward.15} parent=35 // pred_check
          %p278 = pneg %p112
        $region46: #{dit_forward.15} parent=35 // pred_check_branch
          %280 = sbr.rel (%p278) target = $region48
        $region47: #{dit_forward.15} parent=35 // pred_region
          %281 = dma.done %s275, 16
        $region48: #{dit_forward.15} parent=35 // pred_fallthru
          _
        // Predicated region
        $region49: #{dit_forward.15} parent=35 // pred_check
          %p282 = pneg %p133
        $region50: #{dit_forward.15} parent=35 // pred_check_branch
          %284 = sbr.rel (%p282) target = $region52
        $region51: #{dit_forward.15} parent=35 // pred_region
          %285 = dma.done [#allocation9], 1024
        $region52: #{dit_forward.15} parent=35 // pred_fallthru
          _
        %s286 = sand.u32 %s47, 1
        %s287 = scalar_lea.sflag [#allocation3], %s286
        %s288 = sand.u32 %s47, 1
        %s289 = smul.addr %s288, 16
        %s290 = scalar_lea.vmem [#allocation2], %s289
        %p291 = pneg %p60
        %p292 = pneg %p57
        %s293 = sand.u32 %s25, 1
        %s294 = scalar_lea.sflag [#allocation6], %s293
        %s295 = sand.u32 %s73, 1
        %s296 = scalar_lea.vmem [#allocation5], %s295
        %p297 = pneg %p86
        %p298 = pneg %p83
        %s299 = sand.u32 %s25, 1
        %s300 = scalar_lea.sflag [#allocation6], %s299
        %s301 = sand.u32 %s99, 1
        %s302 = scalar_lea.vmem [#allocation7], %s301
        %p303 = pneg %p112
        %p304 = pneg %p109
        %p305 = pneg %p133
        %p306 = pneg %p130
        %p307 = pneg %p161
        %p308 = pneg %p158
        %s309 = sand.u32 %s148, 1
        %s310 = scalar_lea.sflag [#allocation4], %s309
        %s311 = sand.u32 %s148, 1
        %s312 = smul.addr %s311, 16
        %s313 = scalar_lea.vmem [#allocation10], %s312
        %s314 = smul.u32 2, %s30
        %s315 = smul.u32 2, %s30
        %v316 = vld [vmem:[%s261] sm:$0xff]
        %v317 = vld [vmem:[%s261 + $0x8] sm:$0xff]
        %v318 = vld [vmem:[%s269] sm:$0x1]
        %v319 = vld [vmem:[%s277] sm:$0x1]
        %vm320 = vcmask 523264
        %v321 = vsel %vm320, %v316, 0.0
        %322 = vadd.xlane.f32.xlu0 %v321
        %v323 = vpop.xlane.xlu0 %322
        %v324 = vsel %vm320, %v317, 0.0
        %325 = vadd.xlane.f32.xlu0 %v324
        %v326 = vpop.xlane.xlu0 %325
        %v327 = vrcp.pop 64.0
        %v328 = vmul.f32 %v323, %v327
        %v329 = vmul.f32 %v326, %v327
        %v330 = vsub.f32 %v316, %v328
        %v331 = vsub.f32 %v317, %v329
        %v332 = vmul.f32 %v330, %v330
        %v333 = vmul.f32 %v331, %v331
        %v334 = vsel %vm320, %v332, 0.0
        %335 = vadd.xlane.f32.xlu0 %v334
        %v336 = vpop.xlane.xlu0 %335
        %v337 = vsel %vm320, %v333, 0.0
        %338 = vadd.xlane.f32.xlu0 %v337
        %v339 = vpop.xlane.xlu0 %338
        %v340 = vmul.f32 %v336, %v327
        %v341 = vmul.f32 %v339, %v327
        %v342 = vadd.f32 %v340, 1e-06
        %v343 = vadd.f32 %v341, 1e-06
        %v344 = vrsqrt.pop %v342
        %v345 = vrsqrt.pop %v343
        %v346 = vmul.f32 %v330, %v344
        %v347 = vmul.f32 %v331, %v345
        %v348 = vadd.f32 %v318, 1.0
        %v350 = vlaneseq
        %v351 = vshrl.u32 %v350, 7
        %v352 = vsub.s32 0, %v351
        %v353 = vrot.slane %v348, %v352
        %v355 = vmul.f32 %v346, %v353
        %v356 = vmul.f32 %v347, %v353
        %v358 = vlaneseq
        %v359 = vshrl.u32 %v358, 7
        %v360 = vsub.s32 0, %v359
        %v361 = vrot.slane %v319, %v360
        %v363 = vadd.f32 %v355, %v361
        %v364 = vadd.f32 %v356, %v361
        %v365 = vld [vmem:[#allocation8] sm:$0xff]
        %v366 = vld [vmem:[#allocation8 + $0x8] sm:$0xff]
        %v367 = vld [vmem:[#allocation8 + $0x10] sm:$0xff]
        %v368 = vld [vmem:[#allocation8 + $0x18] sm:$0xff]
        %v369 = vld [vmem:[#allocation8 + $0x20] sm:$0xff]
        %v370 = vld [vmem:[#allocation8 + $0x28] sm:$0xff]
        %v371 = vld [vmem:[#allocation8 + $0x30] sm:$0xff]
        %v372 = vld [vmem:[#allocation8 + $0x38] sm:$0xff]
        %v374 = vsel %vm320, %v363, 0
        %v377 = vsel %vm320, %v364, 0
        %379 = vmatprep.subr.mxu0 0.0
        %380 = vmatpush1.msra.mxu0 %v365
        %381 = vmatprep.subr.mxu0 0.0
        %382 = vmatpush1.msra.mxu0 %v366
        %383 = vmatprep.subr.mxu0 0.0
        %384 = vmatpush1.msra.mxu0 %v367
        %385 = vmatprep.subr.mxu0 0.0
        %386 = vmatpush1.msra.mxu0 %v368
        %387 = vmatprep.subr.mxu0 0.0
        %388 = vmatpush1.msra.mxu0 %v369
        %389 = vmatprep.subr.mxu0 0.0
        %390 = vmatpush1.msra.mxu0 %v370
        %391 = vmatprep.subr.mxu0 0.0
        %392 = vmatpush1.msra.mxu0 %v371
        %393 = vmatprep.subr.mxu0 0.0
        %394 = vmatpush1.msra.mxu0 %v372
        %395 = vmatprep.subr.mxu0 0.0
        %396 = vmatpush1.msra.mxu0 0.0
        %397 = vmatprep.subr.mxu0 0.0
        %398 = vmatpush1.msra.mxu0 0.0
        %399 = vmatprep.subr.mxu0 0.0
        %400 = vmatpush1.msra.mxu0 0.0
        %401 = vmatprep.subr.mxu0 0.0
        %402 = vmatpush1.msra.mxu0 0.0
        %403 = vmatprep.subr.mxu0 0.0
        %404 = vmatpush1.msra.mxu0 0.0
        %405 = vmatprep.subr.mxu0 0.0
        %406 = vmatpush1.msra.mxu0 0.0
        %407 = vmatprep.subr.mxu0 0.0
        %408 = vmatpush1.msra.mxu0 0.0
        %409 = vmatprep.subr.mxu0 0.0
        %410 = vmatpush1.msra.mxu0 0.0
        %411 = vmatprep.subr.mxu0 0.0
        %412 = vmatpush1.msra.mxu0 0.0
        %413 = vmatprep.subr.mxu0 0.0
        %414 = vmatpush1.msra.mxu0 0.0
        %415 = vmatprep.subr.mxu0 0.0
        %416 = vmatpush1.msra.mxu0 0.0
        %417 = vmatprep.subr.mxu0 0.0
        %418 = vmatpush1.msra.mxu0 0.0
        %419 = vmatprep.subr.mxu0 0.0
        %420 = vmatpush1.msra.mxu0 0.0
        %421 = vmatprep.subr.mxu0 0.0
        %422 = vmatpush1.msra.mxu0 0.0
        %423 = vmatprep.subr.mxu0 0.0
        %424 = vmatpush1.msra.mxu0 0.0
        %425 = vmatprep.subr.mxu0 0.0
        %426 = vmatpush1.msra.mxu0 0.0
        %427 = vmatprep.subr.mxu0 0.0
        %428 = vmatpush1.msra.mxu0 0.0
        %429 = vmatprep.subr.mxu0 0.0
        %430 = vmatpush1.msra.mxu0 0.0
        %431 = vmatprep.subr.mxu0 0.0
        %432 = vmatpush1.msra.mxu0 0.0
        %433 = vmatprep.subr.mxu0 0.0
        %434 = vmatpush1.msra.mxu0 0.0
        %435 = vmatprep.subr.mxu0 0.0
        %436 = vmatpush1.msra.mxu0 0.0
        %437 = vmatprep.subr.mxu0 0.0
        %438 = vmatpush1.msra.mxu0 0.0
        %439 = vmatprep.subr.mxu0 0.0
        %440 = vmatpush1.msra.mxu0 0.0
        %441 = vmatprep.subr.mxu0 0.0
        %442 = vmatpush1.msra.mxu0 0.0
        %443 = vmatprep.mubr.f32.mxu0 0.0
        %444 = vmatmul.mubr.f32.gmra.mrb[0].mxu0 %v374
        %v445 = vpop.f32.mrb[0].mxu0
        %v446 = vadd.f32 0.0, %v445
        %v447 = vpop.f32.mrb[0].mxu0
        %448 = vmatprep.mubr.f32.mxu0 0.0
        %449 = vmatmul.mubr.f32.gmra.mrb[0].mxu0 %v377
        %v450 = vpop.f32.mrb[0].mxu0
        %v451 = vadd.f32 0.0, %v450
        %v452 = vpop.f32.mrb[0].mxu0
        %453 = vdwg.mxu0
        %454 = vst [vmem:[%s313] sm:$0xff] %v446
        %455 = vst [vmem:[%s313 + $0x8] sm:$0xff] %v451
        %s456 = sand.u32 %s148, 1
        %s457 = scalar_lea.sflag [#allocation4], %s456
        %s458 = sand.u32 %s148, 1
        %s459 = smul.addr %s458, 16
        %s460 = scalar_lea.vmem [#allocation10], %s459
        // Predicated region
        $region53: #{dit_forward.15} parent=35 // pred_check
          %p461 = pneg %p158
        $region54: #{dit_forward.15} parent=35 // pred_check_branch
          %463 = sbr.rel (%p461) target = $region56
        $region55: #{dit_forward.15} parent=35 // pred_region
          %s464 = smul.u32 2, %s30
          %s466 = ssub.s32 256, 256
          %467 = vsyncadd %s457, %s466
          %s468 = smul.addr %s29, 2
          %s469 = sadd.s32 %s464, %s468
          %s470 = smul.addr %s469, 128
          %s471 = scalar_lea.hbm %s4, %s470
          %s472 = sshll.u32 %s460, 4
          %s473 = int_to_ptr.vmem [resolvable:$true] %s472
          %478 = dma.vmem_to_hbm [thread:$0]  %s473, 256, %s471, %s457, 128, 128, 8
        $region56: #{dit_forward.15} parent=35 // pred_fallthru
          _
      $region36: #{dit_forward.15} parent=5 // pred_fallthru
        _
      %p479 = scmp.le.s32.totalorder 2, %s20
      // Predicated region
      $region57: #{dit_forward.15} parent=5 // pred_check
        %p480 = pneg %p479
      $region58: #{dit_forward.15} parent=5 // pred_check_branch
        %482 = sbr.rel (%p480) target = $region60
      $region59: #{dit_forward.15} parent=5 // pred_region
        %s483 = ssub.s32 %s20, 2
        // Predicated region
        $region61: #{dit_forward.15} parent=59 // pred_check
          %p484 = pneg %p164
        $region62: #{dit_forward.15} parent=59 // pred_check_branch
          %486 = sbr.rel (%p484) target = $region64
        $region63: #{dit_forward.15} parent=59 // pred_region
          %s487 = sand.u32 %s149, 1
          %s488 = scalar_lea.sflag [#allocation4], %s487
          %s489 = sand.u32 %s149, 1
          %s490 = smul.addr %s489, 16
          %s491 = scalar_lea.vmem [#allocation10], %s490
          %492 = dma.done %s488, 256
        $region64: #{dit_forward.15} parent=59 // pred_fallthru
          _
      $region60: #{dit_forward.15} parent=5 // pred_fallthru
        _
    $region6: #{dit_forward.15} parent=1 // loop_footer
      %s24 = sadd.s32 1, %s20
    $region7: #{dit_forward.15} parent=1 // loop_footer_branch
      %19 = sbr.rel target = $region3
    $region8: #{dit_forward.15} parent=1 // loop_exit
      _
    %493 = vsyncpa [#allocation3], 1
    %s494 = scalar_lea.sflag [#allocation3], 1
    %495 = vsyncpa %s494, 1
    %496 = vsyncpa [#allocation6], 1
    %s497 = scalar_lea.sflag [#allocation6], 1
    %498 = vsyncpa %s497, 1
    %499 = vsyncpa [#allocation9], 1
    %500 = vsyncpa [#allocation4], 1
    %s501 = scalar_lea.sflag [#allocation4], 1
    %502 = vsyncpa %s501, 1

</llo_original>
